<compile_context>
chip_gen: v6e
topology: v6e:2x2x1
jax: 0.10.0
libtpu: 0.0.40
codegen_flags: <defaults>
</compile_context>

<pallas_src>
import functools

import jax
import jax.numpy as jnp
from jax import lax
from jax.experimental import pallas as pl
from jax.experimental.pallas import tpu as pltpu


def _round_up(x, m):
    return (x + m - 1) // m * m


def _vmem_capacity_bytes():
    try:
        return int(pltpu.get_tpu_info().vmem_capacity_bytes)
    except Exception:
        return 64 * 1024 * 1024          # conservative: v7x per-core VMEM


_ACC_BUDGET = 2 * 1024 * 1024            # f32 accumulator bytes per conv row chunk


# ---------------------------------------------------------------------------
# Tiled matmul + bias + optional ReLU (the two Linear layers).
# grid = (k_split, M, N, K); K is the "arbitrary" reduction axis, the leading
# k_split axis is "parallel" so the huge-K encoder fc uses both TensorCores.
# ---------------------------------------------------------------------------
def _matmul_kernel(x_ref, w_ref, b_ref, o_ref, acc_ref, *, relu, fuse_epilogue):
    @pl.when(pl.program_id(3) == 0)
    def _init():
        acc_ref[...] = jnp.zeros_like(acc_ref)

    acc_ref[...] += jnp.dot(x_ref[...], w_ref[...],
                            preferred_element_type=jnp.float32)

    @pl.when(pl.program_id(3) == pl.num_programs(3) - 1)
    def _finalize():
        acc = acc_ref[...]
        if fuse_epilogue:
            acc = acc + b_ref[...]          # (1, tn) bias broadcasts
            if relu:
                acc = jnp.maximum(acc, 0.0)
        o_ref[0] = acc.astype(o_ref.dtype)


def matmul_bias_act(x, w, b, *, relu, out_dtype=jnp.float32, k_split=1,
                    tm_cap=256, tn_cap=4096, tk_cap=8192):
    """y = relu?(x @ w + b).  x: (M, K), w: (K, N), b: (N,).
    bf16 MXU operands, f32 accumulation, adaptive tiles under a VMEM budget."""
    M, K = x.shape
    K2, N = w.shape
    assert K == K2

    tm = min(_round_up(M, 8), tm_cap)
    tk = min(tk_cap, _round_up(-(-K // k_split), 128))
    tn = min(tn_cap, _round_up(N, 128))
    out_bytes = jnp.dtype(out_dtype).itemsize

    def footprint(tk_, tn_):
        # double-buffered x/w/b blocks + f32 accumulator + double-buffered out
        return (2 * tm * tk_ * 2 + 2 * tk_ * tn_ * 2 + 2 * tn_ * 4
                + tm * tn_ * 4 + 2 * tm * tn_ * out_bytes)

    vmem_cap = _vmem_capacity_bytes()
    budget = min(int(0.40 * vmem_cap), 48 * 1024 * 1024)
    while footprint(tk, tn) > budget and max(tk, tn) > 128:
        if tk >= tn:
            tk = max(128, tk // 2)
        else:
            tn = max(128, tn // 2)

    Mp = _round_up(M, tm)
    Np = _round_up(N, tn)
    Kp = _round_up(K, tk * k_split)
    nks = Kp // (tk * k_split)            # K steps per split
    fuse = (k_split == 1)

    xp = jnp.pad(x.astype(jnp.bfloat16), ((0, Mp - M), (0, Kp - K)))
    wp = jnp.pad(w.astype(jnp.bfloat16), ((0, Kp - K), (0, Np - N)))
    bp = jnp.pad(b.astype(jnp.float32), (0, Np - N)).reshape(1, Np)

    vmem_limit = min(int(0.90 * vmem_cap),
                     max(32 * 1024 * 1024, int(1.5 * footprint(tk, tn))))

    # TODO(synk): optional pipeline_mode=pl.Buffered(3) on the weight stream and
    # int8/fp8 weight quantization are further (generation-specific) wins.
    out = pl.pallas_call(
        functools.partial(_matmul_kernel, relu=relu, fuse_epilogue=fuse),
        out_shape=jax.ShapeDtypeStruct(
            (k_split, Mp, Np), out_dtype if fuse else jnp.float32),
        grid=(k_split, Mp // tm, Np // tn, nks),
        in_specs=[
            pl.BlockSpec((tm, tk), lambda s, i, j, k: (i, s * nks + k)),
            pl.BlockSpec((tk, tn), lambda s, i, j, k: (s * nks + k, j)),
            pl.BlockSpec((1, tn), lambda s, i, j, k: (0, j)),
        ],
        out_specs=pl.BlockSpec((1, tm, tn), lambda s, i, j, k: (s, i, j)),
        scratch_shapes=[pltpu.VMEM((tm, tn), jnp.float32)],
        compiler_params=pltpu.CompilerParams(
            dimension_semantics=("parallel", "parallel", "parallel", "arbitrary"),
            vmem_limit_bytes=vmem_limit),
    )(xp, wp, bp)

    if fuse:
        return out[0, :M, :N]
    res = out.sum(axis=0)[:M, :N] + b.astype(jnp.float32)[None, :]
    if relu:
        res = jnp.maximum(res, 0.0)
    return res.astype(out_dtype)


# ---------------------------------------------------------------------------
# Fused Conv2d(kernel=3, stride=2, padding=1) + bias + ReLU.
# Input is the padded activation split into 4 parity phases, packed on the
# channel axis (width 4*C).  Taps with the same (row, col) offset are merged
# into single MXU dots:
#   aligned (C % 128 == 0): 5 dots, K = 4C / 2C / C / C / C  (exact, 9C total)
#   unaligned (conv1, C=3): 4 dots, K = 4C each with zero-padded weight rows
#                           (avoids non-lane-aligned channel slices).
# ---------------------------------------------------------------------------
def _conv_kernel(x_ref, w_ref, b_ref, o_ref, *, C, OH, OW, relu, row_chunk,
                 aligned):
    coutp = o_ref.shape[-1]
    bias = b_ref[...]
    if aligned:
        w00 = w_ref[0:4].reshape(4 * C, coutp)   # taps (0,0),(0,1),(1,0),(1,1)
        w10 = w_ref[4:6].reshape(2 * C, coutp)   # taps (2,0),(2,1)
        w01a, w01b, w11 = w_ref[6], w_ref[7], w_ref[8]
    else:
        wg = [w_ref[g] for g in range(4)]        # 4 x (4C, coutp)

    for r0 in range(0, OH, row_chunk):
        rows = min(row_chunk, OH - r0)

        def win(ri, rj, lo, hi, _r0=r0, _rows=rows):
            return x_ref[0, _r0 + ri:_r0 + ri + _rows, rj:rj + OW,
                         lo:hi].reshape(_rows * OW, hi - lo)

        if aligned:
            acc = jnp.dot(win(0, 0, 0, 4 * C), w00,
                          preferred_element_type=jnp.float32)
            acc += jnp.dot(win(1, 0, 0, 2 * C), w10,
                           preferred_element_type=jnp.float32)
            acc += jnp.dot(win(0, 1, 0, C), w01a,
                           preferred_element_type=jnp.float32)
            acc += jnp.dot(win(0, 1, 2 * C, 3 * C), w01b,
                           preferred_element_type=jnp.float32)
            acc += jnp.dot(win(1, 1, 0, C), w11,
                           preferred_element_type=jnp.float32)
        else:
            acc = None
            for g, (ri, rj) in enumerate(((0, 0), (0, 1), (1, 0), (1, 1))):
                term = jnp.dot(win(ri, rj, 0, 4 * C), wg[g],
                               preferred_element_type=jnp.float32)
                acc = term if acc is None else acc + term
        acc = acc + bias
        if relu:
            acc = jnp.maximum(acc, 0.0)
        o_ref[0, r0:r0 + rows] = acc.reshape(rows, OW, coutp).astype(o_ref.dtype)


def conv2d_s2p1(x_nhwc, w_oihw, b, *, relu=True, out_dtype=jnp.bfloat16):
    N, H, W, C = x_nhwc.shape
    Cout, Cin, kH, kW = w_oihw.shape
    assert (kH, kW) == (3, 3) and H % 2 == 0 and W % 2 == 0
    assert C >= Cin          # padded activation channels must be zero
    OH, OW = H // 2, W // 2
    Coutp = _round_up(Cout, 128)
    aligned = (C % 128 == 0)

    # Channel-packed parity split of the zero-padded input:
    # packed[n, r, c, p*C:(p+1)*C] = xpad[n, 2r+pi, 2c+pj, :], p = pi*2 + pj.
    xp = jnp.pad(x_nhwc.astype(jnp.bfloat16), ((0, 0), (1, 1), (1, 1), (0, 0)))
    packed = jnp.stack([xp[:, pi::2, pj::2, :] for pi in (0, 1) for pj in (0, 1)],
                       axis=3).reshape(N, OH + 1, OW + 1, 4 * C)

    wt = jnp.transpose(w_oihw, (2, 3, 1, 0))            # (kh, kw, Cin, Cout)
    wt = jnp.pad(wt, ((0, 0), (0, 0), (0, C - Cin), (0, Coutp - Cout)))
    if aligned:
        order = [(0, 0), (0, 1), (1, 0), (1, 1), (2, 0), (2, 1),
                 (0, 2), (1, 2), (2, 2)]
        w_pack = jnp.stack([wt[di, dj] for di, dj in order])     # (9, C, Coutp)
        w_shape = (9, C, Coutp)
    else:
        zero = jnp.zeros_like(wt[0, 0])
        groups = [
            [wt[0, 0], wt[0, 1], wt[1, 0], wt[1, 1]],   # offset (0,0)
            [wt[0, 2], zero,     wt[1, 2], zero],        # offset (0,1)
            [wt[2, 0], wt[2, 1], zero,     zero],        # offset (1,0)
            [wt[2, 2], zero,     zero,     zero],        # offset (1,1)
        ]
        w_pack = jnp.stack([jnp.concatenate(g, axis=0) for g in groups])
        w_shape = (4, 4 * C, Coutp)
    w_pack = w_pack.astype(jnp.bfloat16)
    b_p = jnp.pad(b.astype(jnp.float32), (0, Coutp - Cout)).reshape(1, Coutp)

    row_chunk = max(1, min(OH, _ACC_BUDGET // (OW * Coutp * 4)))

    # TODO(synk): at 416x416 add an output-row grid axis (halo row windows via
    # manual DMA) so the per-image blocks fit v7x's 64 MiB VMEM.
    return pl.pallas_call(
        functools.partial(_conv_kernel, C=C, OH=OH, OW=OW, relu=relu,
                          row_chunk=row_chunk, aligned=aligned),
        out_shape=jax.ShapeDtypeStruct((N, OH, OW, Coutp), out_dtype),
        grid=(N,),
        in_specs=[
            pl.BlockSpec((1, OH + 1, OW + 1, 4 * C), lambda n: (n, 0, 0, 0)),
            pl.BlockSpec(w_shape, lambda n: (0, 0, 0)),
            pl.BlockSpec((1, Coutp), lambda n: (0, 0)),
        ],
        out_specs=pl.BlockSpec((1, OH, OW, Coutp), lambda n: (n, 0, 0, 0)),
        compiler_params=pltpu.CompilerParams(
            dimension_semantics=("parallel",)),
    )(packed, w_pack, b_p)


# ---------------------------------------------------------------------------
# Fused ConvTranspose2d(kernel=3, stride=2, padding=1, output_padding=1)
# + bias + ReLU via the sub-pixel 4-output-phase decomposition:
#   O[2m+a, 2l+b, :] = sum_taps X[m+dr, l+dc, :] @ W[:, :, kh, kw]
# ---------------------------------------------------------------------------
_DECONV_PHASE_TAPS = {           # (a, b) -> list of (kh, kw, dr, dc)
    (0, 0): [(1, 1, 0, 0)],
    (0, 1): [(1, 2, 0, 0), (1, 0, 0, 1)],
    (1, 0): [(2, 1, 0, 0), (0, 1, 1, 0)],
    (1, 1): [(2, 2, 0, 0), (2, 0, 0, 1), (0, 2, 1, 0), (0, 0, 1, 1)],
}


def _deconv_kernel(x_ref, w_ref, b_ref, o_ref, *, H, W, relu, row_chunk):
    cw = o_ref.shape[-1]
    bias = b_ref[...]
    t = 0
    for a in range(2):
        for c in range(2):
            taps = _DECONV_PHASE_TAPS[(a, c)]
            for r0 in range(0, H, row_chunk):
                rows = min(row_chunk, H - r0)
                acc = None
                for ti, (_, _, dr, dc) in enumerate(taps):
                    xt = x_ref[0, r0 + dr:r0 + dr + rows, dc:dc + W, :]
                    xt = xt.reshape(rows * W, -1)
                    term = jnp.dot(xt, w_ref[t + ti],
                                   preferred_element_type=jnp.float32)
                    acc = term if acc is None else acc + term
                acc = acc + bias
                if relu:
                    acc = jnp.maximum(acc, 0.0)
                o_ref[a, c, 0, r0:r0 + rows] = (
                    acc.reshape(rows, W, cw).astype(o_ref.dtype))
            t += len(taps)


def conv_transpose2d_s2p1op1(x_nhwc, w_iohw, b, *, relu=True,
                             out_dtype=jnp.bfloat16, cout_pad=None):
    N, H, W, C = x_nhwc.shape
    Cin, Cout, kH, kW = w_iohw.shape
    assert (kH, kW) == (3, 3)
    assert C >= Cin          # padded activation channels must be zero
    Coutp = cout_pad if cout_pad is not None else _round_up(Cout, 128)
    assert Coutp >= Cout

    # one zero row/col on the bottom/right covers the "ih = m+1 out of range"
    # taps; only ~1x the activation bytes (vs 4x for zero-dilation lowering).
    xp = jnp.pad(x_nhwc.astype(jnp.bfloat16), ((0, 0), (0, 1), (0, 1), (0, 0)))

    taps = []
    for a in range(2):
        for c in range(2):
            for (kh, kw, _, _) in _DECONV_PHASE_TAPS[(a, c)]:
                taps.append(w_iohw[:, :, kh, kw])        # (Cin, Cout)
    w_taps = jnp.stack(taps)                             # (9, Cin, Cout)
    w_taps = jnp.pad(w_taps, ((0, 0), (0, C - Cin), (0, Coutp - Cout)))
    w_taps = w_taps.astype(jnp.bfloat16)
    b_p = jnp.pad(b.astype(jnp.float32), (0, Coutp - Cout)).reshape(1, Coutp)

    row_chunk = max(1, min(H, _ACC_BUDGET // (W * Coutp * 4)))

    out4 = pl.pallas_call(
        functools.partial(_deconv_kernel, H=H, W=W, relu=relu,
                          row_chunk=row_chunk),
        out_shape=jax.ShapeDtypeStruct((2, 2, N, H, W, Coutp), out_dtype),
        grid=(N,),
        in_specs=[
            pl.BlockSpec((1, H + 1, W + 1, C), lambda n: (n, 0, 0, 0)),
            pl.BlockSpec((9, C, Coutp), lambda n: (0, 0, 0)),
            pl.BlockSpec((1, Coutp), lambda n: (0, 0)),
        ],
        out_specs=pl.BlockSpec((2, 2, 1, H, W, Coutp),
                               lambda n: (0, 0, n, 0, 0, 0)),
        compiler_params=pltpu.CompilerParams(
            dimension_semantics=("parallel",)),
    )(xp, w_taps, b_p)

    # TODO(synk): fold the phase interleave into the next layer's index_map to
    # save one activation-sized HBM round-trip per deconv.
    return jnp.transpose(out4, (2, 3, 0, 4, 1, 5)).reshape(
        N, 2 * H, 2 * W, Coutp)


# ---------------------------------------------------------------------------
# One-time parameter repack: fc weights/bias to NHWC-flatten order so the
# forward pass needs no bottleneck NCHW<->NHWC transposes.
# ---------------------------------------------------------------------------
def prepare_params(p, Hb, Wb):
    q = dict(p)
    latent = p["fc_enc_w"].shape[0]
    q["fc_enc_w_nhwc"] = (p["fc_enc_w"].reshape(latent, 128, Hb, Wb)
                          .transpose(2, 3, 1, 0).reshape(Hb * Wb * 128, latent))
    q["fc_dec_w_nhwc"] = (p["fc_dec_w"].reshape(128, Hb, Wb, latent)
                          .transpose(3, 1, 2, 0).reshape(latent, Hb * Wb * 128))
    q["fc_dec_b_nhwc"] = (p["fc_dec_b"].reshape(128, Hb, Wb)
                          .transpose(1, 2, 0).reshape(-1))
    return q


# ---------------------------------------------------------------------------
# Autoencoder forward (matches the PyTorch module: decoder ends with ReLU).
# ---------------------------------------------------------------------------
def autoencoder_forward(x_nchw, p):
    N = x_nchw.shape[0]
    x = jnp.transpose(x_nchw, (0, 2, 3, 1))                  # NCHW -> NHWC
    # encoder
    h = conv2d_s2p1(x, p["enc_w1"], p["enc_b1"])             # (N, H/2, W/2, 128[32])
    h = conv2d_s2p1(h, p["enc_w2"], p["enc_b2"])             # (N, H/4, W/4, 128[64])
    h = conv2d_s2p1(h, p["enc_w3"], p["enc_b3"])             # (N, H/8, W/8, 128)
    Hb, Wb = h.shape[1], h.shape[2]
    hf = h.reshape(N, Hb * Wb * 128)                         # NHWC flatten
    encoded = matmul_bias_act(hf, p["fc_enc_w_nhwc"], p["fc_enc_b"],
                              relu=False, out_dtype=jnp.float32, k_split=2)
    # decoder
    d = matmul_bias_act(encoded, p["fc_dec_w_nhwc"], p["fc_dec_b_nhwc"],
                        relu=True, out_dtype=jnp.bfloat16)
    d = d.reshape(N, Hb, Wb, 128)
    d = conv_transpose2d_s2p1op1(d, p["dec_w1"], p["dec_b1"])
    d = conv_transpose2d_s2p1op1(d, p["dec_w2"], p["dec_b2"])
    d = conv_transpose2d_s2p1op1(d, p["dec_w3"], p["dec_b3"],
                                 out_dtype=jnp.bfloat16, cout_pad=8)
    decoded = jnp.transpose(d[..., :3], (0, 3, 1, 2)).astype(jnp.float32)
    return encoded, decoded


# ---------------------------------------------------------------------------
# Plain-JAX (lax.conv, f32) reference for correctness checking.
# ---------------------------------------------------------------------------
def reference_forward(x_nchw, p):
    N = x_nchw.shape[0]
    dn = ("NHWC", "HWIO", "NHWC")
    x = jnp.transpose(x_nchw, (0, 2, 3, 1))

    def conv(x, w, b):
        wh = jnp.transpose(w, (2, 3, 1, 0))
        y = lax.conv_general_dilated(x, wh, (2, 2), ((1, 1), (1, 1)),
                                     dimension_numbers=dn)
        return jax.nn.relu(y + b)

    def convT(x, w, b):
        wh = jnp.transpose(w[:, :, ::-1, ::-1], (2, 3, 0, 1))
        y = lax.conv_general_dilated(x, wh, (1, 1), ((1, 2), (1, 2)),
                                     lhs_dilation=(2, 2), dimension_numbers=dn)
        return jax.nn.relu(y + b)

    h = conv(x, p["enc_w1"], p["enc_b1"])
    h = conv(h, p["enc_w2"], p["enc_b2"])
    h = conv(h, p["enc_w3"], p["enc_b3"])
    Hb, Wb = h.shape[1], h.shape[2]
    hf = jnp.transpose(h, (0, 3, 1, 2)).reshape(N, -1)
    enc = hf @ p["fc_enc_w"].T + p["fc_enc_b"]
    d = jax.nn.relu(enc @ p["fc_dec_w"].T + p["fc_dec_b"])
    d = jnp.transpose(d.reshape(N, 128, Hb, Wb), (0, 2, 3, 1))
    d = convT(d, p["dec_w1"], p["dec_b1"])
    d = convT(d, p["dec_w2"], p["dec_b2"])
    d = convT(d, p["dec_w3"], p["dec_b3"])
    return enc, jnp.transpose(d, (0, 3, 1, 2))


# ---------------------------------------------------------------------------
# Deterministic parameter init + driver
# ---------------------------------------------------------------------------
def init_params(key, latent_dim, bottleneck_hw):
    flat = 128 * bottleneck_hw * bottleneck_hw
    shapes = {
        "enc_w1": (32, 3, 3, 3),   "enc_b1": (32,),
        "enc_w2": (64, 32, 3, 3),  "enc_b2": (64,),
        "enc_w3": (128, 64, 3, 3), "enc_b3": (128,),
        "fc_enc_w": (latent_dim, flat), "fc_enc_b": (latent_dim,),
        "fc_dec_w": (flat, latent_dim), "fc_dec_b": (flat,),
        "dec_w1": (128, 64, 3, 3), "dec_b1": (64,),   # ConvTranspose: (in, out, k, k)
        "dec_w2": (64, 32, 3, 3),  "dec_b2": (32,),
        "dec_w3": (32, 3, 3, 3),   "dec_b3": (3,),
    }
    params = {}
    for name, shape in shapes.items():
        key, sub = jax.random.split(key)
        params[name] = 0.05 * jax.random.normal(sub, shape, dtype=jnp.float32)
    return params


def _check_close(name, a, b, rel=0.05, atol=1e-3):
    err = float(jnp.max(jnp.abs(a - b)))
    scale = float(jnp.max(jnp.abs(b))) + 1e-6
    assert err <= rel * scale + atol, (name, err, scale)


if __name__ == "__main__":
    N, C, H, W = 2, 3, 16, 16          # small-scale stand-in for 3x416x416
    latent_dim = 32
    Hb = Wb = H // 8                   # three stride-2 convs -> 2

    key = jax.random.PRNGKey(0)
    kx, kp = jax.random.split(key)
    x = jax.random.normal(kx, (N, C, H, W), dtype=jnp.float32)
    params = init_params(kp, latent_dim, Hb)
    run_params = prepare_params(params, Hb, Wb)     # one-time weight repack

    encoded, decoded = jax.jit(autoencoder_forward)(x, run_params)
    jax.block_until_ready((encoded, decoded))

    enc_ref, dec_ref = jax.jit(reference_forward)(x, params)
    jax.block_until_ready((enc_ref, dec_ref))

    assert encoded.shape == (N, latent_dim)
    assert decoded.shape == (N, C, H, W)
    # bf16 MXU operands + bf16 intermediate activations -> scale-relative check
    _check_close("encoded", encoded, enc_ref)
    _check_close("decoded", decoded, dec_ref)

    print("KERNEL_OK")
</pallas_src>

<mosaic_0001>
module attributes {stable_mosaic.version = 11 : i64} {
  func.func @_conv_kernel(%arg0: i32, %arg1: memref<1x9x9x12xbf16, #tpu.memory_space<vmem>>, %arg2: memref<4x12x128xbf16, #tpu.memory_space<vmem>>, %arg3: memref<1x128xf32, #tpu.memory_space<vmem>>, %arg4: memref<1x8x8x128xbf16, #tpu.memory_space<vmem>>) attributes {dimension_semantics = [#tpu.dimension_semantics<parallel>], iteration_bounds = array<i64: 2>, scalar_prefetch = 0 : i64, scratch_operands = 0 : i64, tpu.core_type = #tpu.core_type<tc>, window_params = [{transform_indices = @transform_0, window_bounds = array<i64: 1, 9, 9, 12>}, {pipeline_mode = #tpu.pipeline_mode<synchronous>, transform_indices = @transform_1, window_bounds = array<i64: 4, 12, 128>}, {pipeline_mode = #tpu.pipeline_mode<synchronous>, transform_indices = @transform_2, window_bounds = array<i64: 1, 128>}, {transform_indices = @transform_3, window_bounds = array<i64: 1, 8, 8, 128>}]} {
    %c0 = arith.constant 0 : index
    %c0_0 = arith.constant 0 : index
    %0 = vector.load %arg3[%c0, %c0_0] : memref<1x128xf32, #tpu.memory_space<vmem>>, vector<1x128xf32>
    %c0_1 = arith.constant 0 : index
    %c0_2 = arith.constant 0 : index
    %c0_3 = arith.constant 0 : index
    %1 = vector.load %arg2[%c0_1, %c0_2, %c0_3] : memref<4x12x128xbf16, #tpu.memory_space<vmem>>, vector<1x12x128xbf16>
    %2 = vector.shape_cast %1 : vector<1x12x128xbf16> to vector<12x128xbf16>
    %c1 = arith.constant 1 : index
    %c0_4 = arith.constant 0 : index
    %c0_5 = arith.constant 0 : index
    %3 = vector.load %arg2[%c1, %c0_4, %c0_5] : memref<4x12x128xbf16, #tpu.memory_space<vmem>>, vector<1x12x128xbf16>
    %4 = vector.shape_cast %3 : vector<1x12x128xbf16> to vector<12x128xbf16>
    %c2 = arith.constant 2 : index
    %c0_6 = arith.constant 0 : index
    %c0_7 = arith.constant 0 : index
    %5 = vector.load %arg2[%c2, %c0_6, %c0_7] : memref<4x12x128xbf16, #tpu.memory_space<vmem>>, vector<1x12x128xbf16>
    %6 = vector.shape_cast %5 : vector<1x12x128xbf16> to vector<12x128xbf16>
    %c3 = arith.constant 3 : index
    %c0_8 = arith.constant 0 : index
    %c0_9 = arith.constant 0 : index
    %7 = vector.load %arg2[%c3, %c0_8, %c0_9] : memref<4x12x128xbf16, #tpu.memory_space<vmem>>, vector<1x12x128xbf16>
    %8 = vector.shape_cast %7 : vector<1x12x128xbf16> to vector<12x128xbf16>
    %c0_10 = arith.constant 0 : index
    %c0_11 = arith.constant 0 : index
    %c0_12 = arith.constant 0 : index
    %c0_13 = arith.constant 0 : index
    %9 = vector.load %arg1[%c0_10, %c0_11, %c0_12, %c0_13] : memref<1x9x9x12xbf16, #tpu.memory_space<vmem>>, vector<1x8x8x12xbf16>
    %10 = vector.shape_cast %9 : vector<1x8x8x12xbf16> to vector<8x8x12xbf16>
    %11 = vector.shape_cast %10 : vector<8x8x12xbf16> to vector<64x12xbf16>
    %cst = arith.constant dense<0.000000e+00> : vector<64x128xf32>
    %12 = tpu.matmul %11, %2, %cst {dimension_numbers = #tpu.dot_dimension_numbers<[1], [0], [0], [1], [0, 0, 1, 1], [], []>} : vector<64x12xbf16>, vector<12x128xbf16>, vector<64x128xf32> -> vector<64x128xf32>
    %c0_14 = arith.constant 0 : index
    %c0_15 = arith.constant 0 : index
    %c1_16 = arith.constant 1 : index
    %c0_17 = arith.constant 0 : index
    %13 = vector.load %arg1[%c0_14, %c0_15, %c1_16, %c0_17] : memref<1x9x9x12xbf16, #tpu.memory_space<vmem>>, vector<1x8x8x12xbf16>
    %14 = vector.shape_cast %13 : vector<1x8x8x12xbf16> to vector<8x8x12xbf16>
    %15 = vector.shape_cast %14 : vector<8x8x12xbf16> to vector<64x12xbf16>
    %cst_18 = arith.constant dense<0.000000e+00> : vector<64x128xf32>
    %16 = tpu.matmul %15, %4, %cst_18 {dimension_numbers = #tpu.dot_dimension_numbers<[1], [0], [0], [1], [0, 0, 1, 1], [], []>} : vector<64x12xbf16>, vector<12x128xbf16>, vector<64x128xf32> -> vector<64x128xf32>
    %17 = arith.addf %12, %16 : vector<64x128xf32>
    %c0_19 = arith.constant 0 : index
    %c1_20 = arith.constant 1 : index
    %c0_21 = arith.constant 0 : index
    %c0_22 = arith.constant 0 : index
    %18 = vector.load %arg1[%c0_19, %c1_20, %c0_21, %c0_22] : memref<1x9x9x12xbf16, #tpu.memory_space<vmem>>, vector<1x8x8x12xbf16>
    %19 = vector.shape_cast %18 : vector<1x8x8x12xbf16> to vector<8x8x12xbf16>
    %20 = vector.shape_cast %19 : vector<8x8x12xbf16> to vector<64x12xbf16>
    %cst_23 = arith.constant dense<0.000000e+00> : vector<64x128xf32>
    %21 = tpu.matmul %20, %6, %cst_23 {dimension_numbers = #tpu.dot_dimension_numbers<[1], [0], [0], [1], [0, 0, 1, 1], [], []>} : vector<64x12xbf16>, vector<12x128xbf16>, vector<64x128xf32> -> vector<64x128xf32>
    %22 = arith.addf %17, %21 : vector<64x128xf32>
    %c0_24 = arith.constant 0 : index
    %c1_25 = arith.constant 1 : index
    %c1_26 = arith.constant 1 : index
    %c0_27 = arith.constant 0 : index
    %23 = vector.load %arg1[%c0_24, %c1_25, %c1_26, %c0_27] : memref<1x9x9x12xbf16, #tpu.memory_space<vmem>>, vector<1x8x8x12xbf16>
    %24 = vector.shape_cast %23 : vector<1x8x8x12xbf16> to vector<8x8x12xbf16>
    %25 = vector.shape_cast %24 : vector<8x8x12xbf16> to vector<64x12xbf16>
    %cst_28 = arith.constant dense<0.000000e+00> : vector<64x128xf32>
    %26 = tpu.matmul %25, %8, %cst_28 {dimension_numbers = #tpu.dot_dimension_numbers<[1], [0], [0], [1], [0, 0, 1, 1], [], []>} : vector<64x12xbf16>, vector<12x128xbf16>, vector<64x128xf32> -> vector<64x128xf32>
    %27 = arith.addf %22, %26 : vector<64x128xf32>
    %28 = vector.broadcast %0 : vector<1x128xf32> to vector<64x128xf32>
    %29 = arith.addf %27, %28 : vector<64x128xf32>
    %cst_29 = arith.constant 0.000000e+00 : f32
    %30 = vector.broadcast %cst_29 : f32 to vector<64x128xf32>
    %31 = arith.maximumf %29, %30 : vector<64x128xf32>
    %32 = vector.shape_cast %31 : vector<64x128xf32> to vector<8x8x128xf32>
    %33 = arith.truncf %32 : vector<8x8x128xf32> to vector<8x8x128xbf16>
    %c0_30 = arith.constant 0 : index
    %c0_31 = arith.constant 0 : index
    %c0_32 = arith.constant 0 : index
    %c0_33 = arith.constant 0 : index
    %34 = vector.load %arg4[%c0_30, %c0_31, %c0_32, %c0_33] : memref<1x8x8x128xbf16, #tpu.memory_space<vmem>>, vector<1x8x8x128xbf16>
    %35 = vector.shape_cast %34 : vector<1x8x8x128xbf16> to vector<8x8x128xbf16>
    %36 = vector.shape_cast %33 : vector<8x8x128xbf16> to vector<1x8x8x128xbf16>
    tpu.vector_store %arg4[%c0_30, %c0_31, %c0_32, %c0_33], %36 {strides = array<i32>} : memref<1x8x8x128xbf16, #tpu.memory_space<vmem>>, vector<1x8x8x128xbf16>,
    return
  }
  func.func @transform_0(%arg0: i32) -> (i32, i32, i32, i32) {
    %c0_i32 = arith.constant 0 : i32
    %c0_i32_0 = arith.constant 0 : i32
    %c0_i32_1 = arith.constant 0 : i32
    %c0_i32_2 = arith.constant 0 : i32
    return %arg0, %c0_i32, %c0_i32_0, %c0_i32_1 : i32, i32, i32, i32
  }
  func.func @transform_1(%arg0: i32) -> (i32, i32, i32) {
    %c0_i32 = arith.constant 0 : i32
    %c0_i32_0 = arith.constant 0 : i32
    %c0_i32_1 = arith.constant 0 : i32
    %c0_i32_2 = arith.constant 0 : i32
    return %c0_i32, %c0_i32_0, %c0_i32_1 : i32, i32, i32
  }
  func.func @transform_2(%arg0: i32) -> (i32, i32) {
    %c0_i32 = arith.constant 0 : i32
    %c0_i32_0 = arith.constant 0 : i32
    %c0_i32_1 = arith.constant 0 : i32
    return %c0_i32, %c0_i32_0 : i32, i32
  }
  func.func @transform_3(%arg0: i32) -> (i32, i32, i32, i32) {
    %c0_i32 = arith.constant 0 : i32
    %c0_i32_0 = arith.constant 0 : i32
    %c0_i32_1 = arith.constant 0 : i32
    %c0_i32_2 = arith.constant 0 : i32
    return %arg0, %c0_i32, %c0_i32_0, %c0_i32_1 : i32, i32, i32, i32
  }
}

module attributes {stable_mosaic.version = 11 : i64} {
  func.func @_conv_kernel(%arg0: i32, %arg1: memref<1x5x5x512xbf16, #tpu.memory_space<vmem>>, %arg2: memref<9x128x128xbf16, #tpu.memory_space<vmem>>, %arg3: memref<1x128xf32, #tpu.memory_space<vmem>>, %arg4: memref<1x4x4x128xbf16, #tpu.memory_space<vmem>>) attributes {dimension_semantics = [#tpu.dimension_semantics<parallel>], iteration_bounds = array<i64: 2>, scalar_prefetch = 0 : i64, scratch_operands = 0 : i64, tpu.core_type = #tpu.core_type<tc>, window_params = [{transform_indices = @transform_0, window_bounds = array<i64: 1, 5, 5, 512>}, {pipeline_mode = #tpu.pipeline_mode<synchronous>, transform_indices = @transform_1, window_bounds = array<i64: 9, 128, 128>}, {pipeline_mode = #tpu.pipeline_mode<synchronous>, transform_indices = @transform_2, window_bounds = array<i64: 1, 128>}, {transform_indices = @transform_3, window_bounds = array<i64: 1, 4, 4, 128>}]} {
    %c0 = arith.constant 0 : index
    %c0_0 = arith.constant 0 : index
    %0 = vector.load %arg3[%c0, %c0_0] : memref<1x128xf32, #tpu.memory_space<vmem>>, vector<1x128xf32>
    %c0_1 = arith.constant 0 : index
    %c0_2 = arith.constant 0 : index
    %c0_3 = arith.constant 0 : index
    %1 = vector.load %arg2[%c0_1, %c0_2, %c0_3] : memref<9x128x128xbf16, #tpu.memory_space<vmem>>, vector<4x128x128xbf16>
    %2 = vector.shape_cast %1 : vector<4x128x128xbf16> to vector<512x128xbf16>
    %c4 = arith.constant 4 : index
    %c0_4 = arith.constant 0 : index
    %c0_5 = arith.constant 0 : index
    %3 = vector.load %arg2[%c4, %c0_4, %c0_5] : memref<9x128x128xbf16, #tpu.memory_space<vmem>>, vector<2x128x128xbf16>
    %4 = vector.shape_cast %3 : vector<2x128x128xbf16> to vector<256x128xbf16>
    %c6 = arith.constant 6 : index
    %c0_6 = arith.constant 0 : index
    %c0_7 = arith.constant 0 : index
    %5 = vector.load %arg2[%c6, %c0_6, %c0_7] : memref<9x128x128xbf16, #tpu.memory_space<vmem>>, vector<1x128x128xbf16>
    %6 = vector.shape_cast %5 : vector<1x128x128xbf16> to vector<128x128xbf16>
    %c7 = arith.constant 7 : index
    %c0_8 = arith.constant 0 : index
    %c0_9 = arith.constant 0 : index
    %7 = vector.load %arg2[%c7, %c0_8, %c0_9] : memref<9x128x128xbf16, #tpu.memory_space<vmem>>, vector<1x128x128xbf16>
    %8 = vector.shape_cast %7 : vector<1x128x128xbf16> to vector<128x128xbf16>
    %c8 = arith.constant 8 : index
    %c0_10 = arith.constant 0 : index
    %c0_11 = arith.constant 0 : index
    %9 = vector.load %arg2[%c8, %c0_10, %c0_11] : memref<9x128x128xbf16, #tpu.memory_space<vmem>>, vector<1x128x128xbf16>
    %10 = vector.shape_cast %9 : vector<1x128x128xbf16> to vector<128x128xbf16>
    %c0_12 = arith.constant 0 : index
    %c0_13 = arith.constant 0 : index
    %c0_14 = arith.constant 0 : index
    %c0_15 = arith.constant 0 : index
    %11 = vector.load %arg1[%c0_12, %c0_13, %c0_14, %c0_15] : memref<1x5x5x512xbf16, #tpu.memory_space<vmem>>, vector<1x4x4x512xbf16>
    %12 = vector.shape_cast %11 : vector<1x4x4x512xbf16> to vector<4x4x512xbf16>
    %13 = vector.shape_cast %12 : vector<4x4x512xbf16> to vector<16x512xbf16>
    %cst = arith.constant dense<0.000000e+00> : vector<16x128xf32>
    %14 = tpu.matmul %13, %2, %cst {dimension_numbers = #tpu.dot_dimension_numbers<[1], [0], [0], [1], [0, 0, 1, 1], [], []>} : vector<16x512xbf16>, vector<512x128xbf16>, vector<16x128xf32> -> vector<16x128xf32>
    %c0_16 = arith.constant 0 : index
    %c1 = arith.constant 1 : index
    %c0_17 = arith.constant 0 : index
    %c0_18 = arith.constant 0 : index
    %15 = vector.load %arg1[%c0_16, %c1, %c0_17, %c0_18] : memref<1x5x5x512xbf16, #tpu.memory_space<vmem>>, vector<1x4x4x256xbf16>
    %16 = vector.shape_cast %15 : vector<1x4x4x256xbf16> to vector<4x4x256xbf16>
    %17 = vector.shape_cast %16 : vector<4x4x256xbf16> to vector<16x256xbf16>
    %cst_19 = arith.constant dense<0.000000e+00> : vector<16x128xf32>
    %18 = tpu.matmul %17, %4, %cst_19 {dimension_numbers = #tpu.dot_dimension_numbers<[1], [0], [0], [1], [0, 0, 1, 1], [], []>} : vector<16x256xbf16>, vector<256x128xbf16>, vector<16x128xf32> -> vector<16x128xf32>
    %19 = arith.addf %14, %18 : vector<16x128xf32>
    %c0_20 = arith.constant 0 : index
    %c0_21 = arith.constant 0 : index
    %c1_22 = arith.constant 1 : index
    %c0_23 = arith.constant 0 : index
    %20 = vector.load %arg1[%c0_20, %c0_21, %c1_22, %c0_23] : memref<1x5x5x512xbf16, #tpu.memory_space<vmem>>, vector<1x4x4x128xbf16>
    %21 = vector.shape_cast %20 : vector<1x4x4x128xbf16> to vector<4x4x128xbf16>
    %22 = vector.shape_cast %21 : vector<4x4x128xbf16> to vector<16x128xbf16>
    %cst_24 = arith.constant dense<0.000000e+00> : vector<16x128xf32>
    %23 = tpu.matmul %22, %6, %cst_24 {dimension_numbers = #tpu.dot_dimension_numbers<[1], [0], [0], [1], [0, 0, 1, 1], [], []>} : vector<16x128xbf16>, vector<128x128xbf16>, vector<16x128xf32> -> vector<16x128xf32>
    %24 = arith.addf %19, %23 : vector<16x128xf32>
    %c0_25 = arith.constant 0 : index
    %c0_26 = arith.constant 0 : index
    %c1_27 = arith.constant 1 : index
    %c256 = arith.constant 256 : index
    %25 = vector.load %arg1[%c0_25, %c0_26, %c1_27, %c256] : memref<1x5x5x512xbf16, #tpu.memory_space<vmem>>, vector<1x4x4x128xbf16>
    %26 = vector.shape_cast %25 : vector<1x4x4x128xbf16> to vector<4x4x128xbf16>
    %27 = vector.shape_cast %26 : vector<4x4x128xbf16> to vector<16x128xbf16>
    %cst_28 = arith.constant dense<0.000000e+00> : vector<16x128xf32>
    %28 = tpu.matmul %27, %8, %cst_28 {dimension_numbers = #tpu.dot_dimension_numbers<[1], [0], [0], [1], [0, 0, 1, 1], [], []>} : vector<16x128xbf16>, vector<128x128xbf16>, vector<16x128xf32> -> vector<16x128xf32>
    %29 = arith.addf %24, %28 : vector<16x128xf32>
    %c0_29 = arith.constant 0 : index
    %c1_30 = arith.constant 1 : index
    %c1_31 = arith.constant 1 : index
    %c0_32 = arith.constant 0 : index
    %30 = vector.load %arg1[%c0_29, %c1_30, %c1_31, %c0_32] : memref<1x5x5x512xbf16, #tpu.memory_space<vmem>>, vector<1x4x4x128xbf16>
    %31 = vector.shape_cast %30 : vector<1x4x4x128xbf16> to vector<4x4x128xbf16>
    %32 = vector.shape_cast %31 : vector<4x4x128xbf16> to vector<16x128xbf16>
    %cst_33 = arith.constant dense<0.000000e+00> : vector<16x128xf32>
    %33 = tpu.matmul %32, %10, %cst_33 {dimension_numbers = #tpu.dot_dimension_numbers<[1], [0], [0], [1], [0, 0, 1, 1], [], []>} : vector<16x128xbf16>, vector<128x128xbf16>, vector<16x128xf32> -> vector<16x128xf32>
    %34 = arith.addf %29, %33 : vector<16x128xf32>
    %35 = vector.broadcast %0 : vector<1x128xf32> to vector<16x128xf32>
    %36 = arith.addf %34, %35 : vector<16x128xf32>
    %cst_34 = arith.constant 0.000000e+00 : f32
    %37 = vector.broadcast %cst_34 : f32 to vector<16x128xf32>
    %38 = arith.maximumf %36, %37 : vector<16x128xf32>
    %39 = vector.shape_cast %38 : vector<16x128xf32> to vector<4x4x128xf32>
    %40 = arith.truncf %39 : vector<4x4x128xf32> to vector<4x4x128xbf16>
    %c0_35 = arith.constant 0 : index
    %c0_36 = arith.constant 0 : index
    %c0_37 = arith.constant 0 : index
    %c0_38 = arith.constant 0 : index
    %41 = vector.load %arg4[%c0_35, %c0_36, %c0_37, %c0_38] : memref<1x4x4x128xbf16, #tpu.memory_space<vmem>>, vector<1x4x4x128xbf16>
    %42 = vector.shape_cast %41 : vector<1x4x4x128xbf16> to vector<4x4x128xbf16>
    %43 = vector.shape_cast %40 : vector<4x4x128xbf16> to vector<1x4x4x128xbf16>
    tpu.vector_store %arg4[%c0_35, %c0_36, %c0_37, %c0_38], %43 {strides = array<i32>} : memref<1x4x4x128xbf16, #tpu.memory_space<vmem>>, vector<1x4x4x128xbf16>,
    return
  }
  func.func @transform_0(%arg0: i32) -> (i32, i32, i32, i32) {
    %c0_i32 = arith.constant 0 : i32
    %c0_i32_0 = arith.constant 0 : i32
    %c0_i32_1 = arith.constant 0 : i32
    %c0_i32_2 = arith.constant 0 : i32
    return %arg0, %c0_i32, %c0_i32_0, %c0_i32_1 : i32, i32, i32, i32
  }
  func.func @transform_1(%arg0: i32) -> (i32, i32, i32) {
    %c0_i32 = arith.constant 0 : i32
    %c0_i32_0 = arith.constant 0 : i32
    %c0_i32_1 = arith.constant 0 : i32
    %c0_i32_2 = arith.constant 0 : i32
    return %c0_i32, %c0_i32_0, %c0_i32_1 : i32, i32, i32
  }
  func.func @transform_2(%arg0: i32) -> (i32, i32) {
    %c0_i32 = arith.constant 0 : i32
    %c0_i32_0 = arith.constant 0 : i32
    %c0_i32_1 = arith.constant 0 : i32
    return %c0_i32, %c0_i32_0 : i32, i32
  }
  func.func @transform_3(%arg0: i32) -> (i32, i32, i32, i32) {
    %c0_i32 = arith.constant 0 : i32
    %c0_i32_0 = arith.constant 0 : i32
    %c0_i32_1 = arith.constant 0 : i32
    %c0_i32_2 = arith.constant 0 : i32
    return %arg0, %c0_i32, %c0_i32_0, %c0_i32_1 : i32, i32, i32, i32
  }
}

module attributes {stable_mosaic.version = 11 : i64} {
  func.func @_conv_kernel(%arg0: i32, %arg1: memref<1x3x3x512xbf16, #tpu.memory_space<vmem>>, %arg2: memref<9x128x128xbf16, #tpu.memory_space<vmem>>, %arg3: memref<1x128xf32, #tpu.memory_space<vmem>>, %arg4: memref<1x2x2x128xbf16, #tpu.memory_space<vmem>>) attributes {dimension_semantics = [#tpu.dimension_semantics<parallel>], iteration_bounds = array<i64: 2>, scalar_prefetch = 0 : i64, scratch_operands = 0 : i64, tpu.core_type = #tpu.core_type<tc>, window_params = [{transform_indices = @transform_0, window_bounds = array<i64: 1, 3, 3, 512>}, {pipeline_mode = #tpu.pipeline_mode<synchronous>, transform_indices = @transform_1, window_bounds = array<i64: 9, 128, 128>}, {pipeline_mode = #tpu.pipeline_mode<synchronous>, transform_indices = @transform_2, window_bounds = array<i64: 1, 128>}, {transform_indices = @transform_3, window_bounds = array<i64: 1, 2, 2, 128>}]} {
    %c0 = arith.constant 0 : index
    %c0_0 = arith.constant 0 : index
    %0 = vector.load %arg3[%c0, %c0_0] : memref<1x128xf32, #tpu.memory_space<vmem>>, vector<1x128xf32>
    %c0_1 = arith.constant 0 : index
    %c0_2 = arith.constant 0 : index
    %c0_3 = arith.constant 0 : index
    %1 = vector.load %arg2[%c0_1, %c0_2, %c0_3] : memref<9x128x128xbf16, #tpu.memory_space<vmem>>, vector<4x128x128xbf16>
    %2 = vector.shape_cast %1 : vector<4x128x128xbf16> to vector<512x128xbf16>
    %c4 = arith.constant 4 : index
    %c0_4 = arith.constant 0 : index
    %c0_5 = arith.constant 0 : index
    %3 = vector.load %arg2[%c4, %c0_4, %c0_5] : memref<9x128x128xbf16, #tpu.memory_space<vmem>>, vector<2x128x128xbf16>
    %4 = vector.shape_cast %3 : vector<2x128x128xbf16> to vector<256x128xbf16>
    %c6 = arith.constant 6 : index
    %c0_6 = arith.constant 0 : index
    %c0_7 = arith.constant 0 : index
    %5 = vector.load %arg2[%c6, %c0_6, %c0_7] : memref<9x128x128xbf16, #tpu.memory_space<vmem>>, vector<1x128x128xbf16>
    %6 = vector.shape_cast %5 : vector<1x128x128xbf16> to vector<128x128xbf16>
    %c7 = arith.constant 7 : index
    %c0_8 = arith.constant 0 : index
    %c0_9 = arith.constant 0 : index
    %7 = vector.load %arg2[%c7, %c0_8, %c0_9] : memref<9x128x128xbf16, #tpu.memory_space<vmem>>, vector<1x128x128xbf16>
    %8 = vector.shape_cast %7 : vector<1x128x128xbf16> to vector<128x128xbf16>
    %c8 = arith.constant 8 : index
    %c0_10 = arith.constant 0 : index
    %c0_11 = arith.constant 0 : index
    %9 = vector.load %arg2[%c8, %c0_10, %c0_11] : memref<9x128x128xbf16, #tpu.memory_space<vmem>>, vector<1x128x128xbf16>
    %10 = vector.shape_cast %9 : vector<1x128x128xbf16> to vector<128x128xbf16>
    %c0_12 = arith.constant 0 : index
    %c0_13 = arith.constant 0 : index
    %c0_14 = arith.constant 0 : index
    %c0_15 = arith.constant 0 : index
    %11 = vector.load %arg1[%c0_12, %c0_13, %c0_14, %c0_15] : memref<1x3x3x512xbf16, #tpu.memory_space<vmem>>, vector<1x2x2x512xbf16>
    %12 = vector.shape_cast %11 : vector<1x2x2x512xbf16> to vector<2x2x512xbf16>
    %13 = vector.shape_cast %12 : vector<2x2x512xbf16> to vector<4x512xbf16>
    %cst = arith.constant dense<0.000000e+00> : vector<4x128xf32>
    %14 = tpu.matmul %13, %2, %cst {dimension_numbers = #tpu.dot_dimension_numbers<[1], [0], [0], [1], [0, 0, 1, 1], [], []>} : vector<4x512xbf16>, vector<512x128xbf16>, vector<4x128xf32> -> vector<4x128xf32>
    %c0_16 = arith.constant 0 : index
    %c1 = arith.constant 1 : index
    %c0_17 = arith.constant 0 : index
    %c0_18 = arith.constant 0 : index
    %15 = vector.load %arg1[%c0_16, %c1, %c0_17, %c0_18] : memref<1x3x3x512xbf16, #tpu.memory_space<vmem>>, vector<1x2x2x256xbf16>
    %16 = vector.shape_cast %15 : vector<1x2x2x256xbf16> to vector<2x2x256xbf16>
    %17 = vector.shape_cast %16 : vector<2x2x256xbf16> to vector<4x256xbf16>
    %cst_19 = arith.constant dense<0.000000e+00> : vector<4x128xf32>
    %18 = tpu.matmul %17, %4, %cst_19 {dimension_numbers = #tpu.dot_dimension_numbers<[1], [0], [0], [1], [0, 0, 1, 1], [], []>} : vector<4x256xbf16>, vector<256x128xbf16>, vector<4x128xf32> -> vector<4x128xf32>
    %19 = arith.addf %14, %18 : vector<4x128xf32>
    %c0_20 = arith.constant 0 : index
    %c0_21 = arith.constant 0 : index
    %c1_22 = arith.constant 1 : index
    %c0_23 = arith.constant 0 : index
    %20 = vector.load %arg1[%c0_20, %c0_21, %c1_22, %c0_23] : memref<1x3x3x512xbf16, #tpu.memory_space<vmem>>, vector<1x2x2x128xbf16>
    %21 = vector.shape_cast %20 : vector<1x2x2x128xbf16> to vector<2x2x128xbf16>
    %22 = vector.shape_cast %21 : vector<2x2x128xbf16> to vector<4x128xbf16>
    %cst_24 = arith.constant dense<0.000000e+00> : vector<4x128xf32>
    %23 = tpu.matmul %22, %6, %cst_24 {dimension_numbers = #tpu.dot_dimension_numbers<[1], [0], [0], [1], [0, 0, 1, 1], [], []>} : vector<4x128xbf16>, vector<128x128xbf16>, vector<4x128xf32> -> vector<4x128xf32>
    %24 = arith.addf %19, %23 : vector<4x128xf32>
    %c0_25 = arith.constant 0 : index
    %c0_26 = arith.constant 0 : index
    %c1_27 = arith.constant 1 : index
    %c256 = arith.constant 256 : index
    %25 = vector.load %arg1[%c0_25, %c0_26, %c1_27, %c256] : memref<1x3x3x512xbf16, #tpu.memory_space<vmem>>, vector<1x2x2x128xbf16>
    %26 = vector.shape_cast %25 : vector<1x2x2x128xbf16> to vector<2x2x128xbf16>
    %27 = vector.shape_cast %26 : vector<2x2x128xbf16> to vector<4x128xbf16>
    %cst_28 = arith.constant dense<0.000000e+00> : vector<4x128xf32>
    %28 = tpu.matmul %27, %8, %cst_28 {dimension_numbers = #tpu.dot_dimension_numbers<[1], [0], [0], [1], [0, 0, 1, 1], [], []>} : vector<4x128xbf16>, vector<128x128xbf16>, vector<4x128xf32> -> vector<4x128xf32>
    %29 = arith.addf %24, %28 : vector<4x128xf32>
    %c0_29 = arith.constant 0 : index
    %c1_30 = arith.constant 1 : index
    %c1_31 = arith.constant 1 : index
    %c0_32 = arith.constant 0 : index
    %30 = vector.load %arg1[%c0_29, %c1_30, %c1_31, %c0_32] : memref<1x3x3x512xbf16, #tpu.memory_space<vmem>>, vector<1x2x2x128xbf16>
    %31 = vector.shape_cast %30 : vector<1x2x2x128xbf16> to vector<2x2x128xbf16>
    %32 = vector.shape_cast %31 : vector<2x2x128xbf16> to vector<4x128xbf16>
    %cst_33 = arith.constant dense<0.000000e+00> : vector<4x128xf32>
    %33 = tpu.matmul %32, %10, %cst_33 {dimension_numbers = #tpu.dot_dimension_numbers<[1], [0], [0], [1], [0, 0, 1, 1], [], []>} : vector<4x128xbf16>, vector<128x128xbf16>, vector<4x128xf32> -> vector<4x128xf32>
    %34 = arith.addf %29, %33 : vector<4x128xf32>
    %35 = vector.broadcast %0 : vector<1x128xf32> to vector<4x128xf32>
    %36 = arith.addf %34, %35 : vector<4x128xf32>
    %cst_34 = arith.constant 0.000000e+00 : f32
    %37 = vector.broadcast %cst_34 : f32 to vector<4x128xf32>
    %38 = arith.maximumf %36, %37 : vector<4x128xf32>
    %39 = vector.shape_cast %38 : vector<4x128xf32> to vector<2x2x128xf32>
    %40 = arith.truncf %39 : vector<2x2x128xf32> to vector<2x2x128xbf16>
    %c0_35 = arith.constant 0 : index
    %c0_36 = arith.constant 0 : index
    %c0_37 = arith.constant 0 : index
    %c0_38 = arith.constant 0 : index
    %41 = vector.load %arg4[%c0_35, %c0_36, %c0_37, %c0_38] : memref<1x2x2x128xbf16, #tpu.memory_space<vmem>>, vector<1x2x2x128xbf16>
    %42 = vector.shape_cast %41 : vector<1x2x2x128xbf16> to vector<2x2x128xbf16>
    %43 = vector.shape_cast %40 : vector<2x2x128xbf16> to vector<1x2x2x128xbf16>
    tpu.vector_store %arg4[%c0_35, %c0_36, %c0_37, %c0_38], %43 {strides = array<i32>} : memref<1x2x2x128xbf16, #tpu.memory_space<vmem>>, vector<1x2x2x128xbf16>,
    return
  }
  func.func @transform_0(%arg0: i32) -> (i32, i32, i32, i32) {
    %c0_i32 = arith.constant 0 : i32
    %c0_i32_0 = arith.constant 0 : i32
    %c0_i32_1 = arith.constant 0 : i32
    %c0_i32_2 = arith.constant 0 : i32
    return %arg0, %c0_i32, %c0_i32_0, %c0_i32_1 : i32, i32, i32, i32
  }
  func.func @transform_1(%arg0: i32) -> (i32, i32, i32) {
    %c0_i32 = arith.constant 0 : i32
    %c0_i32_0 = arith.constant 0 : i32
    %c0_i32_1 = arith.constant 0 : i32
    %c0_i32_2 = arith.constant 0 : i32
    return %c0_i32, %c0_i32_0, %c0_i32_1 : i32, i32, i32
  }
  func.func @transform_2(%arg0: i32) -> (i32, i32) {
    %c0_i32 = arith.constant 0 : i32
    %c0_i32_0 = arith.constant 0 : i32
    %c0_i32_1 = arith.constant 0 : i32
    return %c0_i32, %c0_i32_0 : i32, i32
  }
  func.func @transform_3(%arg0: i32) -> (i32, i32, i32, i32) {
    %c0_i32 = arith.constant 0 : i32
    %c0_i32_0 = arith.constant 0 : i32
    %c0_i32_1 = arith.constant 0 : i32
    %c0_i32_2 = arith.constant 0 : i32
    return %arg0, %c0_i32, %c0_i32_0, %c0_i32_1 : i32, i32, i32, i32
  }
}

module attributes {stable_mosaic.version = 11 : i64} {
  func.func @_matmul_kernel(%arg0: i32, %arg1: i32, %arg2: i32, %arg3: i32, %arg4: memref<8x256xbf16, #tpu.memory_space<vmem>>, %arg5: memref<256x128xbf16, #tpu.memory_space<vmem>>, %arg6: memref<1x128xf32, #tpu.memory_space<vmem>>, %arg7: memref<1x8x128xf32, #tpu.memory_space<vmem>>, %arg8: memref<8x128xf32, #tpu.memory_space<vmem>>) attributes {dimension_semantics = [#tpu.dimension_semantics<parallel>, #tpu.dimension_semantics<parallel>, #tpu.dimension_semantics<parallel>, #tpu.dimension_semantics<arbitrary>], iteration_bounds = array<i64: 2, 1, 1, 1>, scalar_prefetch = 0 : i64, scratch_operands = 1 : i64, tpu.core_type = #tpu.core_type<tc>, window_params = [{transform_indices = @transform_0, window_bounds = array<i64: 8, 256>}, {transform_indices = @transform_1, window_bounds = array<i64: 256, 128>}, {transform_indices = @transform_2, window_bounds = array<i64: 1, 128>}, {transform_indices = @transform_3, window_bounds = array<i64: 1, 8, 128>}]} {
    %c0_i32 = arith.constant 0 : i32
    %0 = arith.cmpi eq, %arg3, %c0_i32 : i32
    %1 = arith.extui %0 : i1 to i32
    %c0_i32_0 = arith.constant 0 : i32
    %2 = arith.cmpi ne, %1, %c0_i32_0 : i32
    scf.if %2 {
      %cst_10 = arith.constant 0.000000e+00 : f32
      %12 = vector.broadcast %cst_10 : f32 to vector<8x128xf32>
      %c0_11 = arith.constant 0 : index
      %c0_12 = arith.constant 0 : index
      %13 = vector.load %arg8[%c0_11, %c0_12] : memref<8x128xf32, #tpu.memory_space<vmem>>, vector<8x128xf32>
      tpu.vector_store %arg8[%c0_11, %c0_12], %12 {strides = array<i32>} : memref<8x128xf32, #tpu.memory_space<vmem>>, vector<8x128xf32>,
    } else {
    }
    %c0 = arith.constant 0 : index
    %c0_1 = arith.constant 0 : index
    %3 = vector.load %arg8[%c0, %c0_1] : memref<8x128xf32, #tpu.memory_space<vmem>>, vector<8x128xf32>
    %c0_2 = arith.constant 0 : index
    %c0_3 = arith.constant 0 : index
    %4 = vector.load %arg4[%c0_2, %c0_3] : memref<8x256xbf16, #tpu.memory_space<vmem>>, vector<8x256xbf16>
    %c0_4 = arith.constant 0 : index
    %c0_5 = arith.constant 0 : index
    %5 = vector.load %arg5[%c0_4, %c0_5] : memref<256x128xbf16, #tpu.memory_space<vmem>>, vector<256x128xbf16>
    %cst = arith.constant dense<0.000000e+00> : vector<8x128xf32>
    %6 = tpu.matmul %4, %5, %cst {dimension_numbers = #tpu.dot_dimension_numbers<[1], [0], [0], [1], [0, 0, 1, 1], [], []>} : vector<8x256xbf16>, vector<256x128xbf16>, vector<8x128xf32> -> vector<8x128xf32>
    %7 = arith.addf %3, %6 : vector<8x128xf32>
    %c0_6 = arith.constant 0 : index
    %c0_7 = arith.constant 0 : index
    %8 = vector.load %arg8[%c0_6, %c0_7] : memref<8x128xf32, #tpu.memory_space<vmem>>, vector<8x128xf32>
    tpu.vector_store %arg8[%c0_6, %c0_7], %7 {strides = array<i32>} : memref<8x128xf32, #tpu.memory_space<vmem>>, vector<8x128xf32>,
    %c0_i32_8 = arith.constant 0 : i32
    %9 = arith.cmpi eq, %arg3, %c0_i32_8 : i32
    %10 = arith.extui %9 : i1 to i32
    %c0_i32_9 = arith.constant 0 : i32
    %11 = arith.cmpi ne, %10, %c0_i32_9 : i32
    scf.if %11 {
      %c0_10 = arith.constant 0 : index
      %c0_11 = arith.constant 0 : index
      %12 = vector.load %arg8[%c0_10, %c0_11] : memref<8x128xf32, #tpu.memory_space<vmem>>, vector<8x128xf32>
      %c0_12 = arith.constant 0 : index
      %c0_13 = arith.constant 0 : index
      %c0_14 = arith.constant 0 : index
      %13 = vector.load %arg7[%c0_12, %c0_13, %c0_14] : memref<1x8x128xf32, #tpu.memory_space<vmem>>, vector<1x8x128xf32>
      %14 = vector.shape_cast %13 : vector<1x8x128xf32> to vector<8x128xf32>
      %15 = vector.shape_cast %12 : vector<8x128xf32> to vector<1x8x128xf32>
      tpu.vector_store %arg7[%c0_12, %c0_13, %c0_14], %15 {strides = array<i32>} : memref<1x8x128xf32, #tpu.memory_space<vmem>>, vector<1x8x128xf32>,
    } else {
    }
    return
  }
  func.func @transform_0(%arg0: i32, %arg1: i32, %arg2: i32, %arg3: i32) -> (i32, i32) {
    %c1_i32 = arith.constant 1 : i32
    %0 = arith.muli %arg0, %c1_i32 : i32
    %1 = arith.addi %0, %arg3 : i32
    %c0_i32 = arith.constant 0 : i32
    return %arg1, %1 : i32, i32
  }
  func.func @transform_1(%arg0: i32, %arg1: i32, %arg2: i32, %arg3: i32) -> (i32, i32) {
    %c1_i32 = arith.constant 1 : i32
    %0 = arith.muli %arg0, %c1_i32 : i32
    %1 = arith.addi %0, %arg3 : i32
    %c0_i32 = arith.constant 0 : i32
    return %1, %arg2 : i32, i32
  }
  func.func @transform_2(%arg0: i32, %arg1: i32, %arg2: i32, %arg3: i32) -> (i32, i32) {
    %c0_i32 = arith.constant 0 : i32
    %c0_i32_0 = arith.constant 0 : i32
    return %c0_i32, %arg2 : i32, i32
  }
  func.func @transform_3(%arg0: i32, %arg1: i32, %arg2: i32, %arg3: i32) -> (i32, i32, i32) {
    %c0_i32 = arith.constant 0 : i32
    return %arg0, %arg1, %arg2 : i32, i32, i32
  }
}

module attributes {stable_mosaic.version = 11 : i64} {
  func.func @_matmul_kernel(%arg0: i32, %arg1: i32, %arg2: i32, %arg3: i32, %arg4: memref<8x128xbf16, #tpu.memory_space<vmem>>, %arg5: memref<128x512xbf16, #tpu.memory_space<vmem>>, %arg6: memref<1x512xf32, #tpu.memory_space<vmem>>, %arg7: memref<1x8x512xbf16, #tpu.memory_space<vmem>>, %arg8: memref<8x512xf32, #tpu.memory_space<vmem>>) attributes {dimension_semantics = [#tpu.dimension_semantics<parallel>, #tpu.dimension_semantics<parallel>, #tpu.dimension_semantics<parallel>, #tpu.dimension_semantics<arbitrary>], iteration_bounds = array<i64: 1, 1, 1, 1>, scalar_prefetch = 0 : i64, scratch_operands = 1 : i64, tpu.core_type = #tpu.core_type<tc>, window_params = [{transform_indices = @transform_0, window_bounds = array<i64: 8, 128>}, {transform_indices = @transform_1, window_bounds = array<i64: 128, 512>}, {transform_indices = @transform_2, window_bounds = array<i64: 1, 512>}, {transform_indices = @transform_3, window_bounds = array<i64: 1, 8, 512>}]} {
    %c0_i32 = arith.constant 0 : i32
    %0 = arith.cmpi eq, %arg3, %c0_i32 : i32
    %1 = arith.extui %0 : i1 to i32
    %c0_i32_0 = arith.constant 0 : i32
    %2 = arith.cmpi ne, %1, %c0_i32_0 : i32
    scf.if %2 {
      %cst_10 = arith.constant 0.000000e+00 : f32
      %12 = vector.broadcast %cst_10 : f32 to vector<8x512xf32>
      %c0_11 = arith.constant 0 : index
      %c0_12 = arith.constant 0 : index
      %13 = vector.load %arg8[%c0_11, %c0_12] : memref<8x512xf32, #tpu.memory_space<vmem>>, vector<8x512xf32>
      tpu.vector_store %arg8[%c0_11, %c0_12], %12 {strides = array<i32>} : memref<8x512xf32, #tpu.memory_space<vmem>>, vector<8x512xf32>,
    } else {
    }
    %c0 = arith.constant 0 : index
    %c0_1 = arith.constant 0 : index
    %3 = vector.load %arg8[%c0, %c0_1] : memref<8x512xf32, #tpu.memory_space<vmem>>, vector<8x512xf32>
    %c0_2 = arith.constant 0 : index
    %c0_3 = arith.constant 0 : index
    %4 = vector.load %arg4[%c0_2, %c0_3] : memref<8x128xbf16, #tpu.memory_space<vmem>>, vector<8x128xbf16>
    %c0_4 = arith.constant 0 : index
    %c0_5 = arith.constant 0 : index
    %5 = vector.load %arg5[%c0_4, %c0_5] : memref<128x512xbf16, #tpu.memory_space<vmem>>, vector<128x512xbf16>
    %cst = arith.constant dense<0.000000e+00> : vector<8x512xf32>
    %6 = tpu.matmul %4, %5, %cst {dimension_numbers = #tpu.dot_dimension_numbers<[1], [0], [0], [1], [0, 0, 1, 1], [], []>} : vector<8x128xbf16>, vector<128x512xbf16>, vector<8x512xf32> -> vector<8x512xf32>
    %7 = arith.addf %3, %6 : vector<8x512xf32>
    %c0_6 = arith.constant 0 : index
    %c0_7 = arith.constant 0 : index
    %8 = vector.load %arg8[%c0_6, %c0_7] : memref<8x512xf32, #tpu.memory_space<vmem>>, vector<8x512xf32>
    tpu.vector_store %arg8[%c0_6, %c0_7], %7 {strides = array<i32>} : memref<8x512xf32, #tpu.memory_space<vmem>>, vector<8x512xf32>,
    %c0_i32_8 = arith.constant 0 : i32
    %9 = arith.cmpi eq, %arg3, %c0_i32_8 : i32
    %10 = arith.extui %9 : i1 to i32
    %c0_i32_9 = arith.constant 0 : i32
    %11 = arith.cmpi ne, %10, %c0_i32_9 : i32
    scf.if %11 {
      %c0_10 = arith.constant 0 : index
      %c0_11 = arith.constant 0 : index
      %12 = vector.load %arg8[%c0_10, %c0_11] : memref<8x512xf32, #tpu.memory_space<vmem>>, vector<8x512xf32>
      %c0_12 = arith.constant 0 : index
      %c0_13 = arith.constant 0 : index
      %13 = vector.load %arg6[%c0_12, %c0_13] : memref<1x512xf32, #tpu.memory_space<vmem>>, vector<1x512xf32>
      %14 = vector.broadcast %13 : vector<1x512xf32> to vector<8x512xf32>
      %15 = arith.addf %12, %14 : vector<8x512xf32>
      %cst_14 = arith.constant 0.000000e+00 : f32
      %16 = vector.broadcast %cst_14 : f32 to vector<8x512xf32>
      %17 = arith.maximumf %15, %16 : vector<8x512xf32>
      %18 = arith.truncf %17 : vector<8x512xf32> to vector<8x512xbf16>
      %c0_15 = arith.constant 0 : index
      %c0_16 = arith.constant 0 : index
      %c0_17 = arith.constant 0 : index
      %19 = vector.load %arg7[%c0_15, %c0_16, %c0_17] : memref<1x8x512xbf16, #tpu.memory_space<vmem>>, vector<1x8x512xbf16>
      %20 = vector.shape_cast %19 : vector<1x8x512xbf16> to vector<8x512xbf16>
      %21 = vector.shape_cast %18 : vector<8x512xbf16> to vector<1x8x512xbf16>
      tpu.vector_store %arg7[%c0_15, %c0_16, %c0_17], %21 {strides = array<i32>} : memref<1x8x512xbf16, #tpu.memory_space<vmem>>, vector<1x8x512xbf16>,
    } else {
    }
    return
  }
  func.func @transform_0(%arg0: i32, %arg1: i32, %arg2: i32, %arg3: i32) -> (i32, i32) {
    %c1_i32 = arith.constant 1 : i32
    %0 = arith.muli %arg0, %c1_i32 : i32
    %1 = arith.addi %0, %arg3 : i32
    %c0_i32 = arith.constant 0 : i32
    return %arg1, %1 : i32, i32
  }
  func.func @transform_1(%arg0: i32, %arg1: i32, %arg2: i32, %arg3: i32) -> (i32, i32) {
    %c1_i32 = arith.constant 1 : i32
    %0 = arith.muli %arg0, %c1_i32 : i32
    %1 = arith.addi %0, %arg3 : i32
    %c0_i32 = arith.constant 0 : i32
    return %1, %arg2 : i32, i32
  }
  func.func @transform_2(%arg0: i32, %arg1: i32, %arg2: i32, %arg3: i32) -> (i32, i32) {
    %c0_i32 = arith.constant 0 : i32
    %c0_i32_0 = arith.constant 0 : i32
    return %c0_i32, %arg2 : i32, i32
  }
  func.func @transform_3(%arg0: i32, %arg1: i32, %arg2: i32, %arg3: i32) -> (i32, i32, i32) {
    %c0_i32 = arith.constant 0 : i32
    return %arg0, %arg1, %arg2 : i32, i32, i32
  }
}

module attributes {stable_mosaic.version = 11 : i64} {
  func.func @_deconv_kernel(%arg0: i32, %arg1: memref<1x3x3x128xbf16, #tpu.memory_space<vmem>>, %arg2: memref<9x128x128xbf16, #tpu.memory_space<vmem>>, %arg3: memref<1x128xf32, #tpu.memory_space<vmem>>, %arg4: memref<2x2x1x2x2x128xbf16, #tpu.memory_space<vmem>>) attributes {dimension_semantics = [#tpu.dimension_semantics<parallel>], iteration_bounds = array<i64: 2>, scalar_prefetch = 0 : i64, scratch_operands = 0 : i64, tpu.core_type = #tpu.core_type<tc>, window_params = [{transform_indices = @transform_0, window_bounds = array<i64: 1, 3, 3, 128>}, {pipeline_mode = #tpu.pipeline_mode<synchronous>, transform_indices = @transform_1, window_bounds = array<i64: 9, 128, 128>}, {pipeline_mode = #tpu.pipeline_mode<synchronous>, transform_indices = @transform_2, window_bounds = array<i64: 1, 128>}, {transform_indices = @transform_3, window_bounds = array<i64: 2, 2, 1, 2, 2, 128>}]} {
    %c0 = arith.constant 0 : index
    %c0_0 = arith.constant 0 : index
    %0 = vector.load %arg3[%c0, %c0_0] : memref<1x128xf32, #tpu.memory_space<vmem>>, vector<1x128xf32>
    %c0_1 = arith.constant 0 : index
    %c0_2 = arith.constant 0 : index
    %c0_3 = arith.constant 0 : index
    %c0_4 = arith.constant 0 : index
    %1 = vector.load %arg1[%c0_1, %c0_2, %c0_3, %c0_4] : memref<1x3x3x128xbf16, #tpu.memory_space<vmem>>, vector<1x2x2x128xbf16>
    %2 = vector.shape_cast %1 : vector<1x2x2x128xbf16> to vector<2x2x128xbf16>
    %3 = vector.shape_cast %2 : vector<2x2x128xbf16> to vector<4x128xbf16>
    %c0_5 = arith.constant 0 : index
    %c0_6 = arith.constant 0 : index
    %c0_7 = arith.constant 0 : index
    %4 = vector.load %arg2[%c0_5, %c0_6, %c0_7] : memref<9x128x128xbf16, #tpu.memory_space<vmem>>, vector<1x128x128xbf16>
    %5 = vector.shape_cast %4 : vector<1x128x128xbf16> to vector<128x128xbf16>
    %cst = arith.constant dense<0.000000e+00> : vector<4x128xf32>
    %6 = tpu.matmul %3, %5, %cst {dimension_numbers = #tpu.dot_dimension_numbers<[1], [0], [0], [1], [0, 0, 1, 1], [], []>} : vector<4x128xbf16>, vector<128x128xbf16>, vector<4x128xf32> -> vector<4x128xf32>
    %7 = vector.broadcast %0 : vector<1x128xf32> to vector<4x128xf32>
    %8 = arith.addf %6, %7 : vector<4x128xf32>
    %cst_8 = arith.constant 0.000000e+00 : f32
    %9 = vector.broadcast %cst_8 : f32 to vector<4x128xf32>
    %10 = arith.maximumf %8, %9 : vector<4x128xf32>
    %11 = vector.shape_cast %10 : vector<4x128xf32> to vector<2x2x128xf32>
    %12 = arith.truncf %11 : vector<2x2x128xf32> to vector<2x2x128xbf16>
    %c0_9 = arith.constant 0 : index
    %c0_10 = arith.constant 0 : index
    %c0_11 = arith.constant 0 : index
    %c0_12 = arith.constant 0 : index
    %c0_13 = arith.constant 0 : index
    %c0_14 = arith.constant 0 : index
    %13 = vector.load %arg4[%c0_9, %c0_10, %c0_11, %c0_12, %c0_13, %c0_14] : memref<2x2x1x2x2x128xbf16, #tpu.memory_space<vmem>>, vector<1x1x1x2x2x128xbf16>
    %14 = vector.shape_cast %13 : vector<1x1x1x2x2x128xbf16> to vector<2x2x128xbf16>
    %15 = vector.shape_cast %12 : vector<2x2x128xbf16> to vector<1x1x1x2x2x128xbf16>
    tpu.vector_store %arg4[%c0_9, %c0_10, %c0_11, %c0_12, %c0_13, %c0_14], %15 {strides = array<i32>} : memref<2x2x1x2x2x128xbf16, #tpu.memory_space<vmem>>, vector<1x1x1x2x2x128xbf16>,
    %c0_15 = arith.constant 0 : index
    %c0_16 = arith.constant 0 : index
    %c0_17 = arith.constant 0 : index
    %c0_18 = arith.constant 0 : index
    %16 = vector.load %arg1[%c0_15, %c0_16, %c0_17, %c0_18] : memref<1x3x3x128xbf16, #tpu.memory_space<vmem>>, vector<1x2x2x128xbf16>
    %17 = vector.shape_cast %16 : vector<1x2x2x128xbf16> to vector<2x2x128xbf16>
    %18 = vector.shape_cast %17 : vector<2x2x128xbf16> to vector<4x128xbf16>
    %c1 = arith.constant 1 : index
    %c0_19 = arith.constant 0 : index
    %c0_20 = arith.constant 0 : index
    %19 = vector.load %arg2[%c1, %c0_19, %c0_20] : memref<9x128x128xbf16, #tpu.memory_space<vmem>>, vector<1x128x128xbf16>
    %20 = vector.shape_cast %19 : vector<1x128x128xbf16> to vector<128x128xbf16>
    %cst_21 = arith.constant dense<0.000000e+00> : vector<4x128xf32>
    %21 = tpu.matmul %18, %20, %cst_21 {dimension_numbers = #tpu.dot_dimension_numbers<[1], [0], [0], [1], [0, 0, 1, 1], [], []>} : vector<4x128xbf16>, vector<128x128xbf16>, vector<4x128xf32> -> vector<4x128xf32>
    %c0_22 = arith.constant 0 : index
    %c0_23 = arith.constant 0 : index
    %c1_24 = arith.constant 1 : index
    %c0_25 = arith.constant 0 : index
    %22 = vector.load %arg1[%c0_22, %c0_23, %c1_24, %c0_25] : memref<1x3x3x128xbf16, #tpu.memory_space<vmem>>, vector<1x2x2x128xbf16>
    %23 = vector.shape_cast %22 : vector<1x2x2x128xbf16> to vector<2x2x128xbf16>
    %24 = vector.shape_cast %23 : vector<2x2x128xbf16> to vector<4x128xbf16>
    %c2 = arith.constant 2 : index
    %c0_26 = arith.constant 0 : index
    %c0_27 = arith.constant 0 : index
    %25 = vector.load %arg2[%c2, %c0_26, %c0_27] : memref<9x128x128xbf16, #tpu.memory_space<vmem>>, vector<1x128x128xbf16>
    %26 = vector.shape_cast %25 : vector<1x128x128xbf16> to vector<128x128xbf16>
    %cst_28 = arith.constant dense<0.000000e+00> : vector<4x128xf32>
    %27 = tpu.matmul %24, %26, %cst_28 {dimension_numbers = #tpu.dot_dimension_numbers<[1], [0], [0], [1], [0, 0, 1, 1], [], []>} : vector<4x128xbf16>, vector<128x128xbf16>, vector<4x128xf32> -> vector<4x128xf32>
    %28 = arith.addf %21, %27 : vector<4x128xf32>
    %29 = vector.broadcast %0 : vector<1x128xf32> to vector<4x128xf32>
    %30 = arith.addf %28, %29 : vector<4x128xf32>
    %cst_29 = arith.constant 0.000000e+00 : f32
    %31 = vector.broadcast %cst_29 : f32 to vector<4x128xf32>
    %32 = arith.maximumf %30, %31 : vector<4x128xf32>
    %33 = vector.shape_cast %32 : vector<4x128xf32> to vector<2x2x128xf32>
    %34 = arith.truncf %33 : vector<2x2x128xf32> to vector<2x2x128xbf16>
    %c0_30 = arith.constant 0 : index
    %c1_31 = arith.constant 1 : index
    %c0_32 = arith.constant 0 : index
    %c0_33 = arith.constant 0 : index
    %c0_34 = arith.constant 0 : index
    %c0_35 = arith.constant 0 : index
    %35 = vector.load %arg4[%c0_30, %c1_31, %c0_32, %c0_33, %c0_34, %c0_35] : memref<2x2x1x2x2x128xbf16, #tpu.memory_space<vmem>>, vector<1x1x1x2x2x128xbf16>
    %36 = vector.shape_cast %35 : vector<1x1x1x2x2x128xbf16> to vector<2x2x128xbf16>
    %37 = vector.shape_cast %34 : vector<2x2x128xbf16> to vector<1x1x1x2x2x128xbf16>
    tpu.vector_store %arg4[%c0_30, %c1_31, %c0_32, %c0_33, %c0_34, %c0_35], %37 {strides = array<i32>} : memref<2x2x1x2x2x128xbf16, #tpu.memory_space<vmem>>, vector<1x1x1x2x2x128xbf16>,
    %c0_36 = arith.constant 0 : index
    %c0_37 = arith.constant 0 : index
    %c0_38 = arith.constant 0 : index
    %c0_39 = arith.constant 0 : index
    %38 = vector.load %arg1[%c0_36, %c0_37, %c0_38, %c0_39] : memref<1x3x3x128xbf16, #tpu.memory_space<vmem>>, vector<1x2x2x128xbf16>
    %39 = vector.shape_cast %38 : vector<1x2x2x128xbf16> to vector<2x2x128xbf16>
    %40 = vector.shape_cast %39 : vector<2x2x128xbf16> to vector<4x128xbf16>
    %c3 = arith.constant 3 : index
    %c0_40 = arith.constant 0 : index
    %c0_41 = arith.constant 0 : index
    %41 = vector.load %arg2[%c3, %c0_40, %c0_41] : memref<9x128x128xbf16, #tpu.memory_space<vmem>>, vector<1x128x128xbf16>
    %42 = vector.shape_cast %41 : vector<1x128x128xbf16> to vector<128x128xbf16>
    %cst_42 = arith.constant dense<0.000000e+00> : vector<4x128xf32>
    %43 = tpu.matmul %40, %42, %cst_42 {dimension_numbers = #tpu.dot_dimension_numbers<[1], [0], [0], [1], [0, 0, 1, 1], [], []>} : vector<4x128xbf16>, vector<128x128xbf16>, vector<4x128xf32> -> vector<4x128xf32>
    %c0_43 = arith.constant 0 : index
    %c1_44 = arith.constant 1 : index
    %c0_45 = arith.constant 0 : index
    %c0_46 = arith.constant 0 : index
    %44 = vector.load %arg1[%c0_43, %c1_44, %c0_45, %c0_46] : memref<1x3x3x128xbf16, #tpu.memory_space<vmem>>, vector<1x2x2x128xbf16>
    %45 = vector.shape_cast %44 : vector<1x2x2x128xbf16> to vector<2x2x128xbf16>
    %46 = vector.shape_cast %45 : vector<2x2x128xbf16> to vector<4x128xbf16>
    %c4 = arith.constant 4 : index
    %c0_47 = arith.constant 0 : index
    %c0_48 = arith.constant 0 : index
    %47 = vector.load %arg2[%c4, %c0_47, %c0_48] : memref<9x128x128xbf16, #tpu.memory_space<vmem>>, vector<1x128x128xbf16>
    %48 = vector.shape_cast %47 : vector<1x128x128xbf16> to vector<128x128xbf16>
    %cst_49 = arith.constant dense<0.000000e+00> : vector<4x128xf32>
    %49 = tpu.matmul %46, %48, %cst_49 {dimension_numbers = #tpu.dot_dimension_numbers<[1], [0], [0], [1], [0, 0, 1, 1], [], []>} : vector<4x128xbf16>, vector<128x128xbf16>, vector<4x128xf32> -> vector<4x128xf32>
    %50 = arith.addf %43, %49 : vector<4x128xf32>
    %51 = vector.broadcast %0 : vector<1x128xf32> to vector<4x128xf32>
    %52 = arith.addf %50, %51 : vector<4x128xf32>
    %cst_50 = arith.constant 0.000000e+00 : f32
    %53 = vector.broadcast %cst_50 : f32 to vector<4x128xf32>
    %54 = arith.maximumf %52, %53 : vector<4x128xf32>
    %55 = vector.shape_cast %54 : vector<4x128xf32> to vector<2x2x128xf32>
    %56 = arith.truncf %55 : vector<2x2x128xf32> to vector<2x2x128xbf16>
    %c1_51 = arith.constant 1 : index
    %c0_52 = arith.constant 0 : index
    %c0_53 = arith.constant 0 : index
    %c0_54 = arith.constant 0 : index
    %c0_55 = arith.constant 0 : index
    %c0_56 = arith.constant 0 : index
    %57 = vector.load %arg4[%c1_51, %c0_52, %c0_53, %c0_54, %c0_55, %c0_56] : memref<2x2x1x2x2x128xbf16, #tpu.memory_space<vmem>>, vector<1x1x1x2x2x128xbf16>
    %58 = vector.shape_cast %57 : vector<1x1x1x2x2x128xbf16> to vector<2x2x128xbf16>
    %59 = vector.shape_cast %56 : vector<2x2x128xbf16> to vector<1x1x1x2x2x128xbf16>
    tpu.vector_store %arg4[%c1_51, %c0_52, %c0_53, %c0_54, %c0_55, %c0_56], %59 {strides = array<i32>} : memref<2x2x1x2x2x128xbf16, #tpu.memory_space<vmem>>, vector<1x1x1x2x2x128xbf16>,
    %c0_57 = arith.constant 0 : index
    %c0_58 = arith.constant 0 : index
    %c0_59 = arith.constant 0 : index
    %c0_60 = arith.constant 0 : index
    %60 = vector.load %arg1[%c0_57, %c0_58, %c0_59, %c0_60] : memref<1x3x3x128xbf16, #tpu.memory_space<vmem>>, vector<1x2x2x128xbf16>
    %61 = vector.shape_cast %60 : vector<1x2x2x128xbf16> to vector<2x2x128xbf16>
    %62 = vector.shape_cast %61 : vector<2x2x128xbf16> to vector<4x128xbf16>
    %c5 = arith.constant 5 : index
    %c0_61 = arith.constant 0 : index
    %c0_62 = arith.constant 0 : index
    %63 = vector.load %arg2[%c5, %c0_61, %c0_62] : memref<9x128x128xbf16, #tpu.memory_space<vmem>>, vector<1x128x128xbf16>
    %64 = vector.shape_cast %63 : vector<1x128x128xbf16> to vector<128x128xbf16>
    %cst_63 = arith.constant dense<0.000000e+00> : vector<4x128xf32>
    %65 = tpu.matmul %62, %64, %cst_63 {dimension_numbers = #tpu.dot_dimension_numbers<[1], [0], [0], [1], [0, 0, 1, 1], [], []>} : vector<4x128xbf16>, vector<128x128xbf16>, vector<4x128xf32> -> vector<4x128xf32>
    %c0_64 = arith.constant 0 : index
    %c0_65 = arith.constant 0 : index
    %c1_66 = arith.constant 1 : index
    %c0_67 = arith.constant 0 : index
    %66 = vector.load %arg1[%c0_64, %c0_65, %c1_66, %c0_67] : memref<1x3x3x128xbf16, #tpu.memory_space<vmem>>, vector<1x2x2x128xbf16>
    %67 = vector.shape_cast %66 : vector<1x2x2x128xbf16> to vector<2x2x128xbf16>
    %68 = vector.shape_cast %67 : vector<2x2x128xbf16> to vector<4x128xbf16>
    %c6 = arith.constant 6 : index
    %c0_68 = arith.constant 0 : index
    %c0_69 = arith.constant 0 : index
    %69 = vector.load %arg2[%c6, %c0_68, %c0_69] : memref<9x128x128xbf16, #tpu.memory_space<vmem>>, vector<1x128x128xbf16>
    %70 = vector.shape_cast %69 : vector<1x128x128xbf16> to vector<128x128xbf16>
    %cst_70 = arith.constant dense<0.000000e+00> : vector<4x128xf32>
    %71 = tpu.matmul %68, %70, %cst_70 {dimension_numbers = #tpu.dot_dimension_numbers<[1], [0], [0], [1], [0, 0, 1, 1], [], []>} : vector<4x128xbf16>, vector<128x128xbf16>, vector<4x128xf32> -> vector<4x128xf32>
    %72 = arith.addf %65, %71 : vector<4x128xf32>
    %c0_71 = arith.constant 0 : index
    %c1_72 = arith.constant 1 : index
    %c0_73 = arith.constant 0 : index
    %c0_74 = arith.constant 0 : index
    %73 = vector.load %arg1[%c0_71, %c1_72, %c0_73, %c0_74] : memref<1x3x3x128xbf16, #tpu.memory_space<vmem>>, vector<1x2x2x128xbf16>
    %74 = vector.shape_cast %73 : vector<1x2x2x128xbf16> to vector<2x2x128xbf16>
    %75 = vector.shape_cast %74 : vector<2x2x128xbf16> to vector<4x128xbf16>
    %c7 = arith.constant 7 : index
    %c0_75 = arith.constant 0 : index
    %c0_76 = arith.constant 0 : index
    %76 = vector.load %arg2[%c7, %c0_75, %c0_76] : memref<9x128x128xbf16, #tpu.memory_space<vmem>>, vector<1x128x128xbf16>
    %77 = vector.shape_cast %76 : vector<1x128x128xbf16> to vector<128x128xbf16>
    %cst_77 = arith.constant dense<0.000000e+00> : vector<4x128xf32>
    %78 = tpu.matmul %75, %77, %cst_77 {dimension_numbers = #tpu.dot_dimension_numbers<[1], [0], [0], [1], [0, 0, 1, 1], [], []>} : vector<4x128xbf16>, vector<128x128xbf16>, vector<4x128xf32> -> vector<4x128xf32>
    %79 = arith.addf %72, %78 : vector<4x128xf32>
    %c0_78 = arith.constant 0 : index
    %c1_79 = arith.constant 1 : index
    %c1_80 = arith.constant 1 : index
    %c0_81 = arith.constant 0 : index
    %80 = vector.load %arg1[%c0_78, %c1_79, %c1_80, %c0_81] : memref<1x3x3x128xbf16, #tpu.memory_space<vmem>>, vector<1x2x2x128xbf16>
    %81 = vector.shape_cast %80 : vector<1x2x2x128xbf16> to vector<2x2x128xbf16>
    %82 = vector.shape_cast %81 : vector<2x2x128xbf16> to vector<4x128xbf16>
    %c8 = arith.constant 8 : index
    %c0_82 = arith.constant 0 : index
    %c0_83 = arith.constant 0 : index
    %83 = vector.load %arg2[%c8, %c0_82, %c0_83] : memref<9x128x128xbf16, #tpu.memory_space<vmem>>, vector<1x128x128xbf16>
    %84 = vector.shape_cast %83 : vector<1x128x128xbf16> to vector<128x128xbf16>
    %cst_84 = arith.constant dense<0.000000e+00> : vector<4x128xf32>
    %85 = tpu.matmul %82, %84, %cst_84 {dimension_numbers = #tpu.dot_dimension_numbers<[1], [0], [0], [1], [0, 0, 1, 1], [], []>} : vector<4x128xbf16>, vector<128x128xbf16>, vector<4x128xf32> -> vector<4x128xf32>
    %86 = arith.addf %79, %85 : vector<4x128xf32>
    %87 = vector.broadcast %0 : vector<1x128xf32> to vector<4x128xf32>
    %88 = arith.addf %86, %87 : vector<4x128xf32>
    %cst_85 = arith.constant 0.000000e+00 : f32
    %89 = vector.broadcast %cst_85 : f32 to vector<4x128xf32>
    %90 = arith.maximumf %88, %89 : vector<4x128xf32>
    %91 = vector.shape_cast %90 : vector<4x128xf32> to vector<2x2x128xf32>
    %92 = arith.truncf %91 : vector<2x2x128xf32> to vector<2x2x128xbf16>
    %c1_86 = arith.constant 1 : index
    %c1_87 = arith.constant 1 : index
    %c0_88 = arith.constant 0 : index
    %c0_89 = arith.constant 0 : index
    %c0_90 = arith.constant 0 : index
    %c0_91 = arith.constant 0 : index
    %93 = vector.load %arg4[%c1_86, %c1_87, %c0_88, %c0_89, %c0_90, %c0_91] : memref<2x2x1x2x2x128xbf16, #tpu.memory_space<vmem>>, vector<1x1x1x2x2x128xbf16>
    %94 = vector.shape_cast %93 : vector<1x1x1x2x2x128xbf16> to vector<2x2x128xbf16>
    %95 = vector.shape_cast %92 : vector<2x2x128xbf16> to vector<1x1x1x2x2x128xbf16>
    tpu.vector_store %arg4[%c1_86, %c1_87, %c0_88, %c0_89, %c0_90, %c0_91], %95 {strides = array<i32>} : memref<2x2x1x2x2x128xbf16, #tpu.memory_space<vmem>>, vector<1x1x1x2x2x128xbf16>,
    return
  }
  func.func @transform_0(%arg0: i32) -> (i32, i32, i32, i32) {
    %c0_i32 = arith.constant 0 : i32
    %c0_i32_0 = arith.constant 0 : i32
    %c0_i32_1 = arith.constant 0 : i32
    %c0_i32_2 = arith.constant 0 : i32
    return %arg0, %c0_i32, %c0_i32_0, %c0_i32_1 : i32, i32, i32, i32
  }
  func.func @transform_1(%arg0: i32) -> (i32, i32, i32) {
    %c0_i32 = arith.constant 0 : i32
    %c0_i32_0 = arith.constant 0 : i32
    %c0_i32_1 = arith.constant 0 : i32
    %c0_i32_2 = arith.constant 0 : i32
    return %c0_i32, %c0_i32_0, %c0_i32_1 : i32, i32, i32
  }
  func.func @transform_2(%arg0: i32) -> (i32, i32) {
    %c0_i32 = arith.constant 0 : i32
    %c0_i32_0 = arith.constant 0 : i32
    %c0_i32_1 = arith.constant 0 : i32
    return %c0_i32, %c0_i32_0 : i32, i32
  }
  func.func @transform_3(%arg0: i32) -> (i32, i32, i32, i32, i32, i32) {
    %c0_i32 = arith.constant 0 : i32
    %c0_i32_0 = arith.constant 0 : i32
    %c0_i32_1 = arith.constant 0 : i32
    %c0_i32_2 = arith.constant 0 : i32
    %c0_i32_3 = arith.constant 0 : i32
    %c0_i32_4 = arith.constant 0 : i32
    return %c0_i32, %c0_i32_0, %arg0, %c0_i32_1, %c0_i32_2, %c0_i32_3 : i32, i32, i32, i32, i32, i32
  }
}

module attributes {stable_mosaic.version = 11 : i64} {
  func.func @_deconv_kernel(%arg0: i32, %arg1: memref<1x5x5x128xbf16, #tpu.memory_space<vmem>>, %arg2: memref<9x128x128xbf16, #tpu.memory_space<vmem>>, %arg3: memref<1x128xf32, #tpu.memory_space<vmem>>, %arg4: memref<2x2x1x4x4x128xbf16, #tpu.memory_space<vmem>>) attributes {dimension_semantics = [#tpu.dimension_semantics<parallel>], iteration_bounds = array<i64: 2>, scalar_prefetch = 0 : i64, scratch_operands = 0 : i64, tpu.core_type = #tpu.core_type<tc>, window_params = [{transform_indices = @transform_0, window_bounds = array<i64: 1, 5, 5, 128>}, {pipeline_mode = #tpu.pipeline_mode<synchronous>, transform_indices = @transform_1, window_bounds = array<i64: 9, 128, 128>}, {pipeline_mode = #tpu.pipeline_mode<synchronous>, transform_indices = @transform_2, window_bounds = array<i64: 1, 128>}, {transform_indices = @transform_3, window_bounds = array<i64: 2, 2, 1, 4, 4, 128>}]} {
    %c0 = arith.constant 0 : index
    %c0_0 = arith.constant 0 : index
    %0 = vector.load %arg3[%c0, %c0_0] : memref<1x128xf32, #tpu.memory_space<vmem>>, vector<1x128xf32>
    %c0_1 = arith.constant 0 : index
    %c0_2 = arith.constant 0 : index
    %c0_3 = arith.constant 0 : index
    %c0_4 = arith.constant 0 : index
    %1 = vector.load %arg1[%c0_1, %c0_2, %c0_3, %c0_4] : memref<1x5x5x128xbf16, #tpu.memory_space<vmem>>, vector<1x4x4x128xbf16>
    %2 = vector.shape_cast %1 : vector<1x4x4x128xbf16> to vector<4x4x128xbf16>
    %3 = vector.shape_cast %2 : vector<4x4x128xbf16> to vector<16x128xbf16>
    %c0_5 = arith.constant 0 : index
    %c0_6 = arith.constant 0 : index
    %c0_7 = arith.constant 0 : index
    %4 = vector.load %arg2[%c0_5, %c0_6, %c0_7] : memref<9x128x128xbf16, #tpu.memory_space<vmem>>, vector<1x128x128xbf16>
    %5 = vector.shape_cast %4 : vector<1x128x128xbf16> to vector<128x128xbf16>
    %cst = arith.constant dense<0.000000e+00> : vector<16x128xf32>
    %6 = tpu.matmul %3, %5, %cst {dimension_numbers = #tpu.dot_dimension_numbers<[1], [0], [0], [1], [0, 0, 1, 1], [], []>} : vector<16x128xbf16>, vector<128x128xbf16>, vector<16x128xf32> -> vector<16x128xf32>
    %7 = vector.broadcast %0 : vector<1x128xf32> to vector<16x128xf32>
    %8 = arith.addf %6, %7 : vector<16x128xf32>
    %cst_8 = arith.constant 0.000000e+00 : f32
    %9 = vector.broadcast %cst_8 : f32 to vector<16x128xf32>
    %10 = arith.maximumf %8, %9 : vector<16x128xf32>
    %11 = vector.shape_cast %10 : vector<16x128xf32> to vector<4x4x128xf32>
    %12 = arith.truncf %11 : vector<4x4x128xf32> to vector<4x4x128xbf16>
    %c0_9 = arith.constant 0 : index
    %c0_10 = arith.constant 0 : index
    %c0_11 = arith.constant 0 : index
    %c0_12 = arith.constant 0 : index
    %c0_13 = arith.constant 0 : index
    %c0_14 = arith.constant 0 : index
    %13 = vector.load %arg4[%c0_9, %c0_10, %c0_11, %c0_12, %c0_13, %c0_14] : memref<2x2x1x4x4x128xbf16, #tpu.memory_space<vmem>>, vector<1x1x1x4x4x128xbf16>
    %14 = vector.shape_cast %13 : vector<1x1x1x4x4x128xbf16> to vector<4x4x128xbf16>
    %15 = vector.shape_cast %12 : vector<4x4x128xbf16> to vector<1x1x1x4x4x128xbf16>
    tpu.vector_store %arg4[%c0_9, %c0_10, %c0_11, %c0_12, %c0_13, %c0_14], %15 {strides = array<i32>} : memref<2x2x1x4x4x128xbf16, #tpu.memory_space<vmem>>, vector<1x1x1x4x4x128xbf16>,
    %c0_15 = arith.constant 0 : index
    %c0_16 = arith.constant 0 : index
    %c0_17 = arith.constant 0 : index
    %c0_18 = arith.constant 0 : index
    %16 = vector.load %arg1[%c0_15, %c0_16, %c0_17, %c0_18] : memref<1x5x5x128xbf16, #tpu.memory_space<vmem>>, vector<1x4x4x128xbf16>
    %17 = vector.shape_cast %16 : vector<1x4x4x128xbf16> to vector<4x4x128xbf16>
    %18 = vector.shape_cast %17 : vector<4x4x128xbf16> to vector<16x128xbf16>
    %c1 = arith.constant 1 : index
    %c0_19 = arith.constant 0 : index
    %c0_20 = arith.constant 0 : index
    %19 = vector.load %arg2[%c1, %c0_19, %c0_20] : memref<9x128x128xbf16, #tpu.memory_space<vmem>>, vector<1x128x128xbf16>
    %20 = vector.shape_cast %19 : vector<1x128x128xbf16> to vector<128x128xbf16>
    %cst_21 = arith.constant dense<0.000000e+00> : vector<16x128xf32>
    %21 = tpu.matmul %18, %20, %cst_21 {dimension_numbers = #tpu.dot_dimension_numbers<[1], [0], [0], [1], [0, 0, 1, 1], [], []>} : vector<16x128xbf16>, vector<128x128xbf16>, vector<16x128xf32> -> vector<16x128xf32>
    %c0_22 = arith.constant 0 : index
    %c0_23 = arith.constant 0 : index
    %c1_24 = arith.constant 1 : index
    %c0_25 = arith.constant 0 : index
    %22 = vector.load %arg1[%c0_22, %c0_23, %c1_24, %c0_25] : memref<1x5x5x128xbf16, #tpu.memory_space<vmem>>, vector<1x4x4x128xbf16>
    %23 = vector.shape_cast %22 : vector<1x4x4x128xbf16> to vector<4x4x128xbf16>
    %24 = vector.shape_cast %23 : vector<4x4x128xbf16> to vector<16x128xbf16>
    %c2 = arith.constant 2 : index
    %c0_26 = arith.constant 0 : index
    %c0_27 = arith.constant 0 : index
    %25 = vector.load %arg2[%c2, %c0_26, %c0_27] : memref<9x128x128xbf16, #tpu.memory_space<vmem>>, vector<1x128x128xbf16>
    %26 = vector.shape_cast %25 : vector<1x128x128xbf16> to vector<128x128xbf16>
    %cst_28 = arith.constant dense<0.000000e+00> : vector<16x128xf32>
    %27 = tpu.matmul %24, %26, %cst_28 {dimension_numbers = #tpu.dot_dimension_numbers<[1], [0], [0], [1], [0, 0, 1, 1], [], []>} : vector<16x128xbf16>, vector<128x128xbf16>, vector<16x128xf32> -> vector<16x128xf32>
    %28 = arith.addf %21, %27 : vector<16x128xf32>
    %29 = vector.broadcast %0 : vector<1x128xf32> to vector<16x128xf32>
    %30 = arith.addf %28, %29 : vector<16x128xf32>
    %cst_29 = arith.constant 0.000000e+00 : f32
    %31 = vector.broadcast %cst_29 : f32 to vector<16x128xf32>
    %32 = arith.maximumf %30, %31 : vector<16x128xf32>
    %33 = vector.shape_cast %32 : vector<16x128xf32> to vector<4x4x128xf32>
    %34 = arith.truncf %33 : vector<4x4x128xf32> to vector<4x4x128xbf16>
    %c0_30 = arith.constant 0 : index
    %c1_31 = arith.constant 1 : index
    %c0_32 = arith.constant 0 : index
    %c0_33 = arith.constant 0 : index
    %c0_34 = arith.constant 0 : index
    %c0_35 = arith.constant 0 : index
    %35 = vector.load %arg4[%c0_30, %c1_31, %c0_32, %c0_33, %c0_34, %c0_35] : memref<2x2x1x4x4x128xbf16, #tpu.memory_space<vmem>>, vector<1x1x1x4x4x128xbf16>
    %36 = vector.shape_cast %35 : vector<1x1x1x4x4x128xbf16> to vector<4x4x128xbf16>
    %37 = vector.shape_cast %34 : vector<4x4x128xbf16> to vector<1x1x1x4x4x128xbf16>
    tpu.vector_store %arg4[%c0_30, %c1_31, %c0_32, %c0_33, %c0_34, %c0_35], %37 {strides = array<i32>} : memref<2x2x1x4x4x128xbf16, #tpu.memory_space<vmem>>, vector<1x1x1x4x4x128xbf16>,
    %c0_36 = arith.constant 0 : index
    %c0_37 = arith.constant 0 : index
    %c0_38 = arith.constant 0 : index
    %c0_39 = arith.constant 0 : index
    %38 = vector.load %arg1[%c0_36, %c0_37, %c0_38, %c0_39] : memref<1x5x5x128xbf16, #tpu.memory_space<vmem>>, vector<1x4x4x128xbf16>
    %39 = vector.shape_cast %38 : vector<1x4x4x128xbf16> to vector<4x4x128xbf16>
    %40 = vector.shape_cast %39 : vector<4x4x128xbf16> to vector<16x128xbf16>
    %c3 = arith.constant 3 : index
    %c0_40 = arith.constant 0 : index
    %c0_41 = arith.constant 0 : index
    %41 = vector.load %arg2[%c3, %c0_40, %c0_41] : memref<9x128x128xbf16, #tpu.memory_space<vmem>>, vector<1x128x128xbf16>
    %42 = vector.shape_cast %41 : vector<1x128x128xbf16> to vector<128x128xbf16>
    %cst_42 = arith.constant dense<0.000000e+00> : vector<16x128xf32>
    %43 = tpu.matmul %40, %42, %cst_42 {dimension_numbers = #tpu.dot_dimension_numbers<[1], [0], [0], [1], [0, 0, 1, 1], [], []>} : vector<16x128xbf16>, vector<128x128xbf16>, vector<16x128xf32> -> vector<16x128xf32>
    %c0_43 = arith.constant 0 : index
    %c1_44 = arith.constant 1 : index
    %c0_45 = arith.constant 0 : index
    %c0_46 = arith.constant 0 : index
    %44 = vector.load %arg1[%c0_43, %c1_44, %c0_45, %c0_46] : memref<1x5x5x128xbf16, #tpu.memory_space<vmem>>, vector<1x4x4x128xbf16>
    %45 = vector.shape_cast %44 : vector<1x4x4x128xbf16> to vector<4x4x128xbf16>
    %46 = vector.shape_cast %45 : vector<4x4x128xbf16> to vector<16x128xbf16>
    %c4 = arith.constant 4 : index
    %c0_47 = arith.constant 0 : index
    %c0_48 = arith.constant 0 : index
    %47 = vector.load %arg2[%c4, %c0_47, %c0_48] : memref<9x128x128xbf16, #tpu.memory_space<vmem>>, vector<1x128x128xbf16>
    %48 = vector.shape_cast %47 : vector<1x128x128xbf16> to vector<128x128xbf16>
    %cst_49 = arith.constant dense<0.000000e+00> : vector<16x128xf32>
    %49 = tpu.matmul %46, %48, %cst_49 {dimension_numbers = #tpu.dot_dimension_numbers<[1], [0], [0], [1], [0, 0, 1, 1], [], []>} : vector<16x128xbf16>, vector<128x128xbf16>, vector<16x128xf32> -> vector<16x128xf32>
    %50 = arith.addf %43, %49 : vector<16x128xf32>
    %51 = vector.broadcast %0 : vector<1x128xf32> to vector<16x128xf32>
    %52 = arith.addf %50, %51 : vector<16x128xf32>
    %cst_50 = arith.constant 0.000000e+00 : f32
    %53 = vector.broadcast %cst_50 : f32 to vector<16x128xf32>
    %54 = arith.maximumf %52, %53 : vector<16x128xf32>
    %55 = vector.shape_cast %54 : vector<16x128xf32> to vector<4x4x128xf32>
    %56 = arith.truncf %55 : vector<4x4x128xf32> to vector<4x4x128xbf16>
    %c1_51 = arith.constant 1 : index
    %c0_52 = arith.constant 0 : index
    %c0_53 = arith.constant 0 : index
    %c0_54 = arith.constant 0 : index
    %c0_55 = arith.constant 0 : index
    %c0_56 = arith.constant 0 : index
    %57 = vector.load %arg4[%c1_51, %c0_52, %c0_53, %c0_54, %c0_55, %c0_56] : memref<2x2x1x4x4x128xbf16, #tpu.memory_space<vmem>>, vector<1x1x1x4x4x128xbf16>
    %58 = vector.shape_cast %57 : vector<1x1x1x4x4x128xbf16> to vector<4x4x128xbf16>
    %59 = vector.shape_cast %56 : vector<4x4x128xbf16> to vector<1x1x1x4x4x128xbf16>
    tpu.vector_store %arg4[%c1_51, %c0_52, %c0_53, %c0_54, %c0_55, %c0_56], %59 {strides = array<i32>} : memref<2x2x1x4x4x128xbf16, #tpu.memory_space<vmem>>, vector<1x1x1x4x4x128xbf16>,
    %c0_57 = arith.constant 0 : index
    %c0_58 = arith.constant 0 : index
    %c0_59 = arith.constant 0 : index
    %c0_60 = arith.constant 0 : index
    %60 = vector.load %arg1[%c0_57, %c0_58, %c0_59, %c0_60] : memref<1x5x5x128xbf16, #tpu.memory_space<vmem>>, vector<1x4x4x128xbf16>
    %61 = vector.shape_cast %60 : vector<1x4x4x128xbf16> to vector<4x4x128xbf16>
    %62 = vector.shape_cast %61 : vector<4x4x128xbf16> to vector<16x128xbf16>
    %c5 = arith.constant 5 : index
    %c0_61 = arith.constant 0 : index
    %c0_62 = arith.constant 0 : index
    %63 = vector.load %arg2[%c5, %c0_61, %c0_62] : memref<9x128x128xbf16, #tpu.memory_space<vmem>>, vector<1x128x128xbf16>
    %64 = vector.shape_cast %63 : vector<1x128x128xbf16> to vector<128x128xbf16>
    %cst_63 = arith.constant dense<0.000000e+00> : vector<16x128xf32>
    %65 = tpu.matmul %62, %64, %cst_63 {dimension_numbers = #tpu.dot_dimension_numbers<[1], [0], [0], [1], [0, 0, 1, 1], [], []>} : vector<16x128xbf16>, vector<128x128xbf16>, vector<16x128xf32> -> vector<16x128xf32>
    %c0_64 = arith.constant 0 : index
    %c0_65 = arith.constant 0 : index
    %c1_66 = arith.constant 1 : index
    %c0_67 = arith.constant 0 : index
    %66 = vector.load %arg1[%c0_64, %c0_65, %c1_66, %c0_67] : memref<1x5x5x128xbf16, #tpu.memory_space<vmem>>, vector<1x4x4x128xbf16>
    %67 = vector.shape_cast %66 : vector<1x4x4x128xbf16> to vector<4x4x128xbf16>
    %68 = vector.shape_cast %67 : vector<4x4x128xbf16> to vector<16x128xbf16>
    %c6 = arith.constant 6 : index
    %c0_68 = arith.constant 0 : index
    %c0_69 = arith.constant 0 : index
    %69 = vector.load %arg2[%c6, %c0_68, %c0_69] : memref<9x128x128xbf16, #tpu.memory_space<vmem>>, vector<1x128x128xbf16>
    %70 = vector.shape_cast %69 : vector<1x128x128xbf16> to vector<128x128xbf16>
    %cst_70 = arith.constant dense<0.000000e+00> : vector<16x128xf32>
    %71 = tpu.matmul %68, %70, %cst_70 {dimension_numbers = #tpu.dot_dimension_numbers<[1], [0], [0], [1], [0, 0, 1, 1], [], []>} : vector<16x128xbf16>, vector<128x128xbf16>, vector<16x128xf32> -> vector<16x128xf32>
    %72 = arith.addf %65, %71 : vector<16x128xf32>
    %c0_71 = arith.constant 0 : index
    %c1_72 = arith.constant 1 : index
    %c0_73 = arith.constant 0 : index
    %c0_74 = arith.constant 0 : index
    %73 = vector.load %arg1[%c0_71, %c1_72, %c0_73, %c0_74] : memref<1x5x5x128xbf16, #tpu.memory_space<vmem>>, vector<1x4x4x128xbf16>
    %74 = vector.shape_cast %73 : vector<1x4x4x128xbf16> to vector<4x4x128xbf16>
    %75 = vector.shape_cast %74 : vector<4x4x128xbf16> to vector<16x128xbf16>
    %c7 = arith.constant 7 : index
    %c0_75 = arith.constant 0 : index
    %c0_76 = arith.constant 0 : index
    %76 = vector.load %arg2[%c7, %c0_75, %c0_76] : memref<9x128x128xbf16, #tpu.memory_space<vmem>>, vector<1x128x128xbf16>
    %77 = vector.shape_cast %76 : vector<1x128x128xbf16> to vector<128x128xbf16>
    %cst_77 = arith.constant dense<0.000000e+00> : vector<16x128xf32>
    %78 = tpu.matmul %75, %77, %cst_77 {dimension_numbers = #tpu.dot_dimension_numbers<[1], [0], [0], [1], [0, 0, 1, 1], [], []>} : vector<16x128xbf16>, vector<128x128xbf16>, vector<16x128xf32> -> vector<16x128xf32>
    %79 = arith.addf %72, %78 : vector<16x128xf32>
    %c0_78 = arith.constant 0 : index
    %c1_79 = arith.constant 1 : index
    %c1_80 = arith.constant 1 : index
    %c0_81 = arith.constant 0 : index
    %80 = vector.load %arg1[%c0_78, %c1_79, %c1_80, %c0_81] : memref<1x5x5x128xbf16, #tpu.memory_space<vmem>>, vector<1x4x4x128xbf16>
    %81 = vector.shape_cast %80 : vector<1x4x4x128xbf16> to vector<4x4x128xbf16>
    %82 = vector.shape_cast %81 : vector<4x4x128xbf16> to vector<16x128xbf16>
    %c8 = arith.constant 8 : index
    %c0_82 = arith.constant 0 : index
    %c0_83 = arith.constant 0 : index
    %83 = vector.load %arg2[%c8, %c0_82, %c0_83] : memref<9x128x128xbf16, #tpu.memory_space<vmem>>, vector<1x128x128xbf16>
    %84 = vector.shape_cast %83 : vector<1x128x128xbf16> to vector<128x128xbf16>
    %cst_84 = arith.constant dense<0.000000e+00> : vector<16x128xf32>
    %85 = tpu.matmul %82, %84, %cst_84 {dimension_numbers = #tpu.dot_dimension_numbers<[1], [0], [0], [1], [0, 0, 1, 1], [], []>} : vector<16x128xbf16>, vector<128x128xbf16>, vector<16x128xf32> -> vector<16x128xf32>
    %86 = arith.addf %79, %85 : vector<16x128xf32>
    %87 = vector.broadcast %0 : vector<1x128xf32> to vector<16x128xf32>
    %88 = arith.addf %86, %87 : vector<16x128xf32>
    %cst_85 = arith.constant 0.000000e+00 : f32
    %89 = vector.broadcast %cst_85 : f32 to vector<16x128xf32>
    %90 = arith.maximumf %88, %89 : vector<16x128xf32>
    %91 = vector.shape_cast %90 : vector<16x128xf32> to vector<4x4x128xf32>
    %92 = arith.truncf %91 : vector<4x4x128xf32> to vector<4x4x128xbf16>
    %c1_86 = arith.constant 1 : index
    %c1_87 = arith.constant 1 : index
    %c0_88 = arith.constant 0 : index
    %c0_89 = arith.constant 0 : index
    %c0_90 = arith.constant 0 : index
    %c0_91 = arith.constant 0 : index
    %93 = vector.load %arg4[%c1_86, %c1_87, %c0_88, %c0_89, %c0_90, %c0_91] : memref<2x2x1x4x4x128xbf16, #tpu.memory_space<vmem>>, vector<1x1x1x4x4x128xbf16>
    %94 = vector.shape_cast %93 : vector<1x1x1x4x4x128xbf16> to vector<4x4x128xbf16>
    %95 = vector.shape_cast %92 : vector<4x4x128xbf16> to vector<1x1x1x4x4x128xbf16>
    tpu.vector_store %arg4[%c1_86, %c1_87, %c0_88, %c0_89, %c0_90, %c0_91], %95 {strides = array<i32>} : memref<2x2x1x4x4x128xbf16, #tpu.memory_space<vmem>>, vector<1x1x1x4x4x128xbf16>,
    return
  }
  func.func @transform_0(%arg0: i32) -> (i32, i32, i32, i32) {
    %c0_i32 = arith.constant 0 : i32
    %c0_i32_0 = arith.constant 0 : i32
    %c0_i32_1 = arith.constant 0 : i32
    %c0_i32_2 = arith.constant 0 : i32
    return %arg0, %c0_i32, %c0_i32_0, %c0_i32_1 : i32, i32, i32, i32
  }
  func.func @transform_1(%arg0: i32) -> (i32, i32, i32) {
    %c0_i32 = arith.constant 0 : i32
    %c0_i32_0 = arith.constant 0 : i32
    %c0_i32_1 = arith.constant 0 : i32
    %c0_i32_2 = arith.constant 0 : i32
    return %c0_i32, %c0_i32_0, %c0_i32_1 : i32, i32, i32
  }
  func.func @transform_2(%arg0: i32) -> (i32, i32) {
    %c0_i32 = arith.constant 0 : i32
    %c0_i32_0 = arith.constant 0 : i32
    %c0_i32_1 = arith.constant 0 : i32
    return %c0_i32, %c0_i32_0 : i32, i32
  }
  func.func @transform_3(%arg0: i32) -> (i32, i32, i32, i32, i32, i32) {
    %c0_i32 = arith.constant 0 : i32
    %c0_i32_0 = arith.constant 0 : i32
    %c0_i32_1 = arith.constant 0 : i32
    %c0_i32_2 = arith.constant 0 : i32
    %c0_i32_3 = arith.constant 0 : i32
    %c0_i32_4 = arith.constant 0 : i32
    return %c0_i32, %c0_i32_0, %arg0, %c0_i32_1, %c0_i32_2, %c0_i32_3 : i32, i32, i32, i32, i32, i32
  }
}

module attributes {stable_mosaic.version = 11 : i64} {
  func.func @_deconv_kernel(%arg0: i32, %arg1: memref<1x9x9x128xbf16, #tpu.memory_space<vmem>>, %arg2: memref<9x128x8xbf16, #tpu.memory_space<vmem>>, %arg3: memref<1x8xf32, #tpu.memory_space<vmem>>, %arg4: memref<2x2x1x8x8x8xbf16, #tpu.memory_space<vmem>>) attributes {dimension_semantics = [#tpu.dimension_semantics<parallel>], iteration_bounds = array<i64: 2>, scalar_prefetch = 0 : i64, scratch_operands = 0 : i64, tpu.core_type = #tpu.core_type<tc>, window_params = [{transform_indices = @transform_0, window_bounds = array<i64: 1, 9, 9, 128>}, {pipeline_mode = #tpu.pipeline_mode<synchronous>, transform_indices = @transform_1, window_bounds = array<i64: 9, 128, 8>}, {pipeline_mode = #tpu.pipeline_mode<synchronous>, transform_indices = @transform_2, window_bounds = array<i64: 1, 8>}, {transform_indices = @transform_3, window_bounds = array<i64: 2, 2, 1, 8, 8, 8>}]} {
    %c0 = arith.constant 0 : index
    %c0_0 = arith.constant 0 : index
    %0 = vector.load %arg3[%c0, %c0_0] : memref<1x8xf32, #tpu.memory_space<vmem>>, vector<1x8xf32>
    %c0_1 = arith.constant 0 : index
    %c0_2 = arith.constant 0 : index
    %c0_3 = arith.constant 0 : index
    %c0_4 = arith.constant 0 : index
    %1 = vector.load %arg1[%c0_1, %c0_2, %c0_3, %c0_4] : memref<1x9x9x128xbf16, #tpu.memory_space<vmem>>, vector<1x8x8x128xbf16>
    %2 = vector.shape_cast %1 : vector<1x8x8x128xbf16> to vector<8x8x128xbf16>
    %3 = vector.shape_cast %2 : vector<8x8x128xbf16> to vector<64x128xbf16>
    %c0_5 = arith.constant 0 : index
    %c0_6 = arith.constant 0 : index
    %c0_7 = arith.constant 0 : index
    %4 = vector.load %arg2[%c0_5, %c0_6, %c0_7] : memref<9x128x8xbf16, #tpu.memory_space<vmem>>, vector<1x128x8xbf16>
    %5 = vector.shape_cast %4 : vector<1x128x8xbf16> to vector<128x8xbf16>
    %cst = arith.constant dense<0.000000e+00> : vector<64x8xf32>
    %6 = tpu.matmul %3, %5, %cst {dimension_numbers = #tpu.dot_dimension_numbers<[1], [0], [0], [1], [0, 0, 1, 1], [], []>} : vector<64x128xbf16>, vector<128x8xbf16>, vector<64x8xf32> -> vector<64x8xf32>
    %7 = vector.broadcast %0 : vector<1x8xf32> to vector<64x8xf32>
    %8 = arith.addf %6, %7 : vector<64x8xf32>
    %cst_8 = arith.constant 0.000000e+00 : f32
    %9 = vector.broadcast %cst_8 : f32 to vector<64x8xf32>
    %10 = arith.maximumf %8, %9 : vector<64x8xf32>
    %11 = vector.shape_cast %10 : vector<64x8xf32> to vector<8x8x8xf32>
    %12 = arith.truncf %11 : vector<8x8x8xf32> to vector<8x8x8xbf16>
    %c0_9 = arith.constant 0 : index
    %c0_10 = arith.constant 0 : index
    %c0_11 = arith.constant 0 : index
    %c0_12 = arith.constant 0 : index
    %c0_13 = arith.constant 0 : index
    %c0_14 = arith.constant 0 : index
    %13 = vector.load %arg4[%c0_9, %c0_10, %c0_11, %c0_12, %c0_13, %c0_14] : memref<2x2x1x8x8x8xbf16, #tpu.memory_space<vmem>>, vector<1x1x1x8x8x8xbf16>
    %14 = vector.shape_cast %13 : vector<1x1x1x8x8x8xbf16> to vector<8x8x8xbf16>
    %15 = vector.shape_cast %12 : vector<8x8x8xbf16> to vector<1x1x1x8x8x8xbf16>
    tpu.vector_store %arg4[%c0_9, %c0_10, %c0_11, %c0_12, %c0_13, %c0_14], %15 {strides = array<i32>} : memref<2x2x1x8x8x8xbf16, #tpu.memory_space<vmem>>, vector<1x1x1x8x8x8xbf16>,
    %c0_15 = arith.constant 0 : index
    %c0_16 = arith.constant 0 : index
    %c0_17 = arith.constant 0 : index
    %c0_18 = arith.constant 0 : index
    %16 = vector.load %arg1[%c0_15, %c0_16, %c0_17, %c0_18] : memref<1x9x9x128xbf16, #tpu.memory_space<vmem>>, vector<1x8x8x128xbf16>
    %17 = vector.shape_cast %16 : vector<1x8x8x128xbf16> to vector<8x8x128xbf16>
    %18 = vector.shape_cast %17 : vector<8x8x128xbf16> to vector<64x128xbf16>
    %c1 = arith.constant 1 : index
    %c0_19 = arith.constant 0 : index
    %c0_20 = arith.constant 0 : index
    %19 = vector.load %arg2[%c1, %c0_19, %c0_20] : memref<9x128x8xbf16, #tpu.memory_space<vmem>>, vector<1x128x8xbf16>
    %20 = vector.shape_cast %19 : vector<1x128x8xbf16> to vector<128x8xbf16>
    %cst_21 = arith.constant dense<0.000000e+00> : vector<64x8xf32>
    %21 = tpu.matmul %18, %20, %cst_21 {dimension_numbers = #tpu.dot_dimension_numbers<[1], [0], [0], [1], [0, 0, 1, 1], [], []>} : vector<64x128xbf16>, vector<128x8xbf16>, vector<64x8xf32> -> vector<64x8xf32>
    %c0_22 = arith.constant 0 : index
    %c0_23 = arith.constant 0 : index
    %c1_24 = arith.constant 1 : index
    %c0_25 = arith.constant 0 : index
    %22 = vector.load %arg1[%c0_22, %c0_23, %c1_24, %c0_25] : memref<1x9x9x128xbf16, #tpu.memory_space<vmem>>, vector<1x8x8x128xbf16>
    %23 = vector.shape_cast %22 : vector<1x8x8x128xbf16> to vector<8x8x128xbf16>
    %24 = vector.shape_cast %23 : vector<8x8x128xbf16> to vector<64x128xbf16>
    %c2 = arith.constant 2 : index
    %c0_26 = arith.constant 0 : index
    %c0_27 = arith.constant 0 : index
    %25 = vector.load %arg2[%c2, %c0_26, %c0_27] : memref<9x128x8xbf16, #tpu.memory_space<vmem>>, vector<1x128x8xbf16>
    %26 = vector.shape_cast %25 : vector<1x128x8xbf16> to vector<128x8xbf16>
    %cst_28 = arith.constant dense<0.000000e+00> : vector<64x8xf32>
    %27 = tpu.matmul %24, %26, %cst_28 {dimension_numbers = #tpu.dot_dimension_numbers<[1], [0], [0], [1], [0, 0, 1, 1], [], []>} : vector<64x128xbf16>, vector<128x8xbf16>, vector<64x8xf32> -> vector<64x8xf32>
    %28 = arith.addf %21, %27 : vector<64x8xf32>
    %29 = vector.broadcast %0 : vector<1x8xf32> to vector<64x8xf32>
    %30 = arith.addf %28, %29 : vector<64x8xf32>
    %cst_29 = arith.constant 0.000000e+00 : f32
    %31 = vector.broadcast %cst_29 : f32 to vector<64x8xf32>
    %32 = arith.maximumf %30, %31 : vector<64x8xf32>
    %33 = vector.shape_cast %32 : vector<64x8xf32> to vector<8x8x8xf32>
    %34 = arith.truncf %33 : vector<8x8x8xf32> to vector<8x8x8xbf16>
    %c0_30 = arith.constant 0 : index
    %c1_31 = arith.constant 1 : index
    %c0_32 = arith.constant 0 : index
    %c0_33 = arith.constant 0 : index
    %c0_34 = arith.constant 0 : index
    %c0_35 = arith.constant 0 : index
    %35 = vector.load %arg4[%c0_30, %c1_31, %c0_32, %c0_33, %c0_34, %c0_35] : memref<2x2x1x8x8x8xbf16, #tpu.memory_space<vmem>>, vector<1x1x1x8x8x8xbf16>
    %36 = vector.shape_cast %35 : vector<1x1x1x8x8x8xbf16> to vector<8x8x8xbf16>
    %37 = vector.shape_cast %34 : vector<8x8x8xbf16> to vector<1x1x1x8x8x8xbf16>
    tpu.vector_store %arg4[%c0_30, %c1_31, %c0_32, %c0_33, %c0_34, %c0_35], %37 {strides = array<i32>} : memref<2x2x1x8x8x8xbf16, #tpu.memory_space<vmem>>, vector<1x1x1x8x8x8xbf16>,
    %c0_36 = arith.constant 0 : index
    %c0_37 = arith.constant 0 : index
    %c0_38 = arith.constant 0 : index
    %c0_39 = arith.constant 0 : index
    %38 = vector.load %arg1[%c0_36, %c0_37, %c0_38, %c0_39] : memref<1x9x9x128xbf16, #tpu.memory_space<vmem>>, vector<1x8x8x128xbf16>
    %39 = vector.shape_cast %38 : vector<1x8x8x128xbf16> to vector<8x8x128xbf16>
    %40 = vector.shape_cast %39 : vector<8x8x128xbf16> to vector<64x128xbf16>
    %c3 = arith.constant 3 : index
    %c0_40 = arith.constant 0 : index
    %c0_41 = arith.constant 0 : index
    %41 = vector.load %arg2[%c3, %c0_40, %c0_41] : memref<9x128x8xbf16, #tpu.memory_space<vmem>>, vector<1x128x8xbf16>
    %42 = vector.shape_cast %41 : vector<1x128x8xbf16> to vector<128x8xbf16>
    %cst_42 = arith.constant dense<0.000000e+00> : vector<64x8xf32>
    %43 = tpu.matmul %40, %42, %cst_42 {dimension_numbers = #tpu.dot_dimension_numbers<[1], [0], [0], [1], [0, 0, 1, 1], [], []>} : vector<64x128xbf16>, vector<128x8xbf16>, vector<64x8xf32> -> vector<64x8xf32>
    %c0_43 = arith.constant 0 : index
    %c1_44 = arith.constant 1 : index
    %c0_45 = arith.constant 0 : index
    %c0_46 = arith.constant 0 : index
    %44 = vector.load %arg1[%c0_43, %c1_44, %c0_45, %c0_46] : memref<1x9x9x128xbf16, #tpu.memory_space<vmem>>, vector<1x8x8x128xbf16>
    %45 = vector.shape_cast %44 : vector<1x8x8x128xbf16> to vector<8x8x128xbf16>
    %46 = vector.shape_cast %45 : vector<8x8x128xbf16> to vector<64x128xbf16>
    %c4 = arith.constant 4 : index
    %c0_47 = arith.constant 0 : index
    %c0_48 = arith.constant 0 : index
    %47 = vector.load %arg2[%c4, %c0_47, %c0_48] : memref<9x128x8xbf16, #tpu.memory_space<vmem>>, vector<1x128x8xbf16>
    %48 = vector.shape_cast %47 : vector<1x128x8xbf16> to vector<128x8xbf16>
    %cst_49 = arith.constant dense<0.000000e+00> : vector<64x8xf32>
    %49 = tpu.matmul %46, %48, %cst_49 {dimension_numbers = #tpu.dot_dimension_numbers<[1], [0], [0], [1], [0, 0, 1, 1], [], []>} : vector<64x128xbf16>, vector<128x8xbf16>, vector<64x8xf32> -> vector<64x8xf32>
    %50 = arith.addf %43, %49 : vector<64x8xf32>
    %51 = vector.broadcast %0 : vector<1x8xf32> to vector<64x8xf32>
    %52 = arith.addf %50, %51 : vector<64x8xf32>
    %cst_50 = arith.constant 0.000000e+00 : f32
    %53 = vector.broadcast %cst_50 : f32 to vector<64x8xf32>
    %54 = arith.maximumf %52, %53 : vector<64x8xf32>
    %55 = vector.shape_cast %54 : vector<64x8xf32> to vector<8x8x8xf32>
    %56 = arith.truncf %55 : vector<8x8x8xf32> to vector<8x8x8xbf16>
    %c1_51 = arith.constant 1 : index
    %c0_52 = arith.constant 0 : index
    %c0_53 = arith.constant 0 : index
    %c0_54 = arith.constant 0 : index
    %c0_55 = arith.constant 0 : index
    %c0_56 = arith.constant 0 : index
    %57 = vector.load %arg4[%c1_51, %c0_52, %c0_53, %c0_54, %c0_55, %c0_56] : memref<2x2x1x8x8x8xbf16, #tpu.memory_space<vmem>>, vector<1x1x1x8x8x8xbf16>
    %58 = vector.shape_cast %57 : vector<1x1x1x8x8x8xbf16> to vector<8x8x8xbf16>
    %59 = vector.shape_cast %56 : vector<8x8x8xbf16> to vector<1x1x1x8x8x8xbf16>
    tpu.vector_store %arg4[%c1_51, %c0_52, %c0_53, %c0_54, %c0_55, %c0_56], %59 {strides = array<i32>} : memref<2x2x1x8x8x8xbf16, #tpu.memory_space<vmem>>, vector<1x1x1x8x8x8xbf16>,
    %c0_57 = arith.constant 0 : index
    %c0_58 = arith.constant 0 : index
    %c0_59 = arith.constant 0 : index
    %c0_60 = arith.constant 0 : index
    %60 = vector.load %arg1[%c0_57, %c0_58, %c0_59, %c0_60] : memref<1x9x9x128xbf16, #tpu.memory_space<vmem>>, vector<1x8x8x128xbf16>
    %61 = vector.shape_cast %60 : vector<1x8x8x128xbf16> to vector<8x8x128xbf16>
    %62 = vector.shape_cast %61 : vector<8x8x128xbf16> to vector<64x128xbf16>
    %c5 = arith.constant 5 : index
    %c0_61 = arith.constant 0 : index
    %c0_62 = arith.constant 0 : index
    %63 = vector.load %arg2[%c5, %c0_61, %c0_62] : memref<9x128x8xbf16, #tpu.memory_space<vmem>>, vector<1x128x8xbf16>
    %64 = vector.shape_cast %63 : vector<1x128x8xbf16> to vector<128x8xbf16>
    %cst_63 = arith.constant dense<0.000000e+00> : vector<64x8xf32>
    %65 = tpu.matmul %62, %64, %cst_63 {dimension_numbers = #tpu.dot_dimension_numbers<[1], [0], [0], [1], [0, 0, 1, 1], [], []>} : vector<64x128xbf16>, vector<128x8xbf16>, vector<64x8xf32> -> vector<64x8xf32>
    %c0_64 = arith.constant 0 : index
    %c0_65 = arith.constant 0 : index
    %c1_66 = arith.constant 1 : index
    %c0_67 = arith.constant 0 : index
    %66 = vector.load %arg1[%c0_64, %c0_65, %c1_66, %c0_67] : memref<1x9x9x128xbf16, #tpu.memory_space<vmem>>, vector<1x8x8x128xbf16>
    %67 = vector.shape_cast %66 : vector<1x8x8x128xbf16> to vector<8x8x128xbf16>
    %68 = vector.shape_cast %67 : vector<8x8x128xbf16> to vector<64x128xbf16>
    %c6 = arith.constant 6 : index
    %c0_68 = arith.constant 0 : index
    %c0_69 = arith.constant 0 : index
    %69 = vector.load %arg2[%c6, %c0_68, %c0_69] : memref<9x128x8xbf16, #tpu.memory_space<vmem>>, vector<1x128x8xbf16>
    %70 = vector.shape_cast %69 : vector<1x128x8xbf16> to vector<128x8xbf16>
    %cst_70 = arith.constant dense<0.000000e+00> : vector<64x8xf32>
    %71 = tpu.matmul %68, %70, %cst_70 {dimension_numbers = #tpu.dot_dimension_numbers<[1], [0], [0], [1], [0, 0, 1, 1], [], []>} : vector<64x128xbf16>, vector<128x8xbf16>, vector<64x8xf32> -> vector<64x8xf32>
    %72 = arith.addf %65, %71 : vector<64x8xf32>
    %c0_71 = arith.constant 0 : index
    %c1_72 = arith.constant 1 : index
    %c0_73 = arith.constant 0 : index
    %c0_74 = arith.constant 0 : index
    %73 = vector.load %arg1[%c0_71, %c1_72, %c0_73, %c0_74] : memref<1x9x9x128xbf16, #tpu.memory_space<vmem>>, vector<1x8x8x128xbf16>
    %74 = vector.shape_cast %73 : vector<1x8x8x128xbf16> to vector<8x8x128xbf16>
    %75 = vector.shape_cast %74 : vector<8x8x128xbf16> to vector<64x128xbf16>
    %c7 = arith.constant 7 : index
    %c0_75 = arith.constant 0 : index
    %c0_76 = arith.constant 0 : index
    %76 = vector.load %arg2[%c7, %c0_75, %c0_76] : memref<9x128x8xbf16, #tpu.memory_space<vmem>>, vector<1x128x8xbf16>
    %77 = vector.shape_cast %76 : vector<1x128x8xbf16> to vector<128x8xbf16>
    %cst_77 = arith.constant dense<0.000000e+00> : vector<64x8xf32>
    %78 = tpu.matmul %75, %77, %cst_77 {dimension_numbers = #tpu.dot_dimension_numbers<[1], [0], [0], [1], [0, 0, 1, 1], [], []>} : vector<64x128xbf16>, vector<128x8xbf16>, vector<64x8xf32> -> vector<64x8xf32>
    %79 = arith.addf %72, %78 : vector<64x8xf32>
    %c0_78 = arith.constant 0 : index
    %c1_79 = arith.constant 1 : index
    %c1_80 = arith.constant 1 : index
    %c0_81 = arith.constant 0 : index
    %80 = vector.load %arg1[%c0_78, %c1_79, %c1_80, %c0_81] : memref<1x9x9x128xbf16, #tpu.memory_space<vmem>>, vector<1x8x8x128xbf16>
    %81 = vector.shape_cast %80 : vector<1x8x8x128xbf16> to vector<8x8x128xbf16>
    %82 = vector.shape_cast %81 : vector<8x8x128xbf16> to vector<64x128xbf16>
    %c8 = arith.constant 8 : index
    %c0_82 = arith.constant 0 : index
    %c0_83 = arith.constant 0 : index
    %83 = vector.load %arg2[%c8, %c0_82, %c0_83] : memref<9x128x8xbf16, #tpu.memory_space<vmem>>, vector<1x128x8xbf16>
    %84 = vector.shape_cast %83 : vector<1x128x8xbf16> to vector<128x8xbf16>
    %cst_84 = arith.constant dense<0.000000e+00> : vector<64x8xf32>
    %85 = tpu.matmul %82, %84, %cst_84 {dimension_numbers = #tpu.dot_dimension_numbers<[1], [0], [0], [1], [0, 0, 1, 1], [], []>} : vector<64x128xbf16>, vector<128x8xbf16>, vector<64x8xf32> -> vector<64x8xf32>
    %86 = arith.addf %79, %85 : vector<64x8xf32>
    %87 = vector.broadcast %0 : vector<1x8xf32> to vector<64x8xf32>
    %88 = arith.addf %86, %87 : vector<64x8xf32>
    %cst_85 = arith.constant 0.000000e+00 : f32
    %89 = vector.broadcast %cst_85 : f32 to vector<64x8xf32>
    %90 = arith.maximumf %88, %89 : vector<64x8xf32>
    %91 = vector.shape_cast %90 : vector<64x8xf32> to vector<8x8x8xf32>
    %92 = arith.truncf %91 : vector<8x8x8xf32> to vector<8x8x8xbf16>
    %c1_86 = arith.constant 1 : index
    %c1_87 = arith.constant 1 : index
    %c0_88 = arith.constant 0 : index
    %c0_89 = arith.constant 0 : index
    %c0_90 = arith.constant 0 : index
    %c0_91 = arith.constant 0 : index
    %93 = vector.load %arg4[%c1_86, %c1_87, %c0_88, %c0_89, %c0_90, %c0_91] : memref<2x2x1x8x8x8xbf16, #tpu.memory_space<vmem>>, vector<1x1x1x8x8x8xbf16>
    %94 = vector.shape_cast %93 : vector<1x1x1x8x8x8xbf16> to vector<8x8x8xbf16>
    %95 = vector.shape_cast %92 : vector<8x8x8xbf16> to vector<1x1x1x8x8x8xbf16>
    tpu.vector_store %arg4[%c1_86, %c1_87, %c0_88, %c0_89, %c0_90, %c0_91], %95 {strides = array<i32>} : memref<2x2x1x8x8x8xbf16, #tpu.memory_space<vmem>>, vector<1x1x1x8x8x8xbf16>,
    return
  }
  func.func @transform_0(%arg0: i32) -> (i32, i32, i32, i32) {
    %c0_i32 = arith.constant 0 : i32
    %c0_i32_0 = arith.constant 0 : i32
    %c0_i32_1 = arith.constant 0 : i32
    %c0_i32_2 = arith.constant 0 : i32
    return %arg0, %c0_i32, %c0_i32_0, %c0_i32_1 : i32, i32, i32, i32
  }
  func.func @transform_1(%arg0: i32) -> (i32, i32, i32) {
    %c0_i32 = arith.constant 0 : i32
    %c0_i32_0 = arith.constant 0 : i32
    %c0_i32_1 = arith.constant 0 : i32
    %c0_i32_2 = arith.constant 0 : i32
    return %c0_i32, %c0_i32_0, %c0_i32_1 : i32, i32, i32
  }
  func.func @transform_2(%arg0: i32) -> (i32, i32) {
    %c0_i32 = arith.constant 0 : i32
    %c0_i32_0 = arith.constant 0 : i32
    %c0_i32_1 = arith.constant 0 : i32
    return %c0_i32, %c0_i32_0 : i32, i32
  }
  func.func @transform_3(%arg0: i32) -> (i32, i32, i32, i32, i32, i32) {
    %c0_i32 = arith.constant 0 : i32
    %c0_i32_0 = arith.constant 0 : i32
    %c0_i32_1 = arith.constant 0 : i32
    %c0_i32_2 = arith.constant 0 : i32
    %c0_i32_3 = arith.constant 0 : i32
    %c0_i32_4 = arith.constant 0 : i32
    return %c0_i32, %c0_i32_0, %arg0, %c0_i32_1, %c0_i32_2, %c0_i32_3 : i32, i32, i32, i32, i32, i32
  }
}

</mosaic_0001>

<llo_original>
// kernel: autoencoder_forward.8
$region0: #{autoencoder_forward.8}
  #allocation0 [shape = 'u32[]', space=smem, size = 0x4, offset = 0x4, fixed_abs, tag = 'smem constant byte address 0x4 - core index']
  #allocation1 [shape = 'u32[144,128]{1,0:T(1,128)}', space=vmem, size = 0x12000, scoped, tag = 'internal scratch']
  %s0 = inlined_call_operand.vmem [shape: bf16[2,9,9,12], index: 0, kind: input, shape index: {}]
  %s1 = inlined_call_operand.vmem [shape: bf16[4,12,128], index: 1, kind: input, shape index: {}]
  %s2 = inlined_call_operand.vmem [shape: f32[1,128], index: 2, kind: input, shape index: {}]
  %s3 = inlined_call_operand.vmem [shape: bf16[2,8,8,128], index: 3, kind: output, shape index: {}]
  %s4 = sld [smem:[#allocation0]]
  $region45: #{autoencoder_forward.8} parent=0
    _
  %s6 = ssub.s32 1, %s4
  %s7 = scalar_select 0, %s6, %s4
  loop: start=0, step=1, limit=4
  $region2: #{autoencoder_forward.8} parent=0 // loop_pre_header
    _
  $region3: #{autoencoder_forward.8} parent=0 // loop_header
    %s9 = sphi 0, %s13
    %p10 = scmp.ge.s32.totalorder %s9, 4
    %s19 = sphi 0, %s21
    %s22 = sphi 0, %s19
    %s23 = sphi 0, %s22
    %s39 = sphi 0, %s23
    %s43 = sphi 0, %s43
    %s45 = sphi 0, %s43
    %s46 = sphi 0, %s45
    %s60 = sphi 0, %s46
    %s64 = sphi 0, %s64
    %s66 = sphi 0, %s64
    %s67 = sphi 0, %s66
    %s81 = sphi 0, %s67
    %s87 = sphi 0, %s89
    %s90 = sphi 0, %s87
    %s91 = sphi 0, %s90
    %s107 = sphi 0, %s91
  $region4: #{autoencoder_forward.8} parent=0 // loop_header_branch
    %12 = sbr.rel (%p10) target = $region8
  $region5: #{autoencoder_forward.8} parent=0 // loop_body
    %s14 = ssub.s32 %s9, 1
    %s15 = ssub.s32 %s9, 2
    %s16 = sadd.s32 %s9, 1
    %s17 = ssub.s32 %s9, %s16
    %p18 = scmp.eq.s32.totalorder %s17, 0
    %s20 = sadd.s32 %s19, 1
    %s21 = scalar_select %p18, %s19, %s20
    %p24 = pneg %p18
    %p25 = scmp.eq.s32.totalorder %s9, 1
    %p26 = por %p24, %p25
    %p27 = scmp.ne.s32.totalorder %s19, %s22
    %p28 = scmp.eq.s32.totalorder %s9, 0
    %p29 = por %p27, %p28
    %p30 = scmp.ne.s32.totalorder %s19, %s22
    %p31 = scmp.eq.s32.totalorder %s14, 1
    %p32 = por %p30, %p31
    %p33 = scmp.ne.s32.totalorder %s22, %s23
    %p34 = scmp.eq.s32.totalorder %s14, 0
    %p35 = por %p33, %p34
    %p36 = scmp.ne.s32.totalorder %s22, %s23
    %p37 = scmp.eq.s32.totalorder %s15, 1
    %p38 = por %p36, %p37
    %p40 = scmp.ne.s32.totalorder %s23, %s39
    %p41 = scmp.eq.s32.totalorder %s15, 0
    %p42 = por %p40, %p41
    %s44 = sadd.s32 %s43, 1
    %p47 = scmp.eq.s32.totalorder %s9, 1
    %p48 = scmp.ne.s32.totalorder %s43, %s45
    %p49 = scmp.eq.s32.totalorder %s9, 0
    %p50 = por %p48, %p49
    %p51 = scmp.ne.s32.totalorder %s43, %s45
    %p52 = scmp.eq.s32.totalorder %s14, 1
    %p53 = por %p51, %p52
    %p54 = scmp.ne.s32.totalorder %s45, %s46
    %p55 = scmp.eq.s32.totalorder %s14, 0
    %p56 = por %p54, %p55
    %p57 = scmp.ne.s32.totalorder %s45, %s46
    %p58 = scmp.eq.s32.totalorder %s15, 1
    %p59 = por %p57, %p58
    %p61 = scmp.ne.s32.totalorder %s46, %s60
    %p62 = scmp.eq.s32.totalorder %s15, 0
    %p63 = por %p61, %p62
    %s65 = sadd.s32 %s64, 1
    %p68 = scmp.eq.s32.totalorder %s9, 1
    %p69 = scmp.ne.s32.totalorder %s64, %s66
    %p70 = scmp.eq.s32.totalorder %s9, 0
    %p71 = por %p69, %p70
    %p72 = scmp.ne.s32.totalorder %s64, %s66
    %p73 = scmp.eq.s32.totalorder %s14, 1
    %p74 = por %p72, %p73
    %p75 = scmp.ne.s32.totalorder %s66, %s67
    %p76 = scmp.eq.s32.totalorder %s14, 0
    %p77 = por %p75, %p76
    %p78 = scmp.ne.s32.totalorder %s66, %s67
    %p79 = scmp.eq.s32.totalorder %s15, 1
    %p80 = por %p78, %p79
    %p82 = scmp.ne.s32.totalorder %s67, %s81
    %p83 = scmp.eq.s32.totalorder %s15, 0
    %p84 = por %p82, %p83
    %s85 = ssub.s32 %s9, %s16
    %p86 = scmp.eq.s32.totalorder %s85, 0
    %s88 = sadd.s32 %s87, 1
    %s89 = scalar_select %p86, %s87, %s88
    %p92 = pneg %p86
    %p93 = scmp.eq.s32.totalorder %s9, 1
    %p94 = por %p92, %p93
    %p95 = scmp.ne.s32.totalorder %s87, %s90
    %p96 = scmp.eq.s32.totalorder %s9, 0
    %p97 = por %p95, %p96
    %p98 = scmp.ne.s32.totalorder %s87, %s90
    %p99 = scmp.eq.s32.totalorder %s14, 1
    %p100 = por %p98, %p99
    %p101 = scmp.ne.s32.totalorder %s90, %s91
    %p102 = scmp.eq.s32.totalorder %s14, 0
    %p103 = por %p101, %p102
    %p104 = scmp.ne.s32.totalorder %s90, %s91
    %p105 = scmp.eq.s32.totalorder %s15, 1
    %p106 = por %p104, %p105
    %p108 = scmp.ne.s32.totalorder %s91, %s107
    %p109 = scmp.eq.s32.totalorder %s15, 0
    %p110 = por %p108, %p109
    %p111 = scmp.le.s32.totalorder 1, %s9
    %p112 = scmp.lt.s32.totalorder %s9, 3
    %p113 = pnand %p111, %p112
    %p114 = pneg %p113
    // Predicated region
    $region9: #{autoencoder_forward.8} parent=5 // pred_check
      _
    $region10: #{autoencoder_forward.8} parent=5 // pred_check_branch
      %116 = sbr.rel (%p113) target = $region12
    $region11: #{autoencoder_forward.8} parent=5 // pred_region
      %s117 = ssub.s32 %s9, 1
      // Predicated region
      $region13: #{autoencoder_forward.8} parent=11 // pred_check
        %p118 = pneg %p56
      $region14: #{autoencoder_forward.8} parent=11 // pred_check_branch
        %120 = sbr.rel (%p118) target = $region16
      $region15: #{autoencoder_forward.8} parent=11 // pred_region
        _
      $region16: #{autoencoder_forward.8} parent=11 // pred_fallthru
        _
      // Predicated region
      $region17: #{autoencoder_forward.8} parent=11 // pred_check
        %p121 = pneg %p77
      $region18: #{autoencoder_forward.8} parent=11 // pred_check_branch
        %123 = sbr.rel (%p121) target = $region20
      $region19: #{autoencoder_forward.8} parent=11 // pred_region
        _
      $region20: #{autoencoder_forward.8} parent=11 // pred_fallthru
        _
    $region12: #{autoencoder_forward.8} parent=5 // pred_fallthru
      _
    %p124 = scmp.lt.s32.totalorder %s9, 2
    // Predicated region
    $region21: #{autoencoder_forward.8} parent=5 // pred_check
      %p125 = pneg %p124
    $region22: #{autoencoder_forward.8} parent=5 // pred_check_branch
      %127 = sbr.rel (%p125) target = $region24
    $region23: #{autoencoder_forward.8} parent=5 // pred_region
      // Predicated region
      $region25: #{autoencoder_forward.8} parent=23 // pred_check
        %p128 = pneg %p29
      $region26: #{autoencoder_forward.8} parent=23 // pred_check_branch
        %130 = sbr.rel (%p128) target = $region28
      $region27: #{autoencoder_forward.8} parent=23 // pred_region
        %p131 = scmp.lt.s32.totalorder %s9, 1
        %s132 = scalar_select %p131, %s9, 1
        %s133 = smul.addr %s132, 18
        %s134 = smul.addr %s133, 4
        %s135 = scalar_lea.vmem %s0, %s134
      $region28: #{autoencoder_forward.8} parent=23 // pred_fallthru
        _
    $region24: #{autoencoder_forward.8} parent=5 // pred_fallthru
      _
    %p136 = scmp.le.s32.totalorder 1, %s9
    %p137 = scmp.lt.s32.totalorder %s9, 3
    %p138 = pnand %p136, %p137
    %p139 = pneg %p138
    // Predicated region
    $region29: #{autoencoder_forward.8} parent=5 // pred_check
      _
    $region30: #{autoencoder_forward.8} parent=5 // pred_check_branch
      %141 = sbr.rel (%p138) target = $region32
    $region31: #{autoencoder_forward.8} parent=5 // pred_region
      %s142 = ssub.s32 %s9, 1
      %p143 = scmp.lt.s32.totalorder %s14, 1
      %s144 = scalar_select %p143, %s14, 1
      %s145 = smul.addr %s144, 18
      %s146 = smul.addr %s145, 4
      %s147 = scalar_lea.vmem %s0, %s146
      %p148 = pneg %p35
      %p149 = pneg %p32
      %p150 = pneg %p56
      %p151 = pneg %p53
      %p152 = pneg %p77
      %p153 = pneg %p74
      %p154 = pneg %p103
      %p155 = pneg %p100
      %p156 = scmp.lt.s32.totalorder %s14, 1
      %s157 = scalar_select %p156, %s14, 1
      %s158 = smul.addr %s157, 8
      %s159 = smul.addr %s158, 4
      %s160 = scalar_lea.vmem %s3, %s159
      %p161 = scmp.lt.s32.totalorder %s14, 1
      %s162 = scalar_select %p161, %s14, 1
      %s163 = smul.addr %s162, 18
      %s164 = smul.addr %s163, 4
      %s165 = scalar_lea.vmem %s0, %s164
      %p166 = scmp.lt.s32.totalorder %s14, 1
      %s167 = scalar_select %p166, %s14, 1
      %s168 = smul.addr %s167, 8
      %s169 = smul.addr %s168, 4
      %s170 = scalar_lea.vmem %s3, %s169
      %v172 = vld [vmem:[%s2] sm:$0x1]
      %v173 = vld [vmem:[%s1] sm:$0xf]
      %v174 = vld [vmem:[%s1 + $0x4] sm:$0x3]
      %s175 = scalar_lea.vmem %s1, 8
      %v176 = vld [vmem:[%s175] sm:$0xf]
      %v177 = vld [vmem:[%s175 + $0x4] sm:$0x3]
      %s178 = scalar_lea.vmem %s1, 16
      %v179 = vld [vmem:[%s178] sm:$0xf]
      %v180 = vld [vmem:[%s178 + $0x4] sm:$0x3]
      %s181 = scalar_lea.vmem %s1, 24
      %v182 = vld [vmem:[%s181] sm:$0xf]
      %v183 = vld [vmem:[%s181 + $0x4] sm:$0x3]
      %v184 = vld [vmem:[%s165] sm:$0xf]
      %v185 = vld [vmem:[%s165 + $0x8] sm:$0xf]
      %v186 = vld [vmem:[%s165 + $0x10] sm:$0xf]
      %v187 = vld [vmem:[%s165 + $0x18] sm:$0xf]
      %v188 = vld [vmem:[%s165 + $0x20] sm:$0xf]
      %v189 = vld [vmem:[%s165 + $0x28] sm:$0xf]
      %v190 = vld [vmem:[%s165 + $0x30] sm:$0xf]
      %v191 = vld [vmem:[%s165 + $0x38] sm:$0xf]
      %v192 = vld [vmem:[%s165 + $0x4] sm:$0x1]
      %v193 = vld [vmem:[%s165 + $0xc] sm:$0x1]
      %v194 = vld [vmem:[%s165 + $0x14] sm:$0x1]
      %v195 = vld [vmem:[%s165 + $0x1c] sm:$0x1]
      %v196 = vld [vmem:[%s165 + $0x24] sm:$0x1]
      %v197 = vld [vmem:[%s165 + $0x2c] sm:$0x1]
      %v198 = vld [vmem:[%s165 + $0x34] sm:$0x1]
      %v199 = vld [vmem:[%s165 + $0x3c] sm:$0x1]
      %vm200 = vsmask.f32 3328
      %vm201 = vsmask.f32 7440
      %vm202 = vmor %vm200, %vm201
      %v204 = vshrl.u32 %v184, 16
      %v206 = vrot.slane %v204, 4
      %v207 = vshll.u32 %v184, 16
      %v209 = vrot.slane %v207, 5
      %v210 = vor.u32 %v206, %v209
      %v211 = vrot.slane %v210, 4
      %v213 = vshll.u32 %v192, 16
      %v215 = vrot.slane %v213, 5
      %v216 = vsel %vm202, %v211, %v215
      %v218 = vshrl.u32 %v185, 16
      %v220 = vrot.slane %v218, 4
      %v221 = vshll.u32 %v185, 16
      %v223 = vrot.slane %v221, 5
      %v224 = vor.u32 %v220, %v223
      %v225 = vrot.slane %v224, 4
      %v227 = vshll.u32 %v193, 16
      %v229 = vrot.slane %v227, 5
      %v230 = vsel %vm202, %v225, %v229
      %v232 = vshrl.u32 %v186, 16
      %v234 = vrot.slane %v232, 4
      %v235 = vshll.u32 %v186, 16
      %v237 = vrot.slane %v235, 5
      %v238 = vor.u32 %v234, %v237
      %v239 = vrot.slane %v238, 4
      %v241 = vshll.u32 %v194, 16
      %v243 = vrot.slane %v241, 5
      %v244 = vsel %vm202, %v239, %v243
      %v246 = vshrl.u32 %v187, 16
      %v248 = vrot.slane %v246, 4
      %v249 = vshll.u32 %v187, 16
      %v251 = vrot.slane %v249, 5
      %v252 = vor.u32 %v248, %v251
      %v253 = vrot.slane %v252, 4
      %v255 = vshll.u32 %v195, 16
      %v257 = vrot.slane %v255, 5
      %v258 = vsel %vm202, %v253, %v257
      %v260 = vshrl.u32 %v188, 16
      %v262 = vrot.slane %v260, 4
      %v263 = vshll.u32 %v188, 16
      %v265 = vrot.slane %v263, 5
      %v266 = vor.u32 %v262, %v265
      %v267 = vrot.slane %v266, 4
      %v269 = vshll.u32 %v196, 16
      %v271 = vrot.slane %v269, 5
      %v272 = vsel %vm202, %v267, %v271
      %v274 = vshrl.u32 %v189, 16
      %v276 = vrot.slane %v274, 4
      %v277 = vshll.u32 %v189, 16
      %v279 = vrot.slane %v277, 5
      %v280 = vor.u32 %v276, %v279
      %v281 = vrot.slane %v280, 4
      %v283 = vshll.u32 %v197, 16
      %v285 = vrot.slane %v283, 5
      %v286 = vsel %vm202, %v281, %v285
      %v288 = vshrl.u32 %v190, 16
      %v290 = vrot.slane %v288, 4
      %v291 = vshll.u32 %v190, 16
      %v293 = vrot.slane %v291, 5
      %v294 = vor.u32 %v290, %v293
      %v295 = vrot.slane %v294, 4
      %v297 = vshll.u32 %v198, 16
      %v299 = vrot.slane %v297, 5
      %v300 = vsel %vm202, %v295, %v299
      %v302 = vshrl.u32 %v191, 16
      %v304 = vrot.slane %v302, 4
      %v305 = vshll.u32 %v191, 16
      %v307 = vrot.slane %v305, 5
      %v308 = vor.u32 %v304, %v307
      %v309 = vrot.slane %v308, 4
      %v311 = vshll.u32 %v199, 16
      %v313 = vrot.slane %v311, 5
      %v314 = vsel %vm202, %v309, %v313
      %v315 = vunpack.c.l.b16 %v216
      %v316 = vunpack.c.l.b16 %v230
      %v317 = vunpack.c.l.b16 %v244
      %v318 = vunpack.c.l.b16 %v258
      %v319 = vunpack.c.l.b16 %v272
      %v320 = vunpack.c.l.b16 %v286
      %v321 = vunpack.c.l.b16 %v300
      %v322 = vunpack.c.l.b16 %v314
      %v323 = vpack.c.b16 %v316, %v315
      %v324 = vpack.c.b16 %v318, %v317
      %v325 = vpack.c.b16 %v320, %v319
      %v326 = vpack.c.b16 %v322, %v321
      %v329 = vunpack.c.l.b16 %v176
      %v330 = vunpack.c.l.b16 %v177
      %v331 = vpack.c.b16 %v330, %v329
      %vm332 = vcmask 97280
      %v334 = vsel %vm332, %v323, 0
      %v337 = vsel %vm332, %v324, 0
      %v340 = vsel %vm332, %v325, 0
      %v343 = vsel %vm332, %v326, 0
      %vm345 = vcmask 1045504
      %v347 = vsel %vm345, %v331, 0
      %349 = vmatprep.subr.bf16.mxu0 0
      %350 = vmatpush1.bf16.msra.mxu0 0
      %351 = vmatprep.subr.bf16.mxu0 0
      %352 = vmatpush1.bf16.msra.mxu0 0
      %353 = vmatprep.subr.bf16.mxu0 0
      %354 = vmatpush1.bf16.msra.mxu0 0
      %355 = vmatprep.subr.bf16.mxu0 0
      %356 = vmatpush1.bf16.msra.mxu0 0
      %357 = vmatprep.subr.bf16.mxu0 0
      %358 = vmatpush1.bf16.msra.mxu0 0
      %359 = vmatprep.subr.bf16.mxu0 0
      %360 = vmatpush1.bf16.msra.mxu0 0
      %361 = vmatprep.subr.bf16.mxu0 0
      %362 = vmatpush1.bf16.msra.mxu0 0
      %363 = vmatprep.subr.bf16.mxu0 0
      %364 = vmatpush1.bf16.msra.mxu0 %v347
      %365 = vmatprep.subr.bf16.mxu0 0
      %366 = vmatpush2.bf16.msra.mxu0 0
      %367 = vmatprep.subr.bf16.mxu0 0
      %368 = vmatpush2.bf16.msra.mxu0 0
      %369 = vmatprep.subr.bf16.mxu0 0
      %370 = vmatpush2.bf16.msra.mxu0 0
      %371 = vmatprep.subr.bf16.mxu0 0
      %372 = vmatpush2.bf16.msra.mxu0 0
      %373 = vmatprep.subr.bf16.mxu0 0
      %374 = vmatpush2.bf16.msra.mxu0 0
      %375 = vmatprep.subr.bf16.mxu0 0
      %376 = vmatpush2.bf16.msra.mxu0 0
      %377 = vmatprep.subr.bf16.mxu0 0
      %378 = vmatpush2.bf16.msra.mxu0 0
      %379 = vmatprep.subr.bf16.mxu0 0
      %380 = vmatpush2.bf16.msra.mxu0 0
      %381 = vmatprep.mubr.bf16.mxu0 0
      %382 = vmatmul.mubr.bf16.gmra.mxu0 %v334
      %v383 = vpop.f32.mrf.mxu0
      %v384 = vadd.f32 0.0, %v383
      %v385 = vpop.f32.mrf.mxu0
      %v386 = vpop.f32.mrf.mxu0
      %v387 = vadd.f32 0.0, %v386
      %v388 = vpop.f32.mrf.mxu0
      %389 = vmatprep.mubr.bf16.mxu0 0
      %390 = vmatmul.mubr.bf16.gmra.mxu0 %v337
      %v391 = vpop.f32.mrf.mxu0
      %v392 = vadd.f32 0.0, %v391
      %v393 = vpop.f32.mrf.mxu0
      %v394 = vpop.f32.mrf.mxu0
      %v395 = vadd.f32 0.0, %v394
      %v396 = vpop.f32.mrf.mxu0
      %397 = vmatprep.mubr.bf16.mxu0 0
      %398 = vmatmul.mubr.bf16.gmra.mxu0 %v340
      %v399 = vpop.f32.mrf.mxu0
      %v400 = vadd.f32 0.0, %v399
      %v401 = vpop.f32.mrf.mxu0
      %v402 = vpop.f32.mrf.mxu0
      %v403 = vadd.f32 0.0, %v402
      %v404 = vpop.f32.mrf.mxu0
      %405 = vmatprep.mubr.bf16.mxu0 0
      %406 = vmatmul.mubr.bf16.gmra.mxu0 %v343
      %v407 = vpop.f32.mrf.mxu0
      %v408 = vadd.f32 0.0, %v407
      %v409 = vpop.f32.mrf.mxu0
      %v410 = vpop.f32.mrf.mxu0
      %v411 = vadd.f32 0.0, %v410
      %v412 = vpop.f32.mrf.mxu0
      %413 = vdwg.mxu0
      %v422 = vunpack.c.l.b16 %v184
      %v423 = vunpack.c.l.b16 %v185
      %v424 = vunpack.c.l.b16 %v186
      %v425 = vunpack.c.l.b16 %v187
      %v426 = vunpack.c.l.b16 %v188
      %v427 = vunpack.c.l.b16 %v189
      %v428 = vunpack.c.l.b16 %v190
      %v429 = vunpack.c.l.b16 %v191
      %v430 = vpack.c.b16 %v423, %v422
      %v431 = vpack.c.b16 %v425, %v424
      %v432 = vpack.c.b16 %v427, %v426
      %v433 = vpack.c.b16 %v429, %v428
      %v436 = vunpack.c.l.b16 %v173
      %v437 = vunpack.c.l.b16 %v174
      %v438 = vpack.c.b16 %v437, %v436
      %v440 = vsel %vm332, %v430, 0
      %v443 = vsel %vm332, %v431, 0
      %v446 = vsel %vm332, %v432, 0
      %v449 = vsel %vm332, %v433, 0
      %v452 = vsel %vm345, %v438, 0
      %454 = vmatprep.subr.bf16.mxu0 0
      %455 = vmatpush1.bf16.msra.mxu0 0
      %456 = vmatprep.subr.bf16.mxu0 0
      %457 = vmatpush1.bf16.msra.mxu0 0
      %458 = vmatprep.subr.bf16.mxu0 0
      %459 = vmatpush1.bf16.msra.mxu0 0
      %460 = vmatprep.subr.bf16.mxu0 0
      %461 = vmatpush1.bf16.msra.mxu0 0
      %462 = vmatprep.subr.bf16.mxu0 0
      %463 = vmatpush1.bf16.msra.mxu0 0
      %464 = vmatprep.subr.bf16.mxu0 0
      %465 = vmatpush1.bf16.msra.mxu0 0
      %466 = vmatprep.subr.bf16.mxu0 0
      %467 = vmatpush1.bf16.msra.mxu0 0
      %468 = vmatprep.subr.bf16.mxu0 0
      %469 = vmatpush1.bf16.msra.mxu0 %v452
      %470 = vmatprep.subr.bf16.mxu0 0
      %471 = vmatpush2.bf16.msra.mxu0 0
      %472 = vmatprep.subr.bf16.mxu0 0
      %473 = vmatpush2.bf16.msra.mxu0 0
      %474 = vmatprep.subr.bf16.mxu0 0
      %475 = vmatpush2.bf16.msra.mxu0 0
      %476 = vmatprep.subr.bf16.mxu0 0
      %477 = vmatpush2.bf16.msra.mxu0 0
      %478 = vmatprep.subr.bf16.mxu0 0
      %479 = vmatpush2.bf16.msra.mxu0 0
      %480 = vmatprep.subr.bf16.mxu0 0
      %481 = vmatpush2.bf16.msra.mxu0 0
      %482 = vmatprep.subr.bf16.mxu0 0
      %483 = vmatpush2.bf16.msra.mxu0 0
      %484 = vmatprep.subr.bf16.mxu0 0
      %485 = vmatpush2.bf16.msra.mxu0 0
      %486 = vmatprep.mubr.bf16.mxu0 0
      %487 = vmatmul.mubr.bf16.gmra.mxu0 %v440
      %v488 = vpop.f32.mrf.mxu0
      %v489 = vadd.f32 %v384, %v488
      %v490 = vpop.f32.mrf.mxu0
      %v491 = vpop.f32.mrf.mxu0
      %v492 = vadd.f32 %v387, %v491
      %v493 = vpop.f32.mrf.mxu0
      %494 = vmatprep.mubr.bf16.mxu0 0
      %495 = vmatmul.mubr.bf16.gmra.mxu0 %v443
      %v496 = vpop.f32.mrf.mxu0
      %v497 = vadd.f32 %v392, %v496
      %v498 = vpop.f32.mrf.mxu0
      %v499 = vpop.f32.mrf.mxu0
      %v500 = vadd.f32 %v395, %v499
      %v501 = vpop.f32.mrf.mxu0
      %502 = vmatprep.mubr.bf16.mxu0 0
      %503 = vmatmul.mubr.bf16.gmra.mxu0 %v446
      %v504 = vpop.f32.mrf.mxu0
      %v505 = vadd.f32 %v400, %v504
      %v506 = vpop.f32.mrf.mxu0
      %v507 = vpop.f32.mrf.mxu0
      %v508 = vadd.f32 %v403, %v507
      %v509 = vpop.f32.mrf.mxu0
      %510 = vmatprep.mubr.bf16.mxu0 0
      %511 = vmatmul.mubr.bf16.gmra.mxu0 %v449
      %v512 = vpop.f32.mrf.mxu0
      %v513 = vadd.f32 %v408, %v512
      %v514 = vpop.f32.mrf.mxu0
      %v515 = vpop.f32.mrf.mxu0
      %v516 = vadd.f32 %v411, %v515
      %v517 = vpop.f32.mrf.mxu0
      %518 = vdwg.mxu0
      %s519 = scalar_lea.vmem %s165, 8
      %v520 = vld [vmem:[%s519] sm:$0xf]
      %v521 = vld [vmem:[%s519 + $0x8] sm:$0xf]
      %v522 = vld [vmem:[%s519 + $0x10] sm:$0xf]
      %v523 = vld [vmem:[%s519 + $0x18] sm:$0xf]
      %v524 = vld [vmem:[%s519 + $0x20] sm:$0xf]
      %v525 = vld [vmem:[%s519 + $0x28] sm:$0xf]
      %v526 = vld [vmem:[%s519 + $0x30] sm:$0xf]
      %v527 = vld [vmem:[%s519 + $0x38] sm:$0xf]
      %v536 = vunpack.c.l.b16 %v520
      %v537 = vunpack.c.l.b16 %v521
      %v538 = vunpack.c.l.b16 %v522
      %v539 = vunpack.c.l.b16 %v523
      %v540 = vunpack.c.l.b16 %v524
      %v541 = vunpack.c.l.b16 %v525
      %v542 = vunpack.c.l.b16 %v526
      %v543 = vunpack.c.l.b16 %v527
      %v544 = vpack.c.b16 %v537, %v536
      %v545 = vpack.c.b16 %v539, %v538
      %v546 = vpack.c.b16 %v541, %v540
      %v547 = vpack.c.b16 %v543, %v542
      %v550 = vunpack.c.l.b16 %v179
      %v551 = vunpack.c.l.b16 %v180
      %v552 = vpack.c.b16 %v551, %v550
      %v554 = vsel %vm332, %v544, 0
      %v557 = vsel %vm332, %v545, 0
      %v560 = vsel %vm332, %v546, 0
      %v563 = vsel %vm332, %v547, 0
      %v566 = vsel %vm345, %v552, 0
      %568 = vmatprep.subr.bf16.mxu0 0
      %569 = vmatpush1.bf16.msra.mxu0 0
      %570 = vmatprep.subr.bf16.mxu0 0
      %571 = vmatpush1.bf16.msra.mxu0 0
      %572 = vmatprep.subr.bf16.mxu0 0
      %573 = vmatpush1.bf16.msra.mxu0 0
      %574 = vmatprep.subr.bf16.mxu0 0
      %575 = vmatpush1.bf16.msra.mxu0 0
      %576 = vmatprep.subr.bf16.mxu0 0
      %577 = vmatpush1.bf16.msra.mxu0 0
      %578 = vmatprep.subr.bf16.mxu0 0
      %579 = vmatpush1.bf16.msra.mxu0 0
      %580 = vmatprep.subr.bf16.mxu0 0
      %581 = vmatpush1.bf16.msra.mxu0 0
      %582 = vmatprep.subr.bf16.mxu0 0
      %583 = vmatpush1.bf16.msra.mxu0 %v566
      %584 = vmatprep.subr.bf16.mxu0 0
      %585 = vmatpush2.bf16.msra.mxu0 0
      %586 = vmatprep.subr.bf16.mxu0 0
      %587 = vmatpush2.bf16.msra.mxu0 0
      %588 = vmatprep.subr.bf16.mxu0 0
      %589 = vmatpush2.bf16.msra.mxu0 0
      %590 = vmatprep.subr.bf16.mxu0 0
      %591 = vmatpush2.bf16.msra.mxu0 0
      %592 = vmatprep.subr.bf16.mxu0 0
      %593 = vmatpush2.bf16.msra.mxu0 0
      %594 = vmatprep.subr.bf16.mxu0 0
      %595 = vmatpush2.bf16.msra.mxu0 0
      %596 = vmatprep.subr.bf16.mxu0 0
      %597 = vmatpush2.bf16.msra.mxu0 0
      %598 = vmatprep.subr.bf16.mxu0 0
      %599 = vmatpush2.bf16.msra.mxu0 0
      %600 = vmatprep.mubr.bf16.mxu0 0
      %601 = vmatmul.mubr.bf16.gmra.mxu0 %v554
      %v602 = vpop.f32.mrf.mxu0
      %v603 = vadd.f32 0.0, %v602
      %v604 = vpop.f32.mrf.mxu0
      %v605 = vpop.f32.mrf.mxu0
      %v606 = vadd.f32 0.0, %v605
      %v607 = vpop.f32.mrf.mxu0
      %608 = vmatprep.mubr.bf16.mxu0 0
      %609 = vmatmul.mubr.bf16.gmra.mxu0 %v557
      %v610 = vpop.f32.mrf.mxu0
      %v611 = vadd.f32 0.0, %v610
      %v612 = vpop.f32.mrf.mxu0
      %v613 = vpop.f32.mrf.mxu0
      %v614 = vadd.f32 0.0, %v613
      %v615 = vpop.f32.mrf.mxu0
      %616 = vmatprep.mubr.bf16.mxu0 0
      %617 = vmatmul.mubr.bf16.gmra.mxu0 %v560
      %v618 = vpop.f32.mrf.mxu0
      %v619 = vadd.f32 0.0, %v618
      %v620 = vpop.f32.mrf.mxu0
      %v621 = vpop.f32.mrf.mxu0
      %v622 = vadd.f32 0.0, %v621
      %v623 = vpop.f32.mrf.mxu0
      %624 = vmatprep.mubr.bf16.mxu0 0
      %625 = vmatmul.mubr.bf16.gmra.mxu0 %v563
      %v626 = vpop.f32.mrf.mxu0
      %v627 = vadd.f32 0.0, %v626
      %v628 = vpop.f32.mrf.mxu0
      %v629 = vpop.f32.mrf.mxu0
      %v630 = vadd.f32 0.0, %v629
      %v631 = vpop.f32.mrf.mxu0
      %632 = vdwg.mxu0
      %v633 = vadd.f32 %v489, %v603
      %v634 = vadd.f32 %v492, %v606
      %v635 = vadd.f32 %v497, %v611
      %v636 = vadd.f32 %v500, %v614
      %v637 = vadd.f32 %v505, %v619
      %v638 = vadd.f32 %v508, %v622
      %v639 = vadd.f32 %v513, %v627
      %v640 = vadd.f32 %v516, %v630
      %v641 = vld [vmem:[%s519] sm:$0xf]
      %v642 = vld [vmem:[%s519 + $0x4] sm:$0x1]
      %v643 = vld [vmem:[%s519 + $0x8] sm:$0xf]
      %v644 = vld [vmem:[%s519 + $0xc] sm:$0x1]
      %v645 = vld [vmem:[%s519 + $0x10] sm:$0xf]
      %v646 = vld [vmem:[%s519 + $0x14] sm:$0x1]
      %v647 = vld [vmem:[%s519 + $0x18] sm:$0xf]
      %v648 = vld [vmem:[%s519 + $0x1c] sm:$0x1]
      %v649 = vld [vmem:[%s519 + $0x20] sm:$0xf]
      %v650 = vld [vmem:[%s519 + $0x24] sm:$0x1]
      %v651 = vld [vmem:[%s519 + $0x28] sm:$0xf]
      %v652 = vld [vmem:[%s519 + $0x2c] sm:$0x1]
      %v653 = vld [vmem:[%s519 + $0x30] sm:$0xf]
      %v654 = vld [vmem:[%s519 + $0x34] sm:$0x1]
      %v655 = vld [vmem:[%s519 + $0x38] sm:$0xf]
      %v656 = vld [vmem:[%s519 + $0x3c] sm:$0x1]
      %v658 = vshrl.u32 %v641, 16
      %v660 = vrot.slane %v658, 4
      %v661 = vshll.u32 %v641, 16
      %v663 = vrot.slane %v661, 5
      %v664 = vor.u32 %v660, %v663
      %v665 = vrot.slane %v664, 4
      %v667 = vshll.u32 %v642, 16
      %v669 = vrot.slane %v667, 5
      %v670 = vsel %vm202, %v665, %v669
      %v672 = vshrl.u32 %v643, 16
      %v674 = vrot.slane %v672, 4
      %v675 = vshll.u32 %v643, 16
      %v677 = vrot.slane %v675, 5
      %v678 = vor.u32 %v674, %v677
      %v679 = vrot.slane %v678, 4
      %v681 = vshll.u32 %v644, 16
      %v683 = vrot.slane %v681, 5
      %v684 = vsel %vm202, %v679, %v683
      %v686 = vshrl.u32 %v645, 16
      %v688 = vrot.slane %v686, 4
      %v689 = vshll.u32 %v645, 16
      %v691 = vrot.slane %v689, 5
      %v692 = vor.u32 %v688, %v691
      %v693 = vrot.slane %v692, 4
      %v695 = vshll.u32 %v646, 16
      %v697 = vrot.slane %v695, 5
      %v698 = vsel %vm202, %v693, %v697
      %v700 = vshrl.u32 %v647, 16
      %v702 = vrot.slane %v700, 4
      %v703 = vshll.u32 %v647, 16
      %v705 = vrot.slane %v703, 5
      %v706 = vor.u32 %v702, %v705
      %v707 = vrot.slane %v706, 4
      %v709 = vshll.u32 %v648, 16
      %v711 = vrot.slane %v709, 5
      %v712 = vsel %vm202, %v707, %v711
      %v714 = vshrl.u32 %v649, 16
      %v716 = vrot.slane %v714, 4
      %v717 = vshll.u32 %v649, 16
      %v719 = vrot.slane %v717, 5
      %v720 = vor.u32 %v716, %v719
      %v721 = vrot.slane %v720, 4
      %v723 = vshll.u32 %v650, 16
      %v725 = vrot.slane %v723, 5
      %v726 = vsel %vm202, %v721, %v725
      %v728 = vshrl.u32 %v651, 16
      %v730 = vrot.slane %v728, 4
      %v731 = vshll.u32 %v651, 16
      %v733 = vrot.slane %v731, 5
      %v734 = vor.u32 %v730, %v733
      %v735 = vrot.slane %v734, 4
      %v737 = vshll.u32 %v652, 16
      %v739 = vrot.slane %v737, 5
      %v740 = vsel %vm202, %v735, %v739
      %v742 = vshrl.u32 %v653, 16
      %v744 = vrot.slane %v742, 4
      %v745 = vshll.u32 %v653, 16
      %v747 = vrot.slane %v745, 5
      %v748 = vor.u32 %v744, %v747
      %v749 = vrot.slane %v748, 4
      %v751 = vshll.u32 %v654, 16
      %v753 = vrot.slane %v751, 5
      %v754 = vsel %vm202, %v749, %v753
      %v756 = vshrl.u32 %v655, 16
      %v758 = vrot.slane %v756, 4
      %v759 = vshll.u32 %v655, 16
      %v761 = vrot.slane %v759, 5
      %v762 = vor.u32 %v758, %v761
      %v763 = vrot.slane %v762, 4
      %v765 = vshll.u32 %v656, 16
      %v767 = vrot.slane %v765, 5
      %v768 = vsel %vm202, %v763, %v767
      %v769 = vunpack.c.l.b16 %v670
      %v770 = vunpack.c.l.b16 %v684
      %v771 = vunpack.c.l.b16 %v698
      %v772 = vunpack.c.l.b16 %v712
      %v773 = vunpack.c.l.b16 %v726
      %v774 = vunpack.c.l.b16 %v740
      %v775 = vunpack.c.l.b16 %v754
      %v776 = vunpack.c.l.b16 %v768
      %v777 = vpack.c.b16 %v770, %v769
      %v778 = vpack.c.b16 %v772, %v771
      %v779 = vpack.c.b16 %v774, %v773
      %v780 = vpack.c.b16 %v776, %v775
      %v783 = vunpack.c.l.b16 %v182
      %v784 = vunpack.c.l.b16 %v183
      %v785 = vpack.c.b16 %v784, %v783
      %v787 = vsel %vm332, %v777, 0
      %v790 = vsel %vm332, %v778, 0
      %v793 = vsel %vm332, %v779, 0
      %v796 = vsel %vm332, %v780, 0
      %v799 = vsel %vm345, %v785, 0
      %801 = vmatprep.subr.bf16.mxu0 0
      %802 = vmatpush1.bf16.msra.mxu0 0
      %803 = vmatprep.subr.bf16.mxu0 0
      %804 = vmatpush1.bf16.msra.mxu0 0
      %805 = vmatprep.subr.bf16.mxu0 0
      %806 = vmatpush1.bf16.msra.mxu0 0
      %807 = vmatprep.subr.bf16.mxu0 0
      %808 = vmatpush1.bf16.msra.mxu0 0
      %809 = vmatprep.subr.bf16.mxu0 0
      %810 = vmatpush1.bf16.msra.mxu0 0
      %811 = vmatprep.subr.bf16.mxu0 0
      %812 = vmatpush1.bf16.msra.mxu0 0
      %813 = vmatprep.subr.bf16.mxu0 0
      %814 = vmatpush1.bf16.msra.mxu0 0
      %815 = vmatprep.subr.bf16.mxu0 0
      %816 = vmatpush1.bf16.msra.mxu0 %v799
      %817 = vmatprep.subr.bf16.mxu0 0
      %818 = vmatpush2.bf16.msra.mxu0 0
      %819 = vmatprep.subr.bf16.mxu0 0
      %820 = vmatpush2.bf16.msra.mxu0 0
      %821 = vmatprep.subr.bf16.mxu0 0
      %822 = vmatpush2.bf16.msra.mxu0 0
      %823 = vmatprep.subr.bf16.mxu0 0
      %824 = vmatpush2.bf16.msra.mxu0 0
      %825 = vmatprep.subr.bf16.mxu0 0
      %826 = vmatpush2.bf16.msra.mxu0 0
      %827 = vmatprep.subr.bf16.mxu0 0
      %828 = vmatpush2.bf16.msra.mxu0 0
      %829 = vmatprep.subr.bf16.mxu0 0
      %830 = vmatpush2.bf16.msra.mxu0 0
      %831 = vmatprep.subr.bf16.mxu0 0
      %832 = vmatpush2.bf16.msra.mxu0 0
      %833 = vmatprep.mubr.bf16.mxu0 0
      %834 = vmatmul.mubr.bf16.gmra.mxu0 %v787
      %v835 = vpop.f32.mrf.mxu0
      %v836 = vadd.f32 0.0, %v835
      %v837 = vpop.f32.mrf.mxu0
      %v838 = vpop.f32.mrf.mxu0
      %v839 = vadd.f32 0.0, %v838
      %v840 = vpop.f32.mrf.mxu0
      %841 = vmatprep.mubr.bf16.mxu0 0
      %842 = vmatmul.mubr.bf16.gmra.mxu0 %v790
      %v843 = vpop.f32.mrf.mxu0
      %v844 = vadd.f32 0.0, %v843
      %v845 = vpop.f32.mrf.mxu0
      %v846 = vpop.f32.mrf.mxu0
      %v847 = vadd.f32 0.0, %v846
      %v848 = vpop.f32.mrf.mxu0
      %849 = vmatprep.mubr.bf16.mxu0 0
      %850 = vmatmul.mubr.bf16.gmra.mxu0 %v793
      %v851 = vpop.f32.mrf.mxu0
      %v852 = vadd.f32 0.0, %v851
      %v853 = vpop.f32.mrf.mxu0
      %v854 = vpop.f32.mrf.mxu0
      %v855 = vadd.f32 0.0, %v854
      %v856 = vpop.f32.mrf.mxu0
      %857 = vmatprep.mubr.bf16.mxu0 0
      %858 = vmatmul.mubr.bf16.gmra.mxu0 %v796
      %v859 = vpop.f32.mrf.mxu0
      %v860 = vadd.f32 0.0, %v859
      %v861 = vpop.f32.mrf.mxu0
      %v862 = vpop.f32.mrf.mxu0
      %v863 = vadd.f32 0.0, %v862
      %v864 = vpop.f32.mrf.mxu0
      %865 = vdwg.mxu0
      %v866 = vadd.f32 %v633, %v836
      %v867 = vadd.f32 %v634, %v839
      %v868 = vadd.f32 %v635, %v844
      %v869 = vadd.f32 %v636, %v847
      %v870 = vadd.f32 %v637, %v852
      %v871 = vadd.f32 %v638, %v855
      %v872 = vadd.f32 %v639, %v860
      %v873 = vadd.f32 %v640, %v863
      %v875 = vlaneseq
      %v876 = vshrl.u32 %v875, 7
      %v877 = vsub.s32 0, %v876
      %v878 = vrot.slane %v172, %v877
      %v880 = vadd.f32 %v866, %v878
      %v881 = vadd.f32 %v867, %v878
      %v882 = vadd.f32 %v868, %v878
      %v883 = vadd.f32 %v869, %v878
      %v884 = vadd.f32 %v870, %v878
      %v885 = vadd.f32 %v871, %v878
      %v886 = vadd.f32 %v872, %v878
      %v887 = vadd.f32 %v873, %v878
      %v888 = vmax.f32 %v880, 0.0
      %v889 = vmax.f32 %v881, 0.0
      %v890 = vmax.f32 %v882, 0.0
      %v891 = vmax.f32 %v883, 0.0
      %v892 = vmax.f32 %v884, 0.0
      %v893 = vmax.f32 %v885, 0.0
      %v894 = vmax.f32 %v886, 0.0
      %v895 = vmax.f32 %v887, 0.0
      %v896 = vpack.c.bf16 %v888, %v888
      %v897 = vpack.c.bf16 %v889, %v889
      %v898 = vpack.c.bf16 %v890, %v890
      %v899 = vpack.c.bf16 %v891, %v891
      %v900 = vpack.c.bf16 %v892, %v892
      %v901 = vpack.c.bf16 %v893, %v893
      %v902 = vpack.c.bf16 %v894, %v894
      %v903 = vpack.c.bf16 %v895, %v895
      %904 = vst [vmem:[%s170] sm:$0xf] %v896
      %905 = vst [vmem:[%s170 + $0x4] sm:$0xf] %v897
      %906 = vst [vmem:[%s170 + $0x8] sm:$0xf] %v898
      %907 = vst [vmem:[%s170 + $0xc] sm:$0xf] %v899
      %908 = vst [vmem:[%s170 + $0x10] sm:$0xf] %v900
      %909 = vst [vmem:[%s170 + $0x14] sm:$0xf] %v901
      %910 = vst [vmem:[%s170 + $0x18] sm:$0xf] %v902
      %911 = vst [vmem:[%s170 + $0x1c] sm:$0xf] %v903
      %p912 = scmp.lt.s32.totalorder %s14, 1
      %s913 = scalar_select %p912, %s14, 1
      %s914 = smul.addr %s913, 8
      %s915 = smul.addr %s914, 4
      %s916 = scalar_lea.vmem %s3, %s915
      // Predicated region
      $region33: #{autoencoder_forward.8} parent=31 // pred_check
        %p917 = pneg %p100
      $region34: #{autoencoder_forward.8} parent=31 // pred_check_branch
        %919 = sbr.rel (%p917) target = $region36
      $region35: #{autoencoder_forward.8} parent=31 // pred_region
        _
      $region36: #{autoencoder_forward.8} parent=31 // pred_fallthru
        _
    $region32: #{autoencoder_forward.8} parent=5 // pred_fallthru
      _
    %p920 = scmp.le.s32.totalorder 2, %s9
    // Predicated region
    $region37: #{autoencoder_forward.8} parent=5 // pred_check
      %p921 = pneg %p920
    $region38: #{autoencoder_forward.8} parent=5 // pred_check_branch
      %923 = sbr.rel (%p921) target = $region40
    $region39: #{autoencoder_forward.8} parent=5 // pred_region
      %s924 = ssub.s32 %s9, 2
      // Predicated region
      $region41: #{autoencoder_forward.8} parent=39 // pred_check
        %p925 = pneg %p106
      $region42: #{autoencoder_forward.8} parent=39 // pred_check_branch
        %927 = sbr.rel (%p925) target = $region44
      $region43: #{autoencoder_forward.8} parent=39 // pred_region
        %p928 = scmp.lt.s32.totalorder %s15, 1
        %s929 = scalar_select %p928, %s15, 1
        %s930 = smul.addr %s929, 8
        %s931 = smul.addr %s930, 4
        %s932 = scalar_lea.vmem %s3, %s931
      $region44: #{autoencoder_forward.8} parent=39 // pred_fallthru
        _
    $region40: #{autoencoder_forward.8} parent=5 // pred_fallthru
      _
  $region6: #{autoencoder_forward.8} parent=0 // loop_footer
    %s13 = sadd.s32 1, %s9
  $region7: #{autoencoder_forward.8} parent=0 // loop_footer_branch
    %8 = sbr.rel target = $region3
  $region8: #{autoencoder_forward.8} parent=0 // loop_exit
    _

// kernel: autoencoder_forward.9
$region0: #{autoencoder_forward.9}
  #allocation0 [shape = 'u32[]', space=smem, size = 0x4, offset = 0x4, fixed_abs, tag = 'smem constant byte address 0x4 - core index']
  #allocation1 [shape = 'u32[144,128]{1,0:T(1,128)}', space=vmem, size = 0x12000, scoped, tag = 'internal scratch']
  %s0 = inlined_call_operand.vmem [shape: bf16[2,5,5,512], index: 0, kind: input, shape index: {}]
  %s1 = inlined_call_operand.vmem [shape: bf16[9,128,128], index: 1, kind: input, shape index: {}]
  %s2 = inlined_call_operand.vmem [shape: f32[1,128], index: 2, kind: input, shape index: {}]
  %s3 = inlined_call_operand.vmem [shape: bf16[2,4,4,128], index: 3, kind: output, shape index: {}]
  %s4 = sld [smem:[#allocation0]]
  $region45: #{autoencoder_forward.9} parent=0
    _
  %s6 = ssub.s32 1, %s4
  %s7 = scalar_select 0, %s6, %s4
  loop: start=0, step=1, limit=4
  $region2: #{autoencoder_forward.9} parent=0 // loop_pre_header
    _
  $region3: #{autoencoder_forward.9} parent=0 // loop_header
    %s9 = sphi 0, %s13
    %p10 = scmp.ge.s32.totalorder %s9, 4
    %s19 = sphi 0, %s21
    %s22 = sphi 0, %s19
    %s23 = sphi 0, %s22
    %s39 = sphi 0, %s23
    %s43 = sphi 0, %s43
    %s45 = sphi 0, %s43
    %s46 = sphi 0, %s45
    %s60 = sphi 0, %s46
    %s64 = sphi 0, %s64
    %s66 = sphi 0, %s64
    %s67 = sphi 0, %s66
    %s81 = sphi 0, %s67
    %s87 = sphi 0, %s89
    %s90 = sphi 0, %s87
    %s91 = sphi 0, %s90
    %s107 = sphi 0, %s91
  $region4: #{autoencoder_forward.9} parent=0 // loop_header_branch
    %12 = sbr.rel (%p10) target = $region8
  $region5: #{autoencoder_forward.9} parent=0 // loop_body
    %s14 = ssub.s32 %s9, 1
    %s15 = ssub.s32 %s9, 2
    %s16 = sadd.s32 %s9, 1
    %s17 = ssub.s32 %s9, %s16
    %p18 = scmp.eq.s32.totalorder %s17, 0
    %s20 = sadd.s32 %s19, 1
    %s21 = scalar_select %p18, %s19, %s20
    %p24 = pneg %p18
    %p25 = scmp.eq.s32.totalorder %s9, 1
    %p26 = por %p24, %p25
    %p27 = scmp.ne.s32.totalorder %s19, %s22
    %p28 = scmp.eq.s32.totalorder %s9, 0
    %p29 = por %p27, %p28
    %p30 = scmp.ne.s32.totalorder %s19, %s22
    %p31 = scmp.eq.s32.totalorder %s14, 1
    %p32 = por %p30, %p31
    %p33 = scmp.ne.s32.totalorder %s22, %s23
    %p34 = scmp.eq.s32.totalorder %s14, 0
    %p35 = por %p33, %p34
    %p36 = scmp.ne.s32.totalorder %s22, %s23
    %p37 = scmp.eq.s32.totalorder %s15, 1
    %p38 = por %p36, %p37
    %p40 = scmp.ne.s32.totalorder %s23, %s39
    %p41 = scmp.eq.s32.totalorder %s15, 0
    %p42 = por %p40, %p41
    %s44 = sadd.s32 %s43, 1
    %p47 = scmp.eq.s32.totalorder %s9, 1
    %p48 = scmp.ne.s32.totalorder %s43, %s45
    %p49 = scmp.eq.s32.totalorder %s9, 0
    %p50 = por %p48, %p49
    %p51 = scmp.ne.s32.totalorder %s43, %s45
    %p52 = scmp.eq.s32.totalorder %s14, 1
    %p53 = por %p51, %p52
    %p54 = scmp.ne.s32.totalorder %s45, %s46
    %p55 = scmp.eq.s32.totalorder %s14, 0
    %p56 = por %p54, %p55
    %p57 = scmp.ne.s32.totalorder %s45, %s46
    %p58 = scmp.eq.s32.totalorder %s15, 1
    %p59 = por %p57, %p58
    %p61 = scmp.ne.s32.totalorder %s46, %s60
    %p62 = scmp.eq.s32.totalorder %s15, 0
    %p63 = por %p61, %p62
    %s65 = sadd.s32 %s64, 1
    %p68 = scmp.eq.s32.totalorder %s9, 1
    %p69 = scmp.ne.s32.totalorder %s64, %s66
    %p70 = scmp.eq.s32.totalorder %s9, 0
    %p71 = por %p69, %p70
    %p72 = scmp.ne.s32.totalorder %s64, %s66
    %p73 = scmp.eq.s32.totalorder %s14, 1
    %p74 = por %p72, %p73
    %p75 = scmp.ne.s32.totalorder %s66, %s67
    %p76 = scmp.eq.s32.totalorder %s14, 0
    %p77 = por %p75, %p76
    %p78 = scmp.ne.s32.totalorder %s66, %s67
    %p79 = scmp.eq.s32.totalorder %s15, 1
    %p80 = por %p78, %p79
    %p82 = scmp.ne.s32.totalorder %s67, %s81
    %p83 = scmp.eq.s32.totalorder %s15, 0
    %p84 = por %p82, %p83
    %s85 = ssub.s32 %s9, %s16
    %p86 = scmp.eq.s32.totalorder %s85, 0
    %s88 = sadd.s32 %s87, 1
    %s89 = scalar_select %p86, %s87, %s88
    %p92 = pneg %p86
    %p93 = scmp.eq.s32.totalorder %s9, 1
    %p94 = por %p92, %p93
    %p95 = scmp.ne.s32.totalorder %s87, %s90
    %p96 = scmp.eq.s32.totalorder %s9, 0
    %p97 = por %p95, %p96
    %p98 = scmp.ne.s32.totalorder %s87, %s90
    %p99 = scmp.eq.s32.totalorder %s14, 1
    %p100 = por %p98, %p99
    %p101 = scmp.ne.s32.totalorder %s90, %s91
    %p102 = scmp.eq.s32.totalorder %s14, 0
    %p103 = por %p101, %p102
    %p104 = scmp.ne.s32.totalorder %s90, %s91
    %p105 = scmp.eq.s32.totalorder %s15, 1
    %p106 = por %p104, %p105
    %p108 = scmp.ne.s32.totalorder %s91, %s107
    %p109 = scmp.eq.s32.totalorder %s15, 0
    %p110 = por %p108, %p109
    %p111 = scmp.le.s32.totalorder 1, %s9
    %p112 = scmp.lt.s32.totalorder %s9, 3
    %p113 = pnand %p111, %p112
    %p114 = pneg %p113
    // Predicated region
    $region9: #{autoencoder_forward.9} parent=5 // pred_check
      _
    $region10: #{autoencoder_forward.9} parent=5 // pred_check_branch
      %116 = sbr.rel (%p113) target = $region12
    $region11: #{autoencoder_forward.9} parent=5 // pred_region
      %s117 = ssub.s32 %s9, 1
      // Predicated region
      $region13: #{autoencoder_forward.9} parent=11 // pred_check
        %p118 = pneg %p56
      $region14: #{autoencoder_forward.9} parent=11 // pred_check_branch
        %120 = sbr.rel (%p118) target = $region16
      $region15: #{autoencoder_forward.9} parent=11 // pred_region
        _
      $region16: #{autoencoder_forward.9} parent=11 // pred_fallthru
        _
      // Predicated region
      $region17: #{autoencoder_forward.9} parent=11 // pred_check
        %p121 = pneg %p77
      $region18: #{autoencoder_forward.9} parent=11 // pred_check_branch
        %123 = sbr.rel (%p121) target = $region20
      $region19: #{autoencoder_forward.9} parent=11 // pred_region
        _
      $region20: #{autoencoder_forward.9} parent=11 // pred_fallthru
        _
    $region12: #{autoencoder_forward.9} parent=5 // pred_fallthru
      _
    %p124 = scmp.lt.s32.totalorder %s9, 2
    // Predicated region
    $region21: #{autoencoder_forward.9} parent=5 // pred_check
      %p125 = pneg %p124
    $region22: #{autoencoder_forward.9} parent=5 // pred_check_branch
      %127 = sbr.rel (%p125) target = $region24
    $region23: #{autoencoder_forward.9} parent=5 // pred_region
      // Predicated region
      $region25: #{autoencoder_forward.9} parent=23 // pred_check
        %p128 = pneg %p29
      $region26: #{autoencoder_forward.9} parent=23 // pred_check_branch
        %130 = sbr.rel (%p128) target = $region28
      $region27: #{autoencoder_forward.9} parent=23 // pred_region
        %p131 = scmp.lt.s32.totalorder %s9, 1
        %s132 = scalar_select %p131, %s9, 1
        %s133 = smul.addr %s132, 20
        %s134 = smul.addr %s133, 4
        %s135 = scalar_lea.vmem %s0, %s134
      $region28: #{autoencoder_forward.9} parent=23 // pred_fallthru
        _
    $region24: #{autoencoder_forward.9} parent=5 // pred_fallthru
      _
    %p136 = scmp.le.s32.totalorder 1, %s9
    %p137 = scmp.lt.s32.totalorder %s9, 3
    %p138 = pnand %p136, %p137
    %p139 = pneg %p138
    // Predicated region
    $region29: #{autoencoder_forward.9} parent=5 // pred_check
      _
    $region30: #{autoencoder_forward.9} parent=5 // pred_check_branch
      %141 = sbr.rel (%p138) target = $region32
    $region31: #{autoencoder_forward.9} parent=5 // pred_region
      %s142 = ssub.s32 %s9, 1
      %p143 = scmp.lt.s32.totalorder %s14, 1
      %s144 = scalar_select %p143, %s14, 1
      %s145 = smul.addr %s144, 20
      %s146 = smul.addr %s145, 4
      %s147 = scalar_lea.vmem %s0, %s146
      %p148 = pneg %p35
      %p149 = pneg %p32
      %p150 = pneg %p56
      %p151 = pneg %p53
      %p152 = pneg %p77
      %p153 = pneg %p74
      %p154 = pneg %p103
      %p155 = pneg %p100
      %p156 = scmp.lt.s32.totalorder %s14, 1
      %s157 = scalar_select %p156, %s14, 1
      %s158 = smul.addr %s157, 4
      %s159 = smul.addr %s158, 2
      %s160 = scalar_lea.vmem %s3, %s159
      %p161 = scmp.lt.s32.totalorder %s14, 1
      %s162 = scalar_select %p161, %s14, 1
      %s163 = smul.addr %s162, 20
      %s164 = smul.addr %s163, 4
      %s165 = scalar_lea.vmem %s0, %s164
      %p166 = scmp.lt.s32.totalorder %s14, 1
      %s167 = scalar_select %p166, %s14, 1
      %s168 = smul.addr %s167, 4
      %s169 = smul.addr %s168, 2
      %s170 = scalar_lea.vmem %s3, %s169
      %v172 = vld [vmem:[%s2] sm:$0x1]
      %v173 = vld [vmem:[%s1] sm:$0xf]
      %v174 = vld [vmem:[%s1 + $0x4] sm:$0xf]
      %v175 = vld [vmem:[%s1 + $0x8] sm:$0xf]
      %v176 = vld [vmem:[%s1 + $0xc] sm:$0xf]
      %v177 = vld [vmem:[%s1 + $0x10] sm:$0xf]
      %v178 = vld [vmem:[%s1 + $0x14] sm:$0xf]
      %v179 = vld [vmem:[%s1 + $0x18] sm:$0xf]
      %v180 = vld [vmem:[%s1 + $0x1c] sm:$0xf]
      %v181 = vld [vmem:[%s1 + $0x20] sm:$0xf]
      %v182 = vld [vmem:[%s1 + $0x24] sm:$0xf]
      %v183 = vld [vmem:[%s1 + $0x28] sm:$0xf]
      %v184 = vld [vmem:[%s1 + $0x2c] sm:$0xf]
      %v185 = vld [vmem:[%s1 + $0x30] sm:$0xf]
      %v186 = vld [vmem:[%s1 + $0x34] sm:$0xf]
      %v187 = vld [vmem:[%s1 + $0x38] sm:$0xf]
      %v188 = vld [vmem:[%s1 + $0x3c] sm:$0xf]
      %v189 = vld [vmem:[%s1 + $0x40] sm:$0xf]
      %v190 = vld [vmem:[%s1 + $0x44] sm:$0xf]
      %v191 = vld [vmem:[%s1 + $0x48] sm:$0xf]
      %v192 = vld [vmem:[%s1 + $0x4c] sm:$0xf]
      %v193 = vld [vmem:[%s1 + $0x50] sm:$0xf]
      %v194 = vld [vmem:[%s1 + $0x54] sm:$0xf]
      %v195 = vld [vmem:[%s1 + $0x58] sm:$0xf]
      %v196 = vld [vmem:[%s1 + $0x5c] sm:$0xf]
      %v197 = vld [vmem:[%s1 + $0x60] sm:$0xf]
      %v198 = vld [vmem:[%s1 + $0x64] sm:$0xf]
      %v199 = vld [vmem:[%s1 + $0x68] sm:$0xf]
      %v200 = vld [vmem:[%s1 + $0x6c] sm:$0xf]
      %v201 = vld [vmem:[%s1 + $0x70] sm:$0xf]
      %v202 = vld [vmem:[%s1 + $0x74] sm:$0xf]
      %v203 = vld [vmem:[%s1 + $0x78] sm:$0xf]
      %v204 = vld [vmem:[%s1 + $0x7c] sm:$0xf]
      %v205 = vld [vmem:[%s1 + $0x80] sm:$0xf]
      %v206 = vld [vmem:[%s1 + $0x84] sm:$0xf]
      %v207 = vld [vmem:[%s1 + $0x88] sm:$0xf]
      %v208 = vld [vmem:[%s1 + $0x8c] sm:$0xf]
      %v209 = vld [vmem:[%s1 + $0x90] sm:$0xf]
      %v210 = vld [vmem:[%s1 + $0x94] sm:$0xf]
      %v211 = vld [vmem:[%s1 + $0x98] sm:$0xf]
      %v212 = vld [vmem:[%s1 + $0x9c] sm:$0xf]
      %v213 = vld [vmem:[%s1 + $0xa0] sm:$0xf]
      %v214 = vld [vmem:[%s1 + $0xa4] sm:$0xf]
      %v215 = vld [vmem:[%s1 + $0xa8] sm:$0xf]
      %v216 = vld [vmem:[%s1 + $0xac] sm:$0xf]
      %v217 = vld [vmem:[%s1 + $0xb0] sm:$0xf]
      %v218 = vld [vmem:[%s1 + $0xb4] sm:$0xf]
      %v219 = vld [vmem:[%s1 + $0xb8] sm:$0xf]
      %v220 = vld [vmem:[%s1 + $0xbc] sm:$0xf]
      %v221 = vld [vmem:[%s1 + $0xc0] sm:$0xf]
      %v222 = vld [vmem:[%s1 + $0xc4] sm:$0xf]
      %v223 = vld [vmem:[%s1 + $0xc8] sm:$0xf]
      %v224 = vld [vmem:[%s1 + $0xcc] sm:$0xf]
      %v225 = vld [vmem:[%s1 + $0xd0] sm:$0xf]
      %v226 = vld [vmem:[%s1 + $0xd4] sm:$0xf]
      %v227 = vld [vmem:[%s1 + $0xd8] sm:$0xf]
      %v228 = vld [vmem:[%s1 + $0xdc] sm:$0xf]
      %v229 = vld [vmem:[%s1 + $0xe0] sm:$0xf]
      %v230 = vld [vmem:[%s1 + $0xe4] sm:$0xf]
      %v231 = vld [vmem:[%s1 + $0xe8] sm:$0xf]
      %v232 = vld [vmem:[%s1 + $0xec] sm:$0xf]
      %v233 = vld [vmem:[%s1 + $0xf0] sm:$0xf]
      %v234 = vld [vmem:[%s1 + $0xf4] sm:$0xf]
      %v235 = vld [vmem:[%s1 + $0xf8] sm:$0xf]
      %v236 = vld [vmem:[%s1 + $0xfc] sm:$0xf]
      %s237 = scalar_lea.vmem %s1, 256
      %v238 = vld [vmem:[%s237] sm:$0xf]
      %v239 = vld [vmem:[%s237 + $0x4] sm:$0xf]
      %v240 = vld [vmem:[%s237 + $0x8] sm:$0xf]
      %v241 = vld [vmem:[%s237 + $0xc] sm:$0xf]
      %v242 = vld [vmem:[%s237 + $0x10] sm:$0xf]
      %v243 = vld [vmem:[%s237 + $0x14] sm:$0xf]
      %v244 = vld [vmem:[%s237 + $0x18] sm:$0xf]
      %v245 = vld [vmem:[%s237 + $0x1c] sm:$0xf]
      %v246 = vld [vmem:[%s237 + $0x20] sm:$0xf]
      %v247 = vld [vmem:[%s237 + $0x24] sm:$0xf]
      %v248 = vld [vmem:[%s237 + $0x28] sm:$0xf]
      %v249 = vld [vmem:[%s237 + $0x2c] sm:$0xf]
      %v250 = vld [vmem:[%s237 + $0x30] sm:$0xf]
      %v251 = vld [vmem:[%s237 + $0x34] sm:$0xf]
      %v252 = vld [vmem:[%s237 + $0x38] sm:$0xf]
      %v253 = vld [vmem:[%s237 + $0x3c] sm:$0xf]
      %v254 = vld [vmem:[%s237 + $0x40] sm:$0xf]
      %v255 = vld [vmem:[%s237 + $0x44] sm:$0xf]
      %v256 = vld [vmem:[%s237 + $0x48] sm:$0xf]
      %v257 = vld [vmem:[%s237 + $0x4c] sm:$0xf]
      %v258 = vld [vmem:[%s237 + $0x50] sm:$0xf]
      %v259 = vld [vmem:[%s237 + $0x54] sm:$0xf]
      %v260 = vld [vmem:[%s237 + $0x58] sm:$0xf]
      %v261 = vld [vmem:[%s237 + $0x5c] sm:$0xf]
      %v262 = vld [vmem:[%s237 + $0x60] sm:$0xf]
      %v263 = vld [vmem:[%s237 + $0x64] sm:$0xf]
      %v264 = vld [vmem:[%s237 + $0x68] sm:$0xf]
      %v265 = vld [vmem:[%s237 + $0x6c] sm:$0xf]
      %v266 = vld [vmem:[%s237 + $0x70] sm:$0xf]
      %v267 = vld [vmem:[%s237 + $0x74] sm:$0xf]
      %v268 = vld [vmem:[%s237 + $0x78] sm:$0xf]
      %v269 = vld [vmem:[%s237 + $0x7c] sm:$0xf]
      %s270 = scalar_lea.vmem %s1, 384
      %v271 = vld [vmem:[%s270] sm:$0xf]
      %v272 = vld [vmem:[%s270 + $0x4] sm:$0xf]
      %v273 = vld [vmem:[%s270 + $0x8] sm:$0xf]
      %v274 = vld [vmem:[%s270 + $0xc] sm:$0xf]
      %v275 = vld [vmem:[%s270 + $0x10] sm:$0xf]
      %v276 = vld [vmem:[%s270 + $0x14] sm:$0xf]
      %v277 = vld [vmem:[%s270 + $0x18] sm:$0xf]
      %v278 = vld [vmem:[%s270 + $0x1c] sm:$0xf]
      %v279 = vld [vmem:[%s270 + $0x20] sm:$0xf]
      %v280 = vld [vmem:[%s270 + $0x24] sm:$0xf]
      %v281 = vld [vmem:[%s270 + $0x28] sm:$0xf]
      %v282 = vld [vmem:[%s270 + $0x2c] sm:$0xf]
      %v283 = vld [vmem:[%s270 + $0x30] sm:$0xf]
      %v284 = vld [vmem:[%s270 + $0x34] sm:$0xf]
      %v285 = vld [vmem:[%s270 + $0x38] sm:$0xf]
      %v286 = vld [vmem:[%s270 + $0x3c] sm:$0xf]
      %s287 = scalar_lea.vmem %s1, 448
      %v288 = vld [vmem:[%s287] sm:$0xf]
      %v289 = vld [vmem:[%s287 + $0x4] sm:$0xf]
      %v290 = vld [vmem:[%s287 + $0x8] sm:$0xf]
      %v291 = vld [vmem:[%s287 + $0xc] sm:$0xf]
      %v292 = vld [vmem:[%s287 + $0x10] sm:$0xf]
      %v293 = vld [vmem:[%s287 + $0x14] sm:$0xf]
      %v294 = vld [vmem:[%s287 + $0x18] sm:$0xf]
      %v295 = vld [vmem:[%s287 + $0x1c] sm:$0xf]
      %v296 = vld [vmem:[%s287 + $0x20] sm:$0xf]
      %v297 = vld [vmem:[%s287 + $0x24] sm:$0xf]
      %v298 = vld [vmem:[%s287 + $0x28] sm:$0xf]
      %v299 = vld [vmem:[%s287 + $0x2c] sm:$0xf]
      %v300 = vld [vmem:[%s287 + $0x30] sm:$0xf]
      %v301 = vld [vmem:[%s287 + $0x34] sm:$0xf]
      %v302 = vld [vmem:[%s287 + $0x38] sm:$0xf]
      %v303 = vld [vmem:[%s287 + $0x3c] sm:$0xf]
      %s304 = scalar_lea.vmem %s1, 512
      %v305 = vld [vmem:[%s304] sm:$0xf]
      %v306 = vld [vmem:[%s304 + $0x4] sm:$0xf]
      %v307 = vld [vmem:[%s304 + $0x8] sm:$0xf]
      %v308 = vld [vmem:[%s304 + $0xc] sm:$0xf]
      %v309 = vld [vmem:[%s304 + $0x10] sm:$0xf]
      %v310 = vld [vmem:[%s304 + $0x14] sm:$0xf]
      %v311 = vld [vmem:[%s304 + $0x18] sm:$0xf]
      %v312 = vld [vmem:[%s304 + $0x1c] sm:$0xf]
      %v313 = vld [vmem:[%s304 + $0x20] sm:$0xf]
      %v314 = vld [vmem:[%s304 + $0x24] sm:$0xf]
      %v315 = vld [vmem:[%s304 + $0x28] sm:$0xf]
      %v316 = vld [vmem:[%s304 + $0x2c] sm:$0xf]
      %v317 = vld [vmem:[%s304 + $0x30] sm:$0xf]
      %v318 = vld [vmem:[%s304 + $0x34] sm:$0xf]
      %v319 = vld [vmem:[%s304 + $0x38] sm:$0xf]
      %v320 = vld [vmem:[%s304 + $0x3c] sm:$0xf]
      %v321 = vld [vmem:[%s165] sm:$0x33]
      %v322 = vld [vmem:[%s165 + $0x8] sm:$0x33]
      %v323 = vld [vmem:[%s165 + $0x10] sm:$0x33]
      %v324 = vld [vmem:[%s165 + $0x18] sm:$0x33]
      %v325 = vld [vmem:[%s165 + $0x20] sm:$0x33]
      %v326 = vld [vmem:[%s165 + $0x28] sm:$0x33]
      %v327 = vld [vmem:[%s165 + $0x30] sm:$0x33]
      %v328 = vld [vmem:[%s165 + $0x38] sm:$0x33]
      %v338 = vunpack.c.l.s4 1983009808
      %v339 = vunpack.c.0.s8 %v338
      %v340 = vlaneseq
      %v341 = vshrl.u32 %v340, 7
      %v342 = vsub.s32 %v339, %v341
      %v343 = vrot.slane %v321, %v342
      %v345 = vunpack.c.l.s4 1983009808
      %v346 = vunpack.c.0.s8 %v345
      %v347 = vlaneseq
      %v348 = vshrl.u32 %v347, 7
      %v349 = vsub.s32 %v346, %v348
      %v350 = vrot.slane %v322, %v349
      %v351 = vcombine.low %v343, %v350
      %v353 = vunpack.c.l.s4 1983009808
      %v354 = vunpack.c.0.s8 %v353
      %v355 = vlaneseq
      %v356 = vshrl.u32 %v355, 7
      %v357 = vsub.s32 %v354, %v356
      %v358 = vrot.slane %v323, %v357
      %v360 = vunpack.c.l.s4 1983009808
      %v361 = vunpack.c.0.s8 %v360
      %v362 = vlaneseq
      %v363 = vshrl.u32 %v362, 7
      %v364 = vsub.s32 %v361, %v363
      %v365 = vrot.slane %v324, %v364
      %v366 = vcombine.low %v358, %v365
      %v368 = vunpack.c.l.s4 1983009808
      %v369 = vunpack.c.0.s8 %v368
      %v370 = vlaneseq
      %v371 = vshrl.u32 %v370, 7
      %v372 = vsub.s32 %v369, %v371
      %v373 = vrot.slane %v325, %v372
      %v375 = vunpack.c.l.s4 1983009808
      %v376 = vunpack.c.0.s8 %v375
      %v377 = vlaneseq
      %v378 = vshrl.u32 %v377, 7
      %v379 = vsub.s32 %v376, %v378
      %v380 = vrot.slane %v326, %v379
      %v381 = vcombine.low %v373, %v380
      %v383 = vunpack.c.l.s4 1983009808
      %v384 = vunpack.c.0.s8 %v383
      %v385 = vlaneseq
      %v386 = vshrl.u32 %v385, 7
      %v387 = vsub.s32 %v384, %v386
      %v388 = vrot.slane %v327, %v387
      %v390 = vunpack.c.l.s4 1983009808
      %v391 = vunpack.c.0.s8 %v390
      %v392 = vlaneseq
      %v393 = vshrl.u32 %v392, 7
      %v394 = vsub.s32 %v391, %v393
      %v395 = vrot.slane %v328, %v394
      %v396 = vcombine.low %v388, %v395
      %s397 = scalar_lea.vmem %s165, 16
      %v398 = vld [vmem:[%s397] sm:$0x33]
      %v399 = vld [vmem:[%s397 + $0x10] sm:$0x33]
      %v400 = vld [vmem:[%s397 + $0x20] sm:$0x33]
      %v401 = vld [vmem:[%s397 + $0x30] sm:$0x33]
      %v407 = vunpack.c.l.s4 1983009808
      %v408 = vunpack.c.0.s8 %v407
      %v409 = vlaneseq
      %v410 = vshrl.u32 %v409, 7
      %v411 = vsub.s32 %v408, %v410
      %v412 = vrot.slane %v398, %v411
      %v414 = vunpack.c.l.s4 1983009808
      %v415 = vunpack.c.0.s8 %v414
      %v416 = vlaneseq
      %v417 = vshrl.u32 %v416, 7
      %v418 = vsub.s32 %v415, %v417
      %v419 = vrot.slane %v399, %v418
      %v421 = vunpack.c.l.s4 1983009808
      %v422 = vunpack.c.0.s8 %v421
      %v423 = vlaneseq
      %v424 = vshrl.u32 %v423, 7
      %v425 = vsub.s32 %v422, %v424
      %v426 = vrot.slane %v400, %v425
      %v428 = vunpack.c.l.s4 1983009808
      %v429 = vunpack.c.0.s8 %v428
      %v430 = vlaneseq
      %v431 = vshrl.u32 %v430, 7
      %v432 = vsub.s32 %v429, %v431
      %v433 = vrot.slane %v401, %v432
      %v434 = vcombine.low %v412, %v419
      %v435 = vcombine.low %v426, %v433
      %v437 = vunpack.c.l.s4 1983009808
      %v438 = vunpack.c.0.s8 %v437
      %v439 = vlaneseq
      %v440 = vshrl.u32 %v439, 7
      %v441 = vsub.s32 %v438, %v440
      %v442 = vrot.slane %v434, %v441
      %v444 = vunpack.c.l.s4 1983009808
      %v445 = vunpack.c.0.s8 %v444
      %v446 = vlaneseq
      %v447 = vshrl.u32 %v446, 7
      %v448 = vsub.s32 %v445, %v447
      %v449 = vrot.slane %v435, %v448
      %v450 = vcombine.low %v442, %v449
      %v451 = vcombine.high %v442, %v449
      %v486 = vunpack.c.l.b16 %v238
      %v487 = vunpack.c.l.b16 %v239
      %v488 = vunpack.c.l.b16 %v240
      %v489 = vunpack.c.l.b16 %v241
      %v490 = vunpack.c.l.b16 %v242
      %v491 = vunpack.c.l.b16 %v243
      %v492 = vunpack.c.l.b16 %v244
      %v493 = vunpack.c.l.b16 %v245
      %v494 = vunpack.c.l.b16 %v246
      %v495 = vunpack.c.l.b16 %v247
      %v496 = vunpack.c.l.b16 %v248
      %v497 = vunpack.c.l.b16 %v249
      %v498 = vunpack.c.l.b16 %v250
      %v499 = vunpack.c.l.b16 %v251
      %v500 = vunpack.c.l.b16 %v252
      %v501 = vunpack.c.l.b16 %v253
      %v502 = vunpack.c.l.b16 %v254
      %v503 = vunpack.c.l.b16 %v255
      %v504 = vunpack.c.l.b16 %v256
      %v505 = vunpack.c.l.b16 %v257
      %v506 = vunpack.c.l.b16 %v258
      %v507 = vunpack.c.l.b16 %v259
      %v508 = vunpack.c.l.b16 %v260
      %v509 = vunpack.c.l.b16 %v261
      %v510 = vunpack.c.l.b16 %v262
      %v511 = vunpack.c.l.b16 %v263
      %v512 = vunpack.c.l.b16 %v264
      %v513 = vunpack.c.l.b16 %v265
      %v514 = vunpack.c.l.b16 %v266
      %v515 = vunpack.c.l.b16 %v267
      %v516 = vunpack.c.l.b16 %v268
      %v517 = vunpack.c.l.b16 %v269
      %v518 = vpack.c.b16 %v487, %v486
      %v519 = vpack.c.b16 %v489, %v488
      %v520 = vpack.c.b16 %v491, %v490
      %v521 = vpack.c.b16 %v493, %v492
      %v522 = vpack.c.b16 %v495, %v494
      %v523 = vpack.c.b16 %v497, %v496
      %v524 = vpack.c.b16 %v499, %v498
      %v525 = vpack.c.b16 %v501, %v500
      %v526 = vpack.c.b16 %v503, %v502
      %v527 = vpack.c.b16 %v505, %v504
      %v528 = vpack.c.b16 %v507, %v506
      %v529 = vpack.c.b16 %v509, %v508
      %v530 = vpack.c.b16 %v511, %v510
      %v531 = vpack.c.b16 %v513, %v512
      %v532 = vpack.c.b16 %v515, %v514
      %v533 = vpack.c.b16 %v517, %v516
      %550 = vmatprep.subr.bf16.mxu0 0
      %551 = vmatpush1.bf16.msra.mxu0 %v525
      %552 = vmatprep.subr.bf16.mxu0 0
      %553 = vmatpush1.bf16.msra.mxu0 %v524
      %554 = vmatprep.subr.bf16.mxu0 0
      %555 = vmatpush1.bf16.msra.mxu0 %v523
      %556 = vmatprep.subr.bf16.mxu0 0
      %557 = vmatpush1.bf16.msra.mxu0 %v522
      %558 = vmatprep.subr.bf16.mxu0 0
      %559 = vmatpush1.bf16.msra.mxu0 %v521
      %560 = vmatprep.subr.bf16.mxu0 0
      %561 = vmatpush1.bf16.msra.mxu0 %v520
      %562 = vmatprep.subr.bf16.mxu0 0
      %563 = vmatpush1.bf16.msra.mxu0 %v519
      %564 = vmatprep.subr.bf16.mxu0 0
      %565 = vmatpush1.bf16.msra.mxu0 %v518
      %566 = vmatprep.subr.bf16.mxu0 0
      %567 = vmatpush2.bf16.msra.mxu0 %v533
      %568 = vmatprep.subr.bf16.mxu0 0
      %569 = vmatpush2.bf16.msra.mxu0 %v532
      %570 = vmatprep.subr.bf16.mxu0 0
      %571 = vmatpush2.bf16.msra.mxu0 %v531
      %572 = vmatprep.subr.bf16.mxu0 0
      %573 = vmatpush2.bf16.msra.mxu0 %v530
      %574 = vmatprep.subr.bf16.mxu0 0
      %575 = vmatpush2.bf16.msra.mxu0 %v529
      %576 = vmatprep.subr.bf16.mxu0 0
      %577 = vmatpush2.bf16.msra.mxu0 %v528
      %578 = vmatprep.subr.bf16.mxu0 0
      %579 = vmatpush2.bf16.msra.mxu0 %v527
      %580 = vmatprep.subr.bf16.mxu0 0
      %581 = vmatpush2.bf16.msra.mxu0 %v526
      %582 = vmatprep.mubr.bf16.mxu0 %v451
      %583 = vmatmul.mubr.bf16.gmra.mxu0 %v450
      %v584 = vpop.f32.mrf.mxu0
      %v585 = vadd.f32 0.0, %v584
      %v586 = vpop.f32.mrf.mxu0
      %v587 = vpop.f32.mrf.mxu0
      %v588 = vadd.f32 0.0, %v587
      %v589 = vpop.f32.mrf.mxu0
      %590 = vdwg.mxu0
      %v591 = vcombine.low %v351, %v366
      %v592 = vcombine.high %v351, %v366
      %v593 = vcombine.low %v381, %v396
      %v594 = vcombine.high %v381, %v396
      %v596 = vunpack.c.l.s4 1983009808
      %v597 = vunpack.c.0.s8 %v596
      %v598 = vlaneseq
      %v599 = vshrl.u32 %v598, 7
      %v600 = vsub.s32 %v597, %v599
      %v601 = vrot.slane %v591, %v600
      %v603 = vunpack.c.l.s4 1983009808
      %v604 = vunpack.c.0.s8 %v603
      %v605 = vlaneseq
      %v606 = vshrl.u32 %v605, 7
      %v607 = vsub.s32 %v604, %v606
      %v608 = vrot.slane %v592, %v607
      %v610 = vunpack.c.l.s4 1983009808
      %v611 = vunpack.c.0.s8 %v610
      %v612 = vlaneseq
      %v613 = vshrl.u32 %v612, 7
      %v614 = vsub.s32 %v611, %v613
      %v615 = vrot.slane %v593, %v614
      %v617 = vunpack.c.l.s4 1983009808
      %v618 = vunpack.c.0.s8 %v617
      %v619 = vlaneseq
      %v620 = vshrl.u32 %v619, 7
      %v621 = vsub.s32 %v618, %v620
      %v622 = vrot.slane %v594, %v621
      %v623 = vcombine.low %v601, %v615
      %v624 = vcombine.high %v601, %v615
      %v625 = vcombine.low %v608, %v622
      %v626 = vcombine.high %v608, %v622
      %v695 = vunpack.c.l.b16 %v173
      %v696 = vunpack.c.l.b16 %v174
      %v697 = vunpack.c.l.b16 %v175
      %v698 = vunpack.c.l.b16 %v176
      %v699 = vunpack.c.l.b16 %v177
      %v700 = vunpack.c.l.b16 %v178
      %v701 = vunpack.c.l.b16 %v179
      %v702 = vunpack.c.l.b16 %v180
      %v703 = vunpack.c.l.b16 %v181
      %v704 = vunpack.c.l.b16 %v182
      %v705 = vunpack.c.l.b16 %v183
      %v706 = vunpack.c.l.b16 %v184
      %v707 = vunpack.c.l.b16 %v185
      %v708 = vunpack.c.l.b16 %v186
      %v709 = vunpack.c.l.b16 %v187
      %v710 = vunpack.c.l.b16 %v188
      %v711 = vunpack.c.l.b16 %v189
      %v712 = vunpack.c.l.b16 %v190
      %v713 = vunpack.c.l.b16 %v191
      %v714 = vunpack.c.l.b16 %v192
      %v715 = vunpack.c.l.b16 %v193
      %v716 = vunpack.c.l.b16 %v194
      %v717 = vunpack.c.l.b16 %v195
      %v718 = vunpack.c.l.b16 %v196
      %v719 = vunpack.c.l.b16 %v197
      %v720 = vunpack.c.l.b16 %v198
      %v721 = vunpack.c.l.b16 %v199
      %v722 = vunpack.c.l.b16 %v200
      %v723 = vunpack.c.l.b16 %v201
      %v724 = vunpack.c.l.b16 %v202
      %v725 = vunpack.c.l.b16 %v203
      %v726 = vunpack.c.l.b16 %v204
      %v727 = vunpack.c.l.b16 %v205
      %v728 = vunpack.c.l.b16 %v206
      %v729 = vunpack.c.l.b16 %v207
      %v730 = vunpack.c.l.b16 %v208
      %v731 = vunpack.c.l.b16 %v209
      %v732 = vunpack.c.l.b16 %v210
      %v733 = vunpack.c.l.b16 %v211
      %v734 = vunpack.c.l.b16 %v212
      %v735 = vunpack.c.l.b16 %v213
      %v736 = vunpack.c.l.b16 %v214
      %v737 = vunpack.c.l.b16 %v215
      %v738 = vunpack.c.l.b16 %v216
      %v739 = vunpack.c.l.b16 %v217
      %v740 = vunpack.c.l.b16 %v218
      %v741 = vunpack.c.l.b16 %v219
      %v742 = vunpack.c.l.b16 %v220
      %v743 = vunpack.c.l.b16 %v221
      %v744 = vunpack.c.l.b16 %v222
      %v745 = vunpack.c.l.b16 %v223
      %v746 = vunpack.c.l.b16 %v224
      %v747 = vunpack.c.l.b16 %v225
      %v748 = vunpack.c.l.b16 %v226
      %v749 = vunpack.c.l.b16 %v227
      %v750 = vunpack.c.l.b16 %v228
      %v751 = vunpack.c.l.b16 %v229
      %v752 = vunpack.c.l.b16 %v230
      %v753 = vunpack.c.l.b16 %v231
      %v754 = vunpack.c.l.b16 %v232
      %v755 = vunpack.c.l.b16 %v233
      %v756 = vunpack.c.l.b16 %v234
      %v757 = vunpack.c.l.b16 %v235
      %v758 = vunpack.c.l.b16 %v236
      %v759 = vpack.c.b16 %v696, %v695
      %v760 = vpack.c.b16 %v698, %v697
      %v761 = vpack.c.b16 %v700, %v699
      %v762 = vpack.c.b16 %v702, %v701
      %v763 = vpack.c.b16 %v704, %v703
      %v764 = vpack.c.b16 %v706, %v705
      %v765 = vpack.c.b16 %v708, %v707
      %v766 = vpack.c.b16 %v710, %v709
      %v767 = vpack.c.b16 %v712, %v711
      %v768 = vpack.c.b16 %v714, %v713
      %v769 = vpack.c.b16 %v716, %v715
      %v770 = vpack.c.b16 %v718, %v717
      %v771 = vpack.c.b16 %v720, %v719
      %v772 = vpack.c.b16 %v722, %v721
      %v773 = vpack.c.b16 %v724, %v723
      %v774 = vpack.c.b16 %v726, %v725
      %v775 = vpack.c.b16 %v728, %v727
      %v776 = vpack.c.b16 %v730, %v729
      %v777 = vpack.c.b16 %v732, %v731
      %v778 = vpack.c.b16 %v734, %v733
      %v779 = vpack.c.b16 %v736, %v735
      %v780 = vpack.c.b16 %v738, %v737
      %v781 = vpack.c.b16 %v740, %v739
      %v782 = vpack.c.b16 %v742, %v741
      %v783 = vpack.c.b16 %v744, %v743
      %v784 = vpack.c.b16 %v746, %v745
      %v785 = vpack.c.b16 %v748, %v747
      %v786 = vpack.c.b16 %v750, %v749
      %v787 = vpack.c.b16 %v752, %v751
      %v788 = vpack.c.b16 %v754, %v753
      %v789 = vpack.c.b16 %v756, %v755
      %v790 = vpack.c.b16 %v758, %v757
      %823 = vmatprep.subr.bf16.mxu0 0
      %824 = vmatpush1.bf16.msra.mxu0 %v766
      %825 = vmatprep.subr.bf16.mxu0 0
      %826 = vmatpush1.bf16.msra.mxu0 %v765
      %827 = vmatprep.subr.bf16.mxu0 0
      %828 = vmatpush1.bf16.msra.mxu0 %v764
      %829 = vmatprep.subr.bf16.mxu0 0
      %830 = vmatpush1.bf16.msra.mxu0 %v763
      %831 = vmatprep.subr.bf16.mxu0 0
      %832 = vmatpush1.bf16.msra.mxu0 %v762
      %833 = vmatprep.subr.bf16.mxu0 0
      %834 = vmatpush1.bf16.msra.mxu0 %v761
      %835 = vmatprep.subr.bf16.mxu0 0
      %836 = vmatpush1.bf16.msra.mxu0 %v760
      %837 = vmatprep.subr.bf16.mxu0 0
      %838 = vmatpush1.bf16.msra.mxu0 %v759
      %839 = vmatprep.subr.bf16.mxu0 0
      %840 = vmatpush2.bf16.msra.mxu0 %v774
      %841 = vmatprep.subr.bf16.mxu0 0
      %842 = vmatpush2.bf16.msra.mxu0 %v773
      %843 = vmatprep.subr.bf16.mxu0 0
      %844 = vmatpush2.bf16.msra.mxu0 %v772
      %845 = vmatprep.subr.bf16.mxu0 0
      %846 = vmatpush2.bf16.msra.mxu0 %v771
      %847 = vmatprep.subr.bf16.mxu0 0
      %848 = vmatpush2.bf16.msra.mxu0 %v770
      %849 = vmatprep.subr.bf16.mxu0 0
      %850 = vmatpush2.bf16.msra.mxu0 %v769
      %851 = vmatprep.subr.bf16.mxu0 0
      %852 = vmatpush2.bf16.msra.mxu0 %v768
      %853 = vmatprep.subr.bf16.mxu0 0
      %854 = vmatpush2.bf16.msra.mxu0 %v767
      %855 = vmatprep.mubr.bf16.mxu0 %v624
      %856 = vmatmul.mubr.bf16.gmra.mxu0 %v623
      %v857 = vpop.f32.mrf.mxu0
      %v858 = vadd.f32 %v585, %v857
      %v859 = vpop.f32.mrf.mxu0
      %v860 = vpop.f32.mrf.mxu0
      %v861 = vadd.f32 %v588, %v860
      %v862 = vpop.f32.mrf.mxu0
      %863 = vdwg.mxu0
      %864 = vmatprep.subr.bf16.mxu0 0
      %865 = vmatpush1.bf16.msra.mxu0 %v782
      %866 = vmatprep.subr.bf16.mxu0 0
      %867 = vmatpush1.bf16.msra.mxu0 %v781
      %868 = vmatprep.subr.bf16.mxu0 0
      %869 = vmatpush1.bf16.msra.mxu0 %v780
      %870 = vmatprep.subr.bf16.mxu0 0
      %871 = vmatpush1.bf16.msra.mxu0 %v779
      %872 = vmatprep.subr.bf16.mxu0 0
      %873 = vmatpush1.bf16.msra.mxu0 %v778
      %874 = vmatprep.subr.bf16.mxu0 0
      %875 = vmatpush1.bf16.msra.mxu0 %v777
      %876 = vmatprep.subr.bf16.mxu0 0
      %877 = vmatpush1.bf16.msra.mxu0 %v776
      %878 = vmatprep.subr.bf16.mxu0 0
      %879 = vmatpush1.bf16.msra.mxu0 %v775
      %880 = vmatprep.subr.bf16.mxu0 0
      %881 = vmatpush2.bf16.msra.mxu0 %v790
      %882 = vmatprep.subr.bf16.mxu0 0
      %883 = vmatpush2.bf16.msra.mxu0 %v789
      %884 = vmatprep.subr.bf16.mxu0 0
      %885 = vmatpush2.bf16.msra.mxu0 %v788
      %886 = vmatprep.subr.bf16.mxu0 0
      %887 = vmatpush2.bf16.msra.mxu0 %v787
      %888 = vmatprep.subr.bf16.mxu0 0
      %889 = vmatpush2.bf16.msra.mxu0 %v786
      %890 = vmatprep.subr.bf16.mxu0 0
      %891 = vmatpush2.bf16.msra.mxu0 %v785
      %892 = vmatprep.subr.bf16.mxu0 0
      %893 = vmatpush2.bf16.msra.mxu0 %v784
      %894 = vmatprep.subr.bf16.mxu0 0
      %895 = vmatpush2.bf16.msra.mxu0 %v783
      %896 = vmatprep.mubr.bf16.mxu0 %v626
      %897 = vmatmul.mubr.bf16.gmra.mxu0 %v625
      %v898 = vpop.f32.mrf.mxu0
      %v899 = vadd.f32 %v858, %v898
      %v900 = vpop.f32.mrf.mxu0
      %v901 = vpop.f32.mrf.mxu0
      %v902 = vadd.f32 %v861, %v901
      %v903 = vpop.f32.mrf.mxu0
      %904 = vdwg.mxu0
      %v905 = vld [vmem:[%s165] sm:$0x7]
      %v906 = vld [vmem:[%s165 + $0x10] sm:$0x7]
      %v907 = vld [vmem:[%s165 + $0x20] sm:$0x7]
      %v908 = vld [vmem:[%s165 + $0x30] sm:$0x7]
      %v914 = vunpack.c.l.s4 1983009808
      %v915 = vunpack.c.0.s8 %v914
      %v916 = vlaneseq
      %v917 = vshrl.u32 %v916, 7
      %v918 = vsub.s32 %v915, %v917
      %v919 = vrot.slane %v905, %v918
      %v920 = vcombine.high %v919, %v919
      %v922 = vunpack.c.l.s4 1983009808
      %v923 = vunpack.c.0.s8 %v922
      %v924 = vlaneseq
      %v925 = vshrl.u32 %v924, 7
      %v926 = vsub.s32 %v923, %v925
      %v927 = vrot.slane %v906, %v926
      %v928 = vcombine.high %v927, %v927
      %v930 = vunpack.c.l.s4 1983009808
      %v931 = vunpack.c.0.s8 %v930
      %v932 = vlaneseq
      %v933 = vshrl.u32 %v932, 7
      %v934 = vsub.s32 %v931, %v933
      %v935 = vrot.slane %v907, %v934
      %v936 = vcombine.high %v935, %v935
      %v938 = vunpack.c.l.s4 1983009808
      %v939 = vunpack.c.0.s8 %v938
      %v940 = vlaneseq
      %v941 = vshrl.u32 %v940, 7
      %v942 = vsub.s32 %v939, %v941
      %v943 = vrot.slane %v908, %v942
      %v944 = vcombine.high %v943, %v943
      %vm945 = vsmask.f32 1280
      %vm946 = vsmask.f32 3336
      %vm947 = vmor %vm945, %vm946
      %vm948 = vsmask.f32 5392
      %vm949 = vmor %vm947, %vm948
      %vm950 = vsmask.f32 7448
      %vm951 = vmor %vm949, %vm950
      %v953 = vshrl.u32 %v919, 16
      %v955 = vrot.slane %v953, 6
      %v956 = vshll.u32 %v919, 16
      %v958 = vrot.slane %v956, 7
      %v959 = vor.u32 %v955, %v958
      %v960 = vrot.slane %v959, 2
      %v962 = vshll.u32 %v920, 16
      %v964 = vrot.slane %v962, 7
      %v965 = vsel %vm951, %v960, %v964
      %v967 = vshrl.u32 %v927, 16
      %v969 = vrot.slane %v967, 6
      %v970 = vshll.u32 %v927, 16
      %v972 = vrot.slane %v970, 7
      %v973 = vor.u32 %v969, %v972
      %v974 = vrot.slane %v973, 2
      %v976 = vshll.u32 %v928, 16
      %v978 = vrot.slane %v976, 7
      %v979 = vsel %vm951, %v974, %v978
      %v981 = vshrl.u32 %v935, 16
      %v983 = vrot.slane %v981, 6
      %v984 = vshll.u32 %v935, 16
      %v986 = vrot.slane %v984, 7
      %v987 = vor.u32 %v983, %v986
      %v988 = vrot.slane %v987, 2
      %v990 = vshll.u32 %v936, 16
      %v992 = vrot.slane %v990, 7
      %v993 = vsel %vm951, %v988, %v992
      %v995 = vshrl.u32 %v943, 16
      %v997 = vrot.slane %v995, 6
      %v998 = vshll.u32 %v943, 16
      %v1000 = vrot.slane %v998, 7
      %v1001 = vor.u32 %v997, %v1000
      %v1002 = vrot.slane %v1001, 2
      %v1004 = vshll.u32 %v944, 16
      %v1006 = vrot.slane %v1004, 7
      %v1007 = vsel %vm951, %v1002, %v1006
      %v1008 = vcombine.low %v965, %v979
      %v1009 = vcombine.low %v993, %v1007
      %v1011 = vunpack.c.l.s4 1983009808
      %v1012 = vunpack.c.0.s8 %v1011
      %v1013 = vlaneseq
      %v1014 = vshrl.u32 %v1013, 7
      %v1015 = vsub.s32 %v1012, %v1014
      %v1016 = vrot.slane %v1008, %v1015
      %v1018 = vunpack.c.l.s4 1983009808
      %v1019 = vunpack.c.0.s8 %v1018
      %v1020 = vlaneseq
      %v1021 = vshrl.u32 %v1020, 7
      %v1022 = vsub.s32 %v1019, %v1021
      %v1023 = vrot.slane %v1009, %v1022
      %v1024 = vcombine.low %v1016, %v1023
      %v1042 = vunpack.c.l.b16 %v271
      %v1043 = vunpack.c.l.b16 %v272
      %v1044 = vunpack.c.l.b16 %v273
      %v1045 = vunpack.c.l.b16 %v274
      %v1046 = vunpack.c.l.b16 %v275
      %v1047 = vunpack.c.l.b16 %v276
      %v1048 = vunpack.c.l.b16 %v277
      %v1049 = vunpack.c.l.b16 %v278
      %v1050 = vunpack.c.l.b16 %v279
      %v1051 = vunpack.c.l.b16 %v280
      %v1052 = vunpack.c.l.b16 %v281
      %v1053 = vunpack.c.l.b16 %v282
      %v1054 = vunpack.c.l.b16 %v283
      %v1055 = vunpack.c.l.b16 %v284
      %v1056 = vunpack.c.l.b16 %v285
      %v1057 = vunpack.c.l.b16 %v286
      %v1058 = vpack.c.b16 %v1043, %v1042
      %v1059 = vpack.c.b16 %v1045, %v1044
      %v1060 = vpack.c.b16 %v1047, %v1046
      %v1061 = vpack.c.b16 %v1049, %v1048
      %v1062 = vpack.c.b16 %v1051, %v1050
      %v1063 = vpack.c.b16 %v1053, %v1052
      %v1064 = vpack.c.b16 %v1055, %v1054
      %v1065 = vpack.c.b16 %v1057, %v1056
      %1074 = vmatprep.subr.bf16.mxu0 0
      %1075 = vmatpush1.bf16.msra.mxu0 %v1065
      %1076 = vmatprep.subr.bf16.mxu0 0
      %1077 = vmatpush1.bf16.msra.mxu0 %v1064
      %1078 = vmatprep.subr.bf16.mxu0 0
      %1079 = vmatpush1.bf16.msra.mxu0 %v1063
      %1080 = vmatprep.subr.bf16.mxu0 0
      %1081 = vmatpush1.bf16.msra.mxu0 %v1062
      %1082 = vmatprep.subr.bf16.mxu0 0
      %1083 = vmatpush1.bf16.msra.mxu0 %v1061
      %1084 = vmatprep.subr.bf16.mxu0 0
      %1085 = vmatpush1.bf16.msra.mxu0 %v1060
      %1086 = vmatprep.subr.bf16.mxu0 0
      %1087 = vmatpush1.bf16.msra.mxu0 %v1059
      %1088 = vmatprep.subr.bf16.mxu0 0
      %1089 = vmatpush1.bf16.msra.mxu0 %v1058
      %1090 = vmatprep.subr.bf16.mxu0 0
      %1091 = vmatpush2.bf16.msra.mxu0 0
      %1092 = vmatprep.subr.bf16.mxu0 0
      %1093 = vmatpush2.bf16.msra.mxu0 0
      %1094 = vmatprep.subr.bf16.mxu0 0
      %1095 = vmatpush2.bf16.msra.mxu0 0
      %1096 = vmatprep.subr.bf16.mxu0 0
      %1097 = vmatpush2.bf16.msra.mxu0 0
      %1098 = vmatprep.subr.bf16.mxu0 0
      %1099 = vmatpush2.bf16.msra.mxu0 0
      %1100 = vmatprep.subr.bf16.mxu0 0
      %1101 = vmatpush2.bf16.msra.mxu0 0
      %1102 = vmatprep.subr.bf16.mxu0 0
      %1103 = vmatpush2.bf16.msra.mxu0 0
      %1104 = vmatprep.subr.bf16.mxu0 0
      %1105 = vmatpush2.bf16.msra.mxu0 0
      %1106 = vmatprep.mubr.bf16.mxu0 0
      %1107 = vmatmul.mubr.bf16.gmra.mxu0 %v1024
      %v1108 = vpop.f32.mrf.mxu0
      %v1109 = vadd.f32 0.0, %v1108
      %v1110 = vpop.f32.mrf.mxu0
      %v1111 = vpop.f32.mrf.mxu0
      %v1112 = vadd.f32 0.0, %v1111
      %v1113 = vpop.f32.mrf.mxu0
      %1114 = vdwg.mxu0
      %v1115 = vadd.f32 %v899, %v1109
      %v1116 = vadd.f32 %v902, %v1112
      %v1117 = vld [vmem:[%s165 + $0x8] sm:$0x7]
      %v1118 = vld [vmem:[%s165 + $0x18] sm:$0x7]
      %v1119 = vld [vmem:[%s165 + $0x28] sm:$0x7]
      %v1120 = vld [vmem:[%s165 + $0x38] sm:$0x7]
      %v1126 = vunpack.c.l.s4 1983009808
      %v1127 = vunpack.c.0.s8 %v1126
      %v1128 = vlaneseq
      %v1129 = vshrl.u32 %v1128, 7
      %v1130 = vsub.s32 %v1127, %v1129
      %v1131 = vrot.slane %v1117, %v1130
      %v1132 = vcombine.high %v1131, %v1131
      %v1134 = vunpack.c.l.s4 1983009808
      %v1135 = vunpack.c.0.s8 %v1134
      %v1136 = vlaneseq
      %v1137 = vshrl.u32 %v1136, 7
      %v1138 = vsub.s32 %v1135, %v1137
      %v1139 = vrot.slane %v1118, %v1138
      %v1140 = vcombine.high %v1139, %v1139
      %v1142 = vunpack.c.l.s4 1983009808
      %v1143 = vunpack.c.0.s8 %v1142
      %v1144 = vlaneseq
      %v1145 = vshrl.u32 %v1144, 7
      %v1146 = vsub.s32 %v1143, %v1145
      %v1147 = vrot.slane %v1119, %v1146
      %v1148 = vcombine.high %v1147, %v1147
      %v1150 = vunpack.c.l.s4 1983009808
      %v1151 = vunpack.c.0.s8 %v1150
      %v1152 = vlaneseq
      %v1153 = vshrl.u32 %v1152, 7
      %v1154 = vsub.s32 %v1151, %v1153
      %v1155 = vrot.slane %v1120, %v1154
      %v1156 = vcombine.high %v1155, %v1155
      %v1158 = vshrl.u32 %v1131, 16
      %v1160 = vrot.slane %v1158, 6
      %v1161 = vshll.u32 %v1131, 16
      %v1163 = vrot.slane %v1161, 7
      %v1164 = vor.u32 %v1160, %v1163
      %v1165 = vrot.slane %v1164, 2
      %v1167 = vshll.u32 %v1132, 16
      %v1169 = vrot.slane %v1167, 7
      %v1170 = vsel %vm951, %v1165, %v1169
      %v1172 = vshrl.u32 %v1139, 16
      %v1174 = vrot.slane %v1172, 6
      %v1175 = vshll.u32 %v1139, 16
      %v1177 = vrot.slane %v1175, 7
      %v1178 = vor.u32 %v1174, %v1177
      %v1179 = vrot.slane %v1178, 2
      %v1181 = vshll.u32 %v1140, 16
      %v1183 = vrot.slane %v1181, 7
      %v1184 = vsel %vm951, %v1179, %v1183
      %v1186 = vshrl.u32 %v1147, 16
      %v1188 = vrot.slane %v1186, 6
      %v1189 = vshll.u32 %v1147, 16
      %v1191 = vrot.slane %v1189, 7
      %v1192 = vor.u32 %v1188, %v1191
      %v1193 = vrot.slane %v1192, 2
      %v1195 = vshll.u32 %v1148, 16
      %v1197 = vrot.slane %v1195, 7
      %v1198 = vsel %vm951, %v1193, %v1197
      %v1200 = vshrl.u32 %v1155, 16
      %v1202 = vrot.slane %v1200, 6
      %v1203 = vshll.u32 %v1155, 16
      %v1205 = vrot.slane %v1203, 7
      %v1206 = vor.u32 %v1202, %v1205
      %v1207 = vrot.slane %v1206, 2
      %v1209 = vshll.u32 %v1156, 16
      %v1211 = vrot.slane %v1209, 7
      %v1212 = vsel %vm951, %v1207, %v1211
      %v1213 = vcombine.low %v1170, %v1184
      %v1214 = vcombine.low %v1198, %v1212
      %v1216 = vunpack.c.l.s4 1983009808
      %v1217 = vunpack.c.0.s8 %v1216
      %v1218 = vlaneseq
      %v1219 = vshrl.u32 %v1218, 7
      %v1220 = vsub.s32 %v1217, %v1219
      %v1221 = vrot.slane %v1213, %v1220
      %v1223 = vunpack.c.l.s4 1983009808
      %v1224 = vunpack.c.0.s8 %v1223
      %v1225 = vlaneseq
      %v1226 = vshrl.u32 %v1225, 7
      %v1227 = vsub.s32 %v1224, %v1226
      %v1228 = vrot.slane %v1214, %v1227
      %v1229 = vcombine.low %v1221, %v1228
      %v1247 = vunpack.c.l.b16 %v288
      %v1248 = vunpack.c.l.b16 %v289
      %v1249 = vunpack.c.l.b16 %v290
      %v1250 = vunpack.c.l.b16 %v291
      %v1251 = vunpack.c.l.b16 %v292
      %v1252 = vunpack.c.l.b16 %v293
      %v1253 = vunpack.c.l.b16 %v294
      %v1254 = vunpack.c.l.b16 %v295
      %v1255 = vunpack.c.l.b16 %v296
      %v1256 = vunpack.c.l.b16 %v297
      %v1257 = vunpack.c.l.b16 %v298
      %v1258 = vunpack.c.l.b16 %v299
      %v1259 = vunpack.c.l.b16 %v300
      %v1260 = vunpack.c.l.b16 %v301
      %v1261 = vunpack.c.l.b16 %v302
      %v1262 = vunpack.c.l.b16 %v303
      %v1263 = vpack.c.b16 %v1248, %v1247
      %v1264 = vpack.c.b16 %v1250, %v1249
      %v1265 = vpack.c.b16 %v1252, %v1251
      %v1266 = vpack.c.b16 %v1254, %v1253
      %v1267 = vpack.c.b16 %v1256, %v1255
      %v1268 = vpack.c.b16 %v1258, %v1257
      %v1269 = vpack.c.b16 %v1260, %v1259
      %v1270 = vpack.c.b16 %v1262, %v1261
      %1279 = vmatprep.subr.bf16.mxu0 0
      %1280 = vmatpush1.bf16.msra.mxu0 %v1270
      %1281 = vmatprep.subr.bf16.mxu0 0
      %1282 = vmatpush1.bf16.msra.mxu0 %v1269
      %1283 = vmatprep.subr.bf16.mxu0 0
      %1284 = vmatpush1.bf16.msra.mxu0 %v1268
      %1285 = vmatprep.subr.bf16.mxu0 0
      %1286 = vmatpush1.bf16.msra.mxu0 %v1267
      %1287 = vmatprep.subr.bf16.mxu0 0
      %1288 = vmatpush1.bf16.msra.mxu0 %v1266
      %1289 = vmatprep.subr.bf16.mxu0 0
      %1290 = vmatpush1.bf16.msra.mxu0 %v1265
      %1291 = vmatprep.subr.bf16.mxu0 0
      %1292 = vmatpush1.bf16.msra.mxu0 %v1264
      %1293 = vmatprep.subr.bf16.mxu0 0
      %1294 = vmatpush1.bf16.msra.mxu0 %v1263
      %1295 = vmatprep.subr.bf16.mxu0 0
      %1296 = vmatpush2.bf16.msra.mxu0 0
      %1297 = vmatprep.subr.bf16.mxu0 0
      %1298 = vmatpush2.bf16.msra.mxu0 0
      %1299 = vmatprep.subr.bf16.mxu0 0
      %1300 = vmatpush2.bf16.msra.mxu0 0
      %1301 = vmatprep.subr.bf16.mxu0 0
      %1302 = vmatpush2.bf16.msra.mxu0 0
      %1303 = vmatprep.subr.bf16.mxu0 0
      %1304 = vmatpush2.bf16.msra.mxu0 0
      %1305 = vmatprep.subr.bf16.mxu0 0
      %1306 = vmatpush2.bf16.msra.mxu0 0
      %1307 = vmatprep.subr.bf16.mxu0 0
      %1308 = vmatpush2.bf16.msra.mxu0 0
      %1309 = vmatprep.subr.bf16.mxu0 0
      %1310 = vmatpush2.bf16.msra.mxu0 0
      %1311 = vmatprep.mubr.bf16.mxu0 0
      %1312 = vmatmul.mubr.bf16.gmra.mxu0 %v1229
      %v1313 = vpop.f32.mrf.mxu0
      %v1314 = vadd.f32 0.0, %v1313
      %v1315 = vpop.f32.mrf.mxu0
      %v1316 = vpop.f32.mrf.mxu0
      %v1317 = vadd.f32 0.0, %v1316
      %v1318 = vpop.f32.mrf.mxu0
      %1319 = vdwg.mxu0
      %v1320 = vadd.f32 %v1115, %v1314
      %v1321 = vadd.f32 %v1116, %v1317
      %v1322 = vld [vmem:[%s397] sm:$0x7]
      %v1323 = vld [vmem:[%s397 + $0x10] sm:$0x7]
      %v1324 = vld [vmem:[%s397 + $0x20] sm:$0x7]
      %v1325 = vld [vmem:[%s397 + $0x30] sm:$0x7]
      %v1331 = vunpack.c.l.s4 1983009808
      %v1332 = vunpack.c.0.s8 %v1331
      %v1333 = vlaneseq
      %v1334 = vshrl.u32 %v1333, 7
      %v1335 = vsub.s32 %v1332, %v1334
      %v1336 = vrot.slane %v1322, %v1335
      %v1337 = vcombine.high %v1336, %v1336
      %v1339 = vunpack.c.l.s4 1983009808
      %v1340 = vunpack.c.0.s8 %v1339
      %v1341 = vlaneseq
      %v1342 = vshrl.u32 %v1341, 7
      %v1343 = vsub.s32 %v1340, %v1342
      %v1344 = vrot.slane %v1323, %v1343
      %v1345 = vcombine.high %v1344, %v1344
      %v1347 = vunpack.c.l.s4 1983009808
      %v1348 = vunpack.c.0.s8 %v1347
      %v1349 = vlaneseq
      %v1350 = vshrl.u32 %v1349, 7
      %v1351 = vsub.s32 %v1348, %v1350
      %v1352 = vrot.slane %v1324, %v1351
      %v1353 = vcombine.high %v1352, %v1352
      %v1355 = vunpack.c.l.s4 1983009808
      %v1356 = vunpack.c.0.s8 %v1355
      %v1357 = vlaneseq
      %v1358 = vshrl.u32 %v1357, 7
      %v1359 = vsub.s32 %v1356, %v1358
      %v1360 = vrot.slane %v1325, %v1359
      %v1361 = vcombine.high %v1360, %v1360
      %v1363 = vshrl.u32 %v1336, 16
      %v1365 = vrot.slane %v1363, 6
      %v1366 = vshll.u32 %v1336, 16
      %v1368 = vrot.slane %v1366, 7
      %v1369 = vor.u32 %v1365, %v1368
      %v1370 = vrot.slane %v1369, 2
      %v1372 = vshll.u32 %v1337, 16
      %v1374 = vrot.slane %v1372, 7
      %v1375 = vsel %vm951, %v1370, %v1374
      %v1377 = vshrl.u32 %v1344, 16
      %v1379 = vrot.slane %v1377, 6
      %v1380 = vshll.u32 %v1344, 16
      %v1382 = vrot.slane %v1380, 7
      %v1383 = vor.u32 %v1379, %v1382
      %v1384 = vrot.slane %v1383, 2
      %v1386 = vshll.u32 %v1345, 16
      %v1388 = vrot.slane %v1386, 7
      %v1389 = vsel %vm951, %v1384, %v1388
      %v1391 = vshrl.u32 %v1352, 16
      %v1393 = vrot.slane %v1391, 6
      %v1394 = vshll.u32 %v1352, 16
      %v1396 = vrot.slane %v1394, 7
      %v1397 = vor.u32 %v1393, %v1396
      %v1398 = vrot.slane %v1397, 2
      %v1400 = vshll.u32 %v1353, 16
      %v1402 = vrot.slane %v1400, 7
      %v1403 = vsel %vm951, %v1398, %v1402
      %v1405 = vshrl.u32 %v1360, 16
      %v1407 = vrot.slane %v1405, 6
      %v1408 = vshll.u32 %v1360, 16
      %v1410 = vrot.slane %v1408, 7
      %v1411 = vor.u32 %v1407, %v1410
      %v1412 = vrot.slane %v1411, 2
      %v1414 = vshll.u32 %v1361, 16
      %v1416 = vrot.slane %v1414, 7
      %v1417 = vsel %vm951, %v1412, %v1416
      %v1418 = vcombine.low %v1375, %v1389
      %v1419 = vcombine.low %v1403, %v1417
      %v1421 = vunpack.c.l.s4 1983009808
      %v1422 = vunpack.c.0.s8 %v1421
      %v1423 = vlaneseq
      %v1424 = vshrl.u32 %v1423, 7
      %v1425 = vsub.s32 %v1422, %v1424
      %v1426 = vrot.slane %v1418, %v1425
      %v1428 = vunpack.c.l.s4 1983009808
      %v1429 = vunpack.c.0.s8 %v1428
      %v1430 = vlaneseq
      %v1431 = vshrl.u32 %v1430, 7
      %v1432 = vsub.s32 %v1429, %v1431
      %v1433 = vrot.slane %v1419, %v1432
      %v1434 = vcombine.low %v1426, %v1433
      %v1452 = vunpack.c.l.b16 %v305
      %v1453 = vunpack.c.l.b16 %v306
      %v1454 = vunpack.c.l.b16 %v307
      %v1455 = vunpack.c.l.b16 %v308
      %v1456 = vunpack.c.l.b16 %v309
      %v1457 = vunpack.c.l.b16 %v310
      %v1458 = vunpack.c.l.b16 %v311
      %v1459 = vunpack.c.l.b16 %v312
      %v1460 = vunpack.c.l.b16 %v313
      %v1461 = vunpack.c.l.b16 %v314
      %v1462 = vunpack.c.l.b16 %v315
      %v1463 = vunpack.c.l.b16 %v316
      %v1464 = vunpack.c.l.b16 %v317
      %v1465 = vunpack.c.l.b16 %v318
      %v1466 = vunpack.c.l.b16 %v319
      %v1467 = vunpack.c.l.b16 %v320
      %v1468 = vpack.c.b16 %v1453, %v1452
      %v1469 = vpack.c.b16 %v1455, %v1454
      %v1470 = vpack.c.b16 %v1457, %v1456
      %v1471 = vpack.c.b16 %v1459, %v1458
      %v1472 = vpack.c.b16 %v1461, %v1460
      %v1473 = vpack.c.b16 %v1463, %v1462
      %v1474 = vpack.c.b16 %v1465, %v1464
      %v1475 = vpack.c.b16 %v1467, %v1466
      %1484 = vmatprep.subr.bf16.mxu0 0
      %1485 = vmatpush1.bf16.msra.mxu0 %v1475
      %1486 = vmatprep.subr.bf16.mxu0 0
      %1487 = vmatpush1.bf16.msra.mxu0 %v1474
      %1488 = vmatprep.subr.bf16.mxu0 0
      %1489 = vmatpush1.bf16.msra.mxu0 %v1473
      %1490 = vmatprep.subr.bf16.mxu0 0
      %1491 = vmatpush1.bf16.msra.mxu0 %v1472
      %1492 = vmatprep.subr.bf16.mxu0 0
      %1493 = vmatpush1.bf16.msra.mxu0 %v1471
      %1494 = vmatprep.subr.bf16.mxu0 0
      %1495 = vmatpush1.bf16.msra.mxu0 %v1470
      %1496 = vmatprep.subr.bf16.mxu0 0
      %1497 = vmatpush1.bf16.msra.mxu0 %v1469
      %1498 = vmatprep.subr.bf16.mxu0 0
      %1499 = vmatpush1.bf16.msra.mxu0 %v1468
      %1500 = vmatprep.subr.bf16.mxu0 0
      %1501 = vmatpush2.bf16.msra.mxu0 0
      %1502 = vmatprep.subr.bf16.mxu0 0
      %1503 = vmatpush2.bf16.msra.mxu0 0
      %1504 = vmatprep.subr.bf16.mxu0 0
      %1505 = vmatpush2.bf16.msra.mxu0 0
      %1506 = vmatprep.subr.bf16.mxu0 0
      %1507 = vmatpush2.bf16.msra.mxu0 0
      %1508 = vmatprep.subr.bf16.mxu0 0
      %1509 = vmatpush2.bf16.msra.mxu0 0
      %1510 = vmatprep.subr.bf16.mxu0 0
      %1511 = vmatpush2.bf16.msra.mxu0 0
      %1512 = vmatprep.subr.bf16.mxu0 0
      %1513 = vmatpush2.bf16.msra.mxu0 0
      %1514 = vmatprep.subr.bf16.mxu0 0
      %1515 = vmatpush2.bf16.msra.mxu0 0
      %1516 = vmatprep.mubr.bf16.mxu0 0
      %1517 = vmatmul.mubr.bf16.gmra.mxu0 %v1434
      %v1518 = vpop.f32.mrf.mxu0
      %v1519 = vadd.f32 0.0, %v1518
      %v1520 = vpop.f32.mrf.mxu0
      %v1521 = vpop.f32.mrf.mxu0
      %v1522 = vadd.f32 0.0, %v1521
      %v1523 = vpop.f32.mrf.mxu0
      %1524 = vdwg.mxu0
      %v1525 = vadd.f32 %v1320, %v1519
      %v1526 = vadd.f32 %v1321, %v1522
      %v1528 = vlaneseq
      %v1529 = vshrl.u32 %v1528, 7
      %v1530 = vsub.s32 0, %v1529
      %v1531 = vrot.slane %v172, %v1530
      %v1533 = vadd.f32 %v1525, %v1531
      %v1534 = vadd.f32 %v1526, %v1531
      %v1535 = vmax.f32 %v1533, 0.0
      %v1536 = vmax.f32 %v1534, 0.0
      %v1539 = vcombine.high %v1535, %v1535
      %v1540 = vcombine.high %v1536, %v1536
      %v1543 = vpack.c.bf16 %v1535, %v1535
      %v1544 = vpack.c.bf16 %v1539, %v1539
      %v1545 = vpack.c.bf16 %v1536, %v1536
      %v1546 = vpack.c.bf16 %v1540, %v1540
      %1547 = vst [vmem:[%s170] sm:$0x3] %v1543
      %1548 = vst [vmem:[%s170 + $0x2] sm:$0x3] %v1544
      %1549 = vst [vmem:[%s170 + $0x4] sm:$0x3] %v1545
      %1550 = vst [vmem:[%s170 + $0x6] sm:$0x3] %v1546
      %p1551 = scmp.lt.s32.totalorder %s14, 1
      %s1552 = scalar_select %p1551, %s14, 1
      %s1553 = smul.addr %s1552, 4
      %s1554 = smul.addr %s1553, 2
      %s1555 = scalar_lea.vmem %s3, %s1554
      // Predicated region
      $region33: #{autoencoder_forward.9} parent=31 // pred_check
        %p1556 = pneg %p100
      $region34: #{autoencoder_forward.9} parent=31 // pred_check_branch
        %1558 = sbr.rel (%p1556) target = $region36
      $region35: #{autoencoder_forward.9} parent=31 // pred_region
        _
      $region36: #{autoencoder_forward.9} parent=31 // pred_fallthru
        _
    $region32: #{autoencoder_forward.9} parent=5 // pred_fallthru
      _
    %p1559 = scmp.le.s32.totalorder 2, %s9
    // Predicated region
    $region37: #{autoencoder_forward.9} parent=5 // pred_check
      %p1560 = pneg %p1559
    $region38: #{autoencoder_forward.9} parent=5 // pred_check_branch
      %1562 = sbr.rel (%p1560) target = $region40
    $region39: #{autoencoder_forward.9} parent=5 // pred_region
      %s1563 = ssub.s32 %s9, 2
      // Predicated region
      $region41: #{autoencoder_forward.9} parent=39 // pred_check
        %p1564 = pneg %p106
      $region42: #{autoencoder_forward.9} parent=39 // pred_check_branch
        %1566 = sbr.rel (%p1564) target = $region44
      $region43: #{autoencoder_forward.9} parent=39 // pred_region
        %p1567 = scmp.lt.s32.totalorder %s15, 1
        %s1568 = scalar_select %p1567, %s15, 1
        %s1569 = smul.addr %s1568, 4
        %s1570 = smul.addr %s1569, 2
        %s1571 = scalar_lea.vmem %s3, %s1570
      $region44: #{autoencoder_forward.9} parent=39 // pred_fallthru
        _
    $region40: #{autoencoder_forward.9} parent=5 // pred_fallthru
      _
  $region6: #{autoencoder_forward.9} parent=0 // loop_footer
    %s13 = sadd.s32 1, %s9
  $region7: #{autoencoder_forward.9} parent=0 // loop_footer_branch
    %8 = sbr.rel target = $region3
  $region8: #{autoencoder_forward.9} parent=0 // loop_exit
    _

// kernel: squeeze.82
$region0: #{squeeze.82}
  %s0 = inlined_call_operand.vmem [shape: bf16[1,2,512], index: 0, kind: input, shape index: {}]
  %s1 = inlined_call_operand.vmem [shape: bf16[2,2,2,128], index: 1, kind: output, shape index: {}]
  $region1: #{squeeze.82} parent=0
    #allocation0 [shape = 'u8[16384]{0}', space=vmem, size = 0x4000, scoped, tag = 'scoped mem for output reshape']
    #allocation1 [shape = 'u8[16384]{0}', space=vmem, size = 0x4000, scoped, tag = 'scoped mem for input reshape']
    %s3 = smul.u32 1, 2
    %s4 = sshll.u32 1, %s3
    %s5 = ssub.s32 %s4, 1
    %s6 = smul.addr 1, 3
    %s7 = scalar_lea.vmem %s0, %s6
    %s8 = sshrl.u32 %s5, 1
    %s9 = sor.u32 %s5, %s8
    %s10 = sand.u32 %s9, 85
    %s11 = sshrl.u32 %s10, 1
    %s12 = sor.u32 %s10, %s11
    %s13 = sand.u32 51, %s12
    %s14 = sshrl.u32 %s13, 2
    %s15 = sor.u32 %s13, %s14
    %s16 = sand.u32 15, %s15
    %v17 = vld [vmem:[%s7] sm:%s16]
    %v18 = vunpack.c.l.bf16 %v17
    %v19 = vunpack.c.h.bf16 %v17
    %s20 = scalar_lea.vmem [#allocation1], 24
    %21 = vst [vmem:[%s20] sm:%s5] %v18
    %s22 = smul.addr 1, 2
    %s23 = scalar_lea.vmem %s0, %s22
    %s24 = sshrl.u32 %s5, 1
    %s25 = sor.u32 %s5, %s24
    %s26 = sand.u32 %s25, 85
    %s27 = sshrl.u32 %s26, 1
    %s28 = sor.u32 %s26, %s27
    %s29 = sand.u32 51, %s28
    %s30 = sshrl.u32 %s29, 2
    %s31 = sor.u32 %s29, %s30
    %s32 = sand.u32 15, %s31
    %v33 = vld [vmem:[%s23] sm:%s32]
    %v34 = vunpack.c.l.bf16 %v33
    %v35 = vunpack.c.h.bf16 %v33
    %s36 = scalar_lea.vmem [#allocation1], 16
    %37 = vst [vmem:[%s36] sm:%s5] %v34
    %s38 = scalar_lea.vmem %s0, 1
    %s39 = sshrl.u32 %s5, 1
    %s40 = sor.u32 %s5, %s39
    %s41 = sand.u32 %s40, 85
    %s42 = sshrl.u32 %s41, 1
    %s43 = sor.u32 %s41, %s42
    %s44 = sand.u32 51, %s43
    %s45 = sshrl.u32 %s44, 2
    %s46 = sor.u32 %s44, %s45
    %s47 = sand.u32 15, %s46
    %v48 = vld [vmem:[%s38] sm:%s47]
    %v49 = vunpack.c.l.bf16 %v48
    %v50 = vunpack.c.h.bf16 %v48
    %s51 = scalar_lea.vmem [#allocation1], 8
    %52 = vst [vmem:[%s51] sm:%s5] %v49
    %s53 = sshrl.u32 %s5, 1
    %s54 = sor.u32 %s5, %s53
    %s55 = sand.u32 %s54, 85
    %s56 = sshrl.u32 %s55, 1
    %s57 = sor.u32 %s55, %s56
    %s58 = sand.u32 51, %s57
    %s59 = sshrl.u32 %s58, 2
    %s60 = sor.u32 %s58, %s59
    %s61 = sand.u32 15, %s60
    %v62 = vld [vmem:[%s0] sm:%s61]
    %v63 = vunpack.c.l.bf16 %v62
    %v64 = vunpack.c.h.bf16 %v62
    %65 = vst [vmem:[#allocation1] sm:%s5] %v63
    %v66 = vld [vmem:[#allocation1] sm:$0x3]
    %67 = vst [vmem:[#allocation0] ss:$16 sm:$0x3] %v66
    %s68 = scalar_lea.vmem [#allocation1], 8
    %v69 = vld [vmem:[%s68] sm:$0x3]
    %s70 = scalar_lea.vmem [#allocation0], 1
    %71 = vst [vmem:[%s70] ss:$16 sm:$0x3] %v69
    %s72 = scalar_lea.vmem [#allocation1], 16
    %v73 = vld [vmem:[%s72] sm:$0x3]
    %s74 = scalar_lea.vmem [#allocation0], 8
    %75 = vst [vmem:[%s74] ss:$16 sm:$0x3] %v73
    %s76 = scalar_lea.vmem [#allocation1], 24
    %v77 = vld [vmem:[%s76] sm:$0x3]
    %s78 = scalar_lea.vmem [#allocation0], 9
    %79 = vst [vmem:[%s78] ss:$16 sm:$0x3] %v77
    %s81 = smul.u32 1, 2
    %s82 = sshll.u32 1, %s81
    %s83 = ssub.s32 %s82, 1
    %s84 = sshrl.u32 %s81, 1
    %v85 = vld [vmem:[#allocation0] sm:%s83]
    %v86 = vpack.c.bf16 0.0, %v85
    %s87 = sshll.u32 1, %s84
    %s88 = ssub.s32 %s87, 1
    %89 = vst [vmem:[%s1] sm:%s88] %v86
    %s90 = scalar_lea.vmem [#allocation0], 8
    %v91 = vld [vmem:[%s90] sm:%s83]
    %v92 = vpack.c.bf16 0.0, %v91
    %s93 = sshll.u32 1, %s84
    %s94 = ssub.s32 %s93, 1
    %s95 = scalar_lea.vmem %s1, 1
    %96 = vst [vmem:[%s95] sm:%s94] %v92
    %s97 = scalar_lea.vmem [#allocation0], 16
    %v98 = vld [vmem:[%s97] sm:%s83]
    %v99 = vpack.c.bf16 0.0, %v98
    %s100 = sshll.u32 1, %s84
    %s101 = ssub.s32 %s100, 1
    %s102 = smul.addr 1, 2
    %s103 = scalar_lea.vmem %s1, %s102
    %104 = vst [vmem:[%s103] sm:%s101] %v99
    %s105 = scalar_lea.vmem [#allocation0], 24
    %v106 = vld [vmem:[%s105] sm:%s83]
    %v107 = vpack.c.bf16 0.0, %v106
    %s108 = sshll.u32 1, %s84
    %s109 = ssub.s32 %s108, 1
    %s110 = smul.addr 1, 3
    %s111 = scalar_lea.vmem %s1, %s110
    %112 = vst [vmem:[%s111] sm:%s109] %v107

// kernel: autoencoder_forward.11
$region0: #{autoencoder_forward.11}
  #allocation0 [shape = 'u32[]', space=smem, size = 0x4, offset = 0x4, fixed_abs, tag = 'smem constant byte address 0x4 - core index']
  #allocation1 [shape = 'u32[144,128]{1,0:T(1,128)}', space=vmem, size = 0x12000, scoped, tag = 'internal scratch']
  #allocation2 [shape = 'f32[8,128]{1,0:T(8,128)}', space=vmem, size = 0x1000, scoped, tag = 'scratch operand']
  %s0 = inlined_call_operand.vmem [shape: bf16[8,512], index: 0, kind: input, shape index: {}]
  %s1 = inlined_call_operand.vmem [shape: bf16[512,128], index: 1, kind: input, shape index: {}]
  %s2 = inlined_call_operand.vmem [shape: f32[1,128], index: 2, kind: input, shape index: {}]
  %s3 = inlined_call_operand.vmem [shape: f32[2,8,128], index: 3, kind: output, shape index: {}]
  %s4 = sld [smem:[#allocation0]]
  $region53: #{autoencoder_forward.11} parent=0
    _
  %s6 = ssub.s32 1, %s4
  %s7 = scalar_select 0, %s6, %s4
  loop: start=0, step=1, limit=4
  $region2: #{autoencoder_forward.11} parent=0 // loop_pre_header
    _
  $region3: #{autoencoder_forward.11} parent=0 // loop_header
    %s9 = sphi 0, %s13
    %p10 = scmp.ge.s32.totalorder %s9, 4
    %s16 = sphi 0, %s42
    %s17 = sphi 0, %s38
    %s18 = sphi 0, %s34
    %s19 = sphi 0, %s30
    %s20 = sphi 0, %s16
    %s21 = sphi 0, %s17
    %s22 = sphi 0, %s18
    %s23 = sphi 0, %s19
    %s24 = sphi 0, %s20
    %s25 = sphi 0, %s21
    %s26 = sphi 0, %s22
    %s27 = sphi 0, %s23
    %s49 = sphi 0, %s51
    %s52 = sphi 0, %s49
    %s53 = sphi 0, %s52
    %s69 = sphi 0, %s53
    %s79 = sphi 0, %s81
    %s82 = sphi 0, %s79
    %s83 = sphi 0, %s82
    %s99 = sphi 0, %s83
    %s105 = sphi 0, %s107
    %s108 = sphi 0, %s105
    %s109 = sphi 0, %s108
    %s125 = sphi 0, %s109
    %s135 = sphi 0, %s137
    %s138 = sphi 0, %s135
    %s139 = sphi 0, %s138
    %s155 = sphi 0, %s139
  $region4: #{autoencoder_forward.11} parent=0 // loop_header_branch
    %12 = sbr.rel (%p10) target = $region8
  $region5: #{autoencoder_forward.11} parent=0 // loop_body
    %s14 = ssub.s32 %s9, 1
    %s15 = ssub.s32 %s9, 2
    %s28 = sadd.s32 1, %s19
    %p29 = scmp.ge.s32.totalorder %s28, 1
    %s30 = scalar_select %p29, 0, %s28
    %s31 = sadd.s32 1, %s18
    %s32 = scalar_select %p29, %s31, %s18
    %p33 = scmp.ge.s32.totalorder %s32, 1
    %s34 = scalar_select %p33, 0, %s32
    %s35 = sadd.s32 1, %s17
    %s36 = scalar_select %p33, %s35, %s17
    %p37 = scmp.ge.s32.totalorder %s36, 1
    %s38 = scalar_select %p37, 0, %s36
    %s39 = sadd.s32 1, %s16
    %s40 = scalar_select %p37, %s39, %s16
    %p41 = scmp.ge.s32.totalorder %s40, 2
    %s42 = scalar_select %p41, 0, %s40
    %s43 = sadd.s32 %s16, %s19
    %s44 = sadd.s32 %s42, %s30
    %s45 = ssub.s32 %s17, %s38
    %s46 = ssub.s32 %s43, %s44
    %s47 = sor.u32 %s45, %s46
    %p48 = scmp.eq.s32.totalorder %s47, 0
    %s50 = sadd.s32 %s49, 1
    %s51 = scalar_select %p48, %s49, %s50
    %p54 = pneg %p48
    %p55 = scmp.eq.s32.totalorder %s9, 1
    %p56 = por %p54, %p55
    %p57 = scmp.ne.s32.totalorder %s49, %s52
    %p58 = scmp.eq.s32.totalorder %s9, 0
    %p59 = por %p57, %p58
    %p60 = scmp.ne.s32.totalorder %s49, %s52
    %p61 = scmp.eq.s32.totalorder %s14, 1
    %p62 = por %p60, %p61
    %p63 = scmp.ne.s32.totalorder %s52, %s53
    %p64 = scmp.eq.s32.totalorder %s14, 0
    %p65 = por %p63, %p64
    %p66 = scmp.ne.s32.totalorder %s52, %s53
    %p67 = scmp.eq.s32.totalorder %s15, 1
    %p68 = por %p66, %p67
    %p70 = scmp.ne.s32.totalorder %s53, %s69
    %p71 = scmp.eq.s32.totalorder %s15, 0
    %p72 = por %p70, %p71
    %s73 = sadd.s32 %s16, %s19
    %s74 = sadd.s32 %s42, %s30
    %s75 = ssub.s32 %s73, %s74
    %s76 = ssub.s32 %s18, %s34
    %s77 = sor.u32 %s75, %s76
    %p78 = scmp.eq.s32.totalorder %s77, 0
    %s80 = sadd.s32 %s79, 1
    %s81 = scalar_select %p78, %s79, %s80
    %p84 = pneg %p78
    %p85 = scmp.eq.s32.totalorder %s9, 1
    %p86 = por %p84, %p85
    %p87 = scmp.ne.s32.totalorder %s79, %s82
    %p88 = scmp.eq.s32.totalorder %s9, 0
    %p89 = por %p87, %p88
    %p90 = scmp.ne.s32.totalorder %s79, %s82
    %p91 = scmp.eq.s32.totalorder %s14, 1
    %p92 = por %p90, %p91
    %p93 = scmp.ne.s32.totalorder %s82, %s83
    %p94 = scmp.eq.s32.totalorder %s14, 0
    %p95 = por %p93, %p94
    %p96 = scmp.ne.s32.totalorder %s82, %s83
    %p97 = scmp.eq.s32.totalorder %s15, 1
    %p98 = por %p96, %p97
    %p100 = scmp.ne.s32.totalorder %s83, %s99
    %p101 = scmp.eq.s32.totalorder %s15, 0
    %p102 = por %p100, %p101
    %s103 = ssub.s32 %s18, %s34
    %p104 = scmp.eq.s32.totalorder %s103, 0
    %s106 = sadd.s32 %s105, 1
    %s107 = scalar_select %p104, %s105, %s106
    %p110 = pneg %p104
    %p111 = scmp.eq.s32.totalorder %s9, 1
    %p112 = por %p110, %p111
    %p113 = scmp.ne.s32.totalorder %s105, %s108
    %p114 = scmp.eq.s32.totalorder %s9, 0
    %p115 = por %p113, %p114
    %p116 = scmp.ne.s32.totalorder %s105, %s108
    %p117 = scmp.eq.s32.totalorder %s14, 1
    %p118 = por %p116, %p117
    %p119 = scmp.ne.s32.totalorder %s108, %s109
    %p120 = scmp.eq.s32.totalorder %s14, 0
    %p121 = por %p119, %p120
    %p122 = scmp.ne.s32.totalorder %s108, %s109
    %p123 = scmp.eq.s32.totalorder %s15, 1
    %p124 = por %p122, %p123
    %p126 = scmp.ne.s32.totalorder %s109, %s125
    %p127 = scmp.eq.s32.totalorder %s15, 0
    %p128 = por %p126, %p127
    %s129 = ssub.s32 %s16, %s42
    %s130 = ssub.s32 %s17, %s38
    %s131 = sor.u32 %s129, %s130
    %s132 = ssub.s32 %s18, %s34
    %s133 = sor.u32 %s131, %s132
    %p134 = scmp.eq.s32.totalorder %s133, 0
    %s136 = sadd.s32 %s135, 1
    %s137 = scalar_select %p134, %s135, %s136
    %p140 = pneg %p134
    %p141 = scmp.eq.s32.totalorder %s9, 1
    %p142 = por %p140, %p141
    %p143 = scmp.ne.s32.totalorder %s135, %s138
    %p144 = scmp.eq.s32.totalorder %s9, 0
    %p145 = por %p143, %p144
    %p146 = scmp.ne.s32.totalorder %s135, %s138
    %p147 = scmp.eq.s32.totalorder %s14, 1
    %p148 = por %p146, %p147
    %p149 = scmp.ne.s32.totalorder %s138, %s139
    %p150 = scmp.eq.s32.totalorder %s14, 0
    %p151 = por %p149, %p150
    %p152 = scmp.ne.s32.totalorder %s138, %s139
    %p153 = scmp.eq.s32.totalorder %s15, 1
    %p154 = por %p152, %p153
    %p156 = scmp.ne.s32.totalorder %s139, %s155
    %p157 = scmp.eq.s32.totalorder %s15, 0
    %p158 = por %p156, %p157
    %p159 = scmp.le.s32.totalorder 1, %s9
    %p160 = scmp.lt.s32.totalorder %s9, 3
    %p161 = pnand %p159, %p160
    %p162 = pneg %p161
    // Predicated region
    $region9: #{autoencoder_forward.11} parent=5 // pred_check
      _
    $region10: #{autoencoder_forward.11} parent=5 // pred_check_branch
      %164 = sbr.rel (%p161) target = $region12
    $region11: #{autoencoder_forward.11} parent=5 // pred_region
      %s165 = ssub.s32 %s9, 1
      // Predicated region
      $region13: #{autoencoder_forward.11} parent=11 // pred_check
        %p166 = pneg %p121
      $region14: #{autoencoder_forward.11} parent=11 // pred_check_branch
        %168 = sbr.rel (%p166) target = $region16
      $region15: #{autoencoder_forward.11} parent=11 // pred_region
        %p169 = scmp.lt.s32.totalorder %s22, 0
        %s170 = scalar_select %p169, %s22, 0
        %s171 = scalar_lea.vmem %s2, %s170
      $region16: #{autoencoder_forward.11} parent=11 // pred_fallthru
        _
    $region12: #{autoencoder_forward.11} parent=5 // pred_fallthru
      _
    %p172 = scmp.lt.s32.totalorder %s9, 2
    // Predicated region
    $region17: #{autoencoder_forward.11} parent=5 // pred_check
      %p173 = pneg %p172
    $region18: #{autoencoder_forward.11} parent=5 // pred_check_branch
      %175 = sbr.rel (%p173) target = $region20
    $region19: #{autoencoder_forward.11} parent=5 // pred_region
      // Predicated region
      $region21: #{autoencoder_forward.11} parent=19 // pred_check
        %p176 = pneg %p59
      $region22: #{autoencoder_forward.11} parent=19 // pred_check_branch
        %178 = sbr.rel (%p176) target = $region24
      $region23: #{autoencoder_forward.11} parent=19 // pred_region
        %s179 = sadd.s32 %s16, %s19
        %s180 = smul.u32 2, %s179
        %p181 = scmp.lt.s32.totalorder %s17, 0
        %s182 = scalar_select %p181, %s17, 0
        %p183 = scmp.lt.s32.totalorder %s180, 3
        %s184 = scalar_select %p183, %s180, 3
        %s185 = smul.addr %s182, 4
        %s186 = sadd.s32 %s184, %s185
        %s187 = smul.addr %s186, 4
        %s188 = scalar_lea.vmem %s0, %s187
        %s189 = sadd.s32 %s16, %s19
        %s190 = smul.u32 2, %s189
      $region24: #{autoencoder_forward.11} parent=19 // pred_fallthru
        _
      // Predicated region
      $region25: #{autoencoder_forward.11} parent=19 // pred_check
        %p191 = pneg %p89
      $region26: #{autoencoder_forward.11} parent=19 // pred_check_branch
        %193 = sbr.rel (%p191) target = $region28
      $region27: #{autoencoder_forward.11} parent=19 // pred_region
        %s194 = sadd.s32 %s16, %s19
        %s195 = smul.u32 32, %s194
        %p196 = scmp.lt.s32.totalorder %s195, 63
        %s197 = scalar_select %p196, %s195, 63
        %p198 = scmp.lt.s32.totalorder %s18, 0
        %s199 = scalar_select %p198, %s18, 0
        %s200 = sadd.s32 %s199, %s197
        %s201 = smul.addr %s200, 4
        %s202 = scalar_lea.vmem %s1, %s201
        %s203 = sadd.s32 %s16, %s19
        %s204 = smul.u32 32, %s203
      $region28: #{autoencoder_forward.11} parent=19 // pred_fallthru
        _
    $region20: #{autoencoder_forward.11} parent=5 // pred_fallthru
      _
    %p205 = scmp.le.s32.totalorder 1, %s9
    %p206 = scmp.lt.s32.totalorder %s9, 3
    %p207 = pnand %p205, %p206
    %p208 = pneg %p207
    // Predicated region
    $region29: #{autoencoder_forward.11} parent=5 // pred_check
      _
    $region30: #{autoencoder_forward.11} parent=5 // pred_check_branch
      %210 = sbr.rel (%p207) target = $region32
    $region31: #{autoencoder_forward.11} parent=5 // pred_region
      %s211 = ssub.s32 %s9, 1
      %s212 = sadd.s32 %s20, %s23
      %s213 = smul.u32 2, %s212
      %p214 = scmp.lt.s32.totalorder %s21, 0
      %s215 = scalar_select %p214, %s21, 0
      %p216 = scmp.lt.s32.totalorder %s213, 3
      %s217 = scalar_select %p216, %s213, 3
      %s218 = smul.addr %s215, 4
      %s219 = sadd.s32 %s217, %s218
      %s220 = smul.addr %s219, 4
      %s221 = scalar_lea.vmem %s0, %s220
      %p222 = pneg %p65
      %p223 = pneg %p62
      %s224 = sadd.s32 %s20, %s23
      %s225 = smul.u32 32, %s224
      %p226 = scmp.lt.s32.totalorder %s225, 63
      %s227 = scalar_select %p226, %s225, 63
      %p228 = scmp.lt.s32.totalorder %s22, 0
      %s229 = scalar_select %p228, %s22, 0
      %s230 = sadd.s32 %s229, %s227
      %s231 = smul.addr %s230, 4
      %s232 = scalar_lea.vmem %s1, %s231
      %p233 = pneg %p95
      %p234 = pneg %p92
      %p235 = scmp.lt.s32.totalorder %s22, 0
      %s236 = scalar_select %p235, %s22, 0
      %s237 = scalar_lea.vmem %s2, %s236
      %p238 = pneg %p121
      %p239 = pneg %p118
      %p240 = pneg %p151
      %p241 = pneg %p148
      %p242 = scmp.lt.s32.totalorder %s20, 1
      %s243 = scalar_select %p242, %s20, 1
      %p244 = scmp.lt.s32.totalorder %s21, 0
      %s245 = scalar_select %p244, %s21, 0
      %p246 = scmp.lt.s32.totalorder %s22, 0
      %s247 = scalar_select %p246, %s22, 0
      %s248 = sadd.s32 %s247, %s245
      %s249 = sadd.s32 %s248, %s243
      %s250 = smul.addr %s249, 8
      %s251 = scalar_lea.vmem %s3, %s250
      %s252 = sadd.s32 %s20, %s23
      %s253 = smul.u32 2, %s252
      %p254 = scmp.lt.s32.totalorder %s21, 0
      %s255 = scalar_select %p254, %s21, 0
      %p256 = scmp.lt.s32.totalorder %s253, 3
      %s257 = scalar_select %p256, %s253, 3
      %s258 = smul.addr %s255, 4
      %s259 = sadd.s32 %s257, %s258
      %s260 = smul.addr %s259, 4
      %s261 = scalar_lea.vmem %s0, %s260
      %s262 = sadd.s32 %s20, %s23
      %s263 = smul.u32 2, %s262
      %s264 = sadd.s32 %s20, %s23
      %s265 = smul.u32 32, %s264
      %p266 = scmp.lt.s32.totalorder %s265, 63
      %s267 = scalar_select %p266, %s265, 63
      %p268 = scmp.lt.s32.totalorder %s22, 0
      %s269 = scalar_select %p268, %s22, 0
      %s270 = sadd.s32 %s269, %s267
      %s271 = smul.addr %s270, 4
      %s272 = scalar_lea.vmem %s1, %s271
      %s273 = sadd.s32 %s20, %s23
      %s274 = smul.u32 32, %s273
      %p275 = scmp.lt.s32.totalorder %s22, 0
      %s276 = scalar_select %p275, %s22, 0
      %s277 = scalar_lea.vmem %s2, %s276
      %p278 = scmp.lt.s32.totalorder %s20, 1
      %s279 = scalar_select %p278, %s20, 1
      %p280 = scmp.lt.s32.totalorder %s21, 0
      %s281 = scalar_select %p280, %s21, 0
      %p282 = scmp.lt.s32.totalorder %s22, 0
      %s283 = scalar_select %p282, %s22, 0
      %s284 = sadd.s32 %s283, %s281
      %s285 = sadd.s32 %s284, %s279
      %s286 = smul.addr %s285, 8
      %s287 = scalar_lea.vmem %s3, %s286
      %p289 = scmp.eq.s32.totalorder %s23, 0
      // Predicated region
      $region33: #{autoencoder_forward.11} parent=31 // pred_check
        %p290 = pneg %p289
      $region34: #{autoencoder_forward.11} parent=31 // pred_check_branch
        %292 = sbr.rel (%p290) target = $region36
      $region35: #{autoencoder_forward.11} parent=31 // pred_region
        %293 = vst [vmem:[#allocation2] sm:$0xff] 0.0
      $region36: #{autoencoder_forward.11} parent=31 // pred_fallthru
        _
      %v294 = vld [vmem:[#allocation2] sm:$0xff]
      %v295 = vld [vmem:[%s261] sm:$0xff]
      %v296 = vld [vmem:[%s272] sm:$0xf]
      %v297 = vld [vmem:[%s272 + $0x4] sm:$0xf]
      %v298 = vld [vmem:[%s272 + $0x8] sm:$0xf]
      %v299 = vld [vmem:[%s272 + $0xc] sm:$0xf]
      %v300 = vld [vmem:[%s272 + $0x10] sm:$0xf]
      %v301 = vld [vmem:[%s272 + $0x14] sm:$0xf]
      %v302 = vld [vmem:[%s272 + $0x18] sm:$0xf]
      %v303 = vld [vmem:[%s272 + $0x1c] sm:$0xf]
      %v304 = vld [vmem:[%s272 + $0x20] sm:$0xf]
      %v305 = vld [vmem:[%s272 + $0x24] sm:$0xf]
      %v306 = vld [vmem:[%s272 + $0x28] sm:$0xf]
      %v307 = vld [vmem:[%s272 + $0x2c] sm:$0xf]
      %v308 = vld [vmem:[%s272 + $0x30] sm:$0xf]
      %v309 = vld [vmem:[%s272 + $0x34] sm:$0xf]
      %v310 = vld [vmem:[%s272 + $0x38] sm:$0xf]
      %v311 = vld [vmem:[%s272 + $0x3c] sm:$0xf]
      %v312 = vld [vmem:[%s272 + $0x40] sm:$0xf]
      %v313 = vld [vmem:[%s272 + $0x44] sm:$0xf]
      %v314 = vld [vmem:[%s272 + $0x48] sm:$0xf]
      %v315 = vld [vmem:[%s272 + $0x4c] sm:$0xf]
      %v316 = vld [vmem:[%s272 + $0x50] sm:$0xf]
      %v317 = vld [vmem:[%s272 + $0x54] sm:$0xf]
      %v318 = vld [vmem:[%s272 + $0x58] sm:$0xf]
      %v319 = vld [vmem:[%s272 + $0x5c] sm:$0xf]
      %v320 = vld [vmem:[%s272 + $0x60] sm:$0xf]
      %v321 = vld [vmem:[%s272 + $0x64] sm:$0xf]
      %v322 = vld [vmem:[%s272 + $0x68] sm:$0xf]
      %v323 = vld [vmem:[%s272 + $0x6c] sm:$0xf]
      %v324 = vld [vmem:[%s272 + $0x70] sm:$0xf]
      %v325 = vld [vmem:[%s272 + $0x74] sm:$0xf]
      %v326 = vld [vmem:[%s272 + $0x78] sm:$0xf]
      %v327 = vld [vmem:[%s272 + $0x7c] sm:$0xf]
      %v329 = vunpack.c.l.b16 %v295
      %v330 = vunpack.c.h.b16 %v295
      %v331 = vpack.c.b16 %v329, %v329
      %v332 = vpack.c.b16 %v330, %v330
      %v367 = vunpack.c.l.b16 %v296
      %v368 = vunpack.c.l.b16 %v297
      %v369 = vunpack.c.l.b16 %v298
      %v370 = vunpack.c.l.b16 %v299
      %v371 = vunpack.c.l.b16 %v300
      %v372 = vunpack.c.l.b16 %v301
      %v373 = vunpack.c.l.b16 %v302
      %v374 = vunpack.c.l.b16 %v303
      %v375 = vunpack.c.l.b16 %v304
      %v376 = vunpack.c.l.b16 %v305
      %v377 = vunpack.c.l.b16 %v306
      %v378 = vunpack.c.l.b16 %v307
      %v379 = vunpack.c.l.b16 %v308
      %v380 = vunpack.c.l.b16 %v309
      %v381 = vunpack.c.l.b16 %v310
      %v382 = vunpack.c.l.b16 %v311
      %v383 = vunpack.c.l.b16 %v312
      %v384 = vunpack.c.l.b16 %v313
      %v385 = vunpack.c.l.b16 %v314
      %v386 = vunpack.c.l.b16 %v315
      %v387 = vunpack.c.l.b16 %v316
      %v388 = vunpack.c.l.b16 %v317
      %v389 = vunpack.c.l.b16 %v318
      %v390 = vunpack.c.l.b16 %v319
      %v391 = vunpack.c.l.b16 %v320
      %v392 = vunpack.c.l.b16 %v321
      %v393 = vunpack.c.l.b16 %v322
      %v394 = vunpack.c.l.b16 %v323
      %v395 = vunpack.c.l.b16 %v324
      %v396 = vunpack.c.l.b16 %v325
      %v397 = vunpack.c.l.b16 %v326
      %v398 = vunpack.c.l.b16 %v327
      %v399 = vpack.c.b16 %v368, %v367
      %v400 = vpack.c.b16 %v370, %v369
      %v401 = vpack.c.b16 %v372, %v371
      %v402 = vpack.c.b16 %v374, %v373
      %v403 = vpack.c.b16 %v376, %v375
      %v404 = vpack.c.b16 %v378, %v377
      %v405 = vpack.c.b16 %v380, %v379
      %v406 = vpack.c.b16 %v382, %v381
      %v407 = vpack.c.b16 %v384, %v383
      %v408 = vpack.c.b16 %v386, %v385
      %v409 = vpack.c.b16 %v388, %v387
      %v410 = vpack.c.b16 %v390, %v389
      %v411 = vpack.c.b16 %v392, %v391
      %v412 = vpack.c.b16 %v394, %v393
      %v413 = vpack.c.b16 %v396, %v395
      %v414 = vpack.c.b16 %v398, %v397
      %431 = vmatprep.subr.bf16.mxu0 0
      %432 = vmatpush1.bf16.msra.mxu0 %v406
      %433 = vmatprep.subr.bf16.mxu0 0
      %434 = vmatpush1.bf16.msra.mxu0 %v405
      %435 = vmatprep.subr.bf16.mxu0 0
      %436 = vmatpush1.bf16.msra.mxu0 %v404
      %437 = vmatprep.subr.bf16.mxu0 0
      %438 = vmatpush1.bf16.msra.mxu0 %v403
      %439 = vmatprep.subr.bf16.mxu0 0
      %440 = vmatpush1.bf16.msra.mxu0 %v402
      %441 = vmatprep.subr.bf16.mxu0 0
      %442 = vmatpush1.bf16.msra.mxu0 %v401
      %443 = vmatprep.subr.bf16.mxu0 0
      %444 = vmatpush1.bf16.msra.mxu0 %v400
      %445 = vmatprep.subr.bf16.mxu0 0
      %446 = vmatpush1.bf16.msra.mxu0 %v399
      %447 = vmatprep.subr.bf16.mxu0 0
      %448 = vmatpush2.bf16.msra.mxu0 %v414
      %449 = vmatprep.subr.bf16.mxu0 0
      %450 = vmatpush2.bf16.msra.mxu0 %v413
      %451 = vmatprep.subr.bf16.mxu0 0
      %452 = vmatpush2.bf16.msra.mxu0 %v412
      %453 = vmatprep.subr.bf16.mxu0 0
      %454 = vmatpush2.bf16.msra.mxu0 %v411
      %455 = vmatprep.subr.bf16.mxu0 0
      %456 = vmatpush2.bf16.msra.mxu0 %v410
      %457 = vmatprep.subr.bf16.mxu0 0
      %458 = vmatpush2.bf16.msra.mxu0 %v409
      %459 = vmatprep.subr.bf16.mxu0 0
      %460 = vmatpush2.bf16.msra.mxu0 %v408
      %461 = vmatprep.subr.bf16.mxu0 0
      %462 = vmatpush2.bf16.msra.mxu0 %v407
      %463 = vmatprep.mubr.bf16.mxu0 %v332
      %464 = vmatmul.mubr.bf16.gmra.mxu0 %v331
      %v465 = vpop.f32.mrf.mxu0
      %v466 = vadd.f32 0.0, %v465
      %v467 = vpop.f32.mrf.mxu0
      %v468 = vpop.f32.mrf.mxu0
      %v469 = vpop.f32.mrf.mxu0
      %470 = vdwg.mxu0
      %v471 = vadd.f32 %v294, %v466
      %472 = vst [vmem:[#allocation2] sm:$0xff] %v471
      // Predicated region
      $region37: #{autoencoder_forward.11} parent=31 // pred_check
        %p473 = pneg %p289
      $region38: #{autoencoder_forward.11} parent=31 // pred_check_branch
        %475 = sbr.rel (%p473) target = $region40
      $region39: #{autoencoder_forward.11} parent=31 // pred_region
        %v476 = vld [vmem:[#allocation2] sm:$0xff]
        %477 = vst [vmem:[%s287] sm:$0xff] %v476
      $region40: #{autoencoder_forward.11} parent=31 // pred_fallthru
        _
      %p478 = scmp.lt.s32.totalorder %s20, 1
      %s479 = scalar_select %p478, %s20, 1
      %p480 = scmp.lt.s32.totalorder %s21, 0
      %s481 = scalar_select %p480, %s21, 0
      %p482 = scmp.lt.s32.totalorder %s22, 0
      %s483 = scalar_select %p482, %s22, 0
      %s484 = sadd.s32 %s483, %s481
      %s485 = sadd.s32 %s484, %s479
      %s486 = smul.addr %s485, 8
      %s487 = scalar_lea.vmem %s3, %s486
      // Predicated region
      $region41: #{autoencoder_forward.11} parent=31 // pred_check
        %p488 = pneg %p148
      $region42: #{autoencoder_forward.11} parent=31 // pred_check_branch
        %490 = sbr.rel (%p488) target = $region44
      $region43: #{autoencoder_forward.11} parent=31 // pred_region
        _
      $region44: #{autoencoder_forward.11} parent=31 // pred_fallthru
        _
    $region32: #{autoencoder_forward.11} parent=5 // pred_fallthru
      _
    %p491 = scmp.le.s32.totalorder 2, %s9
    // Predicated region
    $region45: #{autoencoder_forward.11} parent=5 // pred_check
      %p492 = pneg %p491
    $region46: #{autoencoder_forward.11} parent=5 // pred_check_branch
      %494 = sbr.rel (%p492) target = $region48
    $region47: #{autoencoder_forward.11} parent=5 // pred_region
      %s495 = ssub.s32 %s9, 2
      // Predicated region
      $region49: #{autoencoder_forward.11} parent=47 // pred_check
        %p496 = pneg %p154
      $region50: #{autoencoder_forward.11} parent=47 // pred_check_branch
        %498 = sbr.rel (%p496) target = $region52
      $region51: #{autoencoder_forward.11} parent=47 // pred_region
        %p499 = scmp.lt.s32.totalorder %s24, 1
        %s500 = scalar_select %p499, %s24, 1
        %p501 = scmp.lt.s32.totalorder %s25, 0
        %s502 = scalar_select %p501, %s25, 0
        %p503 = scmp.lt.s32.totalorder %s26, 0
        %s504 = scalar_select %p503, %s26, 0
        %s505 = sadd.s32 %s504, %s502
        %s506 = sadd.s32 %s505, %s500
        %s507 = smul.addr %s506, 8
        %s508 = scalar_lea.vmem %s3, %s507
      $region52: #{autoencoder_forward.11} parent=47 // pred_fallthru
        _
    $region48: #{autoencoder_forward.11} parent=5 // pred_fallthru
      _
  $region6: #{autoencoder_forward.11} parent=0 // loop_footer
    %s13 = sadd.s32 1, %s9
  $region7: #{autoencoder_forward.11} parent=0 // loop_footer_branch
    %8 = sbr.rel target = $region3
  $region8: #{autoencoder_forward.11} parent=0 // loop_exit
    _

// kernel: autoencoder_forward.10
$region0: #{autoencoder_forward.10}
  #allocation0 [shape = 'u32[]', space=smem, size = 0x4, offset = 0x4, fixed_abs, tag = 'smem constant byte address 0x4 - core index']
  #allocation1 [shape = 'u32[144,128]{1,0:T(1,128)}', space=vmem, size = 0x12000, scoped, tag = 'internal scratch']
  %s0 = inlined_call_operand.vmem [shape: bf16[2,3,3,512], index: 0, kind: input, shape index: {}]
  %s1 = inlined_call_operand.vmem [shape: bf16[9,128,128], index: 1, kind: input, shape index: {}]
  %s2 = inlined_call_operand.vmem [shape: f32[1,128], index: 2, kind: input, shape index: {}]
  %s3 = inlined_call_operand.vmem [shape: bf16[2,2,2,128], index: 3, kind: output, shape index: {}]
  %s4 = sld [smem:[#allocation0]]
  $region45: #{autoencoder_forward.10} parent=0
    _
  %s6 = ssub.s32 1, %s4
  %s7 = scalar_select 0, %s6, %s4
  loop: start=0, step=1, limit=4
  $region2: #{autoencoder_forward.10} parent=0 // loop_pre_header
    _
  $region3: #{autoencoder_forward.10} parent=0 // loop_header
    %s9 = sphi 0, %s13
    %p10 = scmp.ge.s32.totalorder %s9, 4
    %s19 = sphi 0, %s21
    %s22 = sphi 0, %s19
    %s23 = sphi 0, %s22
    %s39 = sphi 0, %s23
    %s43 = sphi 0, %s43
    %s45 = sphi 0, %s43
    %s46 = sphi 0, %s45
    %s60 = sphi 0, %s46
    %s64 = sphi 0, %s64
    %s66 = sphi 0, %s64
    %s67 = sphi 0, %s66
    %s81 = sphi 0, %s67
    %s87 = sphi 0, %s89
    %s90 = sphi 0, %s87
    %s91 = sphi 0, %s90
    %s107 = sphi 0, %s91
  $region4: #{autoencoder_forward.10} parent=0 // loop_header_branch
    %12 = sbr.rel (%p10) target = $region8
  $region5: #{autoencoder_forward.10} parent=0 // loop_body
    %s14 = ssub.s32 %s9, 1
    %s15 = ssub.s32 %s9, 2
    %s16 = sadd.s32 %s9, 1
    %s17 = ssub.s32 %s9, %s16
    %p18 = scmp.eq.s32.totalorder %s17, 0
    %s20 = sadd.s32 %s19, 1
    %s21 = scalar_select %p18, %s19, %s20
    %p24 = pneg %p18
    %p25 = scmp.eq.s32.totalorder %s9, 1
    %p26 = por %p24, %p25
    %p27 = scmp.ne.s32.totalorder %s19, %s22
    %p28 = scmp.eq.s32.totalorder %s9, 0
    %p29 = por %p27, %p28
    %p30 = scmp.ne.s32.totalorder %s19, %s22
    %p31 = scmp.eq.s32.totalorder %s14, 1
    %p32 = por %p30, %p31
    %p33 = scmp.ne.s32.totalorder %s22, %s23
    %p34 = scmp.eq.s32.totalorder %s14, 0
    %p35 = por %p33, %p34
    %p36 = scmp.ne.s32.totalorder %s22, %s23
    %p37 = scmp.eq.s32.totalorder %s15, 1
    %p38 = por %p36, %p37
    %p40 = scmp.ne.s32.totalorder %s23, %s39
    %p41 = scmp.eq.s32.totalorder %s15, 0
    %p42 = por %p40, %p41
    %s44 = sadd.s32 %s43, 1
    %p47 = scmp.eq.s32.totalorder %s9, 1
    %p48 = scmp.ne.s32.totalorder %s43, %s45
    %p49 = scmp.eq.s32.totalorder %s9, 0
    %p50 = por %p48, %p49
    %p51 = scmp.ne.s32.totalorder %s43, %s45
    %p52 = scmp.eq.s32.totalorder %s14, 1
    %p53 = por %p51, %p52
    %p54 = scmp.ne.s32.totalorder %s45, %s46
    %p55 = scmp.eq.s32.totalorder %s14, 0
    %p56 = por %p54, %p55
    %p57 = scmp.ne.s32.totalorder %s45, %s46
    %p58 = scmp.eq.s32.totalorder %s15, 1
    %p59 = por %p57, %p58
    %p61 = scmp.ne.s32.totalorder %s46, %s60
    %p62 = scmp.eq.s32.totalorder %s15, 0
    %p63 = por %p61, %p62
    %s65 = sadd.s32 %s64, 1
    %p68 = scmp.eq.s32.totalorder %s9, 1
    %p69 = scmp.ne.s32.totalorder %s64, %s66
    %p70 = scmp.eq.s32.totalorder %s9, 0
    %p71 = por %p69, %p70
    %p72 = scmp.ne.s32.totalorder %s64, %s66
    %p73 = scmp.eq.s32.totalorder %s14, 1
    %p74 = por %p72, %p73
    %p75 = scmp.ne.s32.totalorder %s66, %s67
    %p76 = scmp.eq.s32.totalorder %s14, 0
    %p77 = por %p75, %p76
    %p78 = scmp.ne.s32.totalorder %s66, %s67
    %p79 = scmp.eq.s32.totalorder %s15, 1
    %p80 = por %p78, %p79
    %p82 = scmp.ne.s32.totalorder %s67, %s81
    %p83 = scmp.eq.s32.totalorder %s15, 0
    %p84 = por %p82, %p83
    %s85 = ssub.s32 %s9, %s16
    %p86 = scmp.eq.s32.totalorder %s85, 0
    %s88 = sadd.s32 %s87, 1
    %s89 = scalar_select %p86, %s87, %s88
    %p92 = pneg %p86
    %p93 = scmp.eq.s32.totalorder %s9, 1
    %p94 = por %p92, %p93
    %p95 = scmp.ne.s32.totalorder %s87, %s90
    %p96 = scmp.eq.s32.totalorder %s9, 0
    %p97 = por %p95, %p96
    %p98 = scmp.ne.s32.totalorder %s87, %s90
    %p99 = scmp.eq.s32.totalorder %s14, 1
    %p100 = por %p98, %p99
    %p101 = scmp.ne.s32.totalorder %s90, %s91
    %p102 = scmp.eq.s32.totalorder %s14, 0
    %p103 = por %p101, %p102
    %p104 = scmp.ne.s32.totalorder %s90, %s91
    %p105 = scmp.eq.s32.totalorder %s15, 1
    %p106 = por %p104, %p105
    %p108 = scmp.ne.s32.totalorder %s91, %s107
    %p109 = scmp.eq.s32.totalorder %s15, 0
    %p110 = por %p108, %p109
    %p111 = scmp.le.s32.totalorder 1, %s9
    %p112 = scmp.lt.s32.totalorder %s9, 3
    %p113 = pnand %p111, %p112
    %p114 = pneg %p113
    // Predicated region
    $region9: #{autoencoder_forward.10} parent=5 // pred_check
      _
    $region10: #{autoencoder_forward.10} parent=5 // pred_check_branch
      %116 = sbr.rel (%p113) target = $region12
    $region11: #{autoencoder_forward.10} parent=5 // pred_region
      %s117 = ssub.s32 %s9, 1
      // Predicated region
      $region13: #{autoencoder_forward.10} parent=11 // pred_check
        %p118 = pneg %p56
      $region14: #{autoencoder_forward.10} parent=11 // pred_check_branch
        %120 = sbr.rel (%p118) target = $region16
      $region15: #{autoencoder_forward.10} parent=11 // pred_region
        _
      $region16: #{autoencoder_forward.10} parent=11 // pred_fallthru
        _
      // Predicated region
      $region17: #{autoencoder_forward.10} parent=11 // pred_check
        %p121 = pneg %p77
      $region18: #{autoencoder_forward.10} parent=11 // pred_check_branch
        %123 = sbr.rel (%p121) target = $region20
      $region19: #{autoencoder_forward.10} parent=11 // pred_region
        _
      $region20: #{autoencoder_forward.10} parent=11 // pred_fallthru
        _
    $region12: #{autoencoder_forward.10} parent=5 // pred_fallthru
      _
    %p124 = scmp.lt.s32.totalorder %s9, 2
    // Predicated region
    $region21: #{autoencoder_forward.10} parent=5 // pred_check
      %p125 = pneg %p124
    $region22: #{autoencoder_forward.10} parent=5 // pred_check_branch
      %127 = sbr.rel (%p125) target = $region24
    $region23: #{autoencoder_forward.10} parent=5 // pred_region
      // Predicated region
      $region25: #{autoencoder_forward.10} parent=23 // pred_check
        %p128 = pneg %p29
      $region26: #{autoencoder_forward.10} parent=23 // pred_check_branch
        %130 = sbr.rel (%p128) target = $region28
      $region27: #{autoencoder_forward.10} parent=23 // pred_region
        %p131 = scmp.lt.s32.totalorder %s9, 1
        %s132 = scalar_select %p131, %s9, 1
        %s133 = smul.addr %s132, 12
        %s134 = smul.addr %s133, 2
        %s135 = scalar_lea.vmem %s0, %s134
      $region28: #{autoencoder_forward.10} parent=23 // pred_fallthru
        _
    $region24: #{autoencoder_forward.10} parent=5 // pred_fallthru
      _
    %p136 = scmp.le.s32.totalorder 1, %s9
    %p137 = scmp.lt.s32.totalorder %s9, 3
    %p138 = pnand %p136, %p137
    %p139 = pneg %p138
    // Predicated region
    $region29: #{autoencoder_forward.10} parent=5 // pred_check
      _
    $region30: #{autoencoder_forward.10} parent=5 // pred_check_branch
      %141 = sbr.rel (%p138) target = $region32
    $region31: #{autoencoder_forward.10} parent=5 // pred_region
      %s142 = ssub.s32 %s9, 1
      %p143 = scmp.lt.s32.totalorder %s14, 1
      %s144 = scalar_select %p143, %s14, 1
      %s145 = smul.addr %s144, 12
      %s146 = smul.addr %s145, 2
      %s147 = scalar_lea.vmem %s0, %s146
      %p148 = pneg %p35
      %p149 = pneg %p32
      %p150 = pneg %p56
      %p151 = pneg %p53
      %p152 = pneg %p77
      %p153 = pneg %p74
      %p154 = pneg %p103
      %p155 = pneg %p100
      %p156 = scmp.lt.s32.totalorder %s14, 1
      %s157 = scalar_select %p156, %s14, 1
      %s158 = smul.addr %s157, 2
      %s159 = scalar_lea.vmem %s3, %s158
      %p160 = scmp.lt.s32.totalorder %s14, 1
      %s161 = scalar_select %p160, %s14, 1
      %s162 = smul.addr %s161, 12
      %s163 = smul.addr %s162, 2
      %s164 = scalar_lea.vmem %s0, %s163
      %p165 = scmp.lt.s32.totalorder %s14, 1
      %s166 = scalar_select %p165, %s14, 1
      %s167 = smul.addr %s166, 2
      %s168 = scalar_lea.vmem %s3, %s167
      %v170 = vld [vmem:[%s2] sm:$0x1]
      %v171 = vld [vmem:[%s1] sm:$0xf]
      %v172 = vld [vmem:[%s1 + $0x4] sm:$0xf]
      %v173 = vld [vmem:[%s1 + $0x8] sm:$0xf]
      %v174 = vld [vmem:[%s1 + $0xc] sm:$0xf]
      %v175 = vld [vmem:[%s1 + $0x10] sm:$0xf]
      %v176 = vld [vmem:[%s1 + $0x14] sm:$0xf]
      %v177 = vld [vmem:[%s1 + $0x18] sm:$0xf]
      %v178 = vld [vmem:[%s1 + $0x1c] sm:$0xf]
      %v179 = vld [vmem:[%s1 + $0x20] sm:$0xf]
      %v180 = vld [vmem:[%s1 + $0x24] sm:$0xf]
      %v181 = vld [vmem:[%s1 + $0x28] sm:$0xf]
      %v182 = vld [vmem:[%s1 + $0x2c] sm:$0xf]
      %v183 = vld [vmem:[%s1 + $0x30] sm:$0xf]
      %v184 = vld [vmem:[%s1 + $0x34] sm:$0xf]
      %v185 = vld [vmem:[%s1 + $0x38] sm:$0xf]
      %v186 = vld [vmem:[%s1 + $0x3c] sm:$0xf]
      %v187 = vld [vmem:[%s1 + $0x40] sm:$0xf]
      %v188 = vld [vmem:[%s1 + $0x44] sm:$0xf]
      %v189 = vld [vmem:[%s1 + $0x48] sm:$0xf]
      %v190 = vld [vmem:[%s1 + $0x4c] sm:$0xf]
      %v191 = vld [vmem:[%s1 + $0x50] sm:$0xf]
      %v192 = vld [vmem:[%s1 + $0x54] sm:$0xf]
      %v193 = vld [vmem:[%s1 + $0x58] sm:$0xf]
      %v194 = vld [vmem:[%s1 + $0x5c] sm:$0xf]
      %v195 = vld [vmem:[%s1 + $0x60] sm:$0xf]
      %v196 = vld [vmem:[%s1 + $0x64] sm:$0xf]
      %v197 = vld [vmem:[%s1 + $0x68] sm:$0xf]
      %v198 = vld [vmem:[%s1 + $0x6c] sm:$0xf]
      %v199 = vld [vmem:[%s1 + $0x70] sm:$0xf]
      %v200 = vld [vmem:[%s1 + $0x74] sm:$0xf]
      %v201 = vld [vmem:[%s1 + $0x78] sm:$0xf]
      %v202 = vld [vmem:[%s1 + $0x7c] sm:$0xf]
      %v203 = vld [vmem:[%s1 + $0x80] sm:$0xf]
      %v204 = vld [vmem:[%s1 + $0x84] sm:$0xf]
      %v205 = vld [vmem:[%s1 + $0x88] sm:$0xf]
      %v206 = vld [vmem:[%s1 + $0x8c] sm:$0xf]
      %v207 = vld [vmem:[%s1 + $0x90] sm:$0xf]
      %v208 = vld [vmem:[%s1 + $0x94] sm:$0xf]
      %v209 = vld [vmem:[%s1 + $0x98] sm:$0xf]
      %v210 = vld [vmem:[%s1 + $0x9c] sm:$0xf]
      %v211 = vld [vmem:[%s1 + $0xa0] sm:$0xf]
      %v212 = vld [vmem:[%s1 + $0xa4] sm:$0xf]
      %v213 = vld [vmem:[%s1 + $0xa8] sm:$0xf]
      %v214 = vld [vmem:[%s1 + $0xac] sm:$0xf]
      %v215 = vld [vmem:[%s1 + $0xb0] sm:$0xf]
      %v216 = vld [vmem:[%s1 + $0xb4] sm:$0xf]
      %v217 = vld [vmem:[%s1 + $0xb8] sm:$0xf]
      %v218 = vld [vmem:[%s1 + $0xbc] sm:$0xf]
      %v219 = vld [vmem:[%s1 + $0xc0] sm:$0xf]
      %v220 = vld [vmem:[%s1 + $0xc4] sm:$0xf]
      %v221 = vld [vmem:[%s1 + $0xc8] sm:$0xf]
      %v222 = vld [vmem:[%s1 + $0xcc] sm:$0xf]
      %v223 = vld [vmem:[%s1 + $0xd0] sm:$0xf]
      %v224 = vld [vmem:[%s1 + $0xd4] sm:$0xf]
      %v225 = vld [vmem:[%s1 + $0xd8] sm:$0xf]
      %v226 = vld [vmem:[%s1 + $0xdc] sm:$0xf]
      %v227 = vld [vmem:[%s1 + $0xe0] sm:$0xf]
      %v228 = vld [vmem:[%s1 + $0xe4] sm:$0xf]
      %v229 = vld [vmem:[%s1 + $0xe8] sm:$0xf]
      %v230 = vld [vmem:[%s1 + $0xec] sm:$0xf]
      %v231 = vld [vmem:[%s1 + $0xf0] sm:$0xf]
      %v232 = vld [vmem:[%s1 + $0xf4] sm:$0xf]
      %v233 = vld [vmem:[%s1 + $0xf8] sm:$0xf]
      %v234 = vld [vmem:[%s1 + $0xfc] sm:$0xf]
      %s235 = scalar_lea.vmem %s1, 256
      %v236 = vld [vmem:[%s235] sm:$0xf]
      %v237 = vld [vmem:[%s235 + $0x4] sm:$0xf]
      %v238 = vld [vmem:[%s235 + $0x8] sm:$0xf]
      %v239 = vld [vmem:[%s235 + $0xc] sm:$0xf]
      %v240 = vld [vmem:[%s235 + $0x10] sm:$0xf]
      %v241 = vld [vmem:[%s235 + $0x14] sm:$0xf]
      %v242 = vld [vmem:[%s235 + $0x18] sm:$0xf]
      %v243 = vld [vmem:[%s235 + $0x1c] sm:$0xf]
      %v244 = vld [vmem:[%s235 + $0x20] sm:$0xf]
      %v245 = vld [vmem:[%s235 + $0x24] sm:$0xf]
      %v246 = vld [vmem:[%s235 + $0x28] sm:$0xf]
      %v247 = vld [vmem:[%s235 + $0x2c] sm:$0xf]
      %v248 = vld [vmem:[%s235 + $0x30] sm:$0xf]
      %v249 = vld [vmem:[%s235 + $0x34] sm:$0xf]
      %v250 = vld [vmem:[%s235 + $0x38] sm:$0xf]
      %v251 = vld [vmem:[%s235 + $0x3c] sm:$0xf]
      %v252 = vld [vmem:[%s235 + $0x40] sm:$0xf]
      %v253 = vld [vmem:[%s235 + $0x44] sm:$0xf]
      %v254 = vld [vmem:[%s235 + $0x48] sm:$0xf]
      %v255 = vld [vmem:[%s235 + $0x4c] sm:$0xf]
      %v256 = vld [vmem:[%s235 + $0x50] sm:$0xf]
      %v257 = vld [vmem:[%s235 + $0x54] sm:$0xf]
      %v258 = vld [vmem:[%s235 + $0x58] sm:$0xf]
      %v259 = vld [vmem:[%s235 + $0x5c] sm:$0xf]
      %v260 = vld [vmem:[%s235 + $0x60] sm:$0xf]
      %v261 = vld [vmem:[%s235 + $0x64] sm:$0xf]
      %v262 = vld [vmem:[%s235 + $0x68] sm:$0xf]
      %v263 = vld [vmem:[%s235 + $0x6c] sm:$0xf]
      %v264 = vld [vmem:[%s235 + $0x70] sm:$0xf]
      %v265 = vld [vmem:[%s235 + $0x74] sm:$0xf]
      %v266 = vld [vmem:[%s235 + $0x78] sm:$0xf]
      %v267 = vld [vmem:[%s235 + $0x7c] sm:$0xf]
      %s268 = scalar_lea.vmem %s1, 384
      %v269 = vld [vmem:[%s268] sm:$0xf]
      %v270 = vld [vmem:[%s268 + $0x4] sm:$0xf]
      %v271 = vld [vmem:[%s268 + $0x8] sm:$0xf]
      %v272 = vld [vmem:[%s268 + $0xc] sm:$0xf]
      %v273 = vld [vmem:[%s268 + $0x10] sm:$0xf]
      %v274 = vld [vmem:[%s268 + $0x14] sm:$0xf]
      %v275 = vld [vmem:[%s268 + $0x18] sm:$0xf]
      %v276 = vld [vmem:[%s268 + $0x1c] sm:$0xf]
      %v277 = vld [vmem:[%s268 + $0x20] sm:$0xf]
      %v278 = vld [vmem:[%s268 + $0x24] sm:$0xf]
      %v279 = vld [vmem:[%s268 + $0x28] sm:$0xf]
      %v280 = vld [vmem:[%s268 + $0x2c] sm:$0xf]
      %v281 = vld [vmem:[%s268 + $0x30] sm:$0xf]
      %v282 = vld [vmem:[%s268 + $0x34] sm:$0xf]
      %v283 = vld [vmem:[%s268 + $0x38] sm:$0xf]
      %v284 = vld [vmem:[%s268 + $0x3c] sm:$0xf]
      %s285 = scalar_lea.vmem %s1, 448
      %v286 = vld [vmem:[%s285] sm:$0xf]
      %v287 = vld [vmem:[%s285 + $0x4] sm:$0xf]
      %v288 = vld [vmem:[%s285 + $0x8] sm:$0xf]
      %v289 = vld [vmem:[%s285 + $0xc] sm:$0xf]
      %v290 = vld [vmem:[%s285 + $0x10] sm:$0xf]
      %v291 = vld [vmem:[%s285 + $0x14] sm:$0xf]
      %v292 = vld [vmem:[%s285 + $0x18] sm:$0xf]
      %v293 = vld [vmem:[%s285 + $0x1c] sm:$0xf]
      %v294 = vld [vmem:[%s285 + $0x20] sm:$0xf]
      %v295 = vld [vmem:[%s285 + $0x24] sm:$0xf]
      %v296 = vld [vmem:[%s285 + $0x28] sm:$0xf]
      %v297 = vld [vmem:[%s285 + $0x2c] sm:$0xf]
      %v298 = vld [vmem:[%s285 + $0x30] sm:$0xf]
      %v299 = vld [vmem:[%s285 + $0x34] sm:$0xf]
      %v300 = vld [vmem:[%s285 + $0x38] sm:$0xf]
      %v301 = vld [vmem:[%s285 + $0x3c] sm:$0xf]
      %s302 = scalar_lea.vmem %s1, 512
      %v303 = vld [vmem:[%s302] sm:$0xf]
      %v304 = vld [vmem:[%s302 + $0x4] sm:$0xf]
      %v305 = vld [vmem:[%s302 + $0x8] sm:$0xf]
      %v306 = vld [vmem:[%s302 + $0xc] sm:$0xf]
      %v307 = vld [vmem:[%s302 + $0x10] sm:$0xf]
      %v308 = vld [vmem:[%s302 + $0x14] sm:$0xf]
      %v309 = vld [vmem:[%s302 + $0x18] sm:$0xf]
      %v310 = vld [vmem:[%s302 + $0x1c] sm:$0xf]
      %v311 = vld [vmem:[%s302 + $0x20] sm:$0xf]
      %v312 = vld [vmem:[%s302 + $0x24] sm:$0xf]
      %v313 = vld [vmem:[%s302 + $0x28] sm:$0xf]
      %v314 = vld [vmem:[%s302 + $0x2c] sm:$0xf]
      %v315 = vld [vmem:[%s302 + $0x30] sm:$0xf]
      %v316 = vld [vmem:[%s302 + $0x34] sm:$0xf]
      %v317 = vld [vmem:[%s302 + $0x38] sm:$0xf]
      %v318 = vld [vmem:[%s302 + $0x3c] sm:$0xf]
      %v319 = vld [vmem:[%s164] sm:$0x55]
      %v320 = vld [vmem:[%s164 + $0x8] sm:$0x55]
      %v324 = vunpack.c.l.s4 1966171168
      %v325 = vunpack.c.0.s8 %v324
      %v326 = vlaneseq
      %v327 = vshrl.u32 %v326, 7
      %v328 = vsub.s32 %v325, %v327
      %v329 = vrot.slane %v319, %v328
      %v331 = vunpack.c.l.s4 1966171168
      %v332 = vunpack.c.0.s8 %v331
      %v333 = vlaneseq
      %v334 = vshrl.u32 %v333, 7
      %v335 = vsub.s32 %v332, %v334
      %v336 = vrot.slane %v320, %v335
      %s337 = scalar_lea.vmem %s164, 8
      %v338 = vld [vmem:[%s337] sm:$0x5]
      %v339 = vld [vmem:[%s337 + $0x8] sm:$0x5]
      %v343 = vunpack.c.l.s4 1966171168
      %v344 = vunpack.c.0.s8 %v343
      %v345 = vlaneseq
      %v346 = vshrl.u32 %v345, 7
      %v347 = vsub.s32 %v344, %v346
      %v348 = vrot.slane %v338, %v347
      %v350 = vunpack.c.l.s4 1966171168
      %v351 = vunpack.c.0.s8 %v350
      %v352 = vlaneseq
      %v353 = vshrl.u32 %v352, 7
      %v354 = vsub.s32 %v351, %v353
      %v355 = vrot.slane %v339, %v354
      %v356 = vcombine.low %v348, %v355
      %v358 = vunpack.c.l.s4 1966171168
      %v359 = vunpack.c.0.s8 %v358
      %v360 = vlaneseq
      %v361 = vshrl.u32 %v360, 7
      %v362 = vsub.s32 %v359, %v361
      %v363 = vrot.slane %v356, %v362
      %v364 = vcombine.high %v363, %v363
      %v366 = vunpack.c.l.s4 1966171168
      %v367 = vunpack.c.0.s8 %v366
      %v368 = vlaneseq
      %v369 = vshrl.u32 %v368, 7
      %v370 = vsub.s32 %v367, %v369
      %v371 = vrot.slane %v363, %v370
      %v373 = vunpack.c.l.s4 1966171168
      %v374 = vunpack.c.0.s8 %v373
      %v375 = vlaneseq
      %v376 = vshrl.u32 %v375, 7
      %v377 = vsub.s32 %v374, %v376
      %v378 = vrot.slane %v364, %v377
      %v413 = vunpack.c.l.b16 %v236
      %v414 = vunpack.c.l.b16 %v237
      %v415 = vunpack.c.l.b16 %v238
      %v416 = vunpack.c.l.b16 %v239
      %v417 = vunpack.c.l.b16 %v240
      %v418 = vunpack.c.l.b16 %v241
      %v419 = vunpack.c.l.b16 %v242
      %v420 = vunpack.c.l.b16 %v243
      %v421 = vunpack.c.l.b16 %v244
      %v422 = vunpack.c.l.b16 %v245
      %v423 = vunpack.c.l.b16 %v246
      %v424 = vunpack.c.l.b16 %v247
      %v425 = vunpack.c.l.b16 %v248
      %v426 = vunpack.c.l.b16 %v249
      %v427 = vunpack.c.l.b16 %v250
      %v428 = vunpack.c.l.b16 %v251
      %v429 = vunpack.c.l.b16 %v252
      %v430 = vunpack.c.l.b16 %v253
      %v431 = vunpack.c.l.b16 %v254
      %v432 = vunpack.c.l.b16 %v255
      %v433 = vunpack.c.l.b16 %v256
      %v434 = vunpack.c.l.b16 %v257
      %v435 = vunpack.c.l.b16 %v258
      %v436 = vunpack.c.l.b16 %v259
      %v437 = vunpack.c.l.b16 %v260
      %v438 = vunpack.c.l.b16 %v261
      %v439 = vunpack.c.l.b16 %v262
      %v440 = vunpack.c.l.b16 %v263
      %v441 = vunpack.c.l.b16 %v264
      %v442 = vunpack.c.l.b16 %v265
      %v443 = vunpack.c.l.b16 %v266
      %v444 = vunpack.c.l.b16 %v267
      %v445 = vpack.c.b16 %v414, %v413
      %v446 = vpack.c.b16 %v416, %v415
      %v447 = vpack.c.b16 %v418, %v417
      %v448 = vpack.c.b16 %v420, %v419
      %v449 = vpack.c.b16 %v422, %v421
      %v450 = vpack.c.b16 %v424, %v423
      %v451 = vpack.c.b16 %v426, %v425
      %v452 = vpack.c.b16 %v428, %v427
      %v453 = vpack.c.b16 %v430, %v429
      %v454 = vpack.c.b16 %v432, %v431
      %v455 = vpack.c.b16 %v434, %v433
      %v456 = vpack.c.b16 %v436, %v435
      %v457 = vpack.c.b16 %v438, %v437
      %v458 = vpack.c.b16 %v440, %v439
      %v459 = vpack.c.b16 %v442, %v441
      %v460 = vpack.c.b16 %v444, %v443
      %477 = vmatprep.subr.bf16.mxu0 0
      %478 = vmatpush1.bf16.msra.mxu0 %v452
      %479 = vmatprep.subr.bf16.mxu0 0
      %480 = vmatpush1.bf16.msra.mxu0 %v451
      %481 = vmatprep.subr.bf16.mxu0 0
      %482 = vmatpush1.bf16.msra.mxu0 %v450
      %483 = vmatprep.subr.bf16.mxu0 0
      %484 = vmatpush1.bf16.msra.mxu0 %v449
      %485 = vmatprep.subr.bf16.mxu0 0
      %486 = vmatpush1.bf16.msra.mxu0 %v448
      %487 = vmatprep.subr.bf16.mxu0 0
      %488 = vmatpush1.bf16.msra.mxu0 %v447
      %489 = vmatprep.subr.bf16.mxu0 0
      %490 = vmatpush1.bf16.msra.mxu0 %v446
      %491 = vmatprep.subr.bf16.mxu0 0
      %492 = vmatpush1.bf16.msra.mxu0 %v445
      %493 = vmatprep.subr.bf16.mxu0 0
      %494 = vmatpush2.bf16.msra.mxu0 %v460
      %495 = vmatprep.subr.bf16.mxu0 0
      %496 = vmatpush2.bf16.msra.mxu0 %v459
      %497 = vmatprep.subr.bf16.mxu0 0
      %498 = vmatpush2.bf16.msra.mxu0 %v458
      %499 = vmatprep.subr.bf16.mxu0 0
      %500 = vmatpush2.bf16.msra.mxu0 %v457
      %501 = vmatprep.subr.bf16.mxu0 0
      %502 = vmatpush2.bf16.msra.mxu0 %v456
      %503 = vmatprep.subr.bf16.mxu0 0
      %504 = vmatpush2.bf16.msra.mxu0 %v455
      %505 = vmatprep.subr.bf16.mxu0 0
      %506 = vmatpush2.bf16.msra.mxu0 %v454
      %507 = vmatprep.subr.bf16.mxu0 0
      %508 = vmatpush2.bf16.msra.mxu0 %v453
      %509 = vmatprep.mubr.bf16.mxu0 %v378
      %510 = vmatmul.mubr.bf16.gmra.mxu0 %v371
      %v511 = vpop.f32.mrf.mxu0
      %v512 = vadd.f32 0.0, %v511
      %v513 = vpop.f32.mrf.mxu0
      %v514 = vpop.f32.mrf.mxu0
      %v515 = vpop.f32.mrf.mxu0
      %516 = vdwg.mxu0
      %v517 = vcombine.low %v329, %v336
      %v519 = vunpack.c.l.s4 1966171168
      %v520 = vunpack.c.0.s8 %v519
      %v521 = vlaneseq
      %v522 = vshrl.u32 %v521, 7
      %v523 = vsub.s32 %v520, %v522
      %v524 = vrot.slane %v517, %v523
      %v525 = vcombine.high %v524, %v524
      %v527 = vunpack.c.l.s4 1966171168
      %v528 = vunpack.c.0.s8 %v527
      %v529 = vlaneseq
      %v530 = vshrl.u32 %v529, 7
      %v531 = vsub.s32 %v528, %v530
      %v532 = vrot.slane %v524, %v531
      %v534 = vunpack.c.l.s4 1966171168
      %v535 = vunpack.c.0.s8 %v534
      %v536 = vlaneseq
      %v537 = vshrl.u32 %v536, 7
      %v538 = vsub.s32 %v535, %v537
      %v539 = vrot.slane %v525, %v538
      %v540 = vcombine.high %v532, %v532
      %v541 = vcombine.high %v539, %v539
      %v610 = vunpack.c.l.b16 %v171
      %v611 = vunpack.c.l.b16 %v172
      %v612 = vunpack.c.l.b16 %v173
      %v613 = vunpack.c.l.b16 %v174
      %v614 = vunpack.c.l.b16 %v175
      %v615 = vunpack.c.l.b16 %v176
      %v616 = vunpack.c.l.b16 %v177
      %v617 = vunpack.c.l.b16 %v178
      %v618 = vunpack.c.l.b16 %v179
      %v619 = vunpack.c.l.b16 %v180
      %v620 = vunpack.c.l.b16 %v181
      %v621 = vunpack.c.l.b16 %v182
      %v622 = vunpack.c.l.b16 %v183
      %v623 = vunpack.c.l.b16 %v184
      %v624 = vunpack.c.l.b16 %v185
      %v625 = vunpack.c.l.b16 %v186
      %v626 = vunpack.c.l.b16 %v187
      %v627 = vunpack.c.l.b16 %v188
      %v628 = vunpack.c.l.b16 %v189
      %v629 = vunpack.c.l.b16 %v190
      %v630 = vunpack.c.l.b16 %v191
      %v631 = vunpack.c.l.b16 %v192
      %v632 = vunpack.c.l.b16 %v193
      %v633 = vunpack.c.l.b16 %v194
      %v634 = vunpack.c.l.b16 %v195
      %v635 = vunpack.c.l.b16 %v196
      %v636 = vunpack.c.l.b16 %v197
      %v637 = vunpack.c.l.b16 %v198
      %v638 = vunpack.c.l.b16 %v199
      %v639 = vunpack.c.l.b16 %v200
      %v640 = vunpack.c.l.b16 %v201
      %v641 = vunpack.c.l.b16 %v202
      %v642 = vunpack.c.l.b16 %v203
      %v643 = vunpack.c.l.b16 %v204
      %v644 = vunpack.c.l.b16 %v205
      %v645 = vunpack.c.l.b16 %v206
      %v646 = vunpack.c.l.b16 %v207
      %v647 = vunpack.c.l.b16 %v208
      %v648 = vunpack.c.l.b16 %v209
      %v649 = vunpack.c.l.b16 %v210
      %v650 = vunpack.c.l.b16 %v211
      %v651 = vunpack.c.l.b16 %v212
      %v652 = vunpack.c.l.b16 %v213
      %v653 = vunpack.c.l.b16 %v214
      %v654 = vunpack.c.l.b16 %v215
      %v655 = vunpack.c.l.b16 %v216
      %v656 = vunpack.c.l.b16 %v217
      %v657 = vunpack.c.l.b16 %v218
      %v658 = vunpack.c.l.b16 %v219
      %v659 = vunpack.c.l.b16 %v220
      %v660 = vunpack.c.l.b16 %v221
      %v661 = vunpack.c.l.b16 %v222
      %v662 = vunpack.c.l.b16 %v223
      %v663 = vunpack.c.l.b16 %v224
      %v664 = vunpack.c.l.b16 %v225
      %v665 = vunpack.c.l.b16 %v226
      %v666 = vunpack.c.l.b16 %v227
      %v667 = vunpack.c.l.b16 %v228
      %v668 = vunpack.c.l.b16 %v229
      %v669 = vunpack.c.l.b16 %v230
      %v670 = vunpack.c.l.b16 %v231
      %v671 = vunpack.c.l.b16 %v232
      %v672 = vunpack.c.l.b16 %v233
      %v673 = vunpack.c.l.b16 %v234
      %v674 = vpack.c.b16 %v611, %v610
      %v675 = vpack.c.b16 %v613, %v612
      %v676 = vpack.c.b16 %v615, %v614
      %v677 = vpack.c.b16 %v617, %v616
      %v678 = vpack.c.b16 %v619, %v618
      %v679 = vpack.c.b16 %v621, %v620
      %v680 = vpack.c.b16 %v623, %v622
      %v681 = vpack.c.b16 %v625, %v624
      %v682 = vpack.c.b16 %v627, %v626
      %v683 = vpack.c.b16 %v629, %v628
      %v684 = vpack.c.b16 %v631, %v630
      %v685 = vpack.c.b16 %v633, %v632
      %v686 = vpack.c.b16 %v635, %v634
      %v687 = vpack.c.b16 %v637, %v636
      %v688 = vpack.c.b16 %v639, %v638
      %v689 = vpack.c.b16 %v641, %v640
      %v690 = vpack.c.b16 %v643, %v642
      %v691 = vpack.c.b16 %v645, %v644
      %v692 = vpack.c.b16 %v647, %v646
      %v693 = vpack.c.b16 %v649, %v648
      %v694 = vpack.c.b16 %v651, %v650
      %v695 = vpack.c.b16 %v653, %v652
      %v696 = vpack.c.b16 %v655, %v654
      %v697 = vpack.c.b16 %v657, %v656
      %v698 = vpack.c.b16 %v659, %v658
      %v699 = vpack.c.b16 %v661, %v660
      %v700 = vpack.c.b16 %v663, %v662
      %v701 = vpack.c.b16 %v665, %v664
      %v702 = vpack.c.b16 %v667, %v666
      %v703 = vpack.c.b16 %v669, %v668
      %v704 = vpack.c.b16 %v671, %v670
      %v705 = vpack.c.b16 %v673, %v672
      %738 = vmatprep.subr.bf16.mxu0 0
      %739 = vmatpush1.bf16.msra.mxu0 %v681
      %740 = vmatprep.subr.bf16.mxu0 0
      %741 = vmatpush1.bf16.msra.mxu0 %v680
      %742 = vmatprep.subr.bf16.mxu0 0
      %743 = vmatpush1.bf16.msra.mxu0 %v679
      %744 = vmatprep.subr.bf16.mxu0 0
      %745 = vmatpush1.bf16.msra.mxu0 %v678
      %746 = vmatprep.subr.bf16.mxu0 0
      %747 = vmatpush1.bf16.msra.mxu0 %v677
      %748 = vmatprep.subr.bf16.mxu0 0
      %749 = vmatpush1.bf16.msra.mxu0 %v676
      %750 = vmatprep.subr.bf16.mxu0 0
      %751 = vmatpush1.bf16.msra.mxu0 %v675
      %752 = vmatprep.subr.bf16.mxu0 0
      %753 = vmatpush1.bf16.msra.mxu0 %v674
      %754 = vmatprep.subr.bf16.mxu0 0
      %755 = vmatpush2.bf16.msra.mxu0 %v689
      %756 = vmatprep.subr.bf16.mxu0 0
      %757 = vmatpush2.bf16.msra.mxu0 %v688
      %758 = vmatprep.subr.bf16.mxu0 0
      %759 = vmatpush2.bf16.msra.mxu0 %v687
      %760 = vmatprep.subr.bf16.mxu0 0
      %761 = vmatpush2.bf16.msra.mxu0 %v686
      %762 = vmatprep.subr.bf16.mxu0 0
      %763 = vmatpush2.bf16.msra.mxu0 %v685
      %764 = vmatprep.subr.bf16.mxu0 0
      %765 = vmatpush2.bf16.msra.mxu0 %v684
      %766 = vmatprep.subr.bf16.mxu0 0
      %767 = vmatpush2.bf16.msra.mxu0 %v683
      %768 = vmatprep.subr.bf16.mxu0 0
      %769 = vmatpush2.bf16.msra.mxu0 %v682
      %770 = vmatprep.mubr.bf16.mxu0 %v539
      %771 = vmatmul.mubr.bf16.gmra.mxu0 %v532
      %v772 = vpop.f32.mrf.mxu0
      %v773 = vadd.f32 %v512, %v772
      %v774 = vpop.f32.mrf.mxu0
      %v775 = vpop.f32.mrf.mxu0
      %v776 = vpop.f32.mrf.mxu0
      %777 = vdwg.mxu0
      %778 = vmatprep.subr.bf16.mxu0 0
      %779 = vmatpush1.bf16.msra.mxu0 %v697
      %780 = vmatprep.subr.bf16.mxu0 0
      %781 = vmatpush1.bf16.msra.mxu0 %v696
      %782 = vmatprep.subr.bf16.mxu0 0
      %783 = vmatpush1.bf16.msra.mxu0 %v695
      %784 = vmatprep.subr.bf16.mxu0 0
      %785 = vmatpush1.bf16.msra.mxu0 %v694
      %786 = vmatprep.subr.bf16.mxu0 0
      %787 = vmatpush1.bf16.msra.mxu0 %v693
      %788 = vmatprep.subr.bf16.mxu0 0
      %789 = vmatpush1.bf16.msra.mxu0 %v692
      %790 = vmatprep.subr.bf16.mxu0 0
      %791 = vmatpush1.bf16.msra.mxu0 %v691
      %792 = vmatprep.subr.bf16.mxu0 0
      %793 = vmatpush1.bf16.msra.mxu0 %v690
      %794 = vmatprep.subr.bf16.mxu0 0
      %795 = vmatpush2.bf16.msra.mxu0 %v705
      %796 = vmatprep.subr.bf16.mxu0 0
      %797 = vmatpush2.bf16.msra.mxu0 %v704
      %798 = vmatprep.subr.bf16.mxu0 0
      %799 = vmatpush2.bf16.msra.mxu0 %v703
      %800 = vmatprep.subr.bf16.mxu0 0
      %801 = vmatpush2.bf16.msra.mxu0 %v702
      %802 = vmatprep.subr.bf16.mxu0 0
      %803 = vmatpush2.bf16.msra.mxu0 %v701
      %804 = vmatprep.subr.bf16.mxu0 0
      %805 = vmatpush2.bf16.msra.mxu0 %v700
      %806 = vmatprep.subr.bf16.mxu0 0
      %807 = vmatpush2.bf16.msra.mxu0 %v699
      %808 = vmatprep.subr.bf16.mxu0 0
      %809 = vmatpush2.bf16.msra.mxu0 %v698
      %810 = vmatprep.mubr.bf16.mxu0 %v541
      %811 = vmatmul.mubr.bf16.gmra.mxu0 %v540
      %v812 = vpop.f32.mrf.mxu0
      %v813 = vadd.f32 %v773, %v812
      %v814 = vpop.f32.mrf.mxu0
      %v815 = vpop.f32.mrf.mxu0
      %v816 = vpop.f32.mrf.mxu0
      %817 = vdwg.mxu0
      %v818 = vld [vmem:[%s164] sm:$0x3]
      %v819 = vld [vmem:[%s164 + $0x8] sm:$0x3]
      %v823 = vunpack.c.l.s4 1966171168
      %v824 = vunpack.c.0.s8 %v823
      %v825 = vlaneseq
      %v826 = vshrl.u32 %v825, 7
      %v827 = vsub.s32 %v824, %v826
      %v828 = vrot.slane %v818, %v827
      %v829 = vcombine.high %v828, %v828
      %v831 = vunpack.c.l.s4 1966171168
      %v832 = vunpack.c.0.s8 %v831
      %v833 = vlaneseq
      %v834 = vshrl.u32 %v833, 7
      %v835 = vsub.s32 %v832, %v834
      %v836 = vrot.slane %v819, %v835
      %v837 = vcombine.high %v836, %v836
      %vm838 = vsmask.f32 256
      %vm839 = vsmask.f32 1284
      %vm840 = vmor %vm838, %vm839
      %vm841 = vsmask.f32 2312
      %vm842 = vmor %vm840, %vm841
      %vm843 = vsmask.f32 3340
      %vm844 = vmor %vm842, %vm843
      %vm845 = vsmask.f32 4368
      %vm846 = vmor %vm844, %vm845
      %vm847 = vsmask.f32 5396
      %vm848 = vmor %vm846, %vm847
      %vm849 = vsmask.f32 6424
      %vm850 = vmor %vm848, %vm849
      %vm851 = vsmask.f32 7452
      %vm852 = vmor %vm850, %vm851
      %v854 = vshrl.u32 %v828, 16
      %v856 = vrot.slane %v854, 7
      %v857 = vrot.slane %v856, 1
      %v859 = vshll.u32 %v829, 16
      %v861 = vsel %vm852, %v857, %v859
      %v863 = vshrl.u32 %v836, 16
      %v865 = vrot.slane %v863, 7
      %v866 = vrot.slane %v865, 1
      %v868 = vshll.u32 %v837, 16
      %v870 = vsel %vm852, %v866, %v868
      %v871 = vcombine.low %v861, %v870
      %v873 = vunpack.c.l.s4 1966171168
      %v874 = vunpack.c.0.s8 %v873
      %v875 = vlaneseq
      %v876 = vshrl.u32 %v875, 7
      %v877 = vsub.s32 %v874, %v876
      %v878 = vrot.slane %v871, %v877
      %v880 = vunpack.c.l.s4 1966171168
      %v881 = vunpack.c.0.s8 %v880
      %v882 = vlaneseq
      %v883 = vshrl.u32 %v882, 7
      %v884 = vsub.s32 %v881, %v883
      %v885 = vrot.slane %v878, %v884
      %v903 = vunpack.c.l.b16 %v269
      %v904 = vunpack.c.l.b16 %v270
      %v905 = vunpack.c.l.b16 %v271
      %v906 = vunpack.c.l.b16 %v272
      %v907 = vunpack.c.l.b16 %v273
      %v908 = vunpack.c.l.b16 %v274
      %v909 = vunpack.c.l.b16 %v275
      %v910 = vunpack.c.l.b16 %v276
      %v911 = vunpack.c.l.b16 %v277
      %v912 = vunpack.c.l.b16 %v278
      %v913 = vunpack.c.l.b16 %v279
      %v914 = vunpack.c.l.b16 %v280
      %v915 = vunpack.c.l.b16 %v281
      %v916 = vunpack.c.l.b16 %v282
      %v917 = vunpack.c.l.b16 %v283
      %v918 = vunpack.c.l.b16 %v284
      %v919 = vpack.c.b16 %v904, %v903
      %v920 = vpack.c.b16 %v906, %v905
      %v921 = vpack.c.b16 %v908, %v907
      %v922 = vpack.c.b16 %v910, %v909
      %v923 = vpack.c.b16 %v912, %v911
      %v924 = vpack.c.b16 %v914, %v913
      %v925 = vpack.c.b16 %v916, %v915
      %v926 = vpack.c.b16 %v918, %v917
      %935 = vmatprep.subr.bf16.mxu0 0
      %936 = vmatpush1.bf16.msra.mxu0 %v926
      %937 = vmatprep.subr.bf16.mxu0 0
      %938 = vmatpush1.bf16.msra.mxu0 %v925
      %939 = vmatprep.subr.bf16.mxu0 0
      %940 = vmatpush1.bf16.msra.mxu0 %v924
      %941 = vmatprep.subr.bf16.mxu0 0
      %942 = vmatpush1.bf16.msra.mxu0 %v923
      %943 = vmatprep.subr.bf16.mxu0 0
      %944 = vmatpush1.bf16.msra.mxu0 %v922
      %945 = vmatprep.subr.bf16.mxu0 0
      %946 = vmatpush1.bf16.msra.mxu0 %v921
      %947 = vmatprep.subr.bf16.mxu0 0
      %948 = vmatpush1.bf16.msra.mxu0 %v920
      %949 = vmatprep.subr.bf16.mxu0 0
      %950 = vmatpush1.bf16.msra.mxu0 %v919
      %951 = vmatprep.subr.bf16.mxu0 0
      %952 = vmatpush2.bf16.msra.mxu0 0
      %953 = vmatprep.subr.bf16.mxu0 0
      %954 = vmatpush2.bf16.msra.mxu0 0
      %955 = vmatprep.subr.bf16.mxu0 0
      %956 = vmatpush2.bf16.msra.mxu0 0
      %957 = vmatprep.subr.bf16.mxu0 0
      %958 = vmatpush2.bf16.msra.mxu0 0
      %959 = vmatprep.subr.bf16.mxu0 0
      %960 = vmatpush2.bf16.msra.mxu0 0
      %961 = vmatprep.subr.bf16.mxu0 0
      %962 = vmatpush2.bf16.msra.mxu0 0
      %963 = vmatprep.subr.bf16.mxu0 0
      %964 = vmatpush2.bf16.msra.mxu0 0
      %965 = vmatprep.subr.bf16.mxu0 0
      %966 = vmatpush2.bf16.msra.mxu0 0
      %967 = vmatprep.mubr.bf16.mxu0 0
      %968 = vmatmul.mubr.bf16.gmra.mxu0 %v885
      %v969 = vpop.f32.mrf.mxu0
      %v970 = vadd.f32 0.0, %v969
      %v971 = vpop.f32.mrf.mxu0
      %v972 = vpop.f32.mrf.mxu0
      %v973 = vpop.f32.mrf.mxu0
      %974 = vdwg.mxu0
      %v975 = vadd.f32 %v813, %v970
      %v976 = vld [vmem:[%s164 + $0x4] sm:$0x3]
      %v977 = vld [vmem:[%s164 + $0xc] sm:$0x3]
      %v981 = vunpack.c.l.s4 1966171168
      %v982 = vunpack.c.0.s8 %v981
      %v983 = vlaneseq
      %v984 = vshrl.u32 %v983, 7
      %v985 = vsub.s32 %v982, %v984
      %v986 = vrot.slane %v976, %v985
      %v987 = vcombine.high %v986, %v986
      %v989 = vunpack.c.l.s4 1966171168
      %v990 = vunpack.c.0.s8 %v989
      %v991 = vlaneseq
      %v992 = vshrl.u32 %v991, 7
      %v993 = vsub.s32 %v990, %v992
      %v994 = vrot.slane %v977, %v993
      %v995 = vcombine.high %v994, %v994
      %v997 = vshrl.u32 %v986, 16
      %v999 = vrot.slane %v997, 7
      %v1000 = vrot.slane %v999, 1
      %v1002 = vshll.u32 %v987, 16
      %v1004 = vsel %vm852, %v1000, %v1002
      %v1006 = vshrl.u32 %v994, 16
      %v1008 = vrot.slane %v1006, 7
      %v1009 = vrot.slane %v1008, 1
      %v1011 = vshll.u32 %v995, 16
      %v1013 = vsel %vm852, %v1009, %v1011
      %v1014 = vcombine.low %v1004, %v1013
      %v1016 = vunpack.c.l.s4 1966171168
      %v1017 = vunpack.c.0.s8 %v1016
      %v1018 = vlaneseq
      %v1019 = vshrl.u32 %v1018, 7
      %v1020 = vsub.s32 %v1017, %v1019
      %v1021 = vrot.slane %v1014, %v1020
      %v1023 = vunpack.c.l.s4 1966171168
      %v1024 = vunpack.c.0.s8 %v1023
      %v1025 = vlaneseq
      %v1026 = vshrl.u32 %v1025, 7
      %v1027 = vsub.s32 %v1024, %v1026
      %v1028 = vrot.slane %v1021, %v1027
      %v1046 = vunpack.c.l.b16 %v286
      %v1047 = vunpack.c.l.b16 %v287
      %v1048 = vunpack.c.l.b16 %v288
      %v1049 = vunpack.c.l.b16 %v289
      %v1050 = vunpack.c.l.b16 %v290
      %v1051 = vunpack.c.l.b16 %v291
      %v1052 = vunpack.c.l.b16 %v292
      %v1053 = vunpack.c.l.b16 %v293
      %v1054 = vunpack.c.l.b16 %v294
      %v1055 = vunpack.c.l.b16 %v295
      %v1056 = vunpack.c.l.b16 %v296
      %v1057 = vunpack.c.l.b16 %v297
      %v1058 = vunpack.c.l.b16 %v298
      %v1059 = vunpack.c.l.b16 %v299
      %v1060 = vunpack.c.l.b16 %v300
      %v1061 = vunpack.c.l.b16 %v301
      %v1062 = vpack.c.b16 %v1047, %v1046
      %v1063 = vpack.c.b16 %v1049, %v1048
      %v1064 = vpack.c.b16 %v1051, %v1050
      %v1065 = vpack.c.b16 %v1053, %v1052
      %v1066 = vpack.c.b16 %v1055, %v1054
      %v1067 = vpack.c.b16 %v1057, %v1056
      %v1068 = vpack.c.b16 %v1059, %v1058
      %v1069 = vpack.c.b16 %v1061, %v1060
      %1078 = vmatprep.subr.bf16.mxu0 0
      %1079 = vmatpush1.bf16.msra.mxu0 %v1069
      %1080 = vmatprep.subr.bf16.mxu0 0
      %1081 = vmatpush1.bf16.msra.mxu0 %v1068
      %1082 = vmatprep.subr.bf16.mxu0 0
      %1083 = vmatpush1.bf16.msra.mxu0 %v1067
      %1084 = vmatprep.subr.bf16.mxu0 0
      %1085 = vmatpush1.bf16.msra.mxu0 %v1066
      %1086 = vmatprep.subr.bf16.mxu0 0
      %1087 = vmatpush1.bf16.msra.mxu0 %v1065
      %1088 = vmatprep.subr.bf16.mxu0 0
      %1089 = vmatpush1.bf16.msra.mxu0 %v1064
      %1090 = vmatprep.subr.bf16.mxu0 0
      %1091 = vmatpush1.bf16.msra.mxu0 %v1063
      %1092 = vmatprep.subr.bf16.mxu0 0
      %1093 = vmatpush1.bf16.msra.mxu0 %v1062
      %1094 = vmatprep.subr.bf16.mxu0 0
      %1095 = vmatpush2.bf16.msra.mxu0 0
      %1096 = vmatprep.subr.bf16.mxu0 0
      %1097 = vmatpush2.bf16.msra.mxu0 0
      %1098 = vmatprep.subr.bf16.mxu0 0
      %1099 = vmatpush2.bf16.msra.mxu0 0
      %1100 = vmatprep.subr.bf16.mxu0 0
      %1101 = vmatpush2.bf16.msra.mxu0 0
      %1102 = vmatprep.subr.bf16.mxu0 0
      %1103 = vmatpush2.bf16.msra.mxu0 0
      %1104 = vmatprep.subr.bf16.mxu0 0
      %1105 = vmatpush2.bf16.msra.mxu0 0
      %1106 = vmatprep.subr.bf16.mxu0 0
      %1107 = vmatpush2.bf16.msra.mxu0 0
      %1108 = vmatprep.subr.bf16.mxu0 0
      %1109 = vmatpush2.bf16.msra.mxu0 0
      %1110 = vmatprep.mubr.bf16.mxu0 0
      %1111 = vmatmul.mubr.bf16.gmra.mxu0 %v1028
      %v1112 = vpop.f32.mrf.mxu0
      %v1113 = vadd.f32 0.0, %v1112
      %v1114 = vpop.f32.mrf.mxu0
      %v1115 = vpop.f32.mrf.mxu0
      %v1116 = vpop.f32.mrf.mxu0
      %1117 = vdwg.mxu0
      %v1118 = vadd.f32 %v975, %v1113
      %v1119 = vld [vmem:[%s337] sm:$0x3]
      %v1120 = vld [vmem:[%s337 + $0x8] sm:$0x3]
      %v1124 = vunpack.c.l.s4 1966171168
      %v1125 = vunpack.c.0.s8 %v1124
      %v1126 = vlaneseq
      %v1127 = vshrl.u32 %v1126, 7
      %v1128 = vsub.s32 %v1125, %v1127
      %v1129 = vrot.slane %v1119, %v1128
      %v1130 = vcombine.high %v1129, %v1129
      %v1132 = vunpack.c.l.s4 1966171168
      %v1133 = vunpack.c.0.s8 %v1132
      %v1134 = vlaneseq
      %v1135 = vshrl.u32 %v1134, 7
      %v1136 = vsub.s32 %v1133, %v1135
      %v1137 = vrot.slane %v1120, %v1136
      %v1138 = vcombine.high %v1137, %v1137
      %v1140 = vshrl.u32 %v1129, 16
      %v1142 = vrot.slane %v1140, 7
      %v1143 = vrot.slane %v1142, 1
      %v1145 = vshll.u32 %v1130, 16
      %v1147 = vsel %vm852, %v1143, %v1145
      %v1149 = vshrl.u32 %v1137, 16
      %v1151 = vrot.slane %v1149, 7
      %v1152 = vrot.slane %v1151, 1
      %v1154 = vshll.u32 %v1138, 16
      %v1156 = vsel %vm852, %v1152, %v1154
      %v1157 = vcombine.low %v1147, %v1156
      %v1159 = vunpack.c.l.s4 1966171168
      %v1160 = vunpack.c.0.s8 %v1159
      %v1161 = vlaneseq
      %v1162 = vshrl.u32 %v1161, 7
      %v1163 = vsub.s32 %v1160, %v1162
      %v1164 = vrot.slane %v1157, %v1163
      %v1166 = vunpack.c.l.s4 1966171168
      %v1167 = vunpack.c.0.s8 %v1166
      %v1168 = vlaneseq
      %v1169 = vshrl.u32 %v1168, 7
      %v1170 = vsub.s32 %v1167, %v1169
      %v1171 = vrot.slane %v1164, %v1170
      %v1189 = vunpack.c.l.b16 %v303
      %v1190 = vunpack.c.l.b16 %v304
      %v1191 = vunpack.c.l.b16 %v305
      %v1192 = vunpack.c.l.b16 %v306
      %v1193 = vunpack.c.l.b16 %v307
      %v1194 = vunpack.c.l.b16 %v308
      %v1195 = vunpack.c.l.b16 %v309
      %v1196 = vunpack.c.l.b16 %v310
      %v1197 = vunpack.c.l.b16 %v311
      %v1198 = vunpack.c.l.b16 %v312
      %v1199 = vunpack.c.l.b16 %v313
      %v1200 = vunpack.c.l.b16 %v314
      %v1201 = vunpack.c.l.b16 %v315
      %v1202 = vunpack.c.l.b16 %v316
      %v1203 = vunpack.c.l.b16 %v317
      %v1204 = vunpack.c.l.b16 %v318
      %v1205 = vpack.c.b16 %v1190, %v1189
      %v1206 = vpack.c.b16 %v1192, %v1191
      %v1207 = vpack.c.b16 %v1194, %v1193
      %v1208 = vpack.c.b16 %v1196, %v1195
      %v1209 = vpack.c.b16 %v1198, %v1197
      %v1210 = vpack.c.b16 %v1200, %v1199
      %v1211 = vpack.c.b16 %v1202, %v1201
      %v1212 = vpack.c.b16 %v1204, %v1203
      %1221 = vmatprep.subr.bf16.mxu0 0
      %1222 = vmatpush1.bf16.msra.mxu0 %v1212
      %1223 = vmatprep.subr.bf16.mxu0 0
      %1224 = vmatpush1.bf16.msra.mxu0 %v1211
      %1225 = vmatprep.subr.bf16.mxu0 0
      %1226 = vmatpush1.bf16.msra.mxu0 %v1210
      %1227 = vmatprep.subr.bf16.mxu0 0
      %1228 = vmatpush1.bf16.msra.mxu0 %v1209
      %1229 = vmatprep.subr.bf16.mxu0 0
      %1230 = vmatpush1.bf16.msra.mxu0 %v1208
      %1231 = vmatprep.subr.bf16.mxu0 0
      %1232 = vmatpush1.bf16.msra.mxu0 %v1207
      %1233 = vmatprep.subr.bf16.mxu0 0
      %1234 = vmatpush1.bf16.msra.mxu0 %v1206
      %1235 = vmatprep.subr.bf16.mxu0 0
      %1236 = vmatpush1.bf16.msra.mxu0 %v1205
      %1237 = vmatprep.subr.bf16.mxu0 0
      %1238 = vmatpush2.bf16.msra.mxu0 0
      %1239 = vmatprep.subr.bf16.mxu0 0
      %1240 = vmatpush2.bf16.msra.mxu0 0
      %1241 = vmatprep.subr.bf16.mxu0 0
      %1242 = vmatpush2.bf16.msra.mxu0 0
      %1243 = vmatprep.subr.bf16.mxu0 0
      %1244 = vmatpush2.bf16.msra.mxu0 0
      %1245 = vmatprep.subr.bf16.mxu0 0
      %1246 = vmatpush2.bf16.msra.mxu0 0
      %1247 = vmatprep.subr.bf16.mxu0 0
      %1248 = vmatpush2.bf16.msra.mxu0 0
      %1249 = vmatprep.subr.bf16.mxu0 0
      %1250 = vmatpush2.bf16.msra.mxu0 0
      %1251 = vmatprep.subr.bf16.mxu0 0
      %1252 = vmatpush2.bf16.msra.mxu0 0
      %1253 = vmatprep.mubr.bf16.mxu0 0
      %1254 = vmatmul.mubr.bf16.gmra.mxu0 %v1171
      %v1255 = vpop.f32.mrf.mxu0
      %v1256 = vadd.f32 0.0, %v1255
      %v1257 = vpop.f32.mrf.mxu0
      %v1258 = vpop.f32.mrf.mxu0
      %v1259 = vpop.f32.mrf.mxu0
      %1260 = vdwg.mxu0
      %v1261 = vadd.f32 %v1118, %v1256
      %v1263 = vlaneseq
      %v1264 = vshrl.u32 %v1263, 7
      %v1265 = vsub.s32 0, %v1264
      %v1266 = vrot.slane %v170, %v1265
      %v1268 = vadd.f32 %v1261, %v1266
      %v1269 = vmax.f32 %v1268, 0.0
      %v1272 = vunpack.c.l.s4 1983009808
      %v1273 = vunpack.c.0.s8 %v1272
      %v1274 = vlaneseq
      %v1275 = vshrl.u32 %v1274, 7
      %v1276 = vsub.s32 %v1273, %v1275
      %v1277 = vrot.slane %v1269, %v1276
      %v1278 = vcombine.high %v1277, %v1277
      %v1281 = vpack.c.bf16 %v1277, %v1277
      %v1282 = vpack.c.bf16 %v1278, %v1278
      %1283 = vst [vmem:[%s168] sm:$0x1] %v1281
      %1284 = vst [vmem:[%s168 + $0x1] sm:$0x1] %v1282
      %p1285 = scmp.lt.s32.totalorder %s14, 1
      %s1286 = scalar_select %p1285, %s14, 1
      %s1287 = smul.addr %s1286, 2
      %s1288 = scalar_lea.vmem %s3, %s1287
      // Predicated region
      $region33: #{autoencoder_forward.10} parent=31 // pred_check
        %p1289 = pneg %p100
      $region34: #{autoencoder_forward.10} parent=31 // pred_check_branch
        %1291 = sbr.rel (%p1289) target = $region36
      $region35: #{autoencoder_forward.10} parent=31 // pred_region
        _
      $region36: #{autoencoder_forward.10} parent=31 // pred_fallthru
        _
    $region32: #{autoencoder_forward.10} parent=5 // pred_fallthru
      _
    %p1292 = scmp.le.s32.totalorder 2, %s9
    // Predicated region
    $region37: #{autoencoder_forward.10} parent=5 // pred_check
      %p1293 = pneg %p1292
    $region38: #{autoencoder_forward.10} parent=5 // pred_check_branch
      %1295 = sbr.rel (%p1293) target = $region40
    $region39: #{autoencoder_forward.10} parent=5 // pred_region
      %s1296 = ssub.s32 %s9, 2
      // Predicated region
      $region41: #{autoencoder_forward.10} parent=39 // pred_check
        %p1297 = pneg %p106
      $region42: #{autoencoder_forward.10} parent=39 // pred_check_branch
        %1299 = sbr.rel (%p1297) target = $region44
      $region43: #{autoencoder_forward.10} parent=39 // pred_region
        %p1300 = scmp.lt.s32.totalorder %s15, 1
        %s1301 = scalar_select %p1300, %s15, 1
        %s1302 = smul.addr %s1301, 2
        %s1303 = scalar_lea.vmem %s3, %s1302
      $region44: #{autoencoder_forward.10} parent=39 // pred_fallthru
        _
    $region40: #{autoencoder_forward.10} parent=5 // pred_fallthru
      _
  $region6: #{autoencoder_forward.10} parent=0 // loop_footer
    %s13 = sadd.s32 1, %s9
  $region7: #{autoencoder_forward.10} parent=0 // loop_footer_branch
    %8 = sbr.rel target = $region3
  $region8: #{autoencoder_forward.10} parent=0 // loop_exit
    _

// kernel: autoencoder_forward.12
$region0: #{autoencoder_forward.12}
  #allocation0 [shape = 'u32[]', space=smem, size = 0x4, offset = 0x4, fixed_abs, tag = 'smem constant byte address 0x4 - core index']
  #allocation1 [shape = 'u32[144,128]{1,0:T(1,128)}', space=vmem, size = 0x12000, scoped, tag = 'internal scratch']
  #allocation2 [shape = 'f32[8,512]{1,0:T(8,128)}', space=vmem, size = 0x4000, scoped, tag = 'scratch operand']
  %s0 = inlined_call_operand.vmem [shape: bf16[8,128], index: 0, kind: input, shape index: {}]
  %s1 = inlined_call_operand.vmem [shape: bf16[128,512], index: 1, kind: input, shape index: {}]
  %s2 = inlined_call_operand.vmem [shape: f32[1,512], index: 2, kind: input, shape index: {}]
  %s3 = inlined_call_operand.vmem [shape: bf16[1,8,512], index: 3, kind: output, shape index: {}]
  %s4 = sld [smem:[#allocation0]]
  $region30: #{autoencoder_forward.12} parent=0
    _
  %s6 = ssub.s32 1, %s4
  %s7 = scalar_select 0, %s6, %s4
  // Predicated region
  $region2: #{autoencoder_forward.12} parent=0 // pred_check
    _
  $region3: #{autoencoder_forward.12} parent=0 // pred_check_branch
    %9 = sbr.rel (0) target = $region5
  $region4: #{autoencoder_forward.12} parent=0 // pred_region
    %s10 = sadd.s32 0, 0
    %p11 = scmp.lt.s32.totalorder %s10, 0
    %s12 = scalar_select %p11, %s10, 0
    %s13 = smul.addr %s12, 4
    %s14 = scalar_lea.vmem %s0, %s13
    %s15 = sadd.s32 0, 0
  $region5: #{autoencoder_forward.12} parent=0 // pred_fallthru
    _
  // Predicated region
  $region6: #{autoencoder_forward.12} parent=0 // pred_check
    _
  $region7: #{autoencoder_forward.12} parent=0 // pred_check_branch
    %17 = sbr.rel (0) target = $region9
  $region8: #{autoencoder_forward.12} parent=0 // pred_region
    %s18 = sadd.s32 0, 0
    %s19 = smul.u32 16, %s18
    %p20 = scmp.lt.s32.totalorder %s19, 15
    %s21 = scalar_select %p20, %s19, 15
    %s22 = smul.addr %s21, 4
    %s23 = smul.addr %s22, 4
    %s24 = scalar_lea.vmem %s1, %s23
    %s25 = sadd.s32 0, 0
    %s26 = smul.u32 16, %s25
  $region9: #{autoencoder_forward.12} parent=0 // pred_fallthru
    _
  // Predicated region
  $region10: #{autoencoder_forward.12} parent=0 // pred_check
    _
  $region11: #{autoencoder_forward.12} parent=0 // pred_check_branch
    %28 = sbr.rel (0) target = $region13
  $region12: #{autoencoder_forward.12} parent=0 // pred_region
    _
  $region13: #{autoencoder_forward.12} parent=0 // pred_fallthru
    _
  %s29 = sadd.s32 0, 0
  %p30 = scmp.lt.s32.totalorder %s29, 0
  %s31 = scalar_select %p30, %s29, 0
  %s32 = smul.addr %s31, 4
  %s33 = scalar_lea.vmem %s0, %s32
  %s34 = sadd.s32 0, 0
  %s35 = smul.u32 16, %s34
  %p36 = scmp.lt.s32.totalorder %s35, 15
  %s37 = scalar_select %p36, %s35, 15
  %s38 = smul.addr %s37, 4
  %s39 = smul.addr %s38, 4
  %s40 = scalar_lea.vmem %s1, %s39
  %s41 = sadd.s32 0, 0
  %p42 = scmp.lt.s32.totalorder %s41, 0
  %s43 = scalar_select %p42, %s41, 0
  %s44 = smul.addr %s43, 4
  %s45 = scalar_lea.vmem %s0, %s44
  %s46 = sadd.s32 0, 0
  %s47 = sadd.s32 0, 0
  %s48 = smul.u32 16, %s47
  %p49 = scmp.lt.s32.totalorder %s48, 15
  %s50 = scalar_select %p49, %s48, 15
  %s51 = smul.addr %s50, 4
  %s52 = smul.addr %s51, 4
  %s53 = scalar_lea.vmem %s1, %s52
  %s54 = sadd.s32 0, 0
  %s55 = smul.u32 16, %s54
  %p57 = scmp.eq.s32.totalorder 0, 0
  // Predicated region
  $region14: #{autoencoder_forward.12} parent=0 // pred_check
    %p58 = pneg %p57
  $region15: #{autoencoder_forward.12} parent=0 // pred_check_branch
    %60 = sbr.rel (%p58) target = $region17
  $region16: #{autoencoder_forward.12} parent=0 // pred_region
    %61 = vst [vmem:[#allocation2] sm:$0xff] 0.0
    %62 = vst [vmem:[#allocation2 + $0x8] sm:$0xff] 0.0
    %63 = vst [vmem:[#allocation2 + $0x10] sm:$0xff] 0.0
    %64 = vst [vmem:[#allocation2 + $0x18] sm:$0xff] 0.0
  $region17: #{autoencoder_forward.12} parent=0 // pred_fallthru
    _
  %v65 = vld [vmem:[#allocation2] sm:$0xff]
  %v66 = vld [vmem:[#allocation2 + $0x8] sm:$0xff]
  %v67 = vld [vmem:[#allocation2 + $0x10] sm:$0xff]
  %v68 = vld [vmem:[#allocation2 + $0x18] sm:$0xff]
  %v69 = vld [vmem:[%s45] sm:$0xf]
  %v70 = vld [vmem:[%s53] sm:$0xff]
  %v71 = vld [vmem:[%s53 + $0x8] sm:$0xff]
  %v72 = vld [vmem:[%s53 + $0x10] sm:$0xff]
  %v73 = vld [vmem:[%s53 + $0x18] sm:$0xff]
  %v74 = vld [vmem:[%s53 + $0x20] sm:$0xff]
  %v75 = vld [vmem:[%s53 + $0x28] sm:$0xff]
  %v76 = vld [vmem:[%s53 + $0x30] sm:$0xff]
  %v77 = vld [vmem:[%s53 + $0x38] sm:$0xff]
  %v78 = vld [vmem:[%s53 + $0x40] sm:$0xff]
  %v79 = vld [vmem:[%s53 + $0x48] sm:$0xff]
  %v80 = vld [vmem:[%s53 + $0x50] sm:$0xff]
  %v81 = vld [vmem:[%s53 + $0x58] sm:$0xff]
  %v82 = vld [vmem:[%s53 + $0x60] sm:$0xff]
  %v83 = vld [vmem:[%s53 + $0x68] sm:$0xff]
  %v84 = vld [vmem:[%s53 + $0x70] sm:$0xff]
  %v85 = vld [vmem:[%s53 + $0x78] sm:$0xff]
  %v86 = vld [vmem:[%s53 + $0x80] sm:$0xff]
  %v87 = vld [vmem:[%s53 + $0x88] sm:$0xff]
  %v88 = vld [vmem:[%s53 + $0x90] sm:$0xff]
  %v89 = vld [vmem:[%s53 + $0x98] sm:$0xff]
  %v90 = vld [vmem:[%s53 + $0xa0] sm:$0xff]
  %v91 = vld [vmem:[%s53 + $0xa8] sm:$0xff]
  %v92 = vld [vmem:[%s53 + $0xb0] sm:$0xff]
  %v93 = vld [vmem:[%s53 + $0xb8] sm:$0xff]
  %v94 = vld [vmem:[%s53 + $0xc0] sm:$0xff]
  %v95 = vld [vmem:[%s53 + $0xc8] sm:$0xff]
  %v96 = vld [vmem:[%s53 + $0xd0] sm:$0xff]
  %v97 = vld [vmem:[%s53 + $0xd8] sm:$0xff]
  %v98 = vld [vmem:[%s53 + $0xe0] sm:$0xff]
  %v99 = vld [vmem:[%s53 + $0xe8] sm:$0xff]
  %v100 = vld [vmem:[%s53 + $0xf0] sm:$0xff]
  %v101 = vld [vmem:[%s53 + $0xf8] sm:$0xff]
  %v134 = vunpack.c.l.b16 %v70
  %v135 = vunpack.c.h.b16 %v70
  %v136 = vunpack.c.l.b16 %v71
  %v137 = vunpack.c.h.b16 %v71
  %v138 = vunpack.c.l.b16 %v72
  %v139 = vunpack.c.h.b16 %v72
  %v140 = vunpack.c.l.b16 %v73
  %v141 = vunpack.c.h.b16 %v73
  %v142 = vunpack.c.l.b16 %v74
  %v143 = vunpack.c.h.b16 %v74
  %v144 = vunpack.c.l.b16 %v75
  %v145 = vunpack.c.h.b16 %v75
  %v146 = vunpack.c.l.b16 %v76
  %v147 = vunpack.c.h.b16 %v76
  %v148 = vunpack.c.l.b16 %v77
  %v149 = vunpack.c.h.b16 %v77
  %v150 = vunpack.c.l.b16 %v78
  %v151 = vunpack.c.h.b16 %v78
  %v152 = vunpack.c.l.b16 %v79
  %v153 = vunpack.c.h.b16 %v79
  %v154 = vunpack.c.l.b16 %v80
  %v155 = vunpack.c.h.b16 %v80
  %v156 = vunpack.c.l.b16 %v81
  %v157 = vunpack.c.h.b16 %v81
  %v158 = vunpack.c.l.b16 %v82
  %v159 = vunpack.c.h.b16 %v82
  %v160 = vunpack.c.l.b16 %v83
  %v161 = vunpack.c.h.b16 %v83
  %v162 = vunpack.c.l.b16 %v84
  %v163 = vunpack.c.h.b16 %v84
  %v164 = vunpack.c.l.b16 %v85
  %v165 = vunpack.c.h.b16 %v85
  %v166 = vunpack.c.l.b16 %v86
  %v167 = vunpack.c.h.b16 %v86
  %v168 = vunpack.c.l.b16 %v87
  %v169 = vunpack.c.h.b16 %v87
  %v170 = vunpack.c.l.b16 %v88
  %v171 = vunpack.c.h.b16 %v88
  %v172 = vunpack.c.l.b16 %v89
  %v173 = vunpack.c.h.b16 %v89
  %v174 = vunpack.c.l.b16 %v90
  %v175 = vunpack.c.h.b16 %v90
  %v176 = vunpack.c.l.b16 %v91
  %v177 = vunpack.c.h.b16 %v91
  %v178 = vunpack.c.l.b16 %v92
  %v179 = vunpack.c.h.b16 %v92
  %v180 = vunpack.c.l.b16 %v93
  %v181 = vunpack.c.h.b16 %v93
  %v182 = vunpack.c.l.b16 %v94
  %v183 = vunpack.c.h.b16 %v94
  %v184 = vunpack.c.l.b16 %v95
  %v185 = vunpack.c.h.b16 %v95
  %v186 = vunpack.c.l.b16 %v96
  %v187 = vunpack.c.h.b16 %v96
  %v188 = vunpack.c.l.b16 %v97
  %v189 = vunpack.c.h.b16 %v97
  %v190 = vunpack.c.l.b16 %v98
  %v191 = vunpack.c.h.b16 %v98
  %v192 = vunpack.c.l.b16 %v99
  %v193 = vunpack.c.h.b16 %v99
  %v194 = vunpack.c.l.b16 %v100
  %v195 = vunpack.c.h.b16 %v100
  %v196 = vunpack.c.l.b16 %v101
  %v197 = vunpack.c.h.b16 %v101
  %v198 = vpack.c.b16 %v138, %v134
  %v199 = vpack.c.b16 %v139, %v135
  %v200 = vpack.c.b16 %v140, %v136
  %v201 = vpack.c.b16 %v141, %v137
  %v202 = vpack.c.b16 %v146, %v142
  %v203 = vpack.c.b16 %v147, %v143
  %v204 = vpack.c.b16 %v148, %v144
  %v205 = vpack.c.b16 %v149, %v145
  %v206 = vpack.c.b16 %v154, %v150
  %v207 = vpack.c.b16 %v155, %v151
  %v208 = vpack.c.b16 %v156, %v152
  %v209 = vpack.c.b16 %v157, %v153
  %v210 = vpack.c.b16 %v162, %v158
  %v211 = vpack.c.b16 %v163, %v159
  %v212 = vpack.c.b16 %v164, %v160
  %v213 = vpack.c.b16 %v165, %v161
  %v214 = vpack.c.b16 %v170, %v166
  %v215 = vpack.c.b16 %v171, %v167
  %v216 = vpack.c.b16 %v172, %v168
  %v217 = vpack.c.b16 %v173, %v169
  %v218 = vpack.c.b16 %v178, %v174
  %v219 = vpack.c.b16 %v179, %v175
  %v220 = vpack.c.b16 %v180, %v176
  %v221 = vpack.c.b16 %v181, %v177
  %v222 = vpack.c.b16 %v186, %v182
  %v223 = vpack.c.b16 %v187, %v183
  %v224 = vpack.c.b16 %v188, %v184
  %v225 = vpack.c.b16 %v189, %v185
  %v226 = vpack.c.b16 %v194, %v190
  %v227 = vpack.c.b16 %v195, %v191
  %v228 = vpack.c.b16 %v196, %v192
  %v229 = vpack.c.b16 %v197, %v193
  %262 = vmatprep.subr.bf16.mxu0 %v227
  %263 = vmatpush1.bf16.msra.mxu0 %v226
  %264 = vmatprep.subr.bf16.mxu0 %v223
  %265 = vmatpush1.bf16.msra.mxu0 %v222
  %266 = vmatprep.subr.bf16.mxu0 %v219
  %267 = vmatpush1.bf16.msra.mxu0 %v218
  %268 = vmatprep.subr.bf16.mxu0 %v215
  %269 = vmatpush1.bf16.msra.mxu0 %v214
  %270 = vmatprep.subr.bf16.mxu0 %v211
  %271 = vmatpush1.bf16.msra.mxu0 %v210
  %272 = vmatprep.subr.bf16.mxu0 %v207
  %273 = vmatpush1.bf16.msra.mxu0 %v206
  %274 = vmatprep.subr.bf16.mxu0 %v203
  %275 = vmatpush1.bf16.msra.mxu0 %v202
  %276 = vmatprep.subr.bf16.mxu0 %v199
  %277 = vmatpush1.bf16.msra.mxu0 %v198
  %278 = vmatprep.subr.bf16.mxu0 0
  %279 = vmatpush2.bf16.msra.mxu0 0
  %280 = vmatprep.subr.bf16.mxu0 0
  %281 = vmatpush2.bf16.msra.mxu0 0
  %282 = vmatprep.subr.bf16.mxu0 0
  %283 = vmatpush2.bf16.msra.mxu0 0
  %284 = vmatprep.subr.bf16.mxu0 0
  %285 = vmatpush2.bf16.msra.mxu0 0
  %286 = vmatprep.subr.bf16.mxu0 0
  %287 = vmatpush2.bf16.msra.mxu0 0
  %288 = vmatprep.subr.bf16.mxu0 0
  %289 = vmatpush2.bf16.msra.mxu0 0
  %290 = vmatprep.subr.bf16.mxu0 0
  %291 = vmatpush2.bf16.msra.mxu0 0
  %292 = vmatprep.subr.bf16.mxu0 0
  %293 = vmatpush2.bf16.msra.mxu0 0
  %294 = vmatprep.mubr.bf16.mxu0 0
  %295 = vmatmul.mubr.bf16.gmra.mxu0 %v69
  %v296 = vpop.f32.mrf.mxu0
  %v297 = vadd.f32 0.0, %v296
  %v298 = vpop.f32.mrf.mxu0
  %v299 = vadd.f32 0.0, %v298
  %v300 = vpop.f32.mrf.mxu0
  %v301 = vpop.f32.mrf.mxu0
  %302 = vdwg.mxu0
  %303 = vmatprep.subr.bf16.mxu0 %v229
  %304 = vmatpush1.bf16.msra.mxu0 %v228
  %305 = vmatprep.subr.bf16.mxu0 %v225
  %306 = vmatpush1.bf16.msra.mxu0 %v224
  %307 = vmatprep.subr.bf16.mxu0 %v221
  %308 = vmatpush1.bf16.msra.mxu0 %v220
  %309 = vmatprep.subr.bf16.mxu0 %v217
  %310 = vmatpush1.bf16.msra.mxu0 %v216
  %311 = vmatprep.subr.bf16.mxu0 %v213
  %312 = vmatpush1.bf16.msra.mxu0 %v212
  %313 = vmatprep.subr.bf16.mxu0 %v209
  %314 = vmatpush1.bf16.msra.mxu0 %v208
  %315 = vmatprep.subr.bf16.mxu0 %v205
  %316 = vmatpush1.bf16.msra.mxu0 %v204
  %317 = vmatprep.subr.bf16.mxu0 %v201
  %318 = vmatpush1.bf16.msra.mxu0 %v200
  %319 = vmatprep.subr.bf16.mxu0 0
  %320 = vmatpush2.bf16.msra.mxu0 0
  %321 = vmatprep.subr.bf16.mxu0 0
  %322 = vmatpush2.bf16.msra.mxu0 0
  %323 = vmatprep.subr.bf16.mxu0 0
  %324 = vmatpush2.bf16.msra.mxu0 0
  %325 = vmatprep.subr.bf16.mxu0 0
  %326 = vmatpush2.bf16.msra.mxu0 0
  %327 = vmatprep.subr.bf16.mxu0 0
  %328 = vmatpush2.bf16.msra.mxu0 0
  %329 = vmatprep.subr.bf16.mxu0 0
  %330 = vmatpush2.bf16.msra.mxu0 0
  %331 = vmatprep.subr.bf16.mxu0 0
  %332 = vmatpush2.bf16.msra.mxu0 0
  %333 = vmatprep.subr.bf16.mxu0 0
  %334 = vmatpush2.bf16.msra.mxu0 0
  %335 = vmatprep.mubr.bf16.mxu0 0
  %336 = vmatmul.mubr.bf16.gmra.mxu0 %v69
  %v337 = vpop.f32.mrf.mxu0
  %v338 = vadd.f32 0.0, %v337
  %v339 = vpop.f32.mrf.mxu0
  %v340 = vadd.f32 0.0, %v339
  %v341 = vpop.f32.mrf.mxu0
  %v342 = vpop.f32.mrf.mxu0
  %343 = vdwg.mxu0
  %v344 = vadd.f32 %v65, %v297
  %v345 = vadd.f32 %v66, %v299
  %v346 = vadd.f32 %v67, %v338
  %v347 = vadd.f32 %v68, %v340
  %348 = vst [vmem:[#allocation2] sm:$0xff] %v344
  %349 = vst [vmem:[#allocation2 + $0x8] sm:$0xff] %v345
  %350 = vst [vmem:[#allocation2 + $0x10] sm:$0xff] %v346
  %351 = vst [vmem:[#allocation2 + $0x18] sm:$0xff] %v347
  // Predicated region
  $region18: #{autoencoder_forward.12} parent=0 // pred_check
    %p352 = pneg %p57
  $region19: #{autoencoder_forward.12} parent=0 // pred_check_branch
    %354 = sbr.rel (%p352) target = $region21
  $region20: #{autoencoder_forward.12} parent=0 // pred_region
    %v355 = vld [vmem:[#allocation2] sm:$0xff]
    %v356 = vld [vmem:[#allocation2 + $0x8] sm:$0xff]
    %v357 = vld [vmem:[#allocation2 + $0x10] sm:$0xff]
    %v358 = vld [vmem:[#allocation2 + $0x18] sm:$0xff]
    %v359 = vld [vmem:[%s2] sm:$0xf]
    %v361 = vlaneseq
    %v362 = vshrl.u32 %v361, 7
    %v363 = vsub.s32 0, %v362
    %v364 = vrot.slane %v359, %v363
    %v365 = vlaneseq
    %v366 = vshrl.u32 %v365, 7
    %v367 = vsub.s32 1, %v366
    %v368 = vrot.slane %v359, %v367
    %v369 = vlaneseq
    %v370 = vshrl.u32 %v369, 7
    %v371 = vsub.s32 2, %v370
    %v372 = vrot.slane %v359, %v371
    %v373 = vlaneseq
    %v374 = vshrl.u32 %v373, 7
    %v375 = vsub.s32 3, %v374
    %v376 = vrot.slane %v359, %v375
    %v381 = vadd.f32 %v355, %v364
    %v382 = vadd.f32 %v356, %v368
    %v383 = vadd.f32 %v357, %v372
    %v384 = vadd.f32 %v358, %v376
    %v385 = vmax.f32 %v381, 0.0
    %v386 = vmax.f32 %v382, 0.0
    %v387 = vmax.f32 %v383, 0.0
    %v388 = vmax.f32 %v384, 0.0
    %v389 = vpack.c.bf16 %v385, %v385
    %v390 = vpack.c.bf16 %v386, %v386
    %v391 = vpack.c.bf16 %v387, %v387
    %v392 = vpack.c.bf16 %v388, %v388
    %v397 = vunpack.c.l.b16 %v389
    %v398 = vunpack.c.l.b16 %v390
    %v399 = vunpack.c.l.b16 %v391
    %v400 = vunpack.c.l.b16 %v392
    %v401 = vpack.c.b16 %v398, %v397
    %v402 = vpack.c.b16 %v400, %v399
    %405 = vst [vmem:[%s3] sm:$0xff] %v401
    %406 = vst [vmem:[%s3 + $0x8] sm:$0xff] %v402
  $region21: #{autoencoder_forward.12} parent=0 // pred_fallthru
    _
  // Predicated region
  $region22: #{autoencoder_forward.12} parent=0 // pred_check
    _
  $region23: #{autoencoder_forward.12} parent=0 // pred_check_branch
    %408 = sbr.rel (0) target = $region25
  $region24: #{autoencoder_forward.12} parent=0 // pred_region
    _
  $region25: #{autoencoder_forward.12} parent=0 // pred_fallthru
    _
  // Predicated region
  $region26: #{autoencoder_forward.12} parent=0 // pred_check
    _
  $region27: #{autoencoder_forward.12} parent=0 // pred_check_branch
    %410 = sbr.rel (0) target = $region29
  $region28: #{autoencoder_forward.12} parent=0 // pred_region
    _
  $region29: #{autoencoder_forward.12} parent=0 // pred_fallthru
    _

// kernel: autoencoder_forward.13
$region0: #{autoencoder_forward.13}
  #allocation0 [shape = 'u32[]', space=smem, size = 0x4, offset = 0x4, fixed_abs, tag = 'smem constant byte address 0x4 - core index']
  #allocation1 [shape = 'u32[144,128]{1,0:T(1,128)}', space=vmem, size = 0x12000, scoped, tag = 'internal scratch']
  %s0 = inlined_call_operand.vmem [shape: bf16[2,3,3,128], index: 0, kind: input, shape index: {}]
  %s1 = inlined_call_operand.vmem [shape: bf16[9,128,128], index: 1, kind: input, shape index: {}]
  %s2 = inlined_call_operand.vmem [shape: f32[1,128], index: 2, kind: input, shape index: {}]
  %s3 = inlined_call_operand.vmem [shape: bf16[2,2,2,2,2,128], index: 3, kind: output, shape index: {}]
  %s4 = sld [smem:[#allocation0]]
  $region82: #{autoencoder_forward.13} parent=0
    _
  %s6 = ssub.s32 1, %s4
  %s7 = scalar_select 0, %s6, %s4
  $region1: #{autoencoder_forward.13} parent=0
    #allocation2 [shape = 'u8[8192]{0}', space=vmem, size = 0x2000, scoped, tag = 'output window, operand 0']
    loop: start=0, step=1, limit=4
    $region2: #{autoencoder_forward.13} parent=1 // loop_pre_header
      _
    $region3: #{autoencoder_forward.13} parent=1 // loop_header
      %s9 = sphi 0, %s13
      %p10 = scmp.ge.s32.totalorder %s9, 4
      %s19 = sphi 0, %s21
      %s22 = sphi 0, %s19
      %s23 = sphi 0, %s22
      %s39 = sphi 0, %s23
      %s43 = sphi 0, %s43
      %s45 = sphi 0, %s43
      %s46 = sphi 0, %s45
      %s60 = sphi 0, %s46
      %s64 = sphi 0, %s64
      %s66 = sphi 0, %s64
      %s67 = sphi 0, %s66
      %s81 = sphi 0, %s67
      %s87 = sphi 0, %s89
      %s90 = sphi 0, %s87
      %s91 = sphi 0, %s90
      %s107 = sphi 0, %s91
    $region4: #{autoencoder_forward.13} parent=1 // loop_header_branch
      %12 = sbr.rel (%p10) target = $region8
    $region5: #{autoencoder_forward.13} parent=1 // loop_body
      %s14 = ssub.s32 %s9, 1
      %s15 = ssub.s32 %s9, 2
      %s16 = sadd.s32 %s9, 1
      %s17 = ssub.s32 %s9, %s16
      %p18 = scmp.eq.s32.totalorder %s17, 0
      %s20 = sadd.s32 %s19, 1
      %s21 = scalar_select %p18, %s19, %s20
      %p24 = pneg %p18
      %p25 = scmp.eq.s32.totalorder %s9, 1
      %p26 = por %p24, %p25
      %p27 = scmp.ne.s32.totalorder %s19, %s22
      %p28 = scmp.eq.s32.totalorder %s9, 0
      %p29 = por %p27, %p28
      %p30 = scmp.ne.s32.totalorder %s19, %s22
      %p31 = scmp.eq.s32.totalorder %s14, 1
      %p32 = por %p30, %p31
      %p33 = scmp.ne.s32.totalorder %s22, %s23
      %p34 = scmp.eq.s32.totalorder %s14, 0
      %p35 = por %p33, %p34
      %p36 = scmp.ne.s32.totalorder %s22, %s23
      %p37 = scmp.eq.s32.totalorder %s15, 1
      %p38 = por %p36, %p37
      %p40 = scmp.ne.s32.totalorder %s23, %s39
      %p41 = scmp.eq.s32.totalorder %s15, 0
      %p42 = por %p40, %p41
      %s44 = sadd.s32 %s43, 1
      %p47 = scmp.eq.s32.totalorder %s9, 1
      %p48 = scmp.ne.s32.totalorder %s43, %s45
      %p49 = scmp.eq.s32.totalorder %s9, 0
      %p50 = por %p48, %p49
      %p51 = scmp.ne.s32.totalorder %s43, %s45
      %p52 = scmp.eq.s32.totalorder %s14, 1
      %p53 = por %p51, %p52
      %p54 = scmp.ne.s32.totalorder %s45, %s46
      %p55 = scmp.eq.s32.totalorder %s14, 0
      %p56 = por %p54, %p55
      %p57 = scmp.ne.s32.totalorder %s45, %s46
      %p58 = scmp.eq.s32.totalorder %s15, 1
      %p59 = por %p57, %p58
      %p61 = scmp.ne.s32.totalorder %s46, %s60
      %p62 = scmp.eq.s32.totalorder %s15, 0
      %p63 = por %p61, %p62
      %s65 = sadd.s32 %s64, 1
      %p68 = scmp.eq.s32.totalorder %s9, 1
      %p69 = scmp.ne.s32.totalorder %s64, %s66
      %p70 = scmp.eq.s32.totalorder %s9, 0
      %p71 = por %p69, %p70
      %p72 = scmp.ne.s32.totalorder %s64, %s66
      %p73 = scmp.eq.s32.totalorder %s14, 1
      %p74 = por %p72, %p73
      %p75 = scmp.ne.s32.totalorder %s66, %s67
      %p76 = scmp.eq.s32.totalorder %s14, 0
      %p77 = por %p75, %p76
      %p78 = scmp.ne.s32.totalorder %s66, %s67
      %p79 = scmp.eq.s32.totalorder %s15, 1
      %p80 = por %p78, %p79
      %p82 = scmp.ne.s32.totalorder %s67, %s81
      %p83 = scmp.eq.s32.totalorder %s15, 0
      %p84 = por %p82, %p83
      %s85 = ssub.s32 %s9, %s16
      %p86 = scmp.eq.s32.totalorder %s85, 0
      %s88 = sadd.s32 %s87, 1
      %s89 = scalar_select %p86, %s87, %s88
      %p92 = pneg %p86
      %p93 = scmp.eq.s32.totalorder %s9, 1
      %p94 = por %p92, %p93
      %p95 = scmp.ne.s32.totalorder %s87, %s90
      %p96 = scmp.eq.s32.totalorder %s9, 0
      %p97 = por %p95, %p96
      %p98 = scmp.ne.s32.totalorder %s87, %s90
      %p99 = scmp.eq.s32.totalorder %s14, 1
      %p100 = por %p98, %p99
      %p101 = scmp.ne.s32.totalorder %s90, %s91
      %p102 = scmp.eq.s32.totalorder %s14, 0
      %p103 = por %p101, %p102
      %p104 = scmp.ne.s32.totalorder %s90, %s91
      %p105 = scmp.eq.s32.totalorder %s15, 1
      %p106 = por %p104, %p105
      %p108 = scmp.ne.s32.totalorder %s91, %s107
      %p109 = scmp.eq.s32.totalorder %s15, 0
      %p110 = por %p108, %p109
      %p111 = scmp.le.s32.totalorder 1, %s9
      %p112 = scmp.lt.s32.totalorder %s9, 3
      %p113 = pnand %p111, %p112
      %p114 = pneg %p113
      // Predicated region
      $region9: #{autoencoder_forward.13} parent=5 // pred_check
        _
      $region10: #{autoencoder_forward.13} parent=5 // pred_check_branch
        %116 = sbr.rel (%p113) target = $region12
      $region11: #{autoencoder_forward.13} parent=5 // pred_region
        %s117 = ssub.s32 %s9, 1
        // Predicated region
        $region13: #{autoencoder_forward.13} parent=11 // pred_check
          %p118 = pneg %p56
        $region14: #{autoencoder_forward.13} parent=11 // pred_check_branch
          %120 = sbr.rel (%p118) target = $region16
        $region15: #{autoencoder_forward.13} parent=11 // pred_region
          _
        $region16: #{autoencoder_forward.13} parent=11 // pred_fallthru
          _
        // Predicated region
        $region17: #{autoencoder_forward.13} parent=11 // pred_check
          %p121 = pneg %p77
        $region18: #{autoencoder_forward.13} parent=11 // pred_check_branch
          %123 = sbr.rel (%p121) target = $region20
        $region19: #{autoencoder_forward.13} parent=11 // pred_region
          _
        $region20: #{autoencoder_forward.13} parent=11 // pred_fallthru
          _
      $region12: #{autoencoder_forward.13} parent=5 // pred_fallthru
        _
      %p124 = scmp.lt.s32.totalorder %s9, 2
      // Predicated region
      $region21: #{autoencoder_forward.13} parent=5 // pred_check
        %p125 = pneg %p124
      $region22: #{autoencoder_forward.13} parent=5 // pred_check_branch
        %127 = sbr.rel (%p125) target = $region24
      $region23: #{autoencoder_forward.13} parent=5 // pred_region
        // Predicated region
        $region25: #{autoencoder_forward.13} parent=23 // pred_check
          %p128 = pneg %p29
        $region26: #{autoencoder_forward.13} parent=23 // pred_check_branch
          %130 = sbr.rel (%p128) target = $region28
        $region27: #{autoencoder_forward.13} parent=23 // pred_region
          %p131 = scmp.lt.s32.totalorder %s9, 1
          %s132 = scalar_select %p131, %s9, 1
          %s133 = smul.addr %s132, 3
          %s134 = smul.addr %s133, 2
          %s135 = scalar_lea.vmem %s0, %s134
        $region28: #{autoencoder_forward.13} parent=23 // pred_fallthru
          _
      $region24: #{autoencoder_forward.13} parent=5 // pred_fallthru
        _
      %p136 = scmp.le.s32.totalorder 1, %s9
      %p137 = scmp.lt.s32.totalorder %s9, 3
      %p138 = pnand %p136, %p137
      %p139 = pneg %p138
      // Predicated region
      $region29: #{autoencoder_forward.13} parent=5 // pred_check
        _
      $region30: #{autoencoder_forward.13} parent=5 // pred_check_branch
        %141 = sbr.rel (%p138) target = $region32
      $region31: #{autoencoder_forward.13} parent=5 // pred_region
        %s142 = ssub.s32 %s9, 1
        %p143 = scmp.lt.s32.totalorder %s14, 1
        %s144 = scalar_select %p143, %s14, 1
        %s145 = smul.addr %s144, 3
        %s146 = smul.addr %s145, 2
        %s147 = scalar_lea.vmem %s0, %s146
        %p148 = pneg %p35
        %p149 = pneg %p32
        %p150 = pneg %p56
        %p151 = pneg %p53
        %p152 = pneg %p77
        %p153 = pneg %p74
        %p154 = pneg %p103
        %p155 = pneg %p100
        %s156 = sand.u32 %s90, 1
        %s157 = sand.u32 %s90, 1
        %s158 = smul.addr %s157, 8
        %s159 = scalar_lea.vmem [#allocation2], %s158
        %p160 = scmp.lt.s32.totalorder %s14, 1
        %s161 = scalar_select %p160, %s14, 1
        %s162 = smul.addr %s161, 3
        %s163 = smul.addr %s162, 2
        %s164 = scalar_lea.vmem %s0, %s163
        %v166 = vld [vmem:[%s2] sm:$0x1]
        %v167 = vld [vmem:[%s164] sm:$0x1]
        %v168 = vld [vmem:[%s164 + $0x2] sm:$0x1]
        %v169 = vld [vmem:[%s1] sm:$0xf]
        %v170 = vld [vmem:[%s1 + $0x4] sm:$0xf]
        %v171 = vld [vmem:[%s1 + $0x8] sm:$0xf]
        %v172 = vld [vmem:[%s1 + $0xc] sm:$0xf]
        %v173 = vld [vmem:[%s1 + $0x10] sm:$0xf]
        %v174 = vld [vmem:[%s1 + $0x14] sm:$0xf]
        %v175 = vld [vmem:[%s1 + $0x18] sm:$0xf]
        %v176 = vld [vmem:[%s1 + $0x1c] sm:$0xf]
        %v177 = vld [vmem:[%s1 + $0x20] sm:$0xf]
        %v178 = vld [vmem:[%s1 + $0x24] sm:$0xf]
        %v179 = vld [vmem:[%s1 + $0x28] sm:$0xf]
        %v180 = vld [vmem:[%s1 + $0x2c] sm:$0xf]
        %v181 = vld [vmem:[%s1 + $0x30] sm:$0xf]
        %v182 = vld [vmem:[%s1 + $0x34] sm:$0xf]
        %v183 = vld [vmem:[%s1 + $0x38] sm:$0xf]
        %v184 = vld [vmem:[%s1 + $0x3c] sm:$0xf]
        %v186 = vlaneseq
        %v187 = vshrl.u32 %v186, 7
        %v188 = vsub.s32 0, %v187
        %v189 = vrot.slane %v166, %v188
        %v193 = vcombine.low %v167, %v168
        %v195 = vunpack.c.l.s4 1966171168
        %v196 = vunpack.c.0.s8 %v195
        %v197 = vlaneseq
        %v198 = vshrl.u32 %v197, 7
        %v199 = vsub.s32 %v196, %v198
        %v200 = vrot.slane %v193, %v199
        %v202 = vunpack.c.l.s4 1966171168
        %v203 = vunpack.c.0.s8 %v202
        %v204 = vlaneseq
        %v205 = vshrl.u32 %v204, 7
        %v206 = vsub.s32 %v203, %v205
        %v207 = vrot.slane %v200, %v206
        %v225 = vunpack.c.l.b16 %v169
        %v226 = vunpack.c.l.b16 %v170
        %v227 = vunpack.c.l.b16 %v171
        %v228 = vunpack.c.l.b16 %v172
        %v229 = vunpack.c.l.b16 %v173
        %v230 = vunpack.c.l.b16 %v174
        %v231 = vunpack.c.l.b16 %v175
        %v232 = vunpack.c.l.b16 %v176
        %v233 = vunpack.c.l.b16 %v177
        %v234 = vunpack.c.l.b16 %v178
        %v235 = vunpack.c.l.b16 %v179
        %v236 = vunpack.c.l.b16 %v180
        %v237 = vunpack.c.l.b16 %v181
        %v238 = vunpack.c.l.b16 %v182
        %v239 = vunpack.c.l.b16 %v183
        %v240 = vunpack.c.l.b16 %v184
        %v241 = vpack.c.b16 %v226, %v225
        %v242 = vpack.c.b16 %v228, %v227
        %v243 = vpack.c.b16 %v230, %v229
        %v244 = vpack.c.b16 %v232, %v231
        %v245 = vpack.c.b16 %v234, %v233
        %v246 = vpack.c.b16 %v236, %v235
        %v247 = vpack.c.b16 %v238, %v237
        %v248 = vpack.c.b16 %v240, %v239
        %257 = vmatprep.subr.bf16.mxu0 0
        %258 = vmatpush1.bf16.msra.mxu0 %v248
        %259 = vmatprep.subr.bf16.mxu0 0
        %260 = vmatpush1.bf16.msra.mxu0 %v247
        %261 = vmatprep.subr.bf16.mxu0 0
        %262 = vmatpush1.bf16.msra.mxu0 %v246
        %263 = vmatprep.subr.bf16.mxu0 0
        %264 = vmatpush1.bf16.msra.mxu0 %v245
        %265 = vmatprep.subr.bf16.mxu0 0
        %266 = vmatpush1.bf16.msra.mxu0 %v244
        %267 = vmatprep.subr.bf16.mxu0 0
        %268 = vmatpush1.bf16.msra.mxu0 %v243
        %269 = vmatprep.subr.bf16.mxu0 0
        %270 = vmatpush1.bf16.msra.mxu0 %v242
        %271 = vmatprep.subr.bf16.mxu0 0
        %272 = vmatpush1.bf16.msra.mxu0 %v241
        %273 = vmatprep.subr.bf16.mxu0 0
        %274 = vmatpush2.bf16.msra.mxu0 0
        %275 = vmatprep.subr.bf16.mxu0 0
        %276 = vmatpush2.bf16.msra.mxu0 0
        %277 = vmatprep.subr.bf16.mxu0 0
        %278 = vmatpush2.bf16.msra.mxu0 0
        %279 = vmatprep.subr.bf16.mxu0 0
        %280 = vmatpush2.bf16.msra.mxu0 0
        %281 = vmatprep.subr.bf16.mxu0 0
        %282 = vmatpush2.bf16.msra.mxu0 0
        %283 = vmatprep.subr.bf16.mxu0 0
        %284 = vmatpush2.bf16.msra.mxu0 0
        %285 = vmatprep.subr.bf16.mxu0 0
        %286 = vmatpush2.bf16.msra.mxu0 0
        %287 = vmatprep.subr.bf16.mxu0 0
        %288 = vmatpush2.bf16.msra.mxu0 0
        %289 = vmatprep.mubr.bf16.mxu0 0
        %290 = vmatmul.mubr.bf16.gmra.mxu0 %v207
        %v291 = vpop.f32.mrf.mxu0
        %v292 = vadd.f32 %v189, %v291
        %v293 = vpop.f32.mrf.mxu0
        %v294 = vpop.f32.mrf.mxu0
        %v295 = vpop.f32.mrf.mxu0
        %296 = vdwg.mxu0
        %v297 = vmax.f32 %v292, 0.0
        %v300 = vunpack.c.l.s4 1983009808
        %v301 = vunpack.c.0.s8 %v300
        %v302 = vlaneseq
        %v303 = vshrl.u32 %v302, 7
        %v304 = vsub.s32 %v301, %v303
        %v305 = vrot.slane %v297, %v304
        %v306 = vcombine.high %v305, %v305
        %v309 = vpack.c.bf16 %v305, %v305
        %v310 = vpack.c.bf16 %v306, %v306
        %311 = vst [vmem:[%s159] sm:$0x1] %v309
        %312 = vst [vmem:[%s159 + $0x1] sm:$0x1] %v310
        %v313 = vld [vmem:[%s164] sm:$0x1]
        %v314 = vld [vmem:[%s164 + $0x2] sm:$0x1]
        %s315 = scalar_lea.vmem %s1, 64
        %v316 = vld [vmem:[%s315] sm:$0xf]
        %v317 = vld [vmem:[%s315 + $0x4] sm:$0xf]
        %v318 = vld [vmem:[%s315 + $0x8] sm:$0xf]
        %v319 = vld [vmem:[%s315 + $0xc] sm:$0xf]
        %v320 = vld [vmem:[%s315 + $0x10] sm:$0xf]
        %v321 = vld [vmem:[%s315 + $0x14] sm:$0xf]
        %v322 = vld [vmem:[%s315 + $0x18] sm:$0xf]
        %v323 = vld [vmem:[%s315 + $0x1c] sm:$0xf]
        %v324 = vld [vmem:[%s315 + $0x20] sm:$0xf]
        %v325 = vld [vmem:[%s315 + $0x24] sm:$0xf]
        %v326 = vld [vmem:[%s315 + $0x28] sm:$0xf]
        %v327 = vld [vmem:[%s315 + $0x2c] sm:$0xf]
        %v328 = vld [vmem:[%s315 + $0x30] sm:$0xf]
        %v329 = vld [vmem:[%s315 + $0x34] sm:$0xf]
        %v330 = vld [vmem:[%s315 + $0x38] sm:$0xf]
        %v331 = vld [vmem:[%s315 + $0x3c] sm:$0xf]
        %v332 = vld [vmem:[%s164] sm:$0x3]
        %v333 = vld [vmem:[%s164 + $0x2] sm:$0x3]
        %v337 = vunpack.c.l.s4 1966171168
        %v338 = vunpack.c.0.s8 %v337
        %v339 = vlaneseq
        %v340 = vshrl.u32 %v339, 7
        %v341 = vsub.s32 %v338, %v340
        %v342 = vrot.slane %v332, %v341
        %v343 = vcombine.high %v342, %v342
        %v345 = vunpack.c.l.s4 1966171168
        %v346 = vunpack.c.0.s8 %v345
        %v347 = vlaneseq
        %v348 = vshrl.u32 %v347, 7
        %v349 = vsub.s32 %v346, %v348
        %v350 = vrot.slane %v333, %v349
        %v351 = vcombine.high %v350, %v350
        %vm352 = vsmask.f32 256
        %vm353 = vsmask.f32 1284
        %vm354 = vmor %vm352, %vm353
        %vm355 = vsmask.f32 2312
        %vm356 = vmor %vm354, %vm355
        %vm357 = vsmask.f32 3340
        %vm358 = vmor %vm356, %vm357
        %vm359 = vsmask.f32 4368
        %vm360 = vmor %vm358, %vm359
        %vm361 = vsmask.f32 5396
        %vm362 = vmor %vm360, %vm361
        %vm363 = vsmask.f32 6424
        %vm364 = vmor %vm362, %vm363
        %vm365 = vsmask.f32 7452
        %vm366 = vmor %vm364, %vm365
        %v368 = vshrl.u32 %v342, 16
        %v370 = vrot.slane %v368, 7
        %v371 = vrot.slane %v370, 1
        %v373 = vshll.u32 %v343, 16
        %v375 = vsel %vm366, %v371, %v373
        %v377 = vshrl.u32 %v350, 16
        %v379 = vrot.slane %v377, 7
        %v380 = vrot.slane %v379, 1
        %v382 = vshll.u32 %v351, 16
        %v384 = vsel %vm366, %v380, %v382
        %s385 = scalar_lea.vmem %s1, 128
        %v386 = vld [vmem:[%s385] sm:$0xf]
        %v387 = vld [vmem:[%s385 + $0x4] sm:$0xf]
        %v388 = vld [vmem:[%s385 + $0x8] sm:$0xf]
        %v389 = vld [vmem:[%s385 + $0xc] sm:$0xf]
        %v390 = vld [vmem:[%s385 + $0x10] sm:$0xf]
        %v391 = vld [vmem:[%s385 + $0x14] sm:$0xf]
        %v392 = vld [vmem:[%s385 + $0x18] sm:$0xf]
        %v393 = vld [vmem:[%s385 + $0x1c] sm:$0xf]
        %v394 = vld [vmem:[%s385 + $0x20] sm:$0xf]
        %v395 = vld [vmem:[%s385 + $0x24] sm:$0xf]
        %v396 = vld [vmem:[%s385 + $0x28] sm:$0xf]
        %v397 = vld [vmem:[%s385 + $0x2c] sm:$0xf]
        %v398 = vld [vmem:[%s385 + $0x30] sm:$0xf]
        %v399 = vld [vmem:[%s385 + $0x34] sm:$0xf]
        %v400 = vld [vmem:[%s385 + $0x38] sm:$0xf]
        %v401 = vld [vmem:[%s385 + $0x3c] sm:$0xf]
        %v402 = vcombine.low %v375, %v384
        %v404 = vunpack.c.l.s4 1966171168
        %v405 = vunpack.c.0.s8 %v404
        %v406 = vlaneseq
        %v407 = vshrl.u32 %v406, 7
        %v408 = vsub.s32 %v405, %v407
        %v409 = vrot.slane %v402, %v408
        %v411 = vunpack.c.l.s4 1966171168
        %v412 = vunpack.c.0.s8 %v411
        %v413 = vlaneseq
        %v414 = vshrl.u32 %v413, 7
        %v415 = vsub.s32 %v412, %v414
        %v416 = vrot.slane %v409, %v415
        %v434 = vunpack.c.l.b16 %v386
        %v435 = vunpack.c.l.b16 %v387
        %v436 = vunpack.c.l.b16 %v388
        %v437 = vunpack.c.l.b16 %v389
        %v438 = vunpack.c.l.b16 %v390
        %v439 = vunpack.c.l.b16 %v391
        %v440 = vunpack.c.l.b16 %v392
        %v441 = vunpack.c.l.b16 %v393
        %v442 = vunpack.c.l.b16 %v394
        %v443 = vunpack.c.l.b16 %v395
        %v444 = vunpack.c.l.b16 %v396
        %v445 = vunpack.c.l.b16 %v397
        %v446 = vunpack.c.l.b16 %v398
        %v447 = vunpack.c.l.b16 %v399
        %v448 = vunpack.c.l.b16 %v400
        %v449 = vunpack.c.l.b16 %v401
        %v450 = vpack.c.b16 %v435, %v434
        %v451 = vpack.c.b16 %v437, %v436
        %v452 = vpack.c.b16 %v439, %v438
        %v453 = vpack.c.b16 %v441, %v440
        %v454 = vpack.c.b16 %v443, %v442
        %v455 = vpack.c.b16 %v445, %v444
        %v456 = vpack.c.b16 %v447, %v446
        %v457 = vpack.c.b16 %v449, %v448
        %466 = vmatprep.subr.bf16.mxu0 0
        %467 = vmatpush1.bf16.msra.mxu0 %v457
        %468 = vmatprep.subr.bf16.mxu0 0
        %469 = vmatpush1.bf16.msra.mxu0 %v456
        %470 = vmatprep.subr.bf16.mxu0 0
        %471 = vmatpush1.bf16.msra.mxu0 %v455
        %472 = vmatprep.subr.bf16.mxu0 0
        %473 = vmatpush1.bf16.msra.mxu0 %v454
        %474 = vmatprep.subr.bf16.mxu0 0
        %475 = vmatpush1.bf16.msra.mxu0 %v453
        %476 = vmatprep.subr.bf16.mxu0 0
        %477 = vmatpush1.bf16.msra.mxu0 %v452
        %478 = vmatprep.subr.bf16.mxu0 0
        %479 = vmatpush1.bf16.msra.mxu0 %v451
        %480 = vmatprep.subr.bf16.mxu0 0
        %481 = vmatpush1.bf16.msra.mxu0 %v450
        %482 = vmatprep.subr.bf16.mxu0 0
        %483 = vmatpush2.bf16.msra.mxu0 0
        %484 = vmatprep.subr.bf16.mxu0 0
        %485 = vmatpush2.bf16.msra.mxu0 0
        %486 = vmatprep.subr.bf16.mxu0 0
        %487 = vmatpush2.bf16.msra.mxu0 0
        %488 = vmatprep.subr.bf16.mxu0 0
        %489 = vmatpush2.bf16.msra.mxu0 0
        %490 = vmatprep.subr.bf16.mxu0 0
        %491 = vmatpush2.bf16.msra.mxu0 0
        %492 = vmatprep.subr.bf16.mxu0 0
        %493 = vmatpush2.bf16.msra.mxu0 0
        %494 = vmatprep.subr.bf16.mxu0 0
        %495 = vmatpush2.bf16.msra.mxu0 0
        %496 = vmatprep.subr.bf16.mxu0 0
        %497 = vmatpush2.bf16.msra.mxu0 0
        %498 = vmatprep.mubr.bf16.mxu0 0
        %499 = vmatmul.mubr.bf16.gmra.mxu0 %v416
        %v500 = vpop.f32.mrf.mxu0
        %v501 = vadd.f32 0.0, %v500
        %v502 = vpop.f32.mrf.mxu0
        %v503 = vpop.f32.mrf.mxu0
        %v504 = vpop.f32.mrf.mxu0
        %505 = vdwg.mxu0
        %v508 = vcombine.low %v313, %v314
        %v510 = vunpack.c.l.s4 1966171168
        %v511 = vunpack.c.0.s8 %v510
        %v512 = vlaneseq
        %v513 = vshrl.u32 %v512, 7
        %v514 = vsub.s32 %v511, %v513
        %v515 = vrot.slane %v508, %v514
        %v517 = vunpack.c.l.s4 1966171168
        %v518 = vunpack.c.0.s8 %v517
        %v519 = vlaneseq
        %v520 = vshrl.u32 %v519, 7
        %v521 = vsub.s32 %v518, %v520
        %v522 = vrot.slane %v515, %v521
        %v540 = vunpack.c.l.b16 %v316
        %v541 = vunpack.c.l.b16 %v317
        %v542 = vunpack.c.l.b16 %v318
        %v543 = vunpack.c.l.b16 %v319
        %v544 = vunpack.c.l.b16 %v320
        %v545 = vunpack.c.l.b16 %v321
        %v546 = vunpack.c.l.b16 %v322
        %v547 = vunpack.c.l.b16 %v323
        %v548 = vunpack.c.l.b16 %v324
        %v549 = vunpack.c.l.b16 %v325
        %v550 = vunpack.c.l.b16 %v326
        %v551 = vunpack.c.l.b16 %v327
        %v552 = vunpack.c.l.b16 %v328
        %v553 = vunpack.c.l.b16 %v329
        %v554 = vunpack.c.l.b16 %v330
        %v555 = vunpack.c.l.b16 %v331
        %v556 = vpack.c.b16 %v541, %v540
        %v557 = vpack.c.b16 %v543, %v542
        %v558 = vpack.c.b16 %v545, %v544
        %v559 = vpack.c.b16 %v547, %v546
        %v560 = vpack.c.b16 %v549, %v548
        %v561 = vpack.c.b16 %v551, %v550
        %v562 = vpack.c.b16 %v553, %v552
        %v563 = vpack.c.b16 %v555, %v554
        %572 = vmatprep.subr.bf16.mxu0 0
        %573 = vmatpush1.bf16.msra.mxu0 %v563
        %574 = vmatprep.subr.bf16.mxu0 0
        %575 = vmatpush1.bf16.msra.mxu0 %v562
        %576 = vmatprep.subr.bf16.mxu0 0
        %577 = vmatpush1.bf16.msra.mxu0 %v561
        %578 = vmatprep.subr.bf16.mxu0 0
        %579 = vmatpush1.bf16.msra.mxu0 %v560
        %580 = vmatprep.subr.bf16.mxu0 0
        %581 = vmatpush1.bf16.msra.mxu0 %v559
        %582 = vmatprep.subr.bf16.mxu0 0
        %583 = vmatpush1.bf16.msra.mxu0 %v558
        %584 = vmatprep.subr.bf16.mxu0 0
        %585 = vmatpush1.bf16.msra.mxu0 %v557
        %586 = vmatprep.subr.bf16.mxu0 0
        %587 = vmatpush1.bf16.msra.mxu0 %v556
        %588 = vmatprep.subr.bf16.mxu0 0
        %589 = vmatpush2.bf16.msra.mxu0 0
        %590 = vmatprep.subr.bf16.mxu0 0
        %591 = vmatpush2.bf16.msra.mxu0 0
        %592 = vmatprep.subr.bf16.mxu0 0
        %593 = vmatpush2.bf16.msra.mxu0 0
        %594 = vmatprep.subr.bf16.mxu0 0
        %595 = vmatpush2.bf16.msra.mxu0 0
        %596 = vmatprep.subr.bf16.mxu0 0
        %597 = vmatpush2.bf16.msra.mxu0 0
        %598 = vmatprep.subr.bf16.mxu0 0
        %599 = vmatpush2.bf16.msra.mxu0 0
        %600 = vmatprep.subr.bf16.mxu0 0
        %601 = vmatpush2.bf16.msra.mxu0 0
        %602 = vmatprep.subr.bf16.mxu0 0
        %603 = vmatpush2.bf16.msra.mxu0 0
        %604 = vmatprep.mubr.bf16.mxu0 0
        %605 = vmatmul.mubr.bf16.gmra.mxu0 %v522
        %v606 = vpop.f32.mrf.mxu0
        %v607 = vadd.f32 %v501, %v606
        %v608 = vpop.f32.mrf.mxu0
        %v609 = vpop.f32.mrf.mxu0
        %v610 = vpop.f32.mrf.mxu0
        %611 = vdwg.mxu0
        %v612 = vadd.f32 %v607, %v189
        %v613 = vmax.f32 %v612, 0.0
        %v616 = vunpack.c.l.s4 1983009808
        %v617 = vunpack.c.0.s8 %v616
        %v618 = vlaneseq
        %v619 = vshrl.u32 %v618, 7
        %v620 = vsub.s32 %v617, %v619
        %v621 = vrot.slane %v613, %v620
        %v622 = vcombine.high %v621, %v621
        %v625 = vpack.c.bf16 %v621, %v621
        %v626 = vpack.c.bf16 %v622, %v622
        %s627 = scalar_lea.vmem %s159, 2 [#allocation2]
        %628 = vst [vmem:[%s627] sm:$0x1] %v625
        %629 = vst [vmem:[%s627 + $0x1] sm:$0x1] %v626
        %v630 = vld [vmem:[%s164] sm:$0x1]
        %v631 = vld [vmem:[%s164 + $0x2] sm:$0x1]
        %s632 = scalar_lea.vmem %s1, 192
        %v633 = vld [vmem:[%s632] sm:$0xf]
        %v634 = vld [vmem:[%s632 + $0x4] sm:$0xf]
        %v635 = vld [vmem:[%s632 + $0x8] sm:$0xf]
        %v636 = vld [vmem:[%s632 + $0xc] sm:$0xf]
        %v637 = vld [vmem:[%s632 + $0x10] sm:$0xf]
        %v638 = vld [vmem:[%s632 + $0x14] sm:$0xf]
        %v639 = vld [vmem:[%s632 + $0x18] sm:$0xf]
        %v640 = vld [vmem:[%s632 + $0x1c] sm:$0xf]
        %v641 = vld [vmem:[%s632 + $0x20] sm:$0xf]
        %v642 = vld [vmem:[%s632 + $0x24] sm:$0xf]
        %v643 = vld [vmem:[%s632 + $0x28] sm:$0xf]
        %v644 = vld [vmem:[%s632 + $0x2c] sm:$0xf]
        %v645 = vld [vmem:[%s632 + $0x30] sm:$0xf]
        %v646 = vld [vmem:[%s632 + $0x34] sm:$0xf]
        %v647 = vld [vmem:[%s632 + $0x38] sm:$0xf]
        %v648 = vld [vmem:[%s632 + $0x3c] sm:$0xf]
        %s649 = scalar_lea.vmem %s164, 2
        %v650 = vld [vmem:[%s649] sm:$0x1]
        %v651 = vld [vmem:[%s649 + $0x2] sm:$0x1]
        %s652 = scalar_lea.vmem %s1, 256
        %v653 = vld [vmem:[%s652] sm:$0xf]
        %v654 = vld [vmem:[%s652 + $0x4] sm:$0xf]
        %v655 = vld [vmem:[%s652 + $0x8] sm:$0xf]
        %v656 = vld [vmem:[%s652 + $0xc] sm:$0xf]
        %v657 = vld [vmem:[%s652 + $0x10] sm:$0xf]
        %v658 = vld [vmem:[%s652 + $0x14] sm:$0xf]
        %v659 = vld [vmem:[%s652 + $0x18] sm:$0xf]
        %v660 = vld [vmem:[%s652 + $0x1c] sm:$0xf]
        %v661 = vld [vmem:[%s652 + $0x20] sm:$0xf]
        %v662 = vld [vmem:[%s652 + $0x24] sm:$0xf]
        %v663 = vld [vmem:[%s652 + $0x28] sm:$0xf]
        %v664 = vld [vmem:[%s652 + $0x2c] sm:$0xf]
        %v665 = vld [vmem:[%s652 + $0x30] sm:$0xf]
        %v666 = vld [vmem:[%s652 + $0x34] sm:$0xf]
        %v667 = vld [vmem:[%s652 + $0x38] sm:$0xf]
        %v668 = vld [vmem:[%s652 + $0x3c] sm:$0xf]
        %v671 = vcombine.low %v650, %v651
        %v673 = vunpack.c.l.s4 1966171168
        %v674 = vunpack.c.0.s8 %v673
        %v675 = vlaneseq
        %v676 = vshrl.u32 %v675, 7
        %v677 = vsub.s32 %v674, %v676
        %v678 = vrot.slane %v671, %v677
        %v680 = vunpack.c.l.s4 1966171168
        %v681 = vunpack.c.0.s8 %v680
        %v682 = vlaneseq
        %v683 = vshrl.u32 %v682, 7
        %v684 = vsub.s32 %v681, %v683
        %v685 = vrot.slane %v678, %v684
        %v703 = vunpack.c.l.b16 %v653
        %v704 = vunpack.c.l.b16 %v654
        %v705 = vunpack.c.l.b16 %v655
        %v706 = vunpack.c.l.b16 %v656
        %v707 = vunpack.c.l.b16 %v657
        %v708 = vunpack.c.l.b16 %v658
        %v709 = vunpack.c.l.b16 %v659
        %v710 = vunpack.c.l.b16 %v660
        %v711 = vunpack.c.l.b16 %v661
        %v712 = vunpack.c.l.b16 %v662
        %v713 = vunpack.c.l.b16 %v663
        %v714 = vunpack.c.l.b16 %v664
        %v715 = vunpack.c.l.b16 %v665
        %v716 = vunpack.c.l.b16 %v666
        %v717 = vunpack.c.l.b16 %v667
        %v718 = vunpack.c.l.b16 %v668
        %v719 = vpack.c.b16 %v704, %v703
        %v720 = vpack.c.b16 %v706, %v705
        %v721 = vpack.c.b16 %v708, %v707
        %v722 = vpack.c.b16 %v710, %v709
        %v723 = vpack.c.b16 %v712, %v711
        %v724 = vpack.c.b16 %v714, %v713
        %v725 = vpack.c.b16 %v716, %v715
        %v726 = vpack.c.b16 %v718, %v717
        %735 = vmatprep.subr.bf16.mxu0 0
        %736 = vmatpush1.bf16.msra.mxu0 %v726
        %737 = vmatprep.subr.bf16.mxu0 0
        %738 = vmatpush1.bf16.msra.mxu0 %v725
        %739 = vmatprep.subr.bf16.mxu0 0
        %740 = vmatpush1.bf16.msra.mxu0 %v724
        %741 = vmatprep.subr.bf16.mxu0 0
        %742 = vmatpush1.bf16.msra.mxu0 %v723
        %743 = vmatprep.subr.bf16.mxu0 0
        %744 = vmatpush1.bf16.msra.mxu0 %v722
        %745 = vmatprep.subr.bf16.mxu0 0
        %746 = vmatpush1.bf16.msra.mxu0 %v721
        %747 = vmatprep.subr.bf16.mxu0 0
        %748 = vmatpush1.bf16.msra.mxu0 %v720
        %749 = vmatprep.subr.bf16.mxu0 0
        %750 = vmatpush1.bf16.msra.mxu0 %v719
        %751 = vmatprep.subr.bf16.mxu0 0
        %752 = vmatpush2.bf16.msra.mxu0 0
        %753 = vmatprep.subr.bf16.mxu0 0
        %754 = vmatpush2.bf16.msra.mxu0 0
        %755 = vmatprep.subr.bf16.mxu0 0
        %756 = vmatpush2.bf16.msra.mxu0 0
        %757 = vmatprep.subr.bf16.mxu0 0
        %758 = vmatpush2.bf16.msra.mxu0 0
        %759 = vmatprep.subr.bf16.mxu0 0
        %760 = vmatpush2.bf16.msra.mxu0 0
        %761 = vmatprep.subr.bf16.mxu0 0
        %762 = vmatpush2.bf16.msra.mxu0 0
        %763 = vmatprep.subr.bf16.mxu0 0
        %764 = vmatpush2.bf16.msra.mxu0 0
        %765 = vmatprep.subr.bf16.mxu0 0
        %766 = vmatpush2.bf16.msra.mxu0 0
        %767 = vmatprep.mubr.bf16.mxu0 0
        %768 = vmatmul.mubr.bf16.gmra.mxu0 %v685
        %v769 = vpop.f32.mrf.mxu0
        %v770 = vadd.f32 0.0, %v769
        %v771 = vpop.f32.mrf.mxu0
        %v772 = vpop.f32.mrf.mxu0
        %v773 = vpop.f32.mrf.mxu0
        %774 = vdwg.mxu0
        %v777 = vcombine.low %v630, %v631
        %v779 = vunpack.c.l.s4 1966171168
        %v780 = vunpack.c.0.s8 %v779
        %v781 = vlaneseq
        %v782 = vshrl.u32 %v781, 7
        %v783 = vsub.s32 %v780, %v782
        %v784 = vrot.slane %v777, %v783
        %v786 = vunpack.c.l.s4 1966171168
        %v787 = vunpack.c.0.s8 %v786
        %v788 = vlaneseq
        %v789 = vshrl.u32 %v788, 7
        %v790 = vsub.s32 %v787, %v789
        %v791 = vrot.slane %v784, %v790
        %v809 = vunpack.c.l.b16 %v633
        %v810 = vunpack.c.l.b16 %v634
        %v811 = vunpack.c.l.b16 %v635
        %v812 = vunpack.c.l.b16 %v636
        %v813 = vunpack.c.l.b16 %v637
        %v814 = vunpack.c.l.b16 %v638
        %v815 = vunpack.c.l.b16 %v639
        %v816 = vunpack.c.l.b16 %v640
        %v817 = vunpack.c.l.b16 %v641
        %v818 = vunpack.c.l.b16 %v642
        %v819 = vunpack.c.l.b16 %v643
        %v820 = vunpack.c.l.b16 %v644
        %v821 = vunpack.c.l.b16 %v645
        %v822 = vunpack.c.l.b16 %v646
        %v823 = vunpack.c.l.b16 %v647
        %v824 = vunpack.c.l.b16 %v648
        %v825 = vpack.c.b16 %v810, %v809
        %v826 = vpack.c.b16 %v812, %v811
        %v827 = vpack.c.b16 %v814, %v813
        %v828 = vpack.c.b16 %v816, %v815
        %v829 = vpack.c.b16 %v818, %v817
        %v830 = vpack.c.b16 %v820, %v819
        %v831 = vpack.c.b16 %v822, %v821
        %v832 = vpack.c.b16 %v824, %v823
        %841 = vmatprep.subr.bf16.mxu0 0
        %842 = vmatpush1.bf16.msra.mxu0 %v832
        %843 = vmatprep.subr.bf16.mxu0 0
        %844 = vmatpush1.bf16.msra.mxu0 %v831
        %845 = vmatprep.subr.bf16.mxu0 0
        %846 = vmatpush1.bf16.msra.mxu0 %v830
        %847 = vmatprep.subr.bf16.mxu0 0
        %848 = vmatpush1.bf16.msra.mxu0 %v829
        %849 = vmatprep.subr.bf16.mxu0 0
        %850 = vmatpush1.bf16.msra.mxu0 %v828
        %851 = vmatprep.subr.bf16.mxu0 0
        %852 = vmatpush1.bf16.msra.mxu0 %v827
        %853 = vmatprep.subr.bf16.mxu0 0
        %854 = vmatpush1.bf16.msra.mxu0 %v826
        %855 = vmatprep.subr.bf16.mxu0 0
        %856 = vmatpush1.bf16.msra.mxu0 %v825
        %857 = vmatprep.subr.bf16.mxu0 0
        %858 = vmatpush2.bf16.msra.mxu0 0
        %859 = vmatprep.subr.bf16.mxu0 0
        %860 = vmatpush2.bf16.msra.mxu0 0
        %861 = vmatprep.subr.bf16.mxu0 0
        %862 = vmatpush2.bf16.msra.mxu0 0
        %863 = vmatprep.subr.bf16.mxu0 0
        %864 = vmatpush2.bf16.msra.mxu0 0
        %865 = vmatprep.subr.bf16.mxu0 0
        %866 = vmatpush2.bf16.msra.mxu0 0
        %867 = vmatprep.subr.bf16.mxu0 0
        %868 = vmatpush2.bf16.msra.mxu0 0
        %869 = vmatprep.subr.bf16.mxu0 0
        %870 = vmatpush2.bf16.msra.mxu0 0
        %871 = vmatprep.subr.bf16.mxu0 0
        %872 = vmatpush2.bf16.msra.mxu0 0
        %873 = vmatprep.mubr.bf16.mxu0 0
        %874 = vmatmul.mubr.bf16.gmra.mxu0 %v791
        %v875 = vpop.f32.mrf.mxu0
        %v876 = vadd.f32 %v770, %v875
        %v877 = vpop.f32.mrf.mxu0
        %v878 = vpop.f32.mrf.mxu0
        %v879 = vpop.f32.mrf.mxu0
        %880 = vdwg.mxu0
        %v881 = vadd.f32 %v876, %v189
        %v882 = vmax.f32 %v881, 0.0
        %v885 = vunpack.c.l.s4 1983009808
        %v886 = vunpack.c.0.s8 %v885
        %v887 = vlaneseq
        %v888 = vshrl.u32 %v887, 7
        %v889 = vsub.s32 %v886, %v888
        %v890 = vrot.slane %v882, %v889
        %v891 = vcombine.high %v890, %v890
        %v894 = vpack.c.bf16 %v890, %v890
        %v895 = vpack.c.bf16 %v891, %v891
        %s896 = scalar_lea.vmem %s159, 4 [#allocation2]
        %897 = vst [vmem:[%s896] sm:$0x1] %v894
        %898 = vst [vmem:[%s896 + $0x1] sm:$0x1] %v895
        %v899 = vld [vmem:[%s164] sm:$0x1]
        %v900 = vld [vmem:[%s164 + $0x2] sm:$0x1]
        %s901 = scalar_lea.vmem %s1, 320
        %v902 = vld [vmem:[%s901] sm:$0xf]
        %v903 = vld [vmem:[%s901 + $0x4] sm:$0xf]
        %v904 = vld [vmem:[%s901 + $0x8] sm:$0xf]
        %v905 = vld [vmem:[%s901 + $0xc] sm:$0xf]
        %v906 = vld [vmem:[%s901 + $0x10] sm:$0xf]
        %v907 = vld [vmem:[%s901 + $0x14] sm:$0xf]
        %v908 = vld [vmem:[%s901 + $0x18] sm:$0xf]
        %v909 = vld [vmem:[%s901 + $0x1c] sm:$0xf]
        %v910 = vld [vmem:[%s901 + $0x20] sm:$0xf]
        %v911 = vld [vmem:[%s901 + $0x24] sm:$0xf]
        %v912 = vld [vmem:[%s901 + $0x28] sm:$0xf]
        %v913 = vld [vmem:[%s901 + $0x2c] sm:$0xf]
        %v914 = vld [vmem:[%s901 + $0x30] sm:$0xf]
        %v915 = vld [vmem:[%s901 + $0x34] sm:$0xf]
        %v916 = vld [vmem:[%s901 + $0x38] sm:$0xf]
        %v917 = vld [vmem:[%s901 + $0x3c] sm:$0xf]
        %v918 = vld [vmem:[%s164] sm:$0x3]
        %v919 = vld [vmem:[%s164 + $0x2] sm:$0x3]
        %v923 = vunpack.c.l.s4 1966171168
        %v924 = vunpack.c.0.s8 %v923
        %v925 = vlaneseq
        %v926 = vshrl.u32 %v925, 7
        %v927 = vsub.s32 %v924, %v926
        %v928 = vrot.slane %v918, %v927
        %v929 = vcombine.high %v928, %v928
        %v931 = vunpack.c.l.s4 1966171168
        %v932 = vunpack.c.0.s8 %v931
        %v933 = vlaneseq
        %v934 = vshrl.u32 %v933, 7
        %v935 = vsub.s32 %v932, %v934
        %v936 = vrot.slane %v919, %v935
        %v937 = vcombine.high %v936, %v936
        %v939 = vshrl.u32 %v928, 16
        %v941 = vrot.slane %v939, 7
        %v942 = vrot.slane %v941, 1
        %v944 = vshll.u32 %v929, 16
        %v946 = vsel %vm366, %v942, %v944
        %v948 = vshrl.u32 %v936, 16
        %v950 = vrot.slane %v948, 7
        %v951 = vrot.slane %v950, 1
        %v953 = vshll.u32 %v937, 16
        %v955 = vsel %vm366, %v951, %v953
        %s956 = scalar_lea.vmem %s1, 384
        %v957 = vld [vmem:[%s956] sm:$0xf]
        %v958 = vld [vmem:[%s956 + $0x4] sm:$0xf]
        %v959 = vld [vmem:[%s956 + $0x8] sm:$0xf]
        %v960 = vld [vmem:[%s956 + $0xc] sm:$0xf]
        %v961 = vld [vmem:[%s956 + $0x10] sm:$0xf]
        %v962 = vld [vmem:[%s956 + $0x14] sm:$0xf]
        %v963 = vld [vmem:[%s956 + $0x18] sm:$0xf]
        %v964 = vld [vmem:[%s956 + $0x1c] sm:$0xf]
        %v965 = vld [vmem:[%s956 + $0x20] sm:$0xf]
        %v966 = vld [vmem:[%s956 + $0x24] sm:$0xf]
        %v967 = vld [vmem:[%s956 + $0x28] sm:$0xf]
        %v968 = vld [vmem:[%s956 + $0x2c] sm:$0xf]
        %v969 = vld [vmem:[%s956 + $0x30] sm:$0xf]
        %v970 = vld [vmem:[%s956 + $0x34] sm:$0xf]
        %v971 = vld [vmem:[%s956 + $0x38] sm:$0xf]
        %v972 = vld [vmem:[%s956 + $0x3c] sm:$0xf]
        %v973 = vcombine.low %v946, %v955
        %v975 = vunpack.c.l.s4 1966171168
        %v976 = vunpack.c.0.s8 %v975
        %v977 = vlaneseq
        %v978 = vshrl.u32 %v977, 7
        %v979 = vsub.s32 %v976, %v978
        %v980 = vrot.slane %v973, %v979
        %v982 = vunpack.c.l.s4 1966171168
        %v983 = vunpack.c.0.s8 %v982
        %v984 = vlaneseq
        %v985 = vshrl.u32 %v984, 7
        %v986 = vsub.s32 %v983, %v985
        %v987 = vrot.slane %v980, %v986
        %v1005 = vunpack.c.l.b16 %v957
        %v1006 = vunpack.c.l.b16 %v958
        %v1007 = vunpack.c.l.b16 %v959
        %v1008 = vunpack.c.l.b16 %v960
        %v1009 = vunpack.c.l.b16 %v961
        %v1010 = vunpack.c.l.b16 %v962
        %v1011 = vunpack.c.l.b16 %v963
        %v1012 = vunpack.c.l.b16 %v964
        %v1013 = vunpack.c.l.b16 %v965
        %v1014 = vunpack.c.l.b16 %v966
        %v1015 = vunpack.c.l.b16 %v967
        %v1016 = vunpack.c.l.b16 %v968
        %v1017 = vunpack.c.l.b16 %v969
        %v1018 = vunpack.c.l.b16 %v970
        %v1019 = vunpack.c.l.b16 %v971
        %v1020 = vunpack.c.l.b16 %v972
        %v1021 = vpack.c.b16 %v1006, %v1005
        %v1022 = vpack.c.b16 %v1008, %v1007
        %v1023 = vpack.c.b16 %v1010, %v1009
        %v1024 = vpack.c.b16 %v1012, %v1011
        %v1025 = vpack.c.b16 %v1014, %v1013
        %v1026 = vpack.c.b16 %v1016, %v1015
        %v1027 = vpack.c.b16 %v1018, %v1017
        %v1028 = vpack.c.b16 %v1020, %v1019
        %1037 = vmatprep.subr.bf16.mxu0 0
        %1038 = vmatpush1.bf16.msra.mxu0 %v1028
        %1039 = vmatprep.subr.bf16.mxu0 0
        %1040 = vmatpush1.bf16.msra.mxu0 %v1027
        %1041 = vmatprep.subr.bf16.mxu0 0
        %1042 = vmatpush1.bf16.msra.mxu0 %v1026
        %1043 = vmatprep.subr.bf16.mxu0 0
        %1044 = vmatpush1.bf16.msra.mxu0 %v1025
        %1045 = vmatprep.subr.bf16.mxu0 0
        %1046 = vmatpush1.bf16.msra.mxu0 %v1024
        %1047 = vmatprep.subr.bf16.mxu0 0
        %1048 = vmatpush1.bf16.msra.mxu0 %v1023
        %1049 = vmatprep.subr.bf16.mxu0 0
        %1050 = vmatpush1.bf16.msra.mxu0 %v1022
        %1051 = vmatprep.subr.bf16.mxu0 0
        %1052 = vmatpush1.bf16.msra.mxu0 %v1021
        %1053 = vmatprep.subr.bf16.mxu0 0
        %1054 = vmatpush2.bf16.msra.mxu0 0
        %1055 = vmatprep.subr.bf16.mxu0 0
        %1056 = vmatpush2.bf16.msra.mxu0 0
        %1057 = vmatprep.subr.bf16.mxu0 0
        %1058 = vmatpush2.bf16.msra.mxu0 0
        %1059 = vmatprep.subr.bf16.mxu0 0
        %1060 = vmatpush2.bf16.msra.mxu0 0
        %1061 = vmatprep.subr.bf16.mxu0 0
        %1062 = vmatpush2.bf16.msra.mxu0 0
        %1063 = vmatprep.subr.bf16.mxu0 0
        %1064 = vmatpush2.bf16.msra.mxu0 0
        %1065 = vmatprep.subr.bf16.mxu0 0
        %1066 = vmatpush2.bf16.msra.mxu0 0
        %1067 = vmatprep.subr.bf16.mxu0 0
        %1068 = vmatpush2.bf16.msra.mxu0 0
        %1069 = vmatprep.mubr.bf16.mxu0 0
        %1070 = vmatmul.mubr.bf16.gmra.mxu0 %v987
        %v1071 = vpop.f32.mrf.mxu0
        %v1072 = vadd.f32 0.0, %v1071
        %v1073 = vpop.f32.mrf.mxu0
        %v1074 = vpop.f32.mrf.mxu0
        %v1075 = vpop.f32.mrf.mxu0
        %1076 = vdwg.mxu0
        %v1079 = vcombine.low %v899, %v900
        %v1081 = vunpack.c.l.s4 1966171168
        %v1082 = vunpack.c.0.s8 %v1081
        %v1083 = vlaneseq
        %v1084 = vshrl.u32 %v1083, 7
        %v1085 = vsub.s32 %v1082, %v1084
        %v1086 = vrot.slane %v1079, %v1085
        %v1088 = vunpack.c.l.s4 1966171168
        %v1089 = vunpack.c.0.s8 %v1088
        %v1090 = vlaneseq
        %v1091 = vshrl.u32 %v1090, 7
        %v1092 = vsub.s32 %v1089, %v1091
        %v1093 = vrot.slane %v1086, %v1092
        %v1111 = vunpack.c.l.b16 %v902
        %v1112 = vunpack.c.l.b16 %v903
        %v1113 = vunpack.c.l.b16 %v904
        %v1114 = vunpack.c.l.b16 %v905
        %v1115 = vunpack.c.l.b16 %v906
        %v1116 = vunpack.c.l.b16 %v907
        %v1117 = vunpack.c.l.b16 %v908
        %v1118 = vunpack.c.l.b16 %v909
        %v1119 = vunpack.c.l.b16 %v910
        %v1120 = vunpack.c.l.b16 %v911
        %v1121 = vunpack.c.l.b16 %v912
        %v1122 = vunpack.c.l.b16 %v913
        %v1123 = vunpack.c.l.b16 %v914
        %v1124 = vunpack.c.l.b16 %v915
        %v1125 = vunpack.c.l.b16 %v916
        %v1126 = vunpack.c.l.b16 %v917
        %v1127 = vpack.c.b16 %v1112, %v1111
        %v1128 = vpack.c.b16 %v1114, %v1113
        %v1129 = vpack.c.b16 %v1116, %v1115
        %v1130 = vpack.c.b16 %v1118, %v1117
        %v1131 = vpack.c.b16 %v1120, %v1119
        %v1132 = vpack.c.b16 %v1122, %v1121
        %v1133 = vpack.c.b16 %v1124, %v1123
        %v1134 = vpack.c.b16 %v1126, %v1125
        %1143 = vmatprep.subr.bf16.mxu0 0
        %1144 = vmatpush1.bf16.msra.mxu0 %v1134
        %1145 = vmatprep.subr.bf16.mxu0 0
        %1146 = vmatpush1.bf16.msra.mxu0 %v1133
        %1147 = vmatprep.subr.bf16.mxu0 0
        %1148 = vmatpush1.bf16.msra.mxu0 %v1132
        %1149 = vmatprep.subr.bf16.mxu0 0
        %1150 = vmatpush1.bf16.msra.mxu0 %v1131
        %1151 = vmatprep.subr.bf16.mxu0 0
        %1152 = vmatpush1.bf16.msra.mxu0 %v1130
        %1153 = vmatprep.subr.bf16.mxu0 0
        %1154 = vmatpush1.bf16.msra.mxu0 %v1129
        %1155 = vmatprep.subr.bf16.mxu0 0
        %1156 = vmatpush1.bf16.msra.mxu0 %v1128
        %1157 = vmatprep.subr.bf16.mxu0 0
        %1158 = vmatpush1.bf16.msra.mxu0 %v1127
        %1159 = vmatprep.subr.bf16.mxu0 0
        %1160 = vmatpush2.bf16.msra.mxu0 0
        %1161 = vmatprep.subr.bf16.mxu0 0
        %1162 = vmatpush2.bf16.msra.mxu0 0
        %1163 = vmatprep.subr.bf16.mxu0 0
        %1164 = vmatpush2.bf16.msra.mxu0 0
        %1165 = vmatprep.subr.bf16.mxu0 0
        %1166 = vmatpush2.bf16.msra.mxu0 0
        %1167 = vmatprep.subr.bf16.mxu0 0
        %1168 = vmatpush2.bf16.msra.mxu0 0
        %1169 = vmatprep.subr.bf16.mxu0 0
        %1170 = vmatpush2.bf16.msra.mxu0 0
        %1171 = vmatprep.subr.bf16.mxu0 0
        %1172 = vmatpush2.bf16.msra.mxu0 0
        %1173 = vmatprep.subr.bf16.mxu0 0
        %1174 = vmatpush2.bf16.msra.mxu0 0
        %1175 = vmatprep.mubr.bf16.mxu0 0
        %1176 = vmatmul.mubr.bf16.gmra.mxu0 %v1093
        %v1177 = vpop.f32.mrf.mxu0
        %v1178 = vadd.f32 %v1072, %v1177
        %v1179 = vpop.f32.mrf.mxu0
        %v1180 = vpop.f32.mrf.mxu0
        %v1181 = vpop.f32.mrf.mxu0
        %1182 = vdwg.mxu0
        %v1183 = vld [vmem:[%s649] sm:$0x1]
        %v1184 = vld [vmem:[%s649 + $0x2] sm:$0x1]
        %s1185 = scalar_lea.vmem %s1, 448
        %v1186 = vld [vmem:[%s1185] sm:$0xf]
        %v1187 = vld [vmem:[%s1185 + $0x4] sm:$0xf]
        %v1188 = vld [vmem:[%s1185 + $0x8] sm:$0xf]
        %v1189 = vld [vmem:[%s1185 + $0xc] sm:$0xf]
        %v1190 = vld [vmem:[%s1185 + $0x10] sm:$0xf]
        %v1191 = vld [vmem:[%s1185 + $0x14] sm:$0xf]
        %v1192 = vld [vmem:[%s1185 + $0x18] sm:$0xf]
        %v1193 = vld [vmem:[%s1185 + $0x1c] sm:$0xf]
        %v1194 = vld [vmem:[%s1185 + $0x20] sm:$0xf]
        %v1195 = vld [vmem:[%s1185 + $0x24] sm:$0xf]
        %v1196 = vld [vmem:[%s1185 + $0x28] sm:$0xf]
        %v1197 = vld [vmem:[%s1185 + $0x2c] sm:$0xf]
        %v1198 = vld [vmem:[%s1185 + $0x30] sm:$0xf]
        %v1199 = vld [vmem:[%s1185 + $0x34] sm:$0xf]
        %v1200 = vld [vmem:[%s1185 + $0x38] sm:$0xf]
        %v1201 = vld [vmem:[%s1185 + $0x3c] sm:$0xf]
        %v1204 = vcombine.low %v1183, %v1184
        %v1206 = vunpack.c.l.s4 1966171168
        %v1207 = vunpack.c.0.s8 %v1206
        %v1208 = vlaneseq
        %v1209 = vshrl.u32 %v1208, 7
        %v1210 = vsub.s32 %v1207, %v1209
        %v1211 = vrot.slane %v1204, %v1210
        %v1213 = vunpack.c.l.s4 1966171168
        %v1214 = vunpack.c.0.s8 %v1213
        %v1215 = vlaneseq
        %v1216 = vshrl.u32 %v1215, 7
        %v1217 = vsub.s32 %v1214, %v1216
        %v1218 = vrot.slane %v1211, %v1217
        %v1236 = vunpack.c.l.b16 %v1186
        %v1237 = vunpack.c.l.b16 %v1187
        %v1238 = vunpack.c.l.b16 %v1188
        %v1239 = vunpack.c.l.b16 %v1189
        %v1240 = vunpack.c.l.b16 %v1190
        %v1241 = vunpack.c.l.b16 %v1191
        %v1242 = vunpack.c.l.b16 %v1192
        %v1243 = vunpack.c.l.b16 %v1193
        %v1244 = vunpack.c.l.b16 %v1194
        %v1245 = vunpack.c.l.b16 %v1195
        %v1246 = vunpack.c.l.b16 %v1196
        %v1247 = vunpack.c.l.b16 %v1197
        %v1248 = vunpack.c.l.b16 %v1198
        %v1249 = vunpack.c.l.b16 %v1199
        %v1250 = vunpack.c.l.b16 %v1200
        %v1251 = vunpack.c.l.b16 %v1201
        %v1252 = vpack.c.b16 %v1237, %v1236
        %v1253 = vpack.c.b16 %v1239, %v1238
        %v1254 = vpack.c.b16 %v1241, %v1240
        %v1255 = vpack.c.b16 %v1243, %v1242
        %v1256 = vpack.c.b16 %v1245, %v1244
        %v1257 = vpack.c.b16 %v1247, %v1246
        %v1258 = vpack.c.b16 %v1249, %v1248
        %v1259 = vpack.c.b16 %v1251, %v1250
        %1268 = vmatprep.subr.bf16.mxu0 0
        %1269 = vmatpush1.bf16.msra.mxu0 %v1259
        %1270 = vmatprep.subr.bf16.mxu0 0
        %1271 = vmatpush1.bf16.msra.mxu0 %v1258
        %1272 = vmatprep.subr.bf16.mxu0 0
        %1273 = vmatpush1.bf16.msra.mxu0 %v1257
        %1274 = vmatprep.subr.bf16.mxu0 0
        %1275 = vmatpush1.bf16.msra.mxu0 %v1256
        %1276 = vmatprep.subr.bf16.mxu0 0
        %1277 = vmatpush1.bf16.msra.mxu0 %v1255
        %1278 = vmatprep.subr.bf16.mxu0 0
        %1279 = vmatpush1.bf16.msra.mxu0 %v1254
        %1280 = vmatprep.subr.bf16.mxu0 0
        %1281 = vmatpush1.bf16.msra.mxu0 %v1253
        %1282 = vmatprep.subr.bf16.mxu0 0
        %1283 = vmatpush1.bf16.msra.mxu0 %v1252
        %1284 = vmatprep.subr.bf16.mxu0 0
        %1285 = vmatpush2.bf16.msra.mxu0 0
        %1286 = vmatprep.subr.bf16.mxu0 0
        %1287 = vmatpush2.bf16.msra.mxu0 0
        %1288 = vmatprep.subr.bf16.mxu0 0
        %1289 = vmatpush2.bf16.msra.mxu0 0
        %1290 = vmatprep.subr.bf16.mxu0 0
        %1291 = vmatpush2.bf16.msra.mxu0 0
        %1292 = vmatprep.subr.bf16.mxu0 0
        %1293 = vmatpush2.bf16.msra.mxu0 0
        %1294 = vmatprep.subr.bf16.mxu0 0
        %1295 = vmatpush2.bf16.msra.mxu0 0
        %1296 = vmatprep.subr.bf16.mxu0 0
        %1297 = vmatpush2.bf16.msra.mxu0 0
        %1298 = vmatprep.subr.bf16.mxu0 0
        %1299 = vmatpush2.bf16.msra.mxu0 0
        %1300 = vmatprep.mubr.bf16.mxu0 0
        %1301 = vmatmul.mubr.bf16.gmra.mxu0 %v1218
        %v1302 = vpop.f32.mrf.mxu0
        %v1303 = vadd.f32 0.0, %v1302
        %v1304 = vpop.f32.mrf.mxu0
        %v1305 = vpop.f32.mrf.mxu0
        %v1306 = vpop.f32.mrf.mxu0
        %1307 = vdwg.mxu0
        %v1308 = vadd.f32 %v1178, %v1303
        %v1309 = vld [vmem:[%s649] sm:$0x3]
        %v1310 = vld [vmem:[%s649 + $0x2] sm:$0x3]
        %v1314 = vunpack.c.l.s4 1966171168
        %v1315 = vunpack.c.0.s8 %v1314
        %v1316 = vlaneseq
        %v1317 = vshrl.u32 %v1316, 7
        %v1318 = vsub.s32 %v1315, %v1317
        %v1319 = vrot.slane %v1309, %v1318
        %v1320 = vcombine.high %v1319, %v1319
        %v1322 = vunpack.c.l.s4 1966171168
        %v1323 = vunpack.c.0.s8 %v1322
        %v1324 = vlaneseq
        %v1325 = vshrl.u32 %v1324, 7
        %v1326 = vsub.s32 %v1323, %v1325
        %v1327 = vrot.slane %v1310, %v1326
        %v1328 = vcombine.high %v1327, %v1327
        %v1330 = vshrl.u32 %v1319, 16
        %v1332 = vrot.slane %v1330, 7
        %v1333 = vrot.slane %v1332, 1
        %v1335 = vshll.u32 %v1320, 16
        %v1337 = vsel %vm366, %v1333, %v1335
        %v1339 = vshrl.u32 %v1327, 16
        %v1341 = vrot.slane %v1339, 7
        %v1342 = vrot.slane %v1341, 1
        %v1344 = vshll.u32 %v1328, 16
        %v1346 = vsel %vm366, %v1342, %v1344
        %s1347 = scalar_lea.vmem %s1, 512
        %v1348 = vld [vmem:[%s1347] sm:$0xf]
        %v1349 = vld [vmem:[%s1347 + $0x4] sm:$0xf]
        %v1350 = vld [vmem:[%s1347 + $0x8] sm:$0xf]
        %v1351 = vld [vmem:[%s1347 + $0xc] sm:$0xf]
        %v1352 = vld [vmem:[%s1347 + $0x10] sm:$0xf]
        %v1353 = vld [vmem:[%s1347 + $0x14] sm:$0xf]
        %v1354 = vld [vmem:[%s1347 + $0x18] sm:$0xf]
        %v1355 = vld [vmem:[%s1347 + $0x1c] sm:$0xf]
        %v1356 = vld [vmem:[%s1347 + $0x20] sm:$0xf]
        %v1357 = vld [vmem:[%s1347 + $0x24] sm:$0xf]
        %v1358 = vld [vmem:[%s1347 + $0x28] sm:$0xf]
        %v1359 = vld [vmem:[%s1347 + $0x2c] sm:$0xf]
        %v1360 = vld [vmem:[%s1347 + $0x30] sm:$0xf]
        %v1361 = vld [vmem:[%s1347 + $0x34] sm:$0xf]
        %v1362 = vld [vmem:[%s1347 + $0x38] sm:$0xf]
        %v1363 = vld [vmem:[%s1347 + $0x3c] sm:$0xf]
        %v1364 = vcombine.low %v1337, %v1346
        %v1366 = vunpack.c.l.s4 1966171168
        %v1367 = vunpack.c.0.s8 %v1366
        %v1368 = vlaneseq
        %v1369 = vshrl.u32 %v1368, 7
        %v1370 = vsub.s32 %v1367, %v1369
        %v1371 = vrot.slane %v1364, %v1370
        %v1373 = vunpack.c.l.s4 1966171168
        %v1374 = vunpack.c.0.s8 %v1373
        %v1375 = vlaneseq
        %v1376 = vshrl.u32 %v1375, 7
        %v1377 = vsub.s32 %v1374, %v1376
        %v1378 = vrot.slane %v1371, %v1377
        %v1396 = vunpack.c.l.b16 %v1348
        %v1397 = vunpack.c.l.b16 %v1349
        %v1398 = vunpack.c.l.b16 %v1350
        %v1399 = vunpack.c.l.b16 %v1351
        %v1400 = vunpack.c.l.b16 %v1352
        %v1401 = vunpack.c.l.b16 %v1353
        %v1402 = vunpack.c.l.b16 %v1354
        %v1403 = vunpack.c.l.b16 %v1355
        %v1404 = vunpack.c.l.b16 %v1356
        %v1405 = vunpack.c.l.b16 %v1357
        %v1406 = vunpack.c.l.b16 %v1358
        %v1407 = vunpack.c.l.b16 %v1359
        %v1408 = vunpack.c.l.b16 %v1360
        %v1409 = vunpack.c.l.b16 %v1361
        %v1410 = vunpack.c.l.b16 %v1362
        %v1411 = vunpack.c.l.b16 %v1363
        %v1412 = vpack.c.b16 %v1397, %v1396
        %v1413 = vpack.c.b16 %v1399, %v1398
        %v1414 = vpack.c.b16 %v1401, %v1400
        %v1415 = vpack.c.b16 %v1403, %v1402
        %v1416 = vpack.c.b16 %v1405, %v1404
        %v1417 = vpack.c.b16 %v1407, %v1406
        %v1418 = vpack.c.b16 %v1409, %v1408
        %v1419 = vpack.c.b16 %v1411, %v1410
        %1428 = vmatprep.subr.bf16.mxu0 0
        %1429 = vmatpush1.bf16.msra.mxu0 %v1419
        %1430 = vmatprep.subr.bf16.mxu0 0
        %1431 = vmatpush1.bf16.msra.mxu0 %v1418
        %1432 = vmatprep.subr.bf16.mxu0 0
        %1433 = vmatpush1.bf16.msra.mxu0 %v1417
        %1434 = vmatprep.subr.bf16.mxu0 0
        %1435 = vmatpush1.bf16.msra.mxu0 %v1416
        %1436 = vmatprep.subr.bf16.mxu0 0
        %1437 = vmatpush1.bf16.msra.mxu0 %v1415
        %1438 = vmatprep.subr.bf16.mxu0 0
        %1439 = vmatpush1.bf16.msra.mxu0 %v1414
        %1440 = vmatprep.subr.bf16.mxu0 0
        %1441 = vmatpush1.bf16.msra.mxu0 %v1413
        %1442 = vmatprep.subr.bf16.mxu0 0
        %1443 = vmatpush1.bf16.msra.mxu0 %v1412
        %1444 = vmatprep.subr.bf16.mxu0 0
        %1445 = vmatpush2.bf16.msra.mxu0 0
        %1446 = vmatprep.subr.bf16.mxu0 0
        %1447 = vmatpush2.bf16.msra.mxu0 0
        %1448 = vmatprep.subr.bf16.mxu0 0
        %1449 = vmatpush2.bf16.msra.mxu0 0
        %1450 = vmatprep.subr.bf16.mxu0 0
        %1451 = vmatpush2.bf16.msra.mxu0 0
        %1452 = vmatprep.subr.bf16.mxu0 0
        %1453 = vmatpush2.bf16.msra.mxu0 0
        %1454 = vmatprep.subr.bf16.mxu0 0
        %1455 = vmatpush2.bf16.msra.mxu0 0
        %1456 = vmatprep.subr.bf16.mxu0 0
        %1457 = vmatpush2.bf16.msra.mxu0 0
        %1458 = vmatprep.subr.bf16.mxu0 0
        %1459 = vmatpush2.bf16.msra.mxu0 0
        %1460 = vmatprep.mubr.bf16.mxu0 0
        %1461 = vmatmul.mubr.bf16.gmra.mxu0 %v1378
        %v1462 = vpop.f32.mrf.mxu0
        %v1463 = vadd.f32 0.0, %v1462
        %v1464 = vpop.f32.mrf.mxu0
        %v1465 = vpop.f32.mrf.mxu0
        %v1466 = vpop.f32.mrf.mxu0
        %1467 = vdwg.mxu0
        %v1468 = vadd.f32 %v1308, %v1463
        %v1469 = vadd.f32 %v1468, %v189
        %v1470 = vmax.f32 %v1469, 0.0
        %v1473 = vunpack.c.l.s4 1983009808
        %v1474 = vunpack.c.0.s8 %v1473
        %v1475 = vlaneseq
        %v1476 = vshrl.u32 %v1475, 7
        %v1477 = vsub.s32 %v1474, %v1476
        %v1478 = vrot.slane %v1470, %v1477
        %v1479 = vcombine.high %v1478, %v1478
        %v1482 = vpack.c.bf16 %v1478, %v1478
        %v1483 = vpack.c.bf16 %v1479, %v1479
        %s1484 = scalar_lea.vmem %s159, 6 [#allocation2]
        %1485 = vst [vmem:[%s1484] sm:$0x1] %v1482
        %1486 = vst [vmem:[%s1484 + $0x1] sm:$0x1] %v1483
        %s1487 = sand.u32 %s90, 1
        %s1488 = sand.u32 %s90, 1
        %s1489 = smul.addr %s1488, 8
        %s1490 = scalar_lea.vmem [#allocation2], %s1489
        // Predicated region
        $region33: #{autoencoder_forward.13} parent=31 // pred_check
          %p1491 = pneg %p100
        $region34: #{autoencoder_forward.13} parent=31 // pred_check_branch
          %1493 = sbr.rel (%p1491) target = $region36
        $region35: #{autoencoder_forward.13} parent=31 // pred_region
          %s1494 = smul.addr %s14, 2
          %s1495 = scalar_lea.vmem %s3, %s1494
          // Predicated region
          $region37: #{autoencoder_forward.13} parent=35 // pred_check
            _
          $region38: #{autoencoder_forward.13} parent=35 // pred_check_branch
            %1497 = sbr.rel (0) target = $region40
          $region39: #{autoencoder_forward.13} parent=35 // pred_region
            // Predicated region
            $region41: #{autoencoder_forward.13} parent=39 // pred_check
              _
            $region42: #{autoencoder_forward.13} parent=39 // pred_check_branch
              %1499 = sbr.rel target = $region44
            $region43: #{autoencoder_forward.13} parent=39 // pred_region
              // Predicated region
              $region56: #{autoencoder_forward.13} parent=43 // pred_check
                _
              $region57: #{autoencoder_forward.13} parent=43 // pred_check_branch
                %1521 = sbr.rel (0) target = $region59
              $region58: #{autoencoder_forward.13} parent=43 // pred_region
                loop: start=0, step=1, limit=1
                $region60: #{autoencoder_forward.13} parent=58 // loop_pre_header
                  _
                $region61: #{autoencoder_forward.13} parent=58 // loop_header
                  %s1523 = sphi 0, %s1527
                  %p1524 = scmp.ge.s32.totalorder %s1523, 1
                  %s1528 = sphi %s1490, %s1490
                  %s1529 = sphi %s1495, %s1495
                $region62: #{autoencoder_forward.13} parent=58 // loop_header_branch
                  %1526 = sbr.rel (%p1524) target = $region66
                $region63: #{autoencoder_forward.13} parent=58 // loop_body
                  _
                $region64: #{autoencoder_forward.13} parent=58 // loop_footer
                  %s1527 = sadd.s32 1, %s1523
                $region65: #{autoencoder_forward.13} parent=58 // loop_footer_branch
                  %1522 = sbr.rel target = $region61
                $region66: #{autoencoder_forward.13} parent=58 // loop_exit
                  _
                %s1531 = ssub.s32 4, 1
                loop: start=0, step=1, limit=1
                $region67: #{autoencoder_forward.13} parent=58 // loop_pre_header
                  _
                $region68: #{autoencoder_forward.13} parent=58 // loop_header
                  %s1533 = sphi 0, %s1537
                  %p1534 = scmp.ge.s32.totalorder %s1533, 1
                  %s1538 = sphi %s1490, %s1490
                  %s1539 = sphi %s1495, %s1495
                $region69: #{autoencoder_forward.13} parent=58 // loop_header_branch
                  %1536 = sbr.rel (%p1534) target = $region73
                $region70: #{autoencoder_forward.13} parent=58 // loop_body
                  %v1540 = vld [vmem:[%s1538] sm:%s1531]
                  %1541 = vst [vmem:[%s1539] sm:%s1531] %v1540
                  %v1542 = vld [vmem:[%s1538 + $0x2] sm:%s1531]
                  %1543 = vst [vmem:[%s1539 + $0x4] sm:%s1531] %v1542
                  %v1544 = vld [vmem:[%s1538 + $0x4] sm:%s1531]
                  %1545 = vst [vmem:[%s1539 + $0x8] sm:%s1531] %v1544
                  %v1546 = vld [vmem:[%s1538 + $0x6] sm:%s1531]
                  %1547 = vst [vmem:[%s1539 + $0xc] sm:%s1531] %v1546
                $region71: #{autoencoder_forward.13} parent=58 // loop_footer
                  %s1537 = sadd.s32 1, %s1533
                $region72: #{autoencoder_forward.13} parent=58 // loop_footer_branch
                  %1532 = sbr.rel target = $region68
                $region73: #{autoencoder_forward.13} parent=58 // loop_exit
                  _
              $region59: #{autoencoder_forward.13} parent=43 // pred_fallthru
                _
            $region44: #{autoencoder_forward.13} parent=39 // pred_fallthru
              _
            // Predicated region
            $region45: #{autoencoder_forward.13} parent=39 // pred_check
              _
            $region46: #{autoencoder_forward.13} parent=39 // pred_check_branch
              %1501 = sbr.rel (0) target = $region48
            $region47: #{autoencoder_forward.13} parent=39 // pred_region
              %s1503 = ssub.s32 4, 1
              loop: start=0, step=1, limit=1
              $region49: #{autoencoder_forward.13} parent=47 // loop_pre_header
                _
              $region50: #{autoencoder_forward.13} parent=47 // loop_header
                %s1505 = sphi 0, %s1509
                %p1506 = scmp.ge.s32.totalorder %s1505, 1
                %s1510 = sphi %s1490, %s1490
                %s1511 = sphi %s1495, %s1495
              $region51: #{autoencoder_forward.13} parent=47 // loop_header_branch
                %1508 = sbr.rel (%p1506) target = $region55
              $region52: #{autoencoder_forward.13} parent=47 // loop_body
                %v1512 = vld [vmem:[%s1510] sm:%s1503]
                %1513 = vst [vmem:[%s1511] sm:%s1503] %v1512
                %v1514 = vld [vmem:[%s1510 + $0x2] sm:%s1503]
                %1515 = vst [vmem:[%s1511 + $0x4] sm:%s1503] %v1514
                %v1516 = vld [vmem:[%s1510 + $0x4] sm:%s1503]
                %1517 = vst [vmem:[%s1511 + $0x8] sm:%s1503] %v1516
                %v1518 = vld [vmem:[%s1510 + $0x6] sm:%s1503]
                %1519 = vst [vmem:[%s1511 + $0xc] sm:%s1503] %v1518
              $region53: #{autoencoder_forward.13} parent=47 // loop_footer
                %s1509 = sadd.s32 1, %s1505
              $region54: #{autoencoder_forward.13} parent=47 // loop_footer_branch
                %1504 = sbr.rel target = $region50
              $region55: #{autoencoder_forward.13} parent=47 // loop_exit
                _
            $region48: #{autoencoder_forward.13} parent=39 // pred_fallthru
              _
          $region40: #{autoencoder_forward.13} parent=35 // pred_fallthru
            _
          %1548 = vnop
        $region36: #{autoencoder_forward.13} parent=31 // pred_fallthru
          _
      $region32: #{autoencoder_forward.13} parent=5 // pred_fallthru
        _
      %p1549 = scmp.le.s32.totalorder 2, %s9
      // Predicated region
      $region74: #{autoencoder_forward.13} parent=5 // pred_check
        %p1550 = pneg %p1549
      $region75: #{autoencoder_forward.13} parent=5 // pred_check_branch
        %1552 = sbr.rel (%p1550) target = $region77
      $region76: #{autoencoder_forward.13} parent=5 // pred_region
        %s1553 = ssub.s32 %s9, 2
        // Predicated region
        $region78: #{autoencoder_forward.13} parent=76 // pred_check
          %p1554 = pneg %p106
        $region79: #{autoencoder_forward.13} parent=76 // pred_check_branch
          %1556 = sbr.rel (%p1554) target = $region81
        $region80: #{autoencoder_forward.13} parent=76 // pred_region
          %s1557 = sand.u32 %s91, 1
          %s1558 = sand.u32 %s91, 1
          %s1559 = smul.addr %s1558, 8
          %s1560 = scalar_lea.vmem [#allocation2], %s1559
        $region81: #{autoencoder_forward.13} parent=76 // pred_fallthru
          _
      $region77: #{autoencoder_forward.13} parent=5 // pred_fallthru
        _
    $region6: #{autoencoder_forward.13} parent=1 // loop_footer
      %s13 = sadd.s32 1, %s9
    $region7: #{autoencoder_forward.13} parent=1 // loop_footer_branch
      %8 = sbr.rel target = $region3
    $region8: #{autoencoder_forward.13} parent=1 // loop_exit
      _

// kernel: autoencoder_forward.14
$region0: #{autoencoder_forward.14}
  #allocation0 [shape = 'u32[]', space=smem, size = 0x4, offset = 0x4, fixed_abs, tag = 'smem constant byte address 0x4 - core index']
  #allocation1 [shape = 'u32[144,128]{1,0:T(1,128)}', space=vmem, size = 0x12000, scoped, tag = 'internal scratch']
  %s0 = inlined_call_operand.vmem [shape: bf16[2,5,5,128], index: 0, kind: input, shape index: {}]
  %s1 = inlined_call_operand.vmem [shape: bf16[9,128,128], index: 1, kind: input, shape index: {}]
  %s2 = inlined_call_operand.vmem [shape: f32[1,128], index: 2, kind: input, shape index: {}]
  %s3 = inlined_call_operand.vmem [shape: bf16[2,2,2,4,4,128], index: 3, kind: output, shape index: {}]
  %s4 = sld [smem:[#allocation0]]
  $region82: #{autoencoder_forward.14} parent=0
    _
  %s6 = ssub.s32 1, %s4
  %s7 = scalar_select 0, %s6, %s4
  $region1: #{autoencoder_forward.14} parent=0
    #allocation2 [shape = 'u8[32768]{0}', space=vmem, size = 0x8000, scoped, tag = 'output window, operand 0']
    loop: start=0, step=1, limit=4
    $region2: #{autoencoder_forward.14} parent=1 // loop_pre_header
      _
    $region3: #{autoencoder_forward.14} parent=1 // loop_header
      %s9 = sphi 0, %s13
      %p10 = scmp.ge.s32.totalorder %s9, 4
      %s19 = sphi 0, %s21
      %s22 = sphi 0, %s19
      %s23 = sphi 0, %s22
      %s39 = sphi 0, %s23
      %s43 = sphi 0, %s43
      %s45 = sphi 0, %s43
      %s46 = sphi 0, %s45
      %s60 = sphi 0, %s46
      %s64 = sphi 0, %s64
      %s66 = sphi 0, %s64
      %s67 = sphi 0, %s66
      %s81 = sphi 0, %s67
      %s87 = sphi 0, %s89
      %s90 = sphi 0, %s87
      %s91 = sphi 0, %s90
      %s107 = sphi 0, %s91
    $region4: #{autoencoder_forward.14} parent=1 // loop_header_branch
      %12 = sbr.rel (%p10) target = $region8
    $region5: #{autoencoder_forward.14} parent=1 // loop_body
      %s14 = ssub.s32 %s9, 1
      %s15 = ssub.s32 %s9, 2
      %s16 = sadd.s32 %s9, 1
      %s17 = ssub.s32 %s9, %s16
      %p18 = scmp.eq.s32.totalorder %s17, 0
      %s20 = sadd.s32 %s19, 1
      %s21 = scalar_select %p18, %s19, %s20
      %p24 = pneg %p18
      %p25 = scmp.eq.s32.totalorder %s9, 1
      %p26 = por %p24, %p25
      %p27 = scmp.ne.s32.totalorder %s19, %s22
      %p28 = scmp.eq.s32.totalorder %s9, 0
      %p29 = por %p27, %p28
      %p30 = scmp.ne.s32.totalorder %s19, %s22
      %p31 = scmp.eq.s32.totalorder %s14, 1
      %p32 = por %p30, %p31
      %p33 = scmp.ne.s32.totalorder %s22, %s23
      %p34 = scmp.eq.s32.totalorder %s14, 0
      %p35 = por %p33, %p34
      %p36 = scmp.ne.s32.totalorder %s22, %s23
      %p37 = scmp.eq.s32.totalorder %s15, 1
      %p38 = por %p36, %p37
      %p40 = scmp.ne.s32.totalorder %s23, %s39
      %p41 = scmp.eq.s32.totalorder %s15, 0
      %p42 = por %p40, %p41
      %s44 = sadd.s32 %s43, 1
      %p47 = scmp.eq.s32.totalorder %s9, 1
      %p48 = scmp.ne.s32.totalorder %s43, %s45
      %p49 = scmp.eq.s32.totalorder %s9, 0
      %p50 = por %p48, %p49
      %p51 = scmp.ne.s32.totalorder %s43, %s45
      %p52 = scmp.eq.s32.totalorder %s14, 1
      %p53 = por %p51, %p52
      %p54 = scmp.ne.s32.totalorder %s45, %s46
      %p55 = scmp.eq.s32.totalorder %s14, 0
      %p56 = por %p54, %p55
      %p57 = scmp.ne.s32.totalorder %s45, %s46
      %p58 = scmp.eq.s32.totalorder %s15, 1
      %p59 = por %p57, %p58
      %p61 = scmp.ne.s32.totalorder %s46, %s60
      %p62 = scmp.eq.s32.totalorder %s15, 0
      %p63 = por %p61, %p62
      %s65 = sadd.s32 %s64, 1
      %p68 = scmp.eq.s32.totalorder %s9, 1
      %p69 = scmp.ne.s32.totalorder %s64, %s66
      %p70 = scmp.eq.s32.totalorder %s9, 0
      %p71 = por %p69, %p70
      %p72 = scmp.ne.s32.totalorder %s64, %s66
      %p73 = scmp.eq.s32.totalorder %s14, 1
      %p74 = por %p72, %p73
      %p75 = scmp.ne.s32.totalorder %s66, %s67
      %p76 = scmp.eq.s32.totalorder %s14, 0
      %p77 = por %p75, %p76
      %p78 = scmp.ne.s32.totalorder %s66, %s67
      %p79 = scmp.eq.s32.totalorder %s15, 1
      %p80 = por %p78, %p79
      %p82 = scmp.ne.s32.totalorder %s67, %s81
      %p83 = scmp.eq.s32.totalorder %s15, 0
      %p84 = por %p82, %p83
      %s85 = ssub.s32 %s9, %s16
      %p86 = scmp.eq.s32.totalorder %s85, 0
      %s88 = sadd.s32 %s87, 1
      %s89 = scalar_select %p86, %s87, %s88
      %p92 = pneg %p86
      %p93 = scmp.eq.s32.totalorder %s9, 1
      %p94 = por %p92, %p93
      %p95 = scmp.ne.s32.totalorder %s87, %s90
      %p96 = scmp.eq.s32.totalorder %s9, 0
      %p97 = por %p95, %p96
      %p98 = scmp.ne.s32.totalorder %s87, %s90
      %p99 = scmp.eq.s32.totalorder %s14, 1
      %p100 = por %p98, %p99
      %p101 = scmp.ne.s32.totalorder %s90, %s91
      %p102 = scmp.eq.s32.totalorder %s14, 0
      %p103 = por %p101, %p102
      %p104 = scmp.ne.s32.totalorder %s90, %s91
      %p105 = scmp.eq.s32.totalorder %s15, 1
      %p106 = por %p104, %p105
      %p108 = scmp.ne.s32.totalorder %s91, %s107
      %p109 = scmp.eq.s32.totalorder %s15, 0
      %p110 = por %p108, %p109
      %p111 = scmp.le.s32.totalorder 1, %s9
      %p112 = scmp.lt.s32.totalorder %s9, 3
      %p113 = pnand %p111, %p112
      %p114 = pneg %p113
      // Predicated region
      $region9: #{autoencoder_forward.14} parent=5 // pred_check
        _
      $region10: #{autoencoder_forward.14} parent=5 // pred_check_branch
        %116 = sbr.rel (%p113) target = $region12
      $region11: #{autoencoder_forward.14} parent=5 // pred_region
        %s117 = ssub.s32 %s9, 1
        // Predicated region
        $region13: #{autoencoder_forward.14} parent=11 // pred_check
          %p118 = pneg %p56
        $region14: #{autoencoder_forward.14} parent=11 // pred_check_branch
          %120 = sbr.rel (%p118) target = $region16
        $region15: #{autoencoder_forward.14} parent=11 // pred_region
          _
        $region16: #{autoencoder_forward.14} parent=11 // pred_fallthru
          _
        // Predicated region
        $region17: #{autoencoder_forward.14} parent=11 // pred_check
          %p121 = pneg %p77
        $region18: #{autoencoder_forward.14} parent=11 // pred_check_branch
          %123 = sbr.rel (%p121) target = $region20
        $region19: #{autoencoder_forward.14} parent=11 // pred_region
          _
        $region20: #{autoencoder_forward.14} parent=11 // pred_fallthru
          _
      $region12: #{autoencoder_forward.14} parent=5 // pred_fallthru
        _
      %p124 = scmp.lt.s32.totalorder %s9, 2
      // Predicated region
      $region21: #{autoencoder_forward.14} parent=5 // pred_check
        %p125 = pneg %p124
      $region22: #{autoencoder_forward.14} parent=5 // pred_check_branch
        %127 = sbr.rel (%p125) target = $region24
      $region23: #{autoencoder_forward.14} parent=5 // pred_region
        // Predicated region
        $region25: #{autoencoder_forward.14} parent=23 // pred_check
          %p128 = pneg %p29
        $region26: #{autoencoder_forward.14} parent=23 // pred_check_branch
          %130 = sbr.rel (%p128) target = $region28
        $region27: #{autoencoder_forward.14} parent=23 // pred_region
          %p131 = scmp.lt.s32.totalorder %s9, 1
          %s132 = scalar_select %p131, %s9, 1
          %s133 = smul.addr %s132, 5
          %s134 = smul.addr %s133, 4
          %s135 = scalar_lea.vmem %s0, %s134
        $region28: #{autoencoder_forward.14} parent=23 // pred_fallthru
          _
      $region24: #{autoencoder_forward.14} parent=5 // pred_fallthru
        _
      %p136 = scmp.le.s32.totalorder 1, %s9
      %p137 = scmp.lt.s32.totalorder %s9, 3
      %p138 = pnand %p136, %p137
      %p139 = pneg %p138
      // Predicated region
      $region29: #{autoencoder_forward.14} parent=5 // pred_check
        _
      $region30: #{autoencoder_forward.14} parent=5 // pred_check_branch
        %141 = sbr.rel (%p138) target = $region32
      $region31: #{autoencoder_forward.14} parent=5 // pred_region
        %s142 = ssub.s32 %s9, 1
        %p143 = scmp.lt.s32.totalorder %s14, 1
        %s144 = scalar_select %p143, %s14, 1
        %s145 = smul.addr %s144, 5
        %s146 = smul.addr %s145, 4
        %s147 = scalar_lea.vmem %s0, %s146
        %p148 = pneg %p35
        %p149 = pneg %p32
        %p150 = pneg %p56
        %p151 = pneg %p53
        %p152 = pneg %p77
        %p153 = pneg %p74
        %p154 = pneg %p103
        %p155 = pneg %p100
        %s156 = sand.u32 %s90, 1
        %s157 = sand.u32 %s90, 1
        %s158 = smul.addr %s157, 32
        %s159 = scalar_lea.vmem [#allocation2], %s158
        %p160 = scmp.lt.s32.totalorder %s14, 1
        %s161 = scalar_select %p160, %s14, 1
        %s162 = smul.addr %s161, 5
        %s163 = smul.addr %s162, 4
        %s164 = scalar_lea.vmem %s0, %s163
        %v166 = vld [vmem:[%s2] sm:$0x1]
        %v167 = vld [vmem:[%s164] sm:$0x3]
        %v168 = vld [vmem:[%s164 + $0x4] sm:$0x3]
        %v169 = vld [vmem:[%s164 + $0x8] sm:$0x3]
        %v170 = vld [vmem:[%s164 + $0xc] sm:$0x3]
        %v171 = vld [vmem:[%s1] sm:$0xf]
        %v172 = vld [vmem:[%s1 + $0x4] sm:$0xf]
        %v173 = vld [vmem:[%s1 + $0x8] sm:$0xf]
        %v174 = vld [vmem:[%s1 + $0xc] sm:$0xf]
        %v175 = vld [vmem:[%s1 + $0x10] sm:$0xf]
        %v176 = vld [vmem:[%s1 + $0x14] sm:$0xf]
        %v177 = vld [vmem:[%s1 + $0x18] sm:$0xf]
        %v178 = vld [vmem:[%s1 + $0x1c] sm:$0xf]
        %v179 = vld [vmem:[%s1 + $0x20] sm:$0xf]
        %v180 = vld [vmem:[%s1 + $0x24] sm:$0xf]
        %v181 = vld [vmem:[%s1 + $0x28] sm:$0xf]
        %v182 = vld [vmem:[%s1 + $0x2c] sm:$0xf]
        %v183 = vld [vmem:[%s1 + $0x30] sm:$0xf]
        %v184 = vld [vmem:[%s1 + $0x34] sm:$0xf]
        %v185 = vld [vmem:[%s1 + $0x38] sm:$0xf]
        %v186 = vld [vmem:[%s1 + $0x3c] sm:$0xf]
        %v188 = vlaneseq
        %v189 = vshrl.u32 %v188, 7
        %v190 = vsub.s32 0, %v189
        %v191 = vrot.slane %v166, %v190
        %v197 = vcombine.low %v167, %v168
        %v198 = vcombine.low %v169, %v170
        %v200 = vunpack.c.l.s4 1983009808
        %v201 = vunpack.c.0.s8 %v200
        %v202 = vlaneseq
        %v203 = vshrl.u32 %v202, 7
        %v204 = vsub.s32 %v201, %v203
        %v205 = vrot.slane %v197, %v204
        %v207 = vunpack.c.l.s4 1983009808
        %v208 = vunpack.c.0.s8 %v207
        %v209 = vlaneseq
        %v210 = vshrl.u32 %v209, 7
        %v211 = vsub.s32 %v208, %v210
        %v212 = vrot.slane %v198, %v211
        %v213 = vcombine.low %v205, %v212
        %v231 = vunpack.c.l.b16 %v171
        %v232 = vunpack.c.l.b16 %v172
        %v233 = vunpack.c.l.b16 %v173
        %v234 = vunpack.c.l.b16 %v174
        %v235 = vunpack.c.l.b16 %v175
        %v236 = vunpack.c.l.b16 %v176
        %v237 = vunpack.c.l.b16 %v177
        %v238 = vunpack.c.l.b16 %v178
        %v239 = vunpack.c.l.b16 %v179
        %v240 = vunpack.c.l.b16 %v180
        %v241 = vunpack.c.l.b16 %v181
        %v242 = vunpack.c.l.b16 %v182
        %v243 = vunpack.c.l.b16 %v183
        %v244 = vunpack.c.l.b16 %v184
        %v245 = vunpack.c.l.b16 %v185
        %v246 = vunpack.c.l.b16 %v186
        %v247 = vpack.c.b16 %v232, %v231
        %v248 = vpack.c.b16 %v234, %v233
        %v249 = vpack.c.b16 %v236, %v235
        %v250 = vpack.c.b16 %v238, %v237
        %v251 = vpack.c.b16 %v240, %v239
        %v252 = vpack.c.b16 %v242, %v241
        %v253 = vpack.c.b16 %v244, %v243
        %v254 = vpack.c.b16 %v246, %v245
        %263 = vmatprep.subr.bf16.mxu0 0
        %264 = vmatpush1.bf16.msra.mxu0 %v254
        %265 = vmatprep.subr.bf16.mxu0 0
        %266 = vmatpush1.bf16.msra.mxu0 %v253
        %267 = vmatprep.subr.bf16.mxu0 0
        %268 = vmatpush1.bf16.msra.mxu0 %v252
        %269 = vmatprep.subr.bf16.mxu0 0
        %270 = vmatpush1.bf16.msra.mxu0 %v251
        %271 = vmatprep.subr.bf16.mxu0 0
        %272 = vmatpush1.bf16.msra.mxu0 %v250
        %273 = vmatprep.subr.bf16.mxu0 0
        %274 = vmatpush1.bf16.msra.mxu0 %v249
        %275 = vmatprep.subr.bf16.mxu0 0
        %276 = vmatpush1.bf16.msra.mxu0 %v248
        %277 = vmatprep.subr.bf16.mxu0 0
        %278 = vmatpush1.bf16.msra.mxu0 %v247
        %279 = vmatprep.subr.bf16.mxu0 0
        %280 = vmatpush2.bf16.msra.mxu0 0
        %281 = vmatprep.subr.bf16.mxu0 0
        %282 = vmatpush2.bf16.msra.mxu0 0
        %283 = vmatprep.subr.bf16.mxu0 0
        %284 = vmatpush2.bf16.msra.mxu0 0
        %285 = vmatprep.subr.bf16.mxu0 0
        %286 = vmatpush2.bf16.msra.mxu0 0
        %287 = vmatprep.subr.bf16.mxu0 0
        %288 = vmatpush2.bf16.msra.mxu0 0
        %289 = vmatprep.subr.bf16.mxu0 0
        %290 = vmatpush2.bf16.msra.mxu0 0
        %291 = vmatprep.subr.bf16.mxu0 0
        %292 = vmatpush2.bf16.msra.mxu0 0
        %293 = vmatprep.subr.bf16.mxu0 0
        %294 = vmatpush2.bf16.msra.mxu0 0
        %295 = vmatprep.mubr.bf16.mxu0 0
        %296 = vmatmul.mubr.bf16.gmra.mxu0 %v213
        %v297 = vpop.f32.mrf.mxu0
        %v298 = vadd.f32 %v191, %v297
        %v299 = vpop.f32.mrf.mxu0
        %v300 = vpop.f32.mrf.mxu0
        %v301 = vadd.f32 %v191, %v300
        %v302 = vpop.f32.mrf.mxu0
        %303 = vdwg.mxu0
        %v304 = vmax.f32 %v298, 0.0
        %v305 = vmax.f32 %v301, 0.0
        %v308 = vcombine.high %v304, %v304
        %v309 = vcombine.high %v305, %v305
        %v312 = vpack.c.bf16 %v304, %v304
        %v313 = vpack.c.bf16 %v308, %v308
        %v314 = vpack.c.bf16 %v305, %v305
        %v315 = vpack.c.bf16 %v309, %v309
        %316 = vst [vmem:[%s159] sm:$0x3] %v312
        %317 = vst [vmem:[%s159 + $0x2] sm:$0x3] %v313
        %318 = vst [vmem:[%s159 + $0x4] sm:$0x3] %v314
        %319 = vst [vmem:[%s159 + $0x6] sm:$0x3] %v315
        %v320 = vld [vmem:[%s164] sm:$0x3]
        %v321 = vld [vmem:[%s164 + $0x4] sm:$0x3]
        %v322 = vld [vmem:[%s164 + $0x8] sm:$0x3]
        %v323 = vld [vmem:[%s164 + $0xc] sm:$0x3]
        %s324 = scalar_lea.vmem %s1, 64
        %v325 = vld [vmem:[%s324] sm:$0xf]
        %v326 = vld [vmem:[%s324 + $0x4] sm:$0xf]
        %v327 = vld [vmem:[%s324 + $0x8] sm:$0xf]
        %v328 = vld [vmem:[%s324 + $0xc] sm:$0xf]
        %v329 = vld [vmem:[%s324 + $0x10] sm:$0xf]
        %v330 = vld [vmem:[%s324 + $0x14] sm:$0xf]
        %v331 = vld [vmem:[%s324 + $0x18] sm:$0xf]
        %v332 = vld [vmem:[%s324 + $0x1c] sm:$0xf]
        %v333 = vld [vmem:[%s324 + $0x20] sm:$0xf]
        %v334 = vld [vmem:[%s324 + $0x24] sm:$0xf]
        %v335 = vld [vmem:[%s324 + $0x28] sm:$0xf]
        %v336 = vld [vmem:[%s324 + $0x2c] sm:$0xf]
        %v337 = vld [vmem:[%s324 + $0x30] sm:$0xf]
        %v338 = vld [vmem:[%s324 + $0x34] sm:$0xf]
        %v339 = vld [vmem:[%s324 + $0x38] sm:$0xf]
        %v340 = vld [vmem:[%s324 + $0x3c] sm:$0xf]
        %v341 = vld [vmem:[%s164] sm:$0x7]
        %v342 = vld [vmem:[%s164 + $0x4] sm:$0x7]
        %v343 = vld [vmem:[%s164 + $0x8] sm:$0x7]
        %v344 = vld [vmem:[%s164 + $0xc] sm:$0x7]
        %v350 = vunpack.c.l.s4 1983009808
        %v351 = vunpack.c.0.s8 %v350
        %v352 = vlaneseq
        %v353 = vshrl.u32 %v352, 7
        %v354 = vsub.s32 %v351, %v353
        %v355 = vrot.slane %v341, %v354
        %v356 = vcombine.high %v355, %v355
        %v358 = vunpack.c.l.s4 1983009808
        %v359 = vunpack.c.0.s8 %v358
        %v360 = vlaneseq
        %v361 = vshrl.u32 %v360, 7
        %v362 = vsub.s32 %v359, %v361
        %v363 = vrot.slane %v342, %v362
        %v364 = vcombine.high %v363, %v363
        %v366 = vunpack.c.l.s4 1983009808
        %v367 = vunpack.c.0.s8 %v366
        %v368 = vlaneseq
        %v369 = vshrl.u32 %v368, 7
        %v370 = vsub.s32 %v367, %v369
        %v371 = vrot.slane %v343, %v370
        %v372 = vcombine.high %v371, %v371
        %v374 = vunpack.c.l.s4 1983009808
        %v375 = vunpack.c.0.s8 %v374
        %v376 = vlaneseq
        %v377 = vshrl.u32 %v376, 7
        %v378 = vsub.s32 %v375, %v377
        %v379 = vrot.slane %v344, %v378
        %v380 = vcombine.high %v379, %v379
        %vm381 = vsmask.f32 1280
        %vm382 = vsmask.f32 3336
        %vm383 = vmor %vm381, %vm382
        %vm384 = vsmask.f32 5392
        %vm385 = vmor %vm383, %vm384
        %vm386 = vsmask.f32 7448
        %vm387 = vmor %vm385, %vm386
        %v389 = vshrl.u32 %v355, 16
        %v391 = vrot.slane %v389, 6
        %v392 = vshll.u32 %v355, 16
        %v394 = vrot.slane %v392, 7
        %v395 = vor.u32 %v391, %v394
        %v396 = vrot.slane %v395, 2
        %v398 = vshll.u32 %v356, 16
        %v400 = vrot.slane %v398, 7
        %v401 = vsel %vm387, %v396, %v400
        %v403 = vshrl.u32 %v363, 16
        %v405 = vrot.slane %v403, 6
        %v406 = vshll.u32 %v363, 16
        %v408 = vrot.slane %v406, 7
        %v409 = vor.u32 %v405, %v408
        %v410 = vrot.slane %v409, 2
        %v412 = vshll.u32 %v364, 16
        %v414 = vrot.slane %v412, 7
        %v415 = vsel %vm387, %v410, %v414
        %v417 = vshrl.u32 %v371, 16
        %v419 = vrot.slane %v417, 6
        %v420 = vshll.u32 %v371, 16
        %v422 = vrot.slane %v420, 7
        %v423 = vor.u32 %v419, %v422
        %v424 = vrot.slane %v423, 2
        %v426 = vshll.u32 %v372, 16
        %v428 = vrot.slane %v426, 7
        %v429 = vsel %vm387, %v424, %v428
        %v431 = vshrl.u32 %v379, 16
        %v433 = vrot.slane %v431, 6
        %v434 = vshll.u32 %v379, 16
        %v436 = vrot.slane %v434, 7
        %v437 = vor.u32 %v433, %v436
        %v438 = vrot.slane %v437, 2
        %v440 = vshll.u32 %v380, 16
        %v442 = vrot.slane %v440, 7
        %v443 = vsel %vm387, %v438, %v442
        %s444 = scalar_lea.vmem %s1, 128
        %v445 = vld [vmem:[%s444] sm:$0xf]
        %v446 = vld [vmem:[%s444 + $0x4] sm:$0xf]
        %v447 = vld [vmem:[%s444 + $0x8] sm:$0xf]
        %v448 = vld [vmem:[%s444 + $0xc] sm:$0xf]
        %v449 = vld [vmem:[%s444 + $0x10] sm:$0xf]
        %v450 = vld [vmem:[%s444 + $0x14] sm:$0xf]
        %v451 = vld [vmem:[%s444 + $0x18] sm:$0xf]
        %v452 = vld [vmem:[%s444 + $0x1c] sm:$0xf]
        %v453 = vld [vmem:[%s444 + $0x20] sm:$0xf]
        %v454 = vld [vmem:[%s444 + $0x24] sm:$0xf]
        %v455 = vld [vmem:[%s444 + $0x28] sm:$0xf]
        %v456 = vld [vmem:[%s444 + $0x2c] sm:$0xf]
        %v457 = vld [vmem:[%s444 + $0x30] sm:$0xf]
        %v458 = vld [vmem:[%s444 + $0x34] sm:$0xf]
        %v459 = vld [vmem:[%s444 + $0x38] sm:$0xf]
        %v460 = vld [vmem:[%s444 + $0x3c] sm:$0xf]
        %v461 = vcombine.low %v401, %v415
        %v462 = vcombine.low %v429, %v443
        %v464 = vunpack.c.l.s4 1983009808
        %v465 = vunpack.c.0.s8 %v464
        %v466 = vlaneseq
        %v467 = vshrl.u32 %v466, 7
        %v468 = vsub.s32 %v465, %v467
        %v469 = vrot.slane %v461, %v468
        %v471 = vunpack.c.l.s4 1983009808
        %v472 = vunpack.c.0.s8 %v471
        %v473 = vlaneseq
        %v474 = vshrl.u32 %v473, 7
        %v475 = vsub.s32 %v472, %v474
        %v476 = vrot.slane %v462, %v475
        %v477 = vcombine.low %v469, %v476
        %v495 = vunpack.c.l.b16 %v445
        %v496 = vunpack.c.l.b16 %v446
        %v497 = vunpack.c.l.b16 %v447
        %v498 = vunpack.c.l.b16 %v448
        %v499 = vunpack.c.l.b16 %v449
        %v500 = vunpack.c.l.b16 %v450
        %v501 = vunpack.c.l.b16 %v451
        %v502 = vunpack.c.l.b16 %v452
        %v503 = vunpack.c.l.b16 %v453
        %v504 = vunpack.c.l.b16 %v454
        %v505 = vunpack.c.l.b16 %v455
        %v506 = vunpack.c.l.b16 %v456
        %v507 = vunpack.c.l.b16 %v457
        %v508 = vunpack.c.l.b16 %v458
        %v509 = vunpack.c.l.b16 %v459
        %v510 = vunpack.c.l.b16 %v460
        %v511 = vpack.c.b16 %v496, %v495
        %v512 = vpack.c.b16 %v498, %v497
        %v513 = vpack.c.b16 %v500, %v499
        %v514 = vpack.c.b16 %v502, %v501
        %v515 = vpack.c.b16 %v504, %v503
        %v516 = vpack.c.b16 %v506, %v505
        %v517 = vpack.c.b16 %v508, %v507
        %v518 = vpack.c.b16 %v510, %v509
        %527 = vmatprep.subr.bf16.mxu0 0
        %528 = vmatpush1.bf16.msra.mxu0 %v518
        %529 = vmatprep.subr.bf16.mxu0 0
        %530 = vmatpush1.bf16.msra.mxu0 %v517
        %531 = vmatprep.subr.bf16.mxu0 0
        %532 = vmatpush1.bf16.msra.mxu0 %v516
        %533 = vmatprep.subr.bf16.mxu0 0
        %534 = vmatpush1.bf16.msra.mxu0 %v515
        %535 = vmatprep.subr.bf16.mxu0 0
        %536 = vmatpush1.bf16.msra.mxu0 %v514
        %537 = vmatprep.subr.bf16.mxu0 0
        %538 = vmatpush1.bf16.msra.mxu0 %v513
        %539 = vmatprep.subr.bf16.mxu0 0
        %540 = vmatpush1.bf16.msra.mxu0 %v512
        %541 = vmatprep.subr.bf16.mxu0 0
        %542 = vmatpush1.bf16.msra.mxu0 %v511
        %543 = vmatprep.subr.bf16.mxu0 0
        %544 = vmatpush2.bf16.msra.mxu0 0
        %545 = vmatprep.subr.bf16.mxu0 0
        %546 = vmatpush2.bf16.msra.mxu0 0
        %547 = vmatprep.subr.bf16.mxu0 0
        %548 = vmatpush2.bf16.msra.mxu0 0
        %549 = vmatprep.subr.bf16.mxu0 0
        %550 = vmatpush2.bf16.msra.mxu0 0
        %551 = vmatprep.subr.bf16.mxu0 0
        %552 = vmatpush2.bf16.msra.mxu0 0
        %553 = vmatprep.subr.bf16.mxu0 0
        %554 = vmatpush2.bf16.msra.mxu0 0
        %555 = vmatprep.subr.bf16.mxu0 0
        %556 = vmatpush2.bf16.msra.mxu0 0
        %557 = vmatprep.subr.bf16.mxu0 0
        %558 = vmatpush2.bf16.msra.mxu0 0
        %559 = vmatprep.mubr.bf16.mxu0 0
        %560 = vmatmul.mubr.bf16.gmra.mxu0 %v477
        %v561 = vpop.f32.mrf.mxu0
        %v562 = vadd.f32 0.0, %v561
        %v563 = vpop.f32.mrf.mxu0
        %v564 = vpop.f32.mrf.mxu0
        %v565 = vadd.f32 0.0, %v564
        %v566 = vpop.f32.mrf.mxu0
        %567 = vdwg.mxu0
        %v572 = vcombine.low %v320, %v321
        %v573 = vcombine.low %v322, %v323
        %v575 = vunpack.c.l.s4 1983009808
        %v576 = vunpack.c.0.s8 %v575
        %v577 = vlaneseq
        %v578 = vshrl.u32 %v577, 7
        %v579 = vsub.s32 %v576, %v578
        %v580 = vrot.slane %v572, %v579
        %v582 = vunpack.c.l.s4 1983009808
        %v583 = vunpack.c.0.s8 %v582
        %v584 = vlaneseq
        %v585 = vshrl.u32 %v584, 7
        %v586 = vsub.s32 %v583, %v585
        %v587 = vrot.slane %v573, %v586
        %v588 = vcombine.low %v580, %v587
        %v606 = vunpack.c.l.b16 %v325
        %v607 = vunpack.c.l.b16 %v326
        %v608 = vunpack.c.l.b16 %v327
        %v609 = vunpack.c.l.b16 %v328
        %v610 = vunpack.c.l.b16 %v329
        %v611 = vunpack.c.l.b16 %v330
        %v612 = vunpack.c.l.b16 %v331
        %v613 = vunpack.c.l.b16 %v332
        %v614 = vunpack.c.l.b16 %v333
        %v615 = vunpack.c.l.b16 %v334
        %v616 = vunpack.c.l.b16 %v335
        %v617 = vunpack.c.l.b16 %v336
        %v618 = vunpack.c.l.b16 %v337
        %v619 = vunpack.c.l.b16 %v338
        %v620 = vunpack.c.l.b16 %v339
        %v621 = vunpack.c.l.b16 %v340
        %v622 = vpack.c.b16 %v607, %v606
        %v623 = vpack.c.b16 %v609, %v608
        %v624 = vpack.c.b16 %v611, %v610
        %v625 = vpack.c.b16 %v613, %v612
        %v626 = vpack.c.b16 %v615, %v614
        %v627 = vpack.c.b16 %v617, %v616
        %v628 = vpack.c.b16 %v619, %v618
        %v629 = vpack.c.b16 %v621, %v620
        %638 = vmatprep.subr.bf16.mxu0 0
        %639 = vmatpush1.bf16.msra.mxu0 %v629
        %640 = vmatprep.subr.bf16.mxu0 0
        %641 = vmatpush1.bf16.msra.mxu0 %v628
        %642 = vmatprep.subr.bf16.mxu0 0
        %643 = vmatpush1.bf16.msra.mxu0 %v627
        %644 = vmatprep.subr.bf16.mxu0 0
        %645 = vmatpush1.bf16.msra.mxu0 %v626
        %646 = vmatprep.subr.bf16.mxu0 0
        %647 = vmatpush1.bf16.msra.mxu0 %v625
        %648 = vmatprep.subr.bf16.mxu0 0
        %649 = vmatpush1.bf16.msra.mxu0 %v624
        %650 = vmatprep.subr.bf16.mxu0 0
        %651 = vmatpush1.bf16.msra.mxu0 %v623
        %652 = vmatprep.subr.bf16.mxu0 0
        %653 = vmatpush1.bf16.msra.mxu0 %v622
        %654 = vmatprep.subr.bf16.mxu0 0
        %655 = vmatpush2.bf16.msra.mxu0 0
        %656 = vmatprep.subr.bf16.mxu0 0
        %657 = vmatpush2.bf16.msra.mxu0 0
        %658 = vmatprep.subr.bf16.mxu0 0
        %659 = vmatpush2.bf16.msra.mxu0 0
        %660 = vmatprep.subr.bf16.mxu0 0
        %661 = vmatpush2.bf16.msra.mxu0 0
        %662 = vmatprep.subr.bf16.mxu0 0
        %663 = vmatpush2.bf16.msra.mxu0 0
        %664 = vmatprep.subr.bf16.mxu0 0
        %665 = vmatpush2.bf16.msra.mxu0 0
        %666 = vmatprep.subr.bf16.mxu0 0
        %667 = vmatpush2.bf16.msra.mxu0 0
        %668 = vmatprep.subr.bf16.mxu0 0
        %669 = vmatpush2.bf16.msra.mxu0 0
        %670 = vmatprep.mubr.bf16.mxu0 0
        %671 = vmatmul.mubr.bf16.gmra.mxu0 %v588
        %v672 = vpop.f32.mrf.mxu0
        %v673 = vadd.f32 %v562, %v672
        %v674 = vpop.f32.mrf.mxu0
        %v675 = vpop.f32.mrf.mxu0
        %v676 = vadd.f32 %v565, %v675
        %v677 = vpop.f32.mrf.mxu0
        %678 = vdwg.mxu0
        %v679 = vadd.f32 %v673, %v191
        %v680 = vadd.f32 %v676, %v191
        %v681 = vmax.f32 %v679, 0.0
        %v682 = vmax.f32 %v680, 0.0
        %v685 = vcombine.high %v681, %v681
        %v686 = vcombine.high %v682, %v682
        %v689 = vpack.c.bf16 %v681, %v681
        %v690 = vpack.c.bf16 %v685, %v685
        %v691 = vpack.c.bf16 %v682, %v682
        %v692 = vpack.c.bf16 %v686, %v686
        %s693 = scalar_lea.vmem %s159, 8 [#allocation2]
        %694 = vst [vmem:[%s693] sm:$0x3] %v689
        %695 = vst [vmem:[%s693 + $0x2] sm:$0x3] %v690
        %696 = vst [vmem:[%s693 + $0x4] sm:$0x3] %v691
        %697 = vst [vmem:[%s693 + $0x6] sm:$0x3] %v692
        %v698 = vld [vmem:[%s164] sm:$0x3]
        %v699 = vld [vmem:[%s164 + $0x4] sm:$0x3]
        %v700 = vld [vmem:[%s164 + $0x8] sm:$0x3]
        %v701 = vld [vmem:[%s164 + $0xc] sm:$0x3]
        %s702 = scalar_lea.vmem %s1, 192
        %v703 = vld [vmem:[%s702] sm:$0xf]
        %v704 = vld [vmem:[%s702 + $0x4] sm:$0xf]
        %v705 = vld [vmem:[%s702 + $0x8] sm:$0xf]
        %v706 = vld [vmem:[%s702 + $0xc] sm:$0xf]
        %v707 = vld [vmem:[%s702 + $0x10] sm:$0xf]
        %v708 = vld [vmem:[%s702 + $0x14] sm:$0xf]
        %v709 = vld [vmem:[%s702 + $0x18] sm:$0xf]
        %v710 = vld [vmem:[%s702 + $0x1c] sm:$0xf]
        %v711 = vld [vmem:[%s702 + $0x20] sm:$0xf]
        %v712 = vld [vmem:[%s702 + $0x24] sm:$0xf]
        %v713 = vld [vmem:[%s702 + $0x28] sm:$0xf]
        %v714 = vld [vmem:[%s702 + $0x2c] sm:$0xf]
        %v715 = vld [vmem:[%s702 + $0x30] sm:$0xf]
        %v716 = vld [vmem:[%s702 + $0x34] sm:$0xf]
        %v717 = vld [vmem:[%s702 + $0x38] sm:$0xf]
        %v718 = vld [vmem:[%s702 + $0x3c] sm:$0xf]
        %s719 = scalar_lea.vmem %s164, 4
        %v720 = vld [vmem:[%s719] sm:$0x3]
        %v721 = vld [vmem:[%s719 + $0x4] sm:$0x3]
        %v722 = vld [vmem:[%s719 + $0x8] sm:$0x3]
        %v723 = vld [vmem:[%s719 + $0xc] sm:$0x3]
        %s724 = scalar_lea.vmem %s1, 256
        %v725 = vld [vmem:[%s724] sm:$0xf]
        %v726 = vld [vmem:[%s724 + $0x4] sm:$0xf]
        %v727 = vld [vmem:[%s724 + $0x8] sm:$0xf]
        %v728 = vld [vmem:[%s724 + $0xc] sm:$0xf]
        %v729 = vld [vmem:[%s724 + $0x10] sm:$0xf]
        %v730 = vld [vmem:[%s724 + $0x14] sm:$0xf]
        %v731 = vld [vmem:[%s724 + $0x18] sm:$0xf]
        %v732 = vld [vmem:[%s724 + $0x1c] sm:$0xf]
        %v733 = vld [vmem:[%s724 + $0x20] sm:$0xf]
        %v734 = vld [vmem:[%s724 + $0x24] sm:$0xf]
        %v735 = vld [vmem:[%s724 + $0x28] sm:$0xf]
        %v736 = vld [vmem:[%s724 + $0x2c] sm:$0xf]
        %v737 = vld [vmem:[%s724 + $0x30] sm:$0xf]
        %v738 = vld [vmem:[%s724 + $0x34] sm:$0xf]
        %v739 = vld [vmem:[%s724 + $0x38] sm:$0xf]
        %v740 = vld [vmem:[%s724 + $0x3c] sm:$0xf]
        %v745 = vcombine.low %v720, %v721
        %v746 = vcombine.low %v722, %v723
        %v748 = vunpack.c.l.s4 1983009808
        %v749 = vunpack.c.0.s8 %v748
        %v750 = vlaneseq
        %v751 = vshrl.u32 %v750, 7
        %v752 = vsub.s32 %v749, %v751
        %v753 = vrot.slane %v745, %v752
        %v755 = vunpack.c.l.s4 1983009808
        %v756 = vunpack.c.0.s8 %v755
        %v757 = vlaneseq
        %v758 = vshrl.u32 %v757, 7
        %v759 = vsub.s32 %v756, %v758
        %v760 = vrot.slane %v746, %v759
        %v761 = vcombine.low %v753, %v760
        %v779 = vunpack.c.l.b16 %v725
        %v780 = vunpack.c.l.b16 %v726
        %v781 = vunpack.c.l.b16 %v727
        %v782 = vunpack.c.l.b16 %v728
        %v783 = vunpack.c.l.b16 %v729
        %v784 = vunpack.c.l.b16 %v730
        %v785 = vunpack.c.l.b16 %v731
        %v786 = vunpack.c.l.b16 %v732
        %v787 = vunpack.c.l.b16 %v733
        %v788 = vunpack.c.l.b16 %v734
        %v789 = vunpack.c.l.b16 %v735
        %v790 = vunpack.c.l.b16 %v736
        %v791 = vunpack.c.l.b16 %v737
        %v792 = vunpack.c.l.b16 %v738
        %v793 = vunpack.c.l.b16 %v739
        %v794 = vunpack.c.l.b16 %v740
        %v795 = vpack.c.b16 %v780, %v779
        %v796 = vpack.c.b16 %v782, %v781
        %v797 = vpack.c.b16 %v784, %v783
        %v798 = vpack.c.b16 %v786, %v785
        %v799 = vpack.c.b16 %v788, %v787
        %v800 = vpack.c.b16 %v790, %v789
        %v801 = vpack.c.b16 %v792, %v791
        %v802 = vpack.c.b16 %v794, %v793
        %811 = vmatprep.subr.bf16.mxu0 0
        %812 = vmatpush1.bf16.msra.mxu0 %v802
        %813 = vmatprep.subr.bf16.mxu0 0
        %814 = vmatpush1.bf16.msra.mxu0 %v801
        %815 = vmatprep.subr.bf16.mxu0 0
        %816 = vmatpush1.bf16.msra.mxu0 %v800
        %817 = vmatprep.subr.bf16.mxu0 0
        %818 = vmatpush1.bf16.msra.mxu0 %v799
        %819 = vmatprep.subr.bf16.mxu0 0
        %820 = vmatpush1.bf16.msra.mxu0 %v798
        %821 = vmatprep.subr.bf16.mxu0 0
        %822 = vmatpush1.bf16.msra.mxu0 %v797
        %823 = vmatprep.subr.bf16.mxu0 0
        %824 = vmatpush1.bf16.msra.mxu0 %v796
        %825 = vmatprep.subr.bf16.mxu0 0
        %826 = vmatpush1.bf16.msra.mxu0 %v795
        %827 = vmatprep.subr.bf16.mxu0 0
        %828 = vmatpush2.bf16.msra.mxu0 0
        %829 = vmatprep.subr.bf16.mxu0 0
        %830 = vmatpush2.bf16.msra.mxu0 0
        %831 = vmatprep.subr.bf16.mxu0 0
        %832 = vmatpush2.bf16.msra.mxu0 0
        %833 = vmatprep.subr.bf16.mxu0 0
        %834 = vmatpush2.bf16.msra.mxu0 0
        %835 = vmatprep.subr.bf16.mxu0 0
        %836 = vmatpush2.bf16.msra.mxu0 0
        %837 = vmatprep.subr.bf16.mxu0 0
        %838 = vmatpush2.bf16.msra.mxu0 0
        %839 = vmatprep.subr.bf16.mxu0 0
        %840 = vmatpush2.bf16.msra.mxu0 0
        %841 = vmatprep.subr.bf16.mxu0 0
        %842 = vmatpush2.bf16.msra.mxu0 0
        %843 = vmatprep.mubr.bf16.mxu0 0
        %844 = vmatmul.mubr.bf16.gmra.mxu0 %v761
        %v845 = vpop.f32.mrf.mxu0
        %v846 = vadd.f32 0.0, %v845
        %v847 = vpop.f32.mrf.mxu0
        %v848 = vpop.f32.mrf.mxu0
        %v849 = vadd.f32 0.0, %v848
        %v850 = vpop.f32.mrf.mxu0
        %851 = vdwg.mxu0
        %v856 = vcombine.low %v698, %v699
        %v857 = vcombine.low %v700, %v701
        %v859 = vunpack.c.l.s4 1983009808
        %v860 = vunpack.c.0.s8 %v859
        %v861 = vlaneseq
        %v862 = vshrl.u32 %v861, 7
        %v863 = vsub.s32 %v860, %v862
        %v864 = vrot.slane %v856, %v863
        %v866 = vunpack.c.l.s4 1983009808
        %v867 = vunpack.c.0.s8 %v866
        %v868 = vlaneseq
        %v869 = vshrl.u32 %v868, 7
        %v870 = vsub.s32 %v867, %v869
        %v871 = vrot.slane %v857, %v870
        %v872 = vcombine.low %v864, %v871
        %v890 = vunpack.c.l.b16 %v703
        %v891 = vunpack.c.l.b16 %v704
        %v892 = vunpack.c.l.b16 %v705
        %v893 = vunpack.c.l.b16 %v706
        %v894 = vunpack.c.l.b16 %v707
        %v895 = vunpack.c.l.b16 %v708
        %v896 = vunpack.c.l.b16 %v709
        %v897 = vunpack.c.l.b16 %v710
        %v898 = vunpack.c.l.b16 %v711
        %v899 = vunpack.c.l.b16 %v712
        %v900 = vunpack.c.l.b16 %v713
        %v901 = vunpack.c.l.b16 %v714
        %v902 = vunpack.c.l.b16 %v715
        %v903 = vunpack.c.l.b16 %v716
        %v904 = vunpack.c.l.b16 %v717
        %v905 = vunpack.c.l.b16 %v718
        %v906 = vpack.c.b16 %v891, %v890
        %v907 = vpack.c.b16 %v893, %v892
        %v908 = vpack.c.b16 %v895, %v894
        %v909 = vpack.c.b16 %v897, %v896
        %v910 = vpack.c.b16 %v899, %v898
        %v911 = vpack.c.b16 %v901, %v900
        %v912 = vpack.c.b16 %v903, %v902
        %v913 = vpack.c.b16 %v905, %v904
        %922 = vmatprep.subr.bf16.mxu0 0
        %923 = vmatpush1.bf16.msra.mxu0 %v913
        %924 = vmatprep.subr.bf16.mxu0 0
        %925 = vmatpush1.bf16.msra.mxu0 %v912
        %926 = vmatprep.subr.bf16.mxu0 0
        %927 = vmatpush1.bf16.msra.mxu0 %v911
        %928 = vmatprep.subr.bf16.mxu0 0
        %929 = vmatpush1.bf16.msra.mxu0 %v910
        %930 = vmatprep.subr.bf16.mxu0 0
        %931 = vmatpush1.bf16.msra.mxu0 %v909
        %932 = vmatprep.subr.bf16.mxu0 0
        %933 = vmatpush1.bf16.msra.mxu0 %v908
        %934 = vmatprep.subr.bf16.mxu0 0
        %935 = vmatpush1.bf16.msra.mxu0 %v907
        %936 = vmatprep.subr.bf16.mxu0 0
        %937 = vmatpush1.bf16.msra.mxu0 %v906
        %938 = vmatprep.subr.bf16.mxu0 0
        %939 = vmatpush2.bf16.msra.mxu0 0
        %940 = vmatprep.subr.bf16.mxu0 0
        %941 = vmatpush2.bf16.msra.mxu0 0
        %942 = vmatprep.subr.bf16.mxu0 0
        %943 = vmatpush2.bf16.msra.mxu0 0
        %944 = vmatprep.subr.bf16.mxu0 0
        %945 = vmatpush2.bf16.msra.mxu0 0
        %946 = vmatprep.subr.bf16.mxu0 0
        %947 = vmatpush2.bf16.msra.mxu0 0
        %948 = vmatprep.subr.bf16.mxu0 0
        %949 = vmatpush2.bf16.msra.mxu0 0
        %950 = vmatprep.subr.bf16.mxu0 0
        %951 = vmatpush2.bf16.msra.mxu0 0
        %952 = vmatprep.subr.bf16.mxu0 0
        %953 = vmatpush2.bf16.msra.mxu0 0
        %954 = vmatprep.mubr.bf16.mxu0 0
        %955 = vmatmul.mubr.bf16.gmra.mxu0 %v872
        %v956 = vpop.f32.mrf.mxu0
        %v957 = vadd.f32 %v846, %v956
        %v958 = vpop.f32.mrf.mxu0
        %v959 = vpop.f32.mrf.mxu0
        %v960 = vadd.f32 %v849, %v959
        %v961 = vpop.f32.mrf.mxu0
        %962 = vdwg.mxu0
        %v963 = vadd.f32 %v957, %v191
        %v964 = vadd.f32 %v960, %v191
        %v965 = vmax.f32 %v963, 0.0
        %v966 = vmax.f32 %v964, 0.0
        %v969 = vcombine.high %v965, %v965
        %v970 = vcombine.high %v966, %v966
        %v973 = vpack.c.bf16 %v965, %v965
        %v974 = vpack.c.bf16 %v969, %v969
        %v975 = vpack.c.bf16 %v966, %v966
        %v976 = vpack.c.bf16 %v970, %v970
        %s977 = scalar_lea.vmem %s159, 16 [#allocation2]
        %978 = vst [vmem:[%s977] sm:$0x3] %v973
        %979 = vst [vmem:[%s977 + $0x2] sm:$0x3] %v974
        %980 = vst [vmem:[%s977 + $0x4] sm:$0x3] %v975
        %981 = vst [vmem:[%s977 + $0x6] sm:$0x3] %v976
        %v982 = vld [vmem:[%s164] sm:$0x3]
        %v983 = vld [vmem:[%s164 + $0x4] sm:$0x3]
        %v984 = vld [vmem:[%s164 + $0x8] sm:$0x3]
        %v985 = vld [vmem:[%s164 + $0xc] sm:$0x3]
        %s986 = scalar_lea.vmem %s1, 320
        %v987 = vld [vmem:[%s986] sm:$0xf]
        %v988 = vld [vmem:[%s986 + $0x4] sm:$0xf]
        %v989 = vld [vmem:[%s986 + $0x8] sm:$0xf]
        %v990 = vld [vmem:[%s986 + $0xc] sm:$0xf]
        %v991 = vld [vmem:[%s986 + $0x10] sm:$0xf]
        %v992 = vld [vmem:[%s986 + $0x14] sm:$0xf]
        %v993 = vld [vmem:[%s986 + $0x18] sm:$0xf]
        %v994 = vld [vmem:[%s986 + $0x1c] sm:$0xf]
        %v995 = vld [vmem:[%s986 + $0x20] sm:$0xf]
        %v996 = vld [vmem:[%s986 + $0x24] sm:$0xf]
        %v997 = vld [vmem:[%s986 + $0x28] sm:$0xf]
        %v998 = vld [vmem:[%s986 + $0x2c] sm:$0xf]
        %v999 = vld [vmem:[%s986 + $0x30] sm:$0xf]
        %v1000 = vld [vmem:[%s986 + $0x34] sm:$0xf]
        %v1001 = vld [vmem:[%s986 + $0x38] sm:$0xf]
        %v1002 = vld [vmem:[%s986 + $0x3c] sm:$0xf]
        %v1003 = vld [vmem:[%s164] sm:$0x7]
        %v1004 = vld [vmem:[%s164 + $0x4] sm:$0x7]
        %v1005 = vld [vmem:[%s164 + $0x8] sm:$0x7]
        %v1006 = vld [vmem:[%s164 + $0xc] sm:$0x7]
        %v1012 = vunpack.c.l.s4 1983009808
        %v1013 = vunpack.c.0.s8 %v1012
        %v1014 = vlaneseq
        %v1015 = vshrl.u32 %v1014, 7
        %v1016 = vsub.s32 %v1013, %v1015
        %v1017 = vrot.slane %v1003, %v1016
        %v1018 = vcombine.high %v1017, %v1017
        %v1020 = vunpack.c.l.s4 1983009808
        %v1021 = vunpack.c.0.s8 %v1020
        %v1022 = vlaneseq
        %v1023 = vshrl.u32 %v1022, 7
        %v1024 = vsub.s32 %v1021, %v1023
        %v1025 = vrot.slane %v1004, %v1024
        %v1026 = vcombine.high %v1025, %v1025
        %v1028 = vunpack.c.l.s4 1983009808
        %v1029 = vunpack.c.0.s8 %v1028
        %v1030 = vlaneseq
        %v1031 = vshrl.u32 %v1030, 7
        %v1032 = vsub.s32 %v1029, %v1031
        %v1033 = vrot.slane %v1005, %v1032
        %v1034 = vcombine.high %v1033, %v1033
        %v1036 = vunpack.c.l.s4 1983009808
        %v1037 = vunpack.c.0.s8 %v1036
        %v1038 = vlaneseq
        %v1039 = vshrl.u32 %v1038, 7
        %v1040 = vsub.s32 %v1037, %v1039
        %v1041 = vrot.slane %v1006, %v1040
        %v1042 = vcombine.high %v1041, %v1041
        %v1044 = vshrl.u32 %v1017, 16
        %v1046 = vrot.slane %v1044, 6
        %v1047 = vshll.u32 %v1017, 16
        %v1049 = vrot.slane %v1047, 7
        %v1050 = vor.u32 %v1046, %v1049
        %v1051 = vrot.slane %v1050, 2
        %v1053 = vshll.u32 %v1018, 16
        %v1055 = vrot.slane %v1053, 7
        %v1056 = vsel %vm387, %v1051, %v1055
        %v1058 = vshrl.u32 %v1025, 16
        %v1060 = vrot.slane %v1058, 6
        %v1061 = vshll.u32 %v1025, 16
        %v1063 = vrot.slane %v1061, 7
        %v1064 = vor.u32 %v1060, %v1063
        %v1065 = vrot.slane %v1064, 2
        %v1067 = vshll.u32 %v1026, 16
        %v1069 = vrot.slane %v1067, 7
        %v1070 = vsel %vm387, %v1065, %v1069
        %v1072 = vshrl.u32 %v1033, 16
        %v1074 = vrot.slane %v1072, 6
        %v1075 = vshll.u32 %v1033, 16
        %v1077 = vrot.slane %v1075, 7
        %v1078 = vor.u32 %v1074, %v1077
        %v1079 = vrot.slane %v1078, 2
        %v1081 = vshll.u32 %v1034, 16
        %v1083 = vrot.slane %v1081, 7
        %v1084 = vsel %vm387, %v1079, %v1083
        %v1086 = vshrl.u32 %v1041, 16
        %v1088 = vrot.slane %v1086, 6
        %v1089 = vshll.u32 %v1041, 16
        %v1091 = vrot.slane %v1089, 7
        %v1092 = vor.u32 %v1088, %v1091
        %v1093 = vrot.slane %v1092, 2
        %v1095 = vshll.u32 %v1042, 16
        %v1097 = vrot.slane %v1095, 7
        %v1098 = vsel %vm387, %v1093, %v1097
        %s1099 = scalar_lea.vmem %s1, 384
        %v1100 = vld [vmem:[%s1099] sm:$0xf]
        %v1101 = vld [vmem:[%s1099 + $0x4] sm:$0xf]
        %v1102 = vld [vmem:[%s1099 + $0x8] sm:$0xf]
        %v1103 = vld [vmem:[%s1099 + $0xc] sm:$0xf]
        %v1104 = vld [vmem:[%s1099 + $0x10] sm:$0xf]
        %v1105 = vld [vmem:[%s1099 + $0x14] sm:$0xf]
        %v1106 = vld [vmem:[%s1099 + $0x18] sm:$0xf]
        %v1107 = vld [vmem:[%s1099 + $0x1c] sm:$0xf]
        %v1108 = vld [vmem:[%s1099 + $0x20] sm:$0xf]
        %v1109 = vld [vmem:[%s1099 + $0x24] sm:$0xf]
        %v1110 = vld [vmem:[%s1099 + $0x28] sm:$0xf]
        %v1111 = vld [vmem:[%s1099 + $0x2c] sm:$0xf]
        %v1112 = vld [vmem:[%s1099 + $0x30] sm:$0xf]
        %v1113 = vld [vmem:[%s1099 + $0x34] sm:$0xf]
        %v1114 = vld [vmem:[%s1099 + $0x38] sm:$0xf]
        %v1115 = vld [vmem:[%s1099 + $0x3c] sm:$0xf]
        %v1116 = vcombine.low %v1056, %v1070
        %v1117 = vcombine.low %v1084, %v1098
        %v1119 = vunpack.c.l.s4 1983009808
        %v1120 = vunpack.c.0.s8 %v1119
        %v1121 = vlaneseq
        %v1122 = vshrl.u32 %v1121, 7
        %v1123 = vsub.s32 %v1120, %v1122
        %v1124 = vrot.slane %v1116, %v1123
        %v1126 = vunpack.c.l.s4 1983009808
        %v1127 = vunpack.c.0.s8 %v1126
        %v1128 = vlaneseq
        %v1129 = vshrl.u32 %v1128, 7
        %v1130 = vsub.s32 %v1127, %v1129
        %v1131 = vrot.slane %v1117, %v1130
        %v1132 = vcombine.low %v1124, %v1131
        %v1150 = vunpack.c.l.b16 %v1100
        %v1151 = vunpack.c.l.b16 %v1101
        %v1152 = vunpack.c.l.b16 %v1102
        %v1153 = vunpack.c.l.b16 %v1103
        %v1154 = vunpack.c.l.b16 %v1104
        %v1155 = vunpack.c.l.b16 %v1105
        %v1156 = vunpack.c.l.b16 %v1106
        %v1157 = vunpack.c.l.b16 %v1107
        %v1158 = vunpack.c.l.b16 %v1108
        %v1159 = vunpack.c.l.b16 %v1109
        %v1160 = vunpack.c.l.b16 %v1110
        %v1161 = vunpack.c.l.b16 %v1111
        %v1162 = vunpack.c.l.b16 %v1112
        %v1163 = vunpack.c.l.b16 %v1113
        %v1164 = vunpack.c.l.b16 %v1114
        %v1165 = vunpack.c.l.b16 %v1115
        %v1166 = vpack.c.b16 %v1151, %v1150
        %v1167 = vpack.c.b16 %v1153, %v1152
        %v1168 = vpack.c.b16 %v1155, %v1154
        %v1169 = vpack.c.b16 %v1157, %v1156
        %v1170 = vpack.c.b16 %v1159, %v1158
        %v1171 = vpack.c.b16 %v1161, %v1160
        %v1172 = vpack.c.b16 %v1163, %v1162
        %v1173 = vpack.c.b16 %v1165, %v1164
        %1182 = vmatprep.subr.bf16.mxu0 0
        %1183 = vmatpush1.bf16.msra.mxu0 %v1173
        %1184 = vmatprep.subr.bf16.mxu0 0
        %1185 = vmatpush1.bf16.msra.mxu0 %v1172
        %1186 = vmatprep.subr.bf16.mxu0 0
        %1187 = vmatpush1.bf16.msra.mxu0 %v1171
        %1188 = vmatprep.subr.bf16.mxu0 0
        %1189 = vmatpush1.bf16.msra.mxu0 %v1170
        %1190 = vmatprep.subr.bf16.mxu0 0
        %1191 = vmatpush1.bf16.msra.mxu0 %v1169
        %1192 = vmatprep.subr.bf16.mxu0 0
        %1193 = vmatpush1.bf16.msra.mxu0 %v1168
        %1194 = vmatprep.subr.bf16.mxu0 0
        %1195 = vmatpush1.bf16.msra.mxu0 %v1167
        %1196 = vmatprep.subr.bf16.mxu0 0
        %1197 = vmatpush1.bf16.msra.mxu0 %v1166
        %1198 = vmatprep.subr.bf16.mxu0 0
        %1199 = vmatpush2.bf16.msra.mxu0 0
        %1200 = vmatprep.subr.bf16.mxu0 0
        %1201 = vmatpush2.bf16.msra.mxu0 0
        %1202 = vmatprep.subr.bf16.mxu0 0
        %1203 = vmatpush2.bf16.msra.mxu0 0
        %1204 = vmatprep.subr.bf16.mxu0 0
        %1205 = vmatpush2.bf16.msra.mxu0 0
        %1206 = vmatprep.subr.bf16.mxu0 0
        %1207 = vmatpush2.bf16.msra.mxu0 0
        %1208 = vmatprep.subr.bf16.mxu0 0
        %1209 = vmatpush2.bf16.msra.mxu0 0
        %1210 = vmatprep.subr.bf16.mxu0 0
        %1211 = vmatpush2.bf16.msra.mxu0 0
        %1212 = vmatprep.subr.bf16.mxu0 0
        %1213 = vmatpush2.bf16.msra.mxu0 0
        %1214 = vmatprep.mubr.bf16.mxu0 0
        %1215 = vmatmul.mubr.bf16.gmra.mxu0 %v1132
        %v1216 = vpop.f32.mrf.mxu0
        %v1217 = vadd.f32 0.0, %v1216
        %v1218 = vpop.f32.mrf.mxu0
        %v1219 = vpop.f32.mrf.mxu0
        %v1220 = vadd.f32 0.0, %v1219
        %v1221 = vpop.f32.mrf.mxu0
        %1222 = vdwg.mxu0
        %v1227 = vcombine.low %v982, %v983
        %v1228 = vcombine.low %v984, %v985
        %v1230 = vunpack.c.l.s4 1983009808
        %v1231 = vunpack.c.0.s8 %v1230
        %v1232 = vlaneseq
        %v1233 = vshrl.u32 %v1232, 7
        %v1234 = vsub.s32 %v1231, %v1233
        %v1235 = vrot.slane %v1227, %v1234
        %v1237 = vunpack.c.l.s4 1983009808
        %v1238 = vunpack.c.0.s8 %v1237
        %v1239 = vlaneseq
        %v1240 = vshrl.u32 %v1239, 7
        %v1241 = vsub.s32 %v1238, %v1240
        %v1242 = vrot.slane %v1228, %v1241
        %v1243 = vcombine.low %v1235, %v1242
        %v1261 = vunpack.c.l.b16 %v987
        %v1262 = vunpack.c.l.b16 %v988
        %v1263 = vunpack.c.l.b16 %v989
        %v1264 = vunpack.c.l.b16 %v990
        %v1265 = vunpack.c.l.b16 %v991
        %v1266 = vunpack.c.l.b16 %v992
        %v1267 = vunpack.c.l.b16 %v993
        %v1268 = vunpack.c.l.b16 %v994
        %v1269 = vunpack.c.l.b16 %v995
        %v1270 = vunpack.c.l.b16 %v996
        %v1271 = vunpack.c.l.b16 %v997
        %v1272 = vunpack.c.l.b16 %v998
        %v1273 = vunpack.c.l.b16 %v999
        %v1274 = vunpack.c.l.b16 %v1000
        %v1275 = vunpack.c.l.b16 %v1001
        %v1276 = vunpack.c.l.b16 %v1002
        %v1277 = vpack.c.b16 %v1262, %v1261
        %v1278 = vpack.c.b16 %v1264, %v1263
        %v1279 = vpack.c.b16 %v1266, %v1265
        %v1280 = vpack.c.b16 %v1268, %v1267
        %v1281 = vpack.c.b16 %v1270, %v1269
        %v1282 = vpack.c.b16 %v1272, %v1271
        %v1283 = vpack.c.b16 %v1274, %v1273
        %v1284 = vpack.c.b16 %v1276, %v1275
        %1293 = vmatprep.subr.bf16.mxu0 0
        %1294 = vmatpush1.bf16.msra.mxu0 %v1284
        %1295 = vmatprep.subr.bf16.mxu0 0
        %1296 = vmatpush1.bf16.msra.mxu0 %v1283
        %1297 = vmatprep.subr.bf16.mxu0 0
        %1298 = vmatpush1.bf16.msra.mxu0 %v1282
        %1299 = vmatprep.subr.bf16.mxu0 0
        %1300 = vmatpush1.bf16.msra.mxu0 %v1281
        %1301 = vmatprep.subr.bf16.mxu0 0
        %1302 = vmatpush1.bf16.msra.mxu0 %v1280
        %1303 = vmatprep.subr.bf16.mxu0 0
        %1304 = vmatpush1.bf16.msra.mxu0 %v1279
        %1305 = vmatprep.subr.bf16.mxu0 0
        %1306 = vmatpush1.bf16.msra.mxu0 %v1278
        %1307 = vmatprep.subr.bf16.mxu0 0
        %1308 = vmatpush1.bf16.msra.mxu0 %v1277
        %1309 = vmatprep.subr.bf16.mxu0 0
        %1310 = vmatpush2.bf16.msra.mxu0 0
        %1311 = vmatprep.subr.bf16.mxu0 0
        %1312 = vmatpush2.bf16.msra.mxu0 0
        %1313 = vmatprep.subr.bf16.mxu0 0
        %1314 = vmatpush2.bf16.msra.mxu0 0
        %1315 = vmatprep.subr.bf16.mxu0 0
        %1316 = vmatpush2.bf16.msra.mxu0 0
        %1317 = vmatprep.subr.bf16.mxu0 0
        %1318 = vmatpush2.bf16.msra.mxu0 0
        %1319 = vmatprep.subr.bf16.mxu0 0
        %1320 = vmatpush2.bf16.msra.mxu0 0
        %1321 = vmatprep.subr.bf16.mxu0 0
        %1322 = vmatpush2.bf16.msra.mxu0 0
        %1323 = vmatprep.subr.bf16.mxu0 0
        %1324 = vmatpush2.bf16.msra.mxu0 0
        %1325 = vmatprep.mubr.bf16.mxu0 0
        %1326 = vmatmul.mubr.bf16.gmra.mxu0 %v1243
        %v1327 = vpop.f32.mrf.mxu0
        %v1328 = vadd.f32 %v1217, %v1327
        %v1329 = vpop.f32.mrf.mxu0
        %v1330 = vpop.f32.mrf.mxu0
        %v1331 = vadd.f32 %v1220, %v1330
        %v1332 = vpop.f32.mrf.mxu0
        %1333 = vdwg.mxu0
        %v1334 = vld [vmem:[%s719] sm:$0x3]
        %v1335 = vld [vmem:[%s719 + $0x4] sm:$0x3]
        %v1336 = vld [vmem:[%s719 + $0x8] sm:$0x3]
        %v1337 = vld [vmem:[%s719 + $0xc] sm:$0x3]
        %s1338 = scalar_lea.vmem %s1, 448
        %v1339 = vld [vmem:[%s1338] sm:$0xf]
        %v1340 = vld [vmem:[%s1338 + $0x4] sm:$0xf]
        %v1341 = vld [vmem:[%s1338 + $0x8] sm:$0xf]
        %v1342 = vld [vmem:[%s1338 + $0xc] sm:$0xf]
        %v1343 = vld [vmem:[%s1338 + $0x10] sm:$0xf]
        %v1344 = vld [vmem:[%s1338 + $0x14] sm:$0xf]
        %v1345 = vld [vmem:[%s1338 + $0x18] sm:$0xf]
        %v1346 = vld [vmem:[%s1338 + $0x1c] sm:$0xf]
        %v1347 = vld [vmem:[%s1338 + $0x20] sm:$0xf]
        %v1348 = vld [vmem:[%s1338 + $0x24] sm:$0xf]
        %v1349 = vld [vmem:[%s1338 + $0x28] sm:$0xf]
        %v1350 = vld [vmem:[%s1338 + $0x2c] sm:$0xf]
        %v1351 = vld [vmem:[%s1338 + $0x30] sm:$0xf]
        %v1352 = vld [vmem:[%s1338 + $0x34] sm:$0xf]
        %v1353 = vld [vmem:[%s1338 + $0x38] sm:$0xf]
        %v1354 = vld [vmem:[%s1338 + $0x3c] sm:$0xf]
        %v1359 = vcombine.low %v1334, %v1335
        %v1360 = vcombine.low %v1336, %v1337
        %v1362 = vunpack.c.l.s4 1983009808
        %v1363 = vunpack.c.0.s8 %v1362
        %v1364 = vlaneseq
        %v1365 = vshrl.u32 %v1364, 7
        %v1366 = vsub.s32 %v1363, %v1365
        %v1367 = vrot.slane %v1359, %v1366
        %v1369 = vunpack.c.l.s4 1983009808
        %v1370 = vunpack.c.0.s8 %v1369
        %v1371 = vlaneseq
        %v1372 = vshrl.u32 %v1371, 7
        %v1373 = vsub.s32 %v1370, %v1372
        %v1374 = vrot.slane %v1360, %v1373
        %v1375 = vcombine.low %v1367, %v1374
        %v1393 = vunpack.c.l.b16 %v1339
        %v1394 = vunpack.c.l.b16 %v1340
        %v1395 = vunpack.c.l.b16 %v1341
        %v1396 = vunpack.c.l.b16 %v1342
        %v1397 = vunpack.c.l.b16 %v1343
        %v1398 = vunpack.c.l.b16 %v1344
        %v1399 = vunpack.c.l.b16 %v1345
        %v1400 = vunpack.c.l.b16 %v1346
        %v1401 = vunpack.c.l.b16 %v1347
        %v1402 = vunpack.c.l.b16 %v1348
        %v1403 = vunpack.c.l.b16 %v1349
        %v1404 = vunpack.c.l.b16 %v1350
        %v1405 = vunpack.c.l.b16 %v1351
        %v1406 = vunpack.c.l.b16 %v1352
        %v1407 = vunpack.c.l.b16 %v1353
        %v1408 = vunpack.c.l.b16 %v1354
        %v1409 = vpack.c.b16 %v1394, %v1393
        %v1410 = vpack.c.b16 %v1396, %v1395
        %v1411 = vpack.c.b16 %v1398, %v1397
        %v1412 = vpack.c.b16 %v1400, %v1399
        %v1413 = vpack.c.b16 %v1402, %v1401
        %v1414 = vpack.c.b16 %v1404, %v1403
        %v1415 = vpack.c.b16 %v1406, %v1405
        %v1416 = vpack.c.b16 %v1408, %v1407
        %1425 = vmatprep.subr.bf16.mxu0 0
        %1426 = vmatpush1.bf16.msra.mxu0 %v1416
        %1427 = vmatprep.subr.bf16.mxu0 0
        %1428 = vmatpush1.bf16.msra.mxu0 %v1415
        %1429 = vmatprep.subr.bf16.mxu0 0
        %1430 = vmatpush1.bf16.msra.mxu0 %v1414
        %1431 = vmatprep.subr.bf16.mxu0 0
        %1432 = vmatpush1.bf16.msra.mxu0 %v1413
        %1433 = vmatprep.subr.bf16.mxu0 0
        %1434 = vmatpush1.bf16.msra.mxu0 %v1412
        %1435 = vmatprep.subr.bf16.mxu0 0
        %1436 = vmatpush1.bf16.msra.mxu0 %v1411
        %1437 = vmatprep.subr.bf16.mxu0 0
        %1438 = vmatpush1.bf16.msra.mxu0 %v1410
        %1439 = vmatprep.subr.bf16.mxu0 0
        %1440 = vmatpush1.bf16.msra.mxu0 %v1409
        %1441 = vmatprep.subr.bf16.mxu0 0
        %1442 = vmatpush2.bf16.msra.mxu0 0
        %1443 = vmatprep.subr.bf16.mxu0 0
        %1444 = vmatpush2.bf16.msra.mxu0 0
        %1445 = vmatprep.subr.bf16.mxu0 0
        %1446 = vmatpush2.bf16.msra.mxu0 0
        %1447 = vmatprep.subr.bf16.mxu0 0
        %1448 = vmatpush2.bf16.msra.mxu0 0
        %1449 = vmatprep.subr.bf16.mxu0 0
        %1450 = vmatpush2.bf16.msra.mxu0 0
        %1451 = vmatprep.subr.bf16.mxu0 0
        %1452 = vmatpush2.bf16.msra.mxu0 0
        %1453 = vmatprep.subr.bf16.mxu0 0
        %1454 = vmatpush2.bf16.msra.mxu0 0
        %1455 = vmatprep.subr.bf16.mxu0 0
        %1456 = vmatpush2.bf16.msra.mxu0 0
        %1457 = vmatprep.mubr.bf16.mxu0 0
        %1458 = vmatmul.mubr.bf16.gmra.mxu0 %v1375
        %v1459 = vpop.f32.mrf.mxu0
        %v1460 = vadd.f32 0.0, %v1459
        %v1461 = vpop.f32.mrf.mxu0
        %v1462 = vpop.f32.mrf.mxu0
        %v1463 = vadd.f32 0.0, %v1462
        %v1464 = vpop.f32.mrf.mxu0
        %1465 = vdwg.mxu0
        %v1466 = vadd.f32 %v1328, %v1460
        %v1467 = vadd.f32 %v1331, %v1463
        %v1468 = vld [vmem:[%s719] sm:$0x7]
        %v1469 = vld [vmem:[%s719 + $0x4] sm:$0x7]
        %v1470 = vld [vmem:[%s719 + $0x8] sm:$0x7]
        %v1471 = vld [vmem:[%s719 + $0xc] sm:$0x7]
        %v1477 = vunpack.c.l.s4 1983009808
        %v1478 = vunpack.c.0.s8 %v1477
        %v1479 = vlaneseq
        %v1480 = vshrl.u32 %v1479, 7
        %v1481 = vsub.s32 %v1478, %v1480
        %v1482 = vrot.slane %v1468, %v1481
        %v1483 = vcombine.high %v1482, %v1482
        %v1485 = vunpack.c.l.s4 1983009808
        %v1486 = vunpack.c.0.s8 %v1485
        %v1487 = vlaneseq
        %v1488 = vshrl.u32 %v1487, 7
        %v1489 = vsub.s32 %v1486, %v1488
        %v1490 = vrot.slane %v1469, %v1489
        %v1491 = vcombine.high %v1490, %v1490
        %v1493 = vunpack.c.l.s4 1983009808
        %v1494 = vunpack.c.0.s8 %v1493
        %v1495 = vlaneseq
        %v1496 = vshrl.u32 %v1495, 7
        %v1497 = vsub.s32 %v1494, %v1496
        %v1498 = vrot.slane %v1470, %v1497
        %v1499 = vcombine.high %v1498, %v1498
        %v1501 = vunpack.c.l.s4 1983009808
        %v1502 = vunpack.c.0.s8 %v1501
        %v1503 = vlaneseq
        %v1504 = vshrl.u32 %v1503, 7
        %v1505 = vsub.s32 %v1502, %v1504
        %v1506 = vrot.slane %v1471, %v1505
        %v1507 = vcombine.high %v1506, %v1506
        %v1509 = vshrl.u32 %v1482, 16
        %v1511 = vrot.slane %v1509, 6
        %v1512 = vshll.u32 %v1482, 16
        %v1514 = vrot.slane %v1512, 7
        %v1515 = vor.u32 %v1511, %v1514
        %v1516 = vrot.slane %v1515, 2
        %v1518 = vshll.u32 %v1483, 16
        %v1520 = vrot.slane %v1518, 7
        %v1521 = vsel %vm387, %v1516, %v1520
        %v1523 = vshrl.u32 %v1490, 16
        %v1525 = vrot.slane %v1523, 6
        %v1526 = vshll.u32 %v1490, 16
        %v1528 = vrot.slane %v1526, 7
        %v1529 = vor.u32 %v1525, %v1528
        %v1530 = vrot.slane %v1529, 2
        %v1532 = vshll.u32 %v1491, 16
        %v1534 = vrot.slane %v1532, 7
        %v1535 = vsel %vm387, %v1530, %v1534
        %v1537 = vshrl.u32 %v1498, 16
        %v1539 = vrot.slane %v1537, 6
        %v1540 = vshll.u32 %v1498, 16
        %v1542 = vrot.slane %v1540, 7
        %v1543 = vor.u32 %v1539, %v1542
        %v1544 = vrot.slane %v1543, 2
        %v1546 = vshll.u32 %v1499, 16
        %v1548 = vrot.slane %v1546, 7
        %v1549 = vsel %vm387, %v1544, %v1548
        %v1551 = vshrl.u32 %v1506, 16
        %v1553 = vrot.slane %v1551, 6
        %v1554 = vshll.u32 %v1506, 16
        %v1556 = vrot.slane %v1554, 7
        %v1557 = vor.u32 %v1553, %v1556
        %v1558 = vrot.slane %v1557, 2
        %v1560 = vshll.u32 %v1507, 16
        %v1562 = vrot.slane %v1560, 7
        %v1563 = vsel %vm387, %v1558, %v1562
        %s1564 = scalar_lea.vmem %s1, 512
        %v1565 = vld [vmem:[%s1564] sm:$0xf]
        %v1566 = vld [vmem:[%s1564 + $0x4] sm:$0xf]
        %v1567 = vld [vmem:[%s1564 + $0x8] sm:$0xf]
        %v1568 = vld [vmem:[%s1564 + $0xc] sm:$0xf]
        %v1569 = vld [vmem:[%s1564 + $0x10] sm:$0xf]
        %v1570 = vld [vmem:[%s1564 + $0x14] sm:$0xf]
        %v1571 = vld [vmem:[%s1564 + $0x18] sm:$0xf]
        %v1572 = vld [vmem:[%s1564 + $0x1c] sm:$0xf]
        %v1573 = vld [vmem:[%s1564 + $0x20] sm:$0xf]
        %v1574 = vld [vmem:[%s1564 + $0x24] sm:$0xf]
        %v1575 = vld [vmem:[%s1564 + $0x28] sm:$0xf]
        %v1576 = vld [vmem:[%s1564 + $0x2c] sm:$0xf]
        %v1577 = vld [vmem:[%s1564 + $0x30] sm:$0xf]
        %v1578 = vld [vmem:[%s1564 + $0x34] sm:$0xf]
        %v1579 = vld [vmem:[%s1564 + $0x38] sm:$0xf]
        %v1580 = vld [vmem:[%s1564 + $0x3c] sm:$0xf]
        %v1581 = vcombine.low %v1521, %v1535
        %v1582 = vcombine.low %v1549, %v1563
        %v1584 = vunpack.c.l.s4 1983009808
        %v1585 = vunpack.c.0.s8 %v1584
        %v1586 = vlaneseq
        %v1587 = vshrl.u32 %v1586, 7
        %v1588 = vsub.s32 %v1585, %v1587
        %v1589 = vrot.slane %v1581, %v1588
        %v1591 = vunpack.c.l.s4 1983009808
        %v1592 = vunpack.c.0.s8 %v1591
        %v1593 = vlaneseq
        %v1594 = vshrl.u32 %v1593, 7
        %v1595 = vsub.s32 %v1592, %v1594
        %v1596 = vrot.slane %v1582, %v1595
        %v1597 = vcombine.low %v1589, %v1596
        %v1615 = vunpack.c.l.b16 %v1565
        %v1616 = vunpack.c.l.b16 %v1566
        %v1617 = vunpack.c.l.b16 %v1567
        %v1618 = vunpack.c.l.b16 %v1568
        %v1619 = vunpack.c.l.b16 %v1569
        %v1620 = vunpack.c.l.b16 %v1570
        %v1621 = vunpack.c.l.b16 %v1571
        %v1622 = vunpack.c.l.b16 %v1572
        %v1623 = vunpack.c.l.b16 %v1573
        %v1624 = vunpack.c.l.b16 %v1574
        %v1625 = vunpack.c.l.b16 %v1575
        %v1626 = vunpack.c.l.b16 %v1576
        %v1627 = vunpack.c.l.b16 %v1577
        %v1628 = vunpack.c.l.b16 %v1578
        %v1629 = vunpack.c.l.b16 %v1579
        %v1630 = vunpack.c.l.b16 %v1580
        %v1631 = vpack.c.b16 %v1616, %v1615
        %v1632 = vpack.c.b16 %v1618, %v1617
        %v1633 = vpack.c.b16 %v1620, %v1619
        %v1634 = vpack.c.b16 %v1622, %v1621
        %v1635 = vpack.c.b16 %v1624, %v1623
        %v1636 = vpack.c.b16 %v1626, %v1625
        %v1637 = vpack.c.b16 %v1628, %v1627
        %v1638 = vpack.c.b16 %v1630, %v1629
        %1647 = vmatprep.subr.bf16.mxu0 0
        %1648 = vmatpush1.bf16.msra.mxu0 %v1638
        %1649 = vmatprep.subr.bf16.mxu0 0
        %1650 = vmatpush1.bf16.msra.mxu0 %v1637
        %1651 = vmatprep.subr.bf16.mxu0 0
        %1652 = vmatpush1.bf16.msra.mxu0 %v1636
        %1653 = vmatprep.subr.bf16.mxu0 0
        %1654 = vmatpush1.bf16.msra.mxu0 %v1635
        %1655 = vmatprep.subr.bf16.mxu0 0
        %1656 = vmatpush1.bf16.msra.mxu0 %v1634
        %1657 = vmatprep.subr.bf16.mxu0 0
        %1658 = vmatpush1.bf16.msra.mxu0 %v1633
        %1659 = vmatprep.subr.bf16.mxu0 0
        %1660 = vmatpush1.bf16.msra.mxu0 %v1632
        %1661 = vmatprep.subr.bf16.mxu0 0
        %1662 = vmatpush1.bf16.msra.mxu0 %v1631
        %1663 = vmatprep.subr.bf16.mxu0 0
        %1664 = vmatpush2.bf16.msra.mxu0 0
        %1665 = vmatprep.subr.bf16.mxu0 0
        %1666 = vmatpush2.bf16.msra.mxu0 0
        %1667 = vmatprep.subr.bf16.mxu0 0
        %1668 = vmatpush2.bf16.msra.mxu0 0
        %1669 = vmatprep.subr.bf16.mxu0 0
        %1670 = vmatpush2.bf16.msra.mxu0 0
        %1671 = vmatprep.subr.bf16.mxu0 0
        %1672 = vmatpush2.bf16.msra.mxu0 0
        %1673 = vmatprep.subr.bf16.mxu0 0
        %1674 = vmatpush2.bf16.msra.mxu0 0
        %1675 = vmatprep.subr.bf16.mxu0 0
        %1676 = vmatpush2.bf16.msra.mxu0 0
        %1677 = vmatprep.subr.bf16.mxu0 0
        %1678 = vmatpush2.bf16.msra.mxu0 0
        %1679 = vmatprep.mubr.bf16.mxu0 0
        %1680 = vmatmul.mubr.bf16.gmra.mxu0 %v1597
        %v1681 = vpop.f32.mrf.mxu0
        %v1682 = vadd.f32 0.0, %v1681
        %v1683 = vpop.f32.mrf.mxu0
        %v1684 = vpop.f32.mrf.mxu0
        %v1685 = vadd.f32 0.0, %v1684
        %v1686 = vpop.f32.mrf.mxu0
        %1687 = vdwg.mxu0
        %v1688 = vadd.f32 %v1466, %v1682
        %v1689 = vadd.f32 %v1467, %v1685
        %v1690 = vadd.f32 %v1688, %v191
        %v1691 = vadd.f32 %v1689, %v191
        %v1692 = vmax.f32 %v1690, 0.0
        %v1693 = vmax.f32 %v1691, 0.0
        %v1696 = vcombine.high %v1692, %v1692
        %v1697 = vcombine.high %v1693, %v1693
        %v1700 = vpack.c.bf16 %v1692, %v1692
        %v1701 = vpack.c.bf16 %v1696, %v1696
        %v1702 = vpack.c.bf16 %v1693, %v1693
        %v1703 = vpack.c.bf16 %v1697, %v1697
        %s1704 = scalar_lea.vmem %s159, 24 [#allocation2]
        %1705 = vst [vmem:[%s1704] sm:$0x3] %v1700
        %1706 = vst [vmem:[%s1704 + $0x2] sm:$0x3] %v1701
        %1707 = vst [vmem:[%s1704 + $0x4] sm:$0x3] %v1702
        %1708 = vst [vmem:[%s1704 + $0x6] sm:$0x3] %v1703
        %s1709 = sand.u32 %s90, 1
        %s1710 = sand.u32 %s90, 1
        %s1711 = smul.addr %s1710, 32
        %s1712 = scalar_lea.vmem [#allocation2], %s1711
        // Predicated region
        $region33: #{autoencoder_forward.14} parent=31 // pred_check
          %p1713 = pneg %p100
        $region34: #{autoencoder_forward.14} parent=31 // pred_check_branch
          %1715 = sbr.rel (%p1713) target = $region36
        $region35: #{autoencoder_forward.14} parent=31 // pred_region
          %s1716 = smul.addr %s14, 4
          %s1717 = smul.addr %s1716, 2
          %s1718 = scalar_lea.vmem %s3, %s1717
          // Predicated region
          $region37: #{autoencoder_forward.14} parent=35 // pred_check
            _
          $region38: #{autoencoder_forward.14} parent=35 // pred_check_branch
            %1720 = sbr.rel (0) target = $region40
          $region39: #{autoencoder_forward.14} parent=35 // pred_region
            // Predicated region
            $region41: #{autoencoder_forward.14} parent=39 // pred_check
              _
            $region42: #{autoencoder_forward.14} parent=39 // pred_check_branch
              %1722 = sbr.rel target = $region44
            $region43: #{autoencoder_forward.14} parent=39 // pred_region
              // Predicated region
              $region56: #{autoencoder_forward.14} parent=43 // pred_check
                _
              $region57: #{autoencoder_forward.14} parent=43 // pred_check_branch
                %1768 = sbr.rel (0) target = $region59
              $region58: #{autoencoder_forward.14} parent=43 // pred_region
                loop: start=0, step=1, limit=1
                $region60: #{autoencoder_forward.14} parent=58 // loop_pre_header
                  _
                $region61: #{autoencoder_forward.14} parent=58 // loop_header
                  %s1770 = sphi 0, %s1774
                  %p1771 = scmp.ge.s32.totalorder %s1770, 1
                  %s1775 = sphi %s1712, %s1712
                  %s1776 = sphi %s1718, %s1718
                $region62: #{autoencoder_forward.14} parent=58 // loop_header_branch
                  %1773 = sbr.rel (%p1771) target = $region66
                $region63: #{autoencoder_forward.14} parent=58 // loop_body
                  _
                $region64: #{autoencoder_forward.14} parent=58 // loop_footer
                  %s1774 = sadd.s32 1, %s1770
                $region65: #{autoencoder_forward.14} parent=58 // loop_footer_branch
                  %1769 = sbr.rel target = $region61
                $region66: #{autoencoder_forward.14} parent=58 // loop_exit
                  _
                %s1778 = ssub.s32 4, 1
                loop: start=0, step=1, limit=1
                $region67: #{autoencoder_forward.14} parent=58 // loop_pre_header
                  _
                $region68: #{autoencoder_forward.14} parent=58 // loop_header
                  %s1780 = sphi 0, %s1784
                  %p1781 = scmp.ge.s32.totalorder %s1780, 1
                  %s1785 = sphi %s1712, %s1712
                  %s1786 = sphi %s1718, %s1718
                $region69: #{autoencoder_forward.14} parent=58 // loop_header_branch
                  %1783 = sbr.rel (%p1781) target = $region73
                $region70: #{autoencoder_forward.14} parent=58 // loop_body
                  %v1787 = vld [vmem:[%s1785] sm:%s1778]
                  %1788 = vst [vmem:[%s1786] sm:%s1778] %v1787
                  %v1789 = vld [vmem:[%s1785 + $0x2] sm:%s1778]
                  %1790 = vst [vmem:[%s1786 + $0x2] sm:%s1778] %v1789
                  %v1791 = vld [vmem:[%s1785 + $0x4] sm:%s1778]
                  %1792 = vst [vmem:[%s1786 + $0x4] sm:%s1778] %v1791
                  %v1793 = vld [vmem:[%s1785 + $0x6] sm:%s1778]
                  %1794 = vst [vmem:[%s1786 + $0x6] sm:%s1778] %v1793
                  %v1795 = vld [vmem:[%s1785 + $0x8] sm:%s1778]
                  %1796 = vst [vmem:[%s1786 + $0x10] sm:%s1778] %v1795
                  %v1797 = vld [vmem:[%s1785 + $0xa] sm:%s1778]
                  %1798 = vst [vmem:[%s1786 + $0x12] sm:%s1778] %v1797
                  %v1799 = vld [vmem:[%s1785 + $0xc] sm:%s1778]
                  %1800 = vst [vmem:[%s1786 + $0x14] sm:%s1778] %v1799
                  %v1801 = vld [vmem:[%s1785 + $0xe] sm:%s1778]
                  %1802 = vst [vmem:[%s1786 + $0x16] sm:%s1778] %v1801
                  %v1803 = vld [vmem:[%s1785 + $0x10] sm:%s1778]
                  %1804 = vst [vmem:[%s1786 + $0x20] sm:%s1778] %v1803
                  %v1805 = vld [vmem:[%s1785 + $0x12] sm:%s1778]
                  %1806 = vst [vmem:[%s1786 + $0x22] sm:%s1778] %v1805
                  %v1807 = vld [vmem:[%s1785 + $0x14] sm:%s1778]
                  %1808 = vst [vmem:[%s1786 + $0x24] sm:%s1778] %v1807
                  %v1809 = vld [vmem:[%s1785 + $0x16] sm:%s1778]
                  %1810 = vst [vmem:[%s1786 + $0x26] sm:%s1778] %v1809
                  %v1811 = vld [vmem:[%s1785 + $0x18] sm:%s1778]
                  %1812 = vst [vmem:[%s1786 + $0x30] sm:%s1778] %v1811
                  %v1813 = vld [vmem:[%s1785 + $0x1a] sm:%s1778]
                  %1814 = vst [vmem:[%s1786 + $0x32] sm:%s1778] %v1813
                  %v1815 = vld [vmem:[%s1785 + $0x1c] sm:%s1778]
                  %1816 = vst [vmem:[%s1786 + $0x34] sm:%s1778] %v1815
                  %v1817 = vld [vmem:[%s1785 + $0x1e] sm:%s1778]
                  %1818 = vst [vmem:[%s1786 + $0x36] sm:%s1778] %v1817
                $region71: #{autoencoder_forward.14} parent=58 // loop_footer
                  %s1784 = sadd.s32 1, %s1780
                $region72: #{autoencoder_forward.14} parent=58 // loop_footer_branch
                  %1779 = sbr.rel target = $region68
                $region73: #{autoencoder_forward.14} parent=58 // loop_exit
                  _
              $region59: #{autoencoder_forward.14} parent=43 // pred_fallthru
                _
            $region44: #{autoencoder_forward.14} parent=39 // pred_fallthru
              _
            // Predicated region
            $region45: #{autoencoder_forward.14} parent=39 // pred_check
              _
            $region46: #{autoencoder_forward.14} parent=39 // pred_check_branch
              %1724 = sbr.rel (0) target = $region48
            $region47: #{autoencoder_forward.14} parent=39 // pred_region
              %s1726 = ssub.s32 4, 1
              loop: start=0, step=1, limit=1
              $region49: #{autoencoder_forward.14} parent=47 // loop_pre_header
                _
              $region50: #{autoencoder_forward.14} parent=47 // loop_header
                %s1728 = sphi 0, %s1732
                %p1729 = scmp.ge.s32.totalorder %s1728, 1
                %s1733 = sphi %s1712, %s1712
                %s1734 = sphi %s1718, %s1718
              $region51: #{autoencoder_forward.14} parent=47 // loop_header_branch
                %1731 = sbr.rel (%p1729) target = $region55
              $region52: #{autoencoder_forward.14} parent=47 // loop_body
                %v1735 = vld [vmem:[%s1733] sm:%s1726]
                %1736 = vst [vmem:[%s1734] sm:%s1726] %v1735
                %v1737 = vld [vmem:[%s1733 + $0x2] sm:%s1726]
                %1738 = vst [vmem:[%s1734 + $0x2] sm:%s1726] %v1737
                %v1739 = vld [vmem:[%s1733 + $0x4] sm:%s1726]
                %1740 = vst [vmem:[%s1734 + $0x4] sm:%s1726] %v1739
                %v1741 = vld [vmem:[%s1733 + $0x6] sm:%s1726]
                %1742 = vst [vmem:[%s1734 + $0x6] sm:%s1726] %v1741
                %v1743 = vld [vmem:[%s1733 + $0x8] sm:%s1726]
                %1744 = vst [vmem:[%s1734 + $0x10] sm:%s1726] %v1743
                %v1745 = vld [vmem:[%s1733 + $0xa] sm:%s1726]
                %1746 = vst [vmem:[%s1734 + $0x12] sm:%s1726] %v1745
                %v1747 = vld [vmem:[%s1733 + $0xc] sm:%s1726]
                %1748 = vst [vmem:[%s1734 + $0x14] sm:%s1726] %v1747
                %v1749 = vld [vmem:[%s1733 + $0xe] sm:%s1726]
                %1750 = vst [vmem:[%s1734 + $0x16] sm:%s1726] %v1749
                %v1751 = vld [vmem:[%s1733 + $0x10] sm:%s1726]
                %1752 = vst [vmem:[%s1734 + $0x20] sm:%s1726] %v1751
                %v1753 = vld [vmem:[%s1733 + $0x12] sm:%s1726]
                %1754 = vst [vmem:[%s1734 + $0x22] sm:%s1726] %v1753
                %v1755 = vld [vmem:[%s1733 + $0x14] sm:%s1726]
                %1756 = vst [vmem:[%s1734 + $0x24] sm:%s1726] %v1755
                %v1757 = vld [vmem:[%s1733 + $0x16] sm:%s1726]
                %1758 = vst [vmem:[%s1734 + $0x26] sm:%s1726] %v1757
                %v1759 = vld [vmem:[%s1733 + $0x18] sm:%s1726]
                %1760 = vst [vmem:[%s1734 + $0x30] sm:%s1726] %v1759
                %v1761 = vld [vmem:[%s1733 + $0x1a] sm:%s1726]
                %1762 = vst [vmem:[%s1734 + $0x32] sm:%s1726] %v1761
                %v1763 = vld [vmem:[%s1733 + $0x1c] sm:%s1726]
                %1764 = vst [vmem:[%s1734 + $0x34] sm:%s1726] %v1763
                %v1765 = vld [vmem:[%s1733 + $0x1e] sm:%s1726]
                %1766 = vst [vmem:[%s1734 + $0x36] sm:%s1726] %v1765
              $region53: #{autoencoder_forward.14} parent=47 // loop_footer
                %s1732 = sadd.s32 1, %s1728
              $region54: #{autoencoder_forward.14} parent=47 // loop_footer_branch
                %1727 = sbr.rel target = $region50
              $region55: #{autoencoder_forward.14} parent=47 // loop_exit
                _
            $region48: #{autoencoder_forward.14} parent=39 // pred_fallthru
              _
          $region40: #{autoencoder_forward.14} parent=35 // pred_fallthru
            _
          %1819 = vnop
        $region36: #{autoencoder_forward.14} parent=31 // pred_fallthru
          _
      $region32: #{autoencoder_forward.14} parent=5 // pred_fallthru
        _
      %p1820 = scmp.le.s32.totalorder 2, %s9
      // Predicated region
      $region74: #{autoencoder_forward.14} parent=5 // pred_check
        %p1821 = pneg %p1820
      $region75: #{autoencoder_forward.14} parent=5 // pred_check_branch
        %1823 = sbr.rel (%p1821) target = $region77
      $region76: #{autoencoder_forward.14} parent=5 // pred_region
        %s1824 = ssub.s32 %s9, 2
        // Predicated region
        $region78: #{autoencoder_forward.14} parent=76 // pred_check
          %p1825 = pneg %p106
        $region79: #{autoencoder_forward.14} parent=76 // pred_check_branch
          %1827 = sbr.rel (%p1825) target = $region81
        $region80: #{autoencoder_forward.14} parent=76 // pred_region
          %s1828 = sand.u32 %s91, 1
          %s1829 = sand.u32 %s91, 1
          %s1830 = smul.addr %s1829, 32
          %s1831 = scalar_lea.vmem [#allocation2], %s1830
        $region81: #{autoencoder_forward.14} parent=76 // pred_fallthru
          _
      $region77: #{autoencoder_forward.14} parent=5 // pred_fallthru
        _
    $region6: #{autoencoder_forward.14} parent=1 // loop_footer
      %s13 = sadd.s32 1, %s9
    $region7: #{autoencoder_forward.14} parent=1 // loop_footer_branch
      %8 = sbr.rel target = $region3
    $region8: #{autoencoder_forward.14} parent=1 // loop_exit
      _

// kernel: autoencoder_forward.15
$region0: #{autoencoder_forward.15}
  #allocation0 [shape = 'u32[]', space=smem, size = 0x4, offset = 0x4, fixed_abs, tag = 'smem constant byte address 0x4 - core index']
  #allocation1 [shape = 'u32[144,128]{1,0:T(1,128)}', space=vmem, size = 0x12000, scoped, tag = 'internal scratch']
  %s0 = inlined_call_operand.vmem [shape: bf16[2,9,9,128], index: 0, kind: input, shape index: {}]
  %s1 = inlined_call_operand.vmem [shape: bf16[9,128,8], index: 1, kind: input, shape index: {}]
  %s2 = inlined_call_operand.vmem [shape: f32[1,8], index: 2, kind: input, shape index: {}]
  %s3 = inlined_call_operand.vmem [shape: bf16[2,2,2,8,8,8], index: 3, kind: output, shape index: {}]
  %s4 = sld [smem:[#allocation0]]
  $region82: #{autoencoder_forward.15} parent=0
    _
  %s6 = ssub.s32 1, %s4
  %s7 = scalar_select 0, %s6, %s4
  $region1: #{autoencoder_forward.15} parent=0
    #allocation2 [shape = 'u8[131072]{0}', space=vmem, size = 0x20000, scoped, tag = 'output window, operand 0']
    loop: start=0, step=1, limit=4
    $region2: #{autoencoder_forward.15} parent=1 // loop_pre_header
      _
    $region3: #{autoencoder_forward.15} parent=1 // loop_header
      %s9 = sphi 0, %s13
      %p10 = scmp.ge.s32.totalorder %s9, 4
      %s19 = sphi 0, %s21
      %s22 = sphi 0, %s19
      %s23 = sphi 0, %s22
      %s39 = sphi 0, %s23
      %s43 = sphi 0, %s43
      %s45 = sphi 0, %s43
      %s46 = sphi 0, %s45
      %s60 = sphi 0, %s46
      %s64 = sphi 0, %s64
      %s66 = sphi 0, %s64
      %s67 = sphi 0, %s66
      %s81 = sphi 0, %s67
      %s87 = sphi 0, %s89
      %s90 = sphi 0, %s87
      %s91 = sphi 0, %s90
      %s107 = sphi 0, %s91
    $region4: #{autoencoder_forward.15} parent=1 // loop_header_branch
      %12 = sbr.rel (%p10) target = $region8
    $region5: #{autoencoder_forward.15} parent=1 // loop_body
      %s14 = ssub.s32 %s9, 1
      %s15 = ssub.s32 %s9, 2
      %s16 = sadd.s32 %s9, 1
      %s17 = ssub.s32 %s9, %s16
      %p18 = scmp.eq.s32.totalorder %s17, 0
      %s20 = sadd.s32 %s19, 1
      %s21 = scalar_select %p18, %s19, %s20
      %p24 = pneg %p18
      %p25 = scmp.eq.s32.totalorder %s9, 1
      %p26 = por %p24, %p25
      %p27 = scmp.ne.s32.totalorder %s19, %s22
      %p28 = scmp.eq.s32.totalorder %s9, 0
      %p29 = por %p27, %p28
      %p30 = scmp.ne.s32.totalorder %s19, %s22
      %p31 = scmp.eq.s32.totalorder %s14, 1
      %p32 = por %p30, %p31
      %p33 = scmp.ne.s32.totalorder %s22, %s23
      %p34 = scmp.eq.s32.totalorder %s14, 0
      %p35 = por %p33, %p34
      %p36 = scmp.ne.s32.totalorder %s22, %s23
      %p37 = scmp.eq.s32.totalorder %s15, 1
      %p38 = por %p36, %p37
      %p40 = scmp.ne.s32.totalorder %s23, %s39
      %p41 = scmp.eq.s32.totalorder %s15, 0
      %p42 = por %p40, %p41
      %s44 = sadd.s32 %s43, 1
      %p47 = scmp.eq.s32.totalorder %s9, 1
      %p48 = scmp.ne.s32.totalorder %s43, %s45
      %p49 = scmp.eq.s32.totalorder %s9, 0
      %p50 = por %p48, %p49
      %p51 = scmp.ne.s32.totalorder %s43, %s45
      %p52 = scmp.eq.s32.totalorder %s14, 1
      %p53 = por %p51, %p52
      %p54 = scmp.ne.s32.totalorder %s45, %s46
      %p55 = scmp.eq.s32.totalorder %s14, 0
      %p56 = por %p54, %p55
      %p57 = scmp.ne.s32.totalorder %s45, %s46
      %p58 = scmp.eq.s32.totalorder %s15, 1
      %p59 = por %p57, %p58
      %p61 = scmp.ne.s32.totalorder %s46, %s60
      %p62 = scmp.eq.s32.totalorder %s15, 0
      %p63 = por %p61, %p62
      %s65 = sadd.s32 %s64, 1
      %p68 = scmp.eq.s32.totalorder %s9, 1
      %p69 = scmp.ne.s32.totalorder %s64, %s66
      %p70 = scmp.eq.s32.totalorder %s9, 0
      %p71 = por %p69, %p70
      %p72 = scmp.ne.s32.totalorder %s64, %s66
      %p73 = scmp.eq.s32.totalorder %s14, 1
      %p74 = por %p72, %p73
      %p75 = scmp.ne.s32.totalorder %s66, %s67
      %p76 = scmp.eq.s32.totalorder %s14, 0
      %p77 = por %p75, %p76
      %p78 = scmp.ne.s32.totalorder %s66, %s67
      %p79 = scmp.eq.s32.totalorder %s15, 1
      %p80 = por %p78, %p79
      %p82 = scmp.ne.s32.totalorder %s67, %s81
      %p83 = scmp.eq.s32.totalorder %s15, 0
      %p84 = por %p82, %p83
      %s85 = ssub.s32 %s9, %s16
      %p86 = scmp.eq.s32.totalorder %s85, 0
      %s88 = sadd.s32 %s87, 1
      %s89 = scalar_select %p86, %s87, %s88
      %p92 = pneg %p86
      %p93 = scmp.eq.s32.totalorder %s9, 1
      %p94 = por %p92, %p93
      %p95 = scmp.ne.s32.totalorder %s87, %s90
      %p96 = scmp.eq.s32.totalorder %s9, 0
      %p97 = por %p95, %p96
      %p98 = scmp.ne.s32.totalorder %s87, %s90
      %p99 = scmp.eq.s32.totalorder %s14, 1
      %p100 = por %p98, %p99
      %p101 = scmp.ne.s32.totalorder %s90, %s91
      %p102 = scmp.eq.s32.totalorder %s14, 0
      %p103 = por %p101, %p102
      %p104 = scmp.ne.s32.totalorder %s90, %s91
      %p105 = scmp.eq.s32.totalorder %s15, 1
      %p106 = por %p104, %p105
      %p108 = scmp.ne.s32.totalorder %s91, %s107
      %p109 = scmp.eq.s32.totalorder %s15, 0
      %p110 = por %p108, %p109
      %p111 = scmp.le.s32.totalorder 1, %s9
      %p112 = scmp.lt.s32.totalorder %s9, 3
      %p113 = pnand %p111, %p112
      %p114 = pneg %p113
      // Predicated region
      $region9: #{autoencoder_forward.15} parent=5 // pred_check
        _
      $region10: #{autoencoder_forward.15} parent=5 // pred_check_branch
        %116 = sbr.rel (%p113) target = $region12
      $region11: #{autoencoder_forward.15} parent=5 // pred_region
        %s117 = ssub.s32 %s9, 1
        // Predicated region
        $region13: #{autoencoder_forward.15} parent=11 // pred_check
          %p118 = pneg %p56
        $region14: #{autoencoder_forward.15} parent=11 // pred_check_branch
          %120 = sbr.rel (%p118) target = $region16
        $region15: #{autoencoder_forward.15} parent=11 // pred_region
          _
        $region16: #{autoencoder_forward.15} parent=11 // pred_fallthru
          _
        // Predicated region
        $region17: #{autoencoder_forward.15} parent=11 // pred_check
          %p121 = pneg %p77
        $region18: #{autoencoder_forward.15} parent=11 // pred_check_branch
          %123 = sbr.rel (%p121) target = $region20
        $region19: #{autoencoder_forward.15} parent=11 // pred_region
          _
        $region20: #{autoencoder_forward.15} parent=11 // pred_fallthru
          _
      $region12: #{autoencoder_forward.15} parent=5 // pred_fallthru
        _
      %p124 = scmp.lt.s32.totalorder %s9, 2
      // Predicated region
      $region21: #{autoencoder_forward.15} parent=5 // pred_check
        %p125 = pneg %p124
      $region22: #{autoencoder_forward.15} parent=5 // pred_check_branch
        %127 = sbr.rel (%p125) target = $region24
      $region23: #{autoencoder_forward.15} parent=5 // pred_region
        // Predicated region
        $region25: #{autoencoder_forward.15} parent=23 // pred_check
          %p128 = pneg %p29
        $region26: #{autoencoder_forward.15} parent=23 // pred_check_branch
          %130 = sbr.rel (%p128) target = $region28
        $region27: #{autoencoder_forward.15} parent=23 // pred_region
          %p131 = scmp.lt.s32.totalorder %s9, 1
          %s132 = scalar_select %p131, %s9, 1
          %s133 = smul.addr %s132, 18
          %s134 = smul.addr %s133, 4
          %s135 = scalar_lea.vmem %s0, %s134
        $region28: #{autoencoder_forward.15} parent=23 // pred_fallthru
          _
      $region24: #{autoencoder_forward.15} parent=5 // pred_fallthru
        _
      %p136 = scmp.le.s32.totalorder 1, %s9
      %p137 = scmp.lt.s32.totalorder %s9, 3
      %p138 = pnand %p136, %p137
      %p139 = pneg %p138
      // Predicated region
      $region29: #{autoencoder_forward.15} parent=5 // pred_check
        _
      $region30: #{autoencoder_forward.15} parent=5 // pred_check_branch
        %141 = sbr.rel (%p138) target = $region32
      $region31: #{autoencoder_forward.15} parent=5 // pred_region
        %s142 = ssub.s32 %s9, 1
        %p143 = scmp.lt.s32.totalorder %s14, 1
        %s144 = scalar_select %p143, %s14, 1
        %s145 = smul.addr %s144, 18
        %s146 = smul.addr %s145, 4
        %s147 = scalar_lea.vmem %s0, %s146
        %p148 = pneg %p35
        %p149 = pneg %p32
        %p150 = pneg %p56
        %p151 = pneg %p53
        %p152 = pneg %p77
        %p153 = pneg %p74
        %p154 = pneg %p103
        %p155 = pneg %p100
        %s156 = sand.u32 %s90, 1
        %s157 = sand.u32 %s90, 1
        %s158 = smul.addr %s157, 128
        %s159 = scalar_lea.vmem [#allocation2], %s158
        %p160 = scmp.lt.s32.totalorder %s14, 1
        %s161 = scalar_select %p160, %s14, 1
        %s162 = smul.addr %s161, 18
        %s163 = smul.addr %s162, 4
        %s164 = scalar_lea.vmem %s0, %s163
        %v166 = vld [vmem:[%s2] sm:$0x1]
        %v167 = vld [vmem:[%s164] sm:$0xf]
        %v168 = vld [vmem:[%s164 + $0x8] sm:$0xf]
        %v169 = vld [vmem:[%s164 + $0x10] sm:$0xf]
        %v170 = vld [vmem:[%s164 + $0x18] sm:$0xf]
        %v171 = vld [vmem:[%s164 + $0x20] sm:$0xf]
        %v172 = vld [vmem:[%s164 + $0x28] sm:$0xf]
        %v173 = vld [vmem:[%s164 + $0x30] sm:$0xf]
        %v174 = vld [vmem:[%s164 + $0x38] sm:$0xf]
        %v175 = vld [vmem:[%s1] sm:$0xf]
        %v176 = vld [vmem:[%s1 + $0x4] sm:$0xf]
        %v177 = vld [vmem:[%s1 + $0x8] sm:$0xf]
        %v178 = vld [vmem:[%s1 + $0xc] sm:$0xf]
        %v179 = vld [vmem:[%s1 + $0x10] sm:$0xf]
        %v180 = vld [vmem:[%s1 + $0x14] sm:$0xf]
        %v181 = vld [vmem:[%s1 + $0x18] sm:$0xf]
        %v182 = vld [vmem:[%s1 + $0x1c] sm:$0xf]
        %v183 = vld [vmem:[%s1 + $0x20] sm:$0xf]
        %v184 = vld [vmem:[%s1 + $0x24] sm:$0xf]
        %v185 = vld [vmem:[%s1 + $0x28] sm:$0xf]
        %v186 = vld [vmem:[%s1 + $0x2c] sm:$0xf]
        %v187 = vld [vmem:[%s1 + $0x30] sm:$0xf]
        %v188 = vld [vmem:[%s1 + $0x34] sm:$0xf]
        %v189 = vld [vmem:[%s1 + $0x38] sm:$0xf]
        %v190 = vld [vmem:[%s1 + $0x3c] sm:$0xf]
        %v192 = vlaneseq
        %v193 = vshrl.u32 %v192, 7
        %v194 = vsub.s32 0, %v193
        %v195 = vrot.slane %v166, %v194
        %v205 = vunpack.c.l.b16 %v167
        %v206 = vunpack.c.l.b16 %v168
        %v207 = vunpack.c.l.b16 %v169
        %v208 = vunpack.c.l.b16 %v170
        %v209 = vunpack.c.l.b16 %v171
        %v210 = vunpack.c.l.b16 %v172
        %v211 = vunpack.c.l.b16 %v173
        %v212 = vunpack.c.l.b16 %v174
        %v213 = vpack.c.b16 %v206, %v205
        %v214 = vpack.c.b16 %v208, %v207
        %v215 = vpack.c.b16 %v210, %v209
        %v216 = vpack.c.b16 %v212, %v211
        %v237 = vunpack.c.l.b16 %v175
        %v238 = vunpack.c.l.b16 %v176
        %v239 = vunpack.c.l.b16 %v177
        %v240 = vunpack.c.l.b16 %v178
        %v241 = vunpack.c.l.b16 %v179
        %v242 = vunpack.c.l.b16 %v180
        %v243 = vunpack.c.l.b16 %v181
        %v244 = vunpack.c.l.b16 %v182
        %v245 = vunpack.c.l.b16 %v183
        %v246 = vunpack.c.l.b16 %v184
        %v247 = vunpack.c.l.b16 %v185
        %v248 = vunpack.c.l.b16 %v186
        %v249 = vunpack.c.l.b16 %v187
        %v250 = vunpack.c.l.b16 %v188
        %v251 = vunpack.c.l.b16 %v189
        %v252 = vunpack.c.l.b16 %v190
        %v253 = vpack.c.b16 %v238, %v237
        %v254 = vpack.c.b16 %v240, %v239
        %v255 = vpack.c.b16 %v242, %v241
        %v256 = vpack.c.b16 %v244, %v243
        %v257 = vpack.c.b16 %v246, %v245
        %v258 = vpack.c.b16 %v248, %v247
        %v259 = vpack.c.b16 %v250, %v249
        %v260 = vpack.c.b16 %v252, %v251
        %269 = vmatprep.subr.bf16.mxu0 0
        %270 = vmatpush1.bf16.msra.mxu0 %v260
        %271 = vmatprep.subr.bf16.mxu0 0
        %272 = vmatpush1.bf16.msra.mxu0 %v259
        %273 = vmatprep.subr.bf16.mxu0 0
        %274 = vmatpush1.bf16.msra.mxu0 %v258
        %275 = vmatprep.subr.bf16.mxu0 0
        %276 = vmatpush1.bf16.msra.mxu0 %v257
        %277 = vmatprep.subr.bf16.mxu0 0
        %278 = vmatpush1.bf16.msra.mxu0 %v256
        %279 = vmatprep.subr.bf16.mxu0 0
        %280 = vmatpush1.bf16.msra.mxu0 %v255
        %281 = vmatprep.subr.bf16.mxu0 0
        %282 = vmatpush1.bf16.msra.mxu0 %v254
        %283 = vmatprep.subr.bf16.mxu0 0
        %284 = vmatpush1.bf16.msra.mxu0 %v253
        %285 = vmatprep.subr.bf16.mxu0 0
        %286 = vmatpush2.bf16.msra.mxu0 0
        %287 = vmatprep.subr.bf16.mxu0 0
        %288 = vmatpush2.bf16.msra.mxu0 0
        %289 = vmatprep.subr.bf16.mxu0 0
        %290 = vmatpush2.bf16.msra.mxu0 0
        %291 = vmatprep.subr.bf16.mxu0 0
        %292 = vmatpush2.bf16.msra.mxu0 0
        %293 = vmatprep.subr.bf16.mxu0 0
        %294 = vmatpush2.bf16.msra.mxu0 0
        %295 = vmatprep.subr.bf16.mxu0 0
        %296 = vmatpush2.bf16.msra.mxu0 0
        %297 = vmatprep.subr.bf16.mxu0 0
        %298 = vmatpush2.bf16.msra.mxu0 0
        %299 = vmatprep.subr.bf16.mxu0 0
        %300 = vmatpush2.bf16.msra.mxu0 0
        %301 = vmatprep.mubr.bf16.mxu0 0
        %302 = vmatmul.mubr.bf16.gmra.mxu0 %v213
        %v303 = vpop.f32.mrf.mxu0
        %v304 = vadd.f32 %v195, %v303
        %v305 = vpop.f32.mrf.mxu0
        %v306 = vpop.f32.mrf.mxu0
        %v307 = vadd.f32 %v195, %v306
        %v308 = vpop.f32.mrf.mxu0
        %309 = vmatprep.mubr.bf16.mxu0 0
        %310 = vmatmul.mubr.bf16.gmra.mxu0 %v214
        %v311 = vpop.f32.mrf.mxu0
        %v312 = vadd.f32 %v195, %v311
        %v313 = vpop.f32.mrf.mxu0
        %v314 = vpop.f32.mrf.mxu0
        %v315 = vadd.f32 %v195, %v314
        %v316 = vpop.f32.mrf.mxu0
        %317 = vmatprep.mubr.bf16.mxu0 0
        %318 = vmatmul.mubr.bf16.gmra.mxu0 %v215
        %v319 = vpop.f32.mrf.mxu0
        %v320 = vadd.f32 %v195, %v319
        %v321 = vpop.f32.mrf.mxu0
        %v322 = vpop.f32.mrf.mxu0
        %v323 = vadd.f32 %v195, %v322
        %v324 = vpop.f32.mrf.mxu0
        %325 = vmatprep.mubr.bf16.mxu0 0
        %326 = vmatmul.mubr.bf16.gmra.mxu0 %v216
        %v327 = vpop.f32.mrf.mxu0
        %v328 = vadd.f32 %v195, %v327
        %v329 = vpop.f32.mrf.mxu0
        %v330 = vpop.f32.mrf.mxu0
        %v331 = vadd.f32 %v195, %v330
        %v332 = vpop.f32.mrf.mxu0
        %333 = vdwg.mxu0
        %v334 = vmax.f32 %v304, 0.0
        %v335 = vmax.f32 %v307, 0.0
        %v336 = vmax.f32 %v312, 0.0
        %v337 = vmax.f32 %v315, 0.0
        %v338 = vmax.f32 %v320, 0.0
        %v339 = vmax.f32 %v323, 0.0
        %v340 = vmax.f32 %v328, 0.0
        %v341 = vmax.f32 %v331, 0.0
        %v342 = vpack.c.bf16 %v334, %v334
        %v343 = vpack.c.bf16 %v335, %v335
        %v344 = vpack.c.bf16 %v336, %v336
        %v345 = vpack.c.bf16 %v337, %v337
        %v346 = vpack.c.bf16 %v338, %v338
        %v347 = vpack.c.bf16 %v339, %v339
        %v348 = vpack.c.bf16 %v340, %v340
        %v349 = vpack.c.bf16 %v341, %v341
        %vm350 = vcmask 60416
        %351 = vst.msk [vmem:[%s159] sm:$0xf] %vm350, %v342
        %352 = vst.msk [vmem:[%s159 + $0x4] sm:$0xf] %vm350, %v343
        %353 = vst.msk [vmem:[%s159 + $0x8] sm:$0xf] %vm350, %v344
        %354 = vst.msk [vmem:[%s159 + $0xc] sm:$0xf] %vm350, %v345
        %355 = vst.msk [vmem:[%s159 + $0x10] sm:$0xf] %vm350, %v346
        %356 = vst.msk [vmem:[%s159 + $0x14] sm:$0xf] %vm350, %v347
        %357 = vst.msk [vmem:[%s159 + $0x18] sm:$0xf] %vm350, %v348
        %358 = vst.msk [vmem:[%s159 + $0x1c] sm:$0xf] %vm350, %v349
        %v359 = vld [vmem:[%s164] sm:$0xf]
        %v360 = vld [vmem:[%s164 + $0x8] sm:$0xf]
        %v361 = vld [vmem:[%s164 + $0x10] sm:$0xf]
        %v362 = vld [vmem:[%s164 + $0x18] sm:$0xf]
        %v363 = vld [vmem:[%s164 + $0x20] sm:$0xf]
        %v364 = vld [vmem:[%s164 + $0x28] sm:$0xf]
        %v365 = vld [vmem:[%s164 + $0x30] sm:$0xf]
        %v366 = vld [vmem:[%s164 + $0x38] sm:$0xf]
        %s367 = scalar_lea.vmem %s1, 64
        %v368 = vld [vmem:[%s367] sm:$0xf]
        %v369 = vld [vmem:[%s367 + $0x4] sm:$0xf]
        %v370 = vld [vmem:[%s367 + $0x8] sm:$0xf]
        %v371 = vld [vmem:[%s367 + $0xc] sm:$0xf]
        %v372 = vld [vmem:[%s367 + $0x10] sm:$0xf]
        %v373 = vld [vmem:[%s367 + $0x14] sm:$0xf]
        %v374 = vld [vmem:[%s367 + $0x18] sm:$0xf]
        %v375 = vld [vmem:[%s367 + $0x1c] sm:$0xf]
        %v376 = vld [vmem:[%s367 + $0x20] sm:$0xf]
        %v377 = vld [vmem:[%s367 + $0x24] sm:$0xf]
        %v378 = vld [vmem:[%s367 + $0x28] sm:$0xf]
        %v379 = vld [vmem:[%s367 + $0x2c] sm:$0xf]
        %v380 = vld [vmem:[%s367 + $0x30] sm:$0xf]
        %v381 = vld [vmem:[%s367 + $0x34] sm:$0xf]
        %v382 = vld [vmem:[%s367 + $0x38] sm:$0xf]
        %v383 = vld [vmem:[%s367 + $0x3c] sm:$0xf]
        %v384 = vld [vmem:[%s164 + $0x4] sm:$0x1]
        %v385 = vld [vmem:[%s164 + $0xc] sm:$0x1]
        %v386 = vld [vmem:[%s164 + $0x14] sm:$0x1]
        %v387 = vld [vmem:[%s164 + $0x1c] sm:$0x1]
        %v388 = vld [vmem:[%s164 + $0x24] sm:$0x1]
        %v389 = vld [vmem:[%s164 + $0x2c] sm:$0x1]
        %v390 = vld [vmem:[%s164 + $0x34] sm:$0x1]
        %v391 = vld [vmem:[%s164 + $0x3c] sm:$0x1]
        %vm392 = vsmask.f32 3328
        %vm393 = vsmask.f32 7440
        %vm394 = vmor %vm392, %vm393
        %v396 = vshrl.u32 %v359, 16
        %v398 = vrot.slane %v396, 4
        %v399 = vshll.u32 %v359, 16
        %v401 = vrot.slane %v399, 5
        %v402 = vor.u32 %v398, %v401
        %v403 = vrot.slane %v402, 4
        %v405 = vshll.u32 %v384, 16
        %v407 = vrot.slane %v405, 5
        %v408 = vsel %vm394, %v403, %v407
        %v410 = vshrl.u32 %v360, 16
        %v412 = vrot.slane %v410, 4
        %v413 = vshll.u32 %v360, 16
        %v415 = vrot.slane %v413, 5
        %v416 = vor.u32 %v412, %v415
        %v417 = vrot.slane %v416, 4
        %v419 = vshll.u32 %v385, 16
        %v421 = vrot.slane %v419, 5
        %v422 = vsel %vm394, %v417, %v421
        %v424 = vshrl.u32 %v361, 16
        %v426 = vrot.slane %v424, 4
        %v427 = vshll.u32 %v361, 16
        %v429 = vrot.slane %v427, 5
        %v430 = vor.u32 %v426, %v429
        %v431 = vrot.slane %v430, 4
        %v433 = vshll.u32 %v386, 16
        %v435 = vrot.slane %v433, 5
        %v436 = vsel %vm394, %v431, %v435
        %v438 = vshrl.u32 %v362, 16
        %v440 = vrot.slane %v438, 4
        %v441 = vshll.u32 %v362, 16
        %v443 = vrot.slane %v441, 5
        %v444 = vor.u32 %v440, %v443
        %v445 = vrot.slane %v444, 4
        %v447 = vshll.u32 %v387, 16
        %v449 = vrot.slane %v447, 5
        %v450 = vsel %vm394, %v445, %v449
        %v452 = vshrl.u32 %v363, 16
        %v454 = vrot.slane %v452, 4
        %v455 = vshll.u32 %v363, 16
        %v457 = vrot.slane %v455, 5
        %v458 = vor.u32 %v454, %v457
        %v459 = vrot.slane %v458, 4
        %v461 = vshll.u32 %v388, 16
        %v463 = vrot.slane %v461, 5
        %v464 = vsel %vm394, %v459, %v463
        %v466 = vshrl.u32 %v364, 16
        %v468 = vrot.slane %v466, 4
        %v469 = vshll.u32 %v364, 16
        %v471 = vrot.slane %v469, 5
        %v472 = vor.u32 %v468, %v471
        %v473 = vrot.slane %v472, 4
        %v475 = vshll.u32 %v389, 16
        %v477 = vrot.slane %v475, 5
        %v478 = vsel %vm394, %v473, %v477
        %v480 = vshrl.u32 %v365, 16
        %v482 = vrot.slane %v480, 4
        %v483 = vshll.u32 %v365, 16
        %v485 = vrot.slane %v483, 5
        %v486 = vor.u32 %v482, %v485
        %v487 = vrot.slane %v486, 4
        %v489 = vshll.u32 %v390, 16
        %v491 = vrot.slane %v489, 5
        %v492 = vsel %vm394, %v487, %v491
        %v494 = vshrl.u32 %v366, 16
        %v496 = vrot.slane %v494, 4
        %v497 = vshll.u32 %v366, 16
        %v499 = vrot.slane %v497, 5
        %v500 = vor.u32 %v496, %v499
        %v501 = vrot.slane %v500, 4
        %v503 = vshll.u32 %v391, 16
        %v505 = vrot.slane %v503, 5
        %v506 = vsel %vm394, %v501, %v505
        %s507 = scalar_lea.vmem %s1, 128
        %v508 = vld [vmem:[%s507] sm:$0xf]
        %v509 = vld [vmem:[%s507 + $0x4] sm:$0xf]
        %v510 = vld [vmem:[%s507 + $0x8] sm:$0xf]
        %v511 = vld [vmem:[%s507 + $0xc] sm:$0xf]
        %v512 = vld [vmem:[%s507 + $0x10] sm:$0xf]
        %v513 = vld [vmem:[%s507 + $0x14] sm:$0xf]
        %v514 = vld [vmem:[%s507 + $0x18] sm:$0xf]
        %v515 = vld [vmem:[%s507 + $0x1c] sm:$0xf]
        %v516 = vld [vmem:[%s507 + $0x20] sm:$0xf]
        %v517 = vld [vmem:[%s507 + $0x24] sm:$0xf]
        %v518 = vld [vmem:[%s507 + $0x28] sm:$0xf]
        %v519 = vld [vmem:[%s507 + $0x2c] sm:$0xf]
        %v520 = vld [vmem:[%s507 + $0x30] sm:$0xf]
        %v521 = vld [vmem:[%s507 + $0x34] sm:$0xf]
        %v522 = vld [vmem:[%s507 + $0x38] sm:$0xf]
        %v523 = vld [vmem:[%s507 + $0x3c] sm:$0xf]
        %v524 = vunpack.c.l.b16 %v408
        %v525 = vunpack.c.l.b16 %v422
        %v526 = vunpack.c.l.b16 %v436
        %v527 = vunpack.c.l.b16 %v450
        %v528 = vunpack.c.l.b16 %v464
        %v529 = vunpack.c.l.b16 %v478
        %v530 = vunpack.c.l.b16 %v492
        %v531 = vunpack.c.l.b16 %v506
        %v532 = vpack.c.b16 %v525, %v524
        %v533 = vpack.c.b16 %v527, %v526
        %v534 = vpack.c.b16 %v529, %v528
        %v535 = vpack.c.b16 %v531, %v530
        %v556 = vunpack.c.l.b16 %v508
        %v557 = vunpack.c.l.b16 %v509
        %v558 = vunpack.c.l.b16 %v510
        %v559 = vunpack.c.l.b16 %v511
        %v560 = vunpack.c.l.b16 %v512
        %v561 = vunpack.c.l.b16 %v513
        %v562 = vunpack.c.l.b16 %v514
        %v563 = vunpack.c.l.b16 %v515
        %v564 = vunpack.c.l.b16 %v516
        %v565 = vunpack.c.l.b16 %v517
        %v566 = vunpack.c.l.b16 %v518
        %v567 = vunpack.c.l.b16 %v519
        %v568 = vunpack.c.l.b16 %v520
        %v569 = vunpack.c.l.b16 %v521
        %v570 = vunpack.c.l.b16 %v522
        %v571 = vunpack.c.l.b16 %v523
        %v572 = vpack.c.b16 %v557, %v556
        %v573 = vpack.c.b16 %v559, %v558
        %v574 = vpack.c.b16 %v561, %v560
        %v575 = vpack.c.b16 %v563, %v562
        %v576 = vpack.c.b16 %v565, %v564
        %v577 = vpack.c.b16 %v567, %v566
        %v578 = vpack.c.b16 %v569, %v568
        %v579 = vpack.c.b16 %v571, %v570
        %588 = vmatprep.subr.bf16.mxu0 0
        %589 = vmatpush1.bf16.msra.mxu0 %v579
        %590 = vmatprep.subr.bf16.mxu0 0
        %591 = vmatpush1.bf16.msra.mxu0 %v578
        %592 = vmatprep.subr.bf16.mxu0 0
        %593 = vmatpush1.bf16.msra.mxu0 %v577
        %594 = vmatprep.subr.bf16.mxu0 0
        %595 = vmatpush1.bf16.msra.mxu0 %v576
        %596 = vmatprep.subr.bf16.mxu0 0
        %597 = vmatpush1.bf16.msra.mxu0 %v575
        %598 = vmatprep.subr.bf16.mxu0 0
        %599 = vmatpush1.bf16.msra.mxu0 %v574
        %600 = vmatprep.subr.bf16.mxu0 0
        %601 = vmatpush1.bf16.msra.mxu0 %v573
        %602 = vmatprep.subr.bf16.mxu0 0
        %603 = vmatpush1.bf16.msra.mxu0 %v572
        %604 = vmatprep.subr.bf16.mxu0 0
        %605 = vmatpush2.bf16.msra.mxu0 0
        %606 = vmatprep.subr.bf16.mxu0 0
        %607 = vmatpush2.bf16.msra.mxu0 0
        %608 = vmatprep.subr.bf16.mxu0 0
        %609 = vmatpush2.bf16.msra.mxu0 0
        %610 = vmatprep.subr.bf16.mxu0 0
        %611 = vmatpush2.bf16.msra.mxu0 0
        %612 = vmatprep.subr.bf16.mxu0 0
        %613 = vmatpush2.bf16.msra.mxu0 0
        %614 = vmatprep.subr.bf16.mxu0 0
        %615 = vmatpush2.bf16.msra.mxu0 0
        %616 = vmatprep.subr.bf16.mxu0 0
        %617 = vmatpush2.bf16.msra.mxu0 0
        %618 = vmatprep.subr.bf16.mxu0 0
        %619 = vmatpush2.bf16.msra.mxu0 0
        %620 = vmatprep.mubr.bf16.mxu0 0
        %621 = vmatmul.mubr.bf16.gmra.mxu0 %v532
        %v622 = vpop.f32.mrf.mxu0
        %v623 = vadd.f32 0.0, %v622
        %v624 = vpop.f32.mrf.mxu0
        %v625 = vpop.f32.mrf.mxu0
        %v626 = vadd.f32 0.0, %v625
        %v627 = vpop.f32.mrf.mxu0
        %628 = vmatprep.mubr.bf16.mxu0 0
        %629 = vmatmul.mubr.bf16.gmra.mxu0 %v533
        %v630 = vpop.f32.mrf.mxu0
        %v631 = vadd.f32 0.0, %v630
        %v632 = vpop.f32.mrf.mxu0
        %v633 = vpop.f32.mrf.mxu0
        %v634 = vadd.f32 0.0, %v633
        %v635 = vpop.f32.mrf.mxu0
        %636 = vmatprep.mubr.bf16.mxu0 0
        %637 = vmatmul.mubr.bf16.gmra.mxu0 %v534
        %v638 = vpop.f32.mrf.mxu0
        %v639 = vadd.f32 0.0, %v638
        %v640 = vpop.f32.mrf.mxu0
        %v641 = vpop.f32.mrf.mxu0
        %v642 = vadd.f32 0.0, %v641
        %v643 = vpop.f32.mrf.mxu0
        %644 = vmatprep.mubr.bf16.mxu0 0
        %645 = vmatmul.mubr.bf16.gmra.mxu0 %v535
        %v646 = vpop.f32.mrf.mxu0
        %v647 = vadd.f32 0.0, %v646
        %v648 = vpop.f32.mrf.mxu0
        %v649 = vpop.f32.mrf.mxu0
        %v650 = vadd.f32 0.0, %v649
        %v651 = vpop.f32.mrf.mxu0
        %652 = vdwg.mxu0
        %v661 = vunpack.c.l.b16 %v359
        %v662 = vunpack.c.l.b16 %v360
        %v663 = vunpack.c.l.b16 %v361
        %v664 = vunpack.c.l.b16 %v362
        %v665 = vunpack.c.l.b16 %v363
        %v666 = vunpack.c.l.b16 %v364
        %v667 = vunpack.c.l.b16 %v365
        %v668 = vunpack.c.l.b16 %v366
        %v669 = vpack.c.b16 %v662, %v661
        %v670 = vpack.c.b16 %v664, %v663
        %v671 = vpack.c.b16 %v666, %v665
        %v672 = vpack.c.b16 %v668, %v667
        %v693 = vunpack.c.l.b16 %v368
        %v694 = vunpack.c.l.b16 %v369
        %v695 = vunpack.c.l.b16 %v370
        %v696 = vunpack.c.l.b16 %v371
        %v697 = vunpack.c.l.b16 %v372
        %v698 = vunpack.c.l.b16 %v373
        %v699 = vunpack.c.l.b16 %v374
        %v700 = vunpack.c.l.b16 %v375
        %v701 = vunpack.c.l.b16 %v376
        %v702 = vunpack.c.l.b16 %v377
        %v703 = vunpack.c.l.b16 %v378
        %v704 = vunpack.c.l.b16 %v379
        %v705 = vunpack.c.l.b16 %v380
        %v706 = vunpack.c.l.b16 %v381
        %v707 = vunpack.c.l.b16 %v382
        %v708 = vunpack.c.l.b16 %v383
        %v709 = vpack.c.b16 %v694, %v693
        %v710 = vpack.c.b16 %v696, %v695
        %v711 = vpack.c.b16 %v698, %v697
        %v712 = vpack.c.b16 %v700, %v699
        %v713 = vpack.c.b16 %v702, %v701
        %v714 = vpack.c.b16 %v704, %v703
        %v715 = vpack.c.b16 %v706, %v705
        %v716 = vpack.c.b16 %v708, %v707
        %725 = vmatprep.subr.bf16.mxu0 0
        %726 = vmatpush1.bf16.msra.mxu0 %v716
        %727 = vmatprep.subr.bf16.mxu0 0
        %728 = vmatpush1.bf16.msra.mxu0 %v715
        %729 = vmatprep.subr.bf16.mxu0 0
        %730 = vmatpush1.bf16.msra.mxu0 %v714
        %731 = vmatprep.subr.bf16.mxu0 0
        %732 = vmatpush1.bf16.msra.mxu0 %v713
        %733 = vmatprep.subr.bf16.mxu0 0
        %734 = vmatpush1.bf16.msra.mxu0 %v712
        %735 = vmatprep.subr.bf16.mxu0 0
        %736 = vmatpush1.bf16.msra.mxu0 %v711
        %737 = vmatprep.subr.bf16.mxu0 0
        %738 = vmatpush1.bf16.msra.mxu0 %v710
        %739 = vmatprep.subr.bf16.mxu0 0
        %740 = vmatpush1.bf16.msra.mxu0 %v709
        %741 = vmatprep.subr.bf16.mxu0 0
        %742 = vmatpush2.bf16.msra.mxu0 0
        %743 = vmatprep.subr.bf16.mxu0 0
        %744 = vmatpush2.bf16.msra.mxu0 0
        %745 = vmatprep.subr.bf16.mxu0 0
        %746 = vmatpush2.bf16.msra.mxu0 0
        %747 = vmatprep.subr.bf16.mxu0 0
        %748 = vmatpush2.bf16.msra.mxu0 0
        %749 = vmatprep.subr.bf16.mxu0 0
        %750 = vmatpush2.bf16.msra.mxu0 0
        %751 = vmatprep.subr.bf16.mxu0 0
        %752 = vmatpush2.bf16.msra.mxu0 0
        %753 = vmatprep.subr.bf16.mxu0 0
        %754 = vmatpush2.bf16.msra.mxu0 0
        %755 = vmatprep.subr.bf16.mxu0 0
        %756 = vmatpush2.bf16.msra.mxu0 0
        %757 = vmatprep.mubr.bf16.mxu0 0
        %758 = vmatmul.mubr.bf16.gmra.mxu0 %v669
        %v759 = vpop.f32.mrf.mxu0
        %v760 = vadd.f32 %v623, %v759
        %v761 = vpop.f32.mrf.mxu0
        %v762 = vpop.f32.mrf.mxu0
        %v763 = vadd.f32 %v626, %v762
        %v764 = vpop.f32.mrf.mxu0
        %765 = vmatprep.mubr.bf16.mxu0 0
        %766 = vmatmul.mubr.bf16.gmra.mxu0 %v670
        %v767 = vpop.f32.mrf.mxu0
        %v768 = vadd.f32 %v631, %v767
        %v769 = vpop.f32.mrf.mxu0
        %v770 = vpop.f32.mrf.mxu0
        %v771 = vadd.f32 %v634, %v770
        %v772 = vpop.f32.mrf.mxu0
        %773 = vmatprep.mubr.bf16.mxu0 0
        %774 = vmatmul.mubr.bf16.gmra.mxu0 %v671
        %v775 = vpop.f32.mrf.mxu0
        %v776 = vadd.f32 %v639, %v775
        %v777 = vpop.f32.mrf.mxu0
        %v778 = vpop.f32.mrf.mxu0
        %v779 = vadd.f32 %v642, %v778
        %v780 = vpop.f32.mrf.mxu0
        %781 = vmatprep.mubr.bf16.mxu0 0
        %782 = vmatmul.mubr.bf16.gmra.mxu0 %v672
        %v783 = vpop.f32.mrf.mxu0
        %v784 = vadd.f32 %v647, %v783
        %v785 = vpop.f32.mrf.mxu0
        %v786 = vpop.f32.mrf.mxu0
        %v787 = vadd.f32 %v650, %v786
        %v788 = vpop.f32.mrf.mxu0
        %789 = vdwg.mxu0
        %v790 = vadd.f32 %v760, %v195
        %v791 = vadd.f32 %v763, %v195
        %v792 = vadd.f32 %v768, %v195
        %v793 = vadd.f32 %v771, %v195
        %v794 = vadd.f32 %v776, %v195
        %v795 = vadd.f32 %v779, %v195
        %v796 = vadd.f32 %v784, %v195
        %v797 = vadd.f32 %v787, %v195
        %v798 = vmax.f32 %v790, 0.0
        %v799 = vmax.f32 %v791, 0.0
        %v800 = vmax.f32 %v792, 0.0
        %v801 = vmax.f32 %v793, 0.0
        %v802 = vmax.f32 %v794, 0.0
        %v803 = vmax.f32 %v795, 0.0
        %v804 = vmax.f32 %v796, 0.0
        %v805 = vmax.f32 %v797, 0.0
        %v806 = vpack.c.bf16 %v798, %v798
        %v807 = vpack.c.bf16 %v799, %v799
        %v808 = vpack.c.bf16 %v800, %v800
        %v809 = vpack.c.bf16 %v801, %v801
        %v810 = vpack.c.bf16 %v802, %v802
        %v811 = vpack.c.bf16 %v803, %v803
        %v812 = vpack.c.bf16 %v804, %v804
        %v813 = vpack.c.bf16 %v805, %v805
        %s814 = scalar_lea.vmem %s159, 32 [#allocation2]
        %815 = vst.msk [vmem:[%s814] sm:$0xf] %vm350, %v806
        %816 = vst.msk [vmem:[%s814 + $0x4] sm:$0xf] %vm350, %v807
        %817 = vst.msk [vmem:[%s814 + $0x8] sm:$0xf] %vm350, %v808
        %818 = vst.msk [vmem:[%s814 + $0xc] sm:$0xf] %vm350, %v809
        %819 = vst.msk [vmem:[%s814 + $0x10] sm:$0xf] %vm350, %v810
        %820 = vst.msk [vmem:[%s814 + $0x14] sm:$0xf] %vm350, %v811
        %821 = vst.msk [vmem:[%s814 + $0x18] sm:$0xf] %vm350, %v812
        %822 = vst.msk [vmem:[%s814 + $0x1c] sm:$0xf] %vm350, %v813
        %v823 = vld [vmem:[%s164] sm:$0xf]
        %v824 = vld [vmem:[%s164 + $0x8] sm:$0xf]
        %v825 = vld [vmem:[%s164 + $0x10] sm:$0xf]
        %v826 = vld [vmem:[%s164 + $0x18] sm:$0xf]
        %v827 = vld [vmem:[%s164 + $0x20] sm:$0xf]
        %v828 = vld [vmem:[%s164 + $0x28] sm:$0xf]
        %v829 = vld [vmem:[%s164 + $0x30] sm:$0xf]
        %v830 = vld [vmem:[%s164 + $0x38] sm:$0xf]
        %s831 = scalar_lea.vmem %s1, 192
        %v832 = vld [vmem:[%s831] sm:$0xf]
        %v833 = vld [vmem:[%s831 + $0x4] sm:$0xf]
        %v834 = vld [vmem:[%s831 + $0x8] sm:$0xf]
        %v835 = vld [vmem:[%s831 + $0xc] sm:$0xf]
        %v836 = vld [vmem:[%s831 + $0x10] sm:$0xf]
        %v837 = vld [vmem:[%s831 + $0x14] sm:$0xf]
        %v838 = vld [vmem:[%s831 + $0x18] sm:$0xf]
        %v839 = vld [vmem:[%s831 + $0x1c] sm:$0xf]
        %v840 = vld [vmem:[%s831 + $0x20] sm:$0xf]
        %v841 = vld [vmem:[%s831 + $0x24] sm:$0xf]
        %v842 = vld [vmem:[%s831 + $0x28] sm:$0xf]
        %v843 = vld [vmem:[%s831 + $0x2c] sm:$0xf]
        %v844 = vld [vmem:[%s831 + $0x30] sm:$0xf]
        %v845 = vld [vmem:[%s831 + $0x34] sm:$0xf]
        %v846 = vld [vmem:[%s831 + $0x38] sm:$0xf]
        %v847 = vld [vmem:[%s831 + $0x3c] sm:$0xf]
        %s848 = scalar_lea.vmem %s164, 8
        %v849 = vld [vmem:[%s848] sm:$0xf]
        %v850 = vld [vmem:[%s848 + $0x8] sm:$0xf]
        %v851 = vld [vmem:[%s848 + $0x10] sm:$0xf]
        %v852 = vld [vmem:[%s848 + $0x18] sm:$0xf]
        %v853 = vld [vmem:[%s848 + $0x20] sm:$0xf]
        %v854 = vld [vmem:[%s848 + $0x28] sm:$0xf]
        %v855 = vld [vmem:[%s848 + $0x30] sm:$0xf]
        %v856 = vld [vmem:[%s848 + $0x38] sm:$0xf]
        %s857 = scalar_lea.vmem %s1, 256
        %v858 = vld [vmem:[%s857] sm:$0xf]
        %v859 = vld [vmem:[%s857 + $0x4] sm:$0xf]
        %v860 = vld [vmem:[%s857 + $0x8] sm:$0xf]
        %v861 = vld [vmem:[%s857 + $0xc] sm:$0xf]
        %v862 = vld [vmem:[%s857 + $0x10] sm:$0xf]
        %v863 = vld [vmem:[%s857 + $0x14] sm:$0xf]
        %v864 = vld [vmem:[%s857 + $0x18] sm:$0xf]
        %v865 = vld [vmem:[%s857 + $0x1c] sm:$0xf]
        %v866 = vld [vmem:[%s857 + $0x20] sm:$0xf]
        %v867 = vld [vmem:[%s857 + $0x24] sm:$0xf]
        %v868 = vld [vmem:[%s857 + $0x28] sm:$0xf]
        %v869 = vld [vmem:[%s857 + $0x2c] sm:$0xf]
        %v870 = vld [vmem:[%s857 + $0x30] sm:$0xf]
        %v871 = vld [vmem:[%s857 + $0x34] sm:$0xf]
        %v872 = vld [vmem:[%s857 + $0x38] sm:$0xf]
        %v873 = vld [vmem:[%s857 + $0x3c] sm:$0xf]
        %v882 = vunpack.c.l.b16 %v849
        %v883 = vunpack.c.l.b16 %v850
        %v884 = vunpack.c.l.b16 %v851
        %v885 = vunpack.c.l.b16 %v852
        %v886 = vunpack.c.l.b16 %v853
        %v887 = vunpack.c.l.b16 %v854
        %v888 = vunpack.c.l.b16 %v855
        %v889 = vunpack.c.l.b16 %v856
        %v890 = vpack.c.b16 %v883, %v882
        %v891 = vpack.c.b16 %v885, %v884
        %v892 = vpack.c.b16 %v887, %v886
        %v893 = vpack.c.b16 %v889, %v888
        %v914 = vunpack.c.l.b16 %v858
        %v915 = vunpack.c.l.b16 %v859
        %v916 = vunpack.c.l.b16 %v860
        %v917 = vunpack.c.l.b16 %v861
        %v918 = vunpack.c.l.b16 %v862
        %v919 = vunpack.c.l.b16 %v863
        %v920 = vunpack.c.l.b16 %v864
        %v921 = vunpack.c.l.b16 %v865
        %v922 = vunpack.c.l.b16 %v866
        %v923 = vunpack.c.l.b16 %v867
        %v924 = vunpack.c.l.b16 %v868
        %v925 = vunpack.c.l.b16 %v869
        %v926 = vunpack.c.l.b16 %v870
        %v927 = vunpack.c.l.b16 %v871
        %v928 = vunpack.c.l.b16 %v872
        %v929 = vunpack.c.l.b16 %v873
        %v930 = vpack.c.b16 %v915, %v914
        %v931 = vpack.c.b16 %v917, %v916
        %v932 = vpack.c.b16 %v919, %v918
        %v933 = vpack.c.b16 %v921, %v920
        %v934 = vpack.c.b16 %v923, %v922
        %v935 = vpack.c.b16 %v925, %v924
        %v936 = vpack.c.b16 %v927, %v926
        %v937 = vpack.c.b16 %v929, %v928
        %946 = vmatprep.subr.bf16.mxu0 0
        %947 = vmatpush1.bf16.msra.mxu0 %v937
        %948 = vmatprep.subr.bf16.mxu0 0
        %949 = vmatpush1.bf16.msra.mxu0 %v936
        %950 = vmatprep.subr.bf16.mxu0 0
        %951 = vmatpush1.bf16.msra.mxu0 %v935
        %952 = vmatprep.subr.bf16.mxu0 0
        %953 = vmatpush1.bf16.msra.mxu0 %v934
        %954 = vmatprep.subr.bf16.mxu0 0
        %955 = vmatpush1.bf16.msra.mxu0 %v933
        %956 = vmatprep.subr.bf16.mxu0 0
        %957 = vmatpush1.bf16.msra.mxu0 %v932
        %958 = vmatprep.subr.bf16.mxu0 0
        %959 = vmatpush1.bf16.msra.mxu0 %v931
        %960 = vmatprep.subr.bf16.mxu0 0
        %961 = vmatpush1.bf16.msra.mxu0 %v930
        %962 = vmatprep.subr.bf16.mxu0 0
        %963 = vmatpush2.bf16.msra.mxu0 0
        %964 = vmatprep.subr.bf16.mxu0 0
        %965 = vmatpush2.bf16.msra.mxu0 0
        %966 = vmatprep.subr.bf16.mxu0 0
        %967 = vmatpush2.bf16.msra.mxu0 0
        %968 = vmatprep.subr.bf16.mxu0 0
        %969 = vmatpush2.bf16.msra.mxu0 0
        %970 = vmatprep.subr.bf16.mxu0 0
        %971 = vmatpush2.bf16.msra.mxu0 0
        %972 = vmatprep.subr.bf16.mxu0 0
        %973 = vmatpush2.bf16.msra.mxu0 0
        %974 = vmatprep.subr.bf16.mxu0 0
        %975 = vmatpush2.bf16.msra.mxu0 0
        %976 = vmatprep.subr.bf16.mxu0 0
        %977 = vmatpush2.bf16.msra.mxu0 0
        %978 = vmatprep.mubr.bf16.mxu0 0
        %979 = vmatmul.mubr.bf16.gmra.mxu0 %v890
        %v980 = vpop.f32.mrf.mxu0
        %v981 = vadd.f32 0.0, %v980
        %v982 = vpop.f32.mrf.mxu0
        %v983 = vpop.f32.mrf.mxu0
        %v984 = vadd.f32 0.0, %v983
        %v985 = vpop.f32.mrf.mxu0
        %986 = vmatprep.mubr.bf16.mxu0 0
        %987 = vmatmul.mubr.bf16.gmra.mxu0 %v891
        %v988 = vpop.f32.mrf.mxu0
        %v989 = vadd.f32 0.0, %v988
        %v990 = vpop.f32.mrf.mxu0
        %v991 = vpop.f32.mrf.mxu0
        %v992 = vadd.f32 0.0, %v991
        %v993 = vpop.f32.mrf.mxu0
        %994 = vmatprep.mubr.bf16.mxu0 0
        %995 = vmatmul.mubr.bf16.gmra.mxu0 %v892
        %v996 = vpop.f32.mrf.mxu0
        %v997 = vadd.f32 0.0, %v996
        %v998 = vpop.f32.mrf.mxu0
        %v999 = vpop.f32.mrf.mxu0
        %v1000 = vadd.f32 0.0, %v999
        %v1001 = vpop.f32.mrf.mxu0
        %1002 = vmatprep.mubr.bf16.mxu0 0
        %1003 = vmatmul.mubr.bf16.gmra.mxu0 %v893
        %v1004 = vpop.f32.mrf.mxu0
        %v1005 = vadd.f32 0.0, %v1004
        %v1006 = vpop.f32.mrf.mxu0
        %v1007 = vpop.f32.mrf.mxu0
        %v1008 = vadd.f32 0.0, %v1007
        %v1009 = vpop.f32.mrf.mxu0
        %1010 = vdwg.mxu0
        %v1019 = vunpack.c.l.b16 %v823
        %v1020 = vunpack.c.l.b16 %v824
        %v1021 = vunpack.c.l.b16 %v825
        %v1022 = vunpack.c.l.b16 %v826
        %v1023 = vunpack.c.l.b16 %v827
        %v1024 = vunpack.c.l.b16 %v828
        %v1025 = vunpack.c.l.b16 %v829
        %v1026 = vunpack.c.l.b16 %v830
        %v1027 = vpack.c.b16 %v1020, %v1019
        %v1028 = vpack.c.b16 %v1022, %v1021
        %v1029 = vpack.c.b16 %v1024, %v1023
        %v1030 = vpack.c.b16 %v1026, %v1025
        %v1051 = vunpack.c.l.b16 %v832
        %v1052 = vunpack.c.l.b16 %v833
        %v1053 = vunpack.c.l.b16 %v834
        %v1054 = vunpack.c.l.b16 %v835
        %v1055 = vunpack.c.l.b16 %v836
        %v1056 = vunpack.c.l.b16 %v837
        %v1057 = vunpack.c.l.b16 %v838
        %v1058 = vunpack.c.l.b16 %v839
        %v1059 = vunpack.c.l.b16 %v840
        %v1060 = vunpack.c.l.b16 %v841
        %v1061 = vunpack.c.l.b16 %v842
        %v1062 = vunpack.c.l.b16 %v843
        %v1063 = vunpack.c.l.b16 %v844
        %v1064 = vunpack.c.l.b16 %v845
        %v1065 = vunpack.c.l.b16 %v846
        %v1066 = vunpack.c.l.b16 %v847
        %v1067 = vpack.c.b16 %v1052, %v1051
        %v1068 = vpack.c.b16 %v1054, %v1053
        %v1069 = vpack.c.b16 %v1056, %v1055
        %v1070 = vpack.c.b16 %v1058, %v1057
        %v1071 = vpack.c.b16 %v1060, %v1059
        %v1072 = vpack.c.b16 %v1062, %v1061
        %v1073 = vpack.c.b16 %v1064, %v1063
        %v1074 = vpack.c.b16 %v1066, %v1065
        %1083 = vmatprep.subr.bf16.mxu0 0
        %1084 = vmatpush1.bf16.msra.mxu0 %v1074
        %1085 = vmatprep.subr.bf16.mxu0 0
        %1086 = vmatpush1.bf16.msra.mxu0 %v1073
        %1087 = vmatprep.subr.bf16.mxu0 0
        %1088 = vmatpush1.bf16.msra.mxu0 %v1072
        %1089 = vmatprep.subr.bf16.mxu0 0
        %1090 = vmatpush1.bf16.msra.mxu0 %v1071
        %1091 = vmatprep.subr.bf16.mxu0 0
        %1092 = vmatpush1.bf16.msra.mxu0 %v1070
        %1093 = vmatprep.subr.bf16.mxu0 0
        %1094 = vmatpush1.bf16.msra.mxu0 %v1069
        %1095 = vmatprep.subr.bf16.mxu0 0
        %1096 = vmatpush1.bf16.msra.mxu0 %v1068
        %1097 = vmatprep.subr.bf16.mxu0 0
        %1098 = vmatpush1.bf16.msra.mxu0 %v1067
        %1099 = vmatprep.subr.bf16.mxu0 0
        %1100 = vmatpush2.bf16.msra.mxu0 0
        %1101 = vmatprep.subr.bf16.mxu0 0
        %1102 = vmatpush2.bf16.msra.mxu0 0
        %1103 = vmatprep.subr.bf16.mxu0 0
        %1104 = vmatpush2.bf16.msra.mxu0 0
        %1105 = vmatprep.subr.bf16.mxu0 0
        %1106 = vmatpush2.bf16.msra.mxu0 0
        %1107 = vmatprep.subr.bf16.mxu0 0
        %1108 = vmatpush2.bf16.msra.mxu0 0
        %1109 = vmatprep.subr.bf16.mxu0 0
        %1110 = vmatpush2.bf16.msra.mxu0 0
        %1111 = vmatprep.subr.bf16.mxu0 0
        %1112 = vmatpush2.bf16.msra.mxu0 0
        %1113 = vmatprep.subr.bf16.mxu0 0
        %1114 = vmatpush2.bf16.msra.mxu0 0
        %1115 = vmatprep.mubr.bf16.mxu0 0
        %1116 = vmatmul.mubr.bf16.gmra.mxu0 %v1027
        %v1117 = vpop.f32.mrf.mxu0
        %v1118 = vadd.f32 %v981, %v1117
        %v1119 = vpop.f32.mrf.mxu0
        %v1120 = vpop.f32.mrf.mxu0
        %v1121 = vadd.f32 %v984, %v1120
        %v1122 = vpop.f32.mrf.mxu0
        %1123 = vmatprep.mubr.bf16.mxu0 0
        %1124 = vmatmul.mubr.bf16.gmra.mxu0 %v1028
        %v1125 = vpop.f32.mrf.mxu0
        %v1126 = vadd.f32 %v989, %v1125
        %v1127 = vpop.f32.mrf.mxu0
        %v1128 = vpop.f32.mrf.mxu0
        %v1129 = vadd.f32 %v992, %v1128
        %v1130 = vpop.f32.mrf.mxu0
        %1131 = vmatprep.mubr.bf16.mxu0 0
        %1132 = vmatmul.mubr.bf16.gmra.mxu0 %v1029
        %v1133 = vpop.f32.mrf.mxu0
        %v1134 = vadd.f32 %v997, %v1133
        %v1135 = vpop.f32.mrf.mxu0
        %v1136 = vpop.f32.mrf.mxu0
        %v1137 = vadd.f32 %v1000, %v1136
        %v1138 = vpop.f32.mrf.mxu0
        %1139 = vmatprep.mubr.bf16.mxu0 0
        %1140 = vmatmul.mubr.bf16.gmra.mxu0 %v1030
        %v1141 = vpop.f32.mrf.mxu0
        %v1142 = vadd.f32 %v1005, %v1141
        %v1143 = vpop.f32.mrf.mxu0
        %v1144 = vpop.f32.mrf.mxu0
        %v1145 = vadd.f32 %v1008, %v1144
        %v1146 = vpop.f32.mrf.mxu0
        %1147 = vdwg.mxu0
        %v1148 = vadd.f32 %v1118, %v195
        %v1149 = vadd.f32 %v1121, %v195
        %v1150 = vadd.f32 %v1126, %v195
        %v1151 = vadd.f32 %v1129, %v195
        %v1152 = vadd.f32 %v1134, %v195
        %v1153 = vadd.f32 %v1137, %v195
        %v1154 = vadd.f32 %v1142, %v195
        %v1155 = vadd.f32 %v1145, %v195
        %v1156 = vmax.f32 %v1148, 0.0
        %v1157 = vmax.f32 %v1149, 0.0
        %v1158 = vmax.f32 %v1150, 0.0
        %v1159 = vmax.f32 %v1151, 0.0
        %v1160 = vmax.f32 %v1152, 0.0
        %v1161 = vmax.f32 %v1153, 0.0
        %v1162 = vmax.f32 %v1154, 0.0
        %v1163 = vmax.f32 %v1155, 0.0
        %v1164 = vpack.c.bf16 %v1156, %v1156
        %v1165 = vpack.c.bf16 %v1157, %v1157
        %v1166 = vpack.c.bf16 %v1158, %v1158
        %v1167 = vpack.c.bf16 %v1159, %v1159
        %v1168 = vpack.c.bf16 %v1160, %v1160
        %v1169 = vpack.c.bf16 %v1161, %v1161
        %v1170 = vpack.c.bf16 %v1162, %v1162
        %v1171 = vpack.c.bf16 %v1163, %v1163
        %s1172 = scalar_lea.vmem %s159, 64 [#allocation2]
        %1173 = vst.msk [vmem:[%s1172] sm:$0xf] %vm350, %v1164
        %1174 = vst.msk [vmem:[%s1172 + $0x4] sm:$0xf] %vm350, %v1165
        %1175 = vst.msk [vmem:[%s1172 + $0x8] sm:$0xf] %vm350, %v1166
        %1176 = vst.msk [vmem:[%s1172 + $0xc] sm:$0xf] %vm350, %v1167
        %1177 = vst.msk [vmem:[%s1172 + $0x10] sm:$0xf] %vm350, %v1168
        %1178 = vst.msk [vmem:[%s1172 + $0x14] sm:$0xf] %vm350, %v1169
        %1179 = vst.msk [vmem:[%s1172 + $0x18] sm:$0xf] %vm350, %v1170
        %1180 = vst.msk [vmem:[%s1172 + $0x1c] sm:$0xf] %vm350, %v1171
        %v1181 = vld [vmem:[%s164] sm:$0xf]
        %v1182 = vld [vmem:[%s164 + $0x8] sm:$0xf]
        %v1183 = vld [vmem:[%s164 + $0x10] sm:$0xf]
        %v1184 = vld [vmem:[%s164 + $0x18] sm:$0xf]
        %v1185 = vld [vmem:[%s164 + $0x20] sm:$0xf]
        %v1186 = vld [vmem:[%s164 + $0x28] sm:$0xf]
        %v1187 = vld [vmem:[%s164 + $0x30] sm:$0xf]
        %v1188 = vld [vmem:[%s164 + $0x38] sm:$0xf]
        %s1189 = scalar_lea.vmem %s1, 320
        %v1190 = vld [vmem:[%s1189] sm:$0xf]
        %v1191 = vld [vmem:[%s1189 + $0x4] sm:$0xf]
        %v1192 = vld [vmem:[%s1189 + $0x8] sm:$0xf]
        %v1193 = vld [vmem:[%s1189 + $0xc] sm:$0xf]
        %v1194 = vld [vmem:[%s1189 + $0x10] sm:$0xf]
        %v1195 = vld [vmem:[%s1189 + $0x14] sm:$0xf]
        %v1196 = vld [vmem:[%s1189 + $0x18] sm:$0xf]
        %v1197 = vld [vmem:[%s1189 + $0x1c] sm:$0xf]
        %v1198 = vld [vmem:[%s1189 + $0x20] sm:$0xf]
        %v1199 = vld [vmem:[%s1189 + $0x24] sm:$0xf]
        %v1200 = vld [vmem:[%s1189 + $0x28] sm:$0xf]
        %v1201 = vld [vmem:[%s1189 + $0x2c] sm:$0xf]
        %v1202 = vld [vmem:[%s1189 + $0x30] sm:$0xf]
        %v1203 = vld [vmem:[%s1189 + $0x34] sm:$0xf]
        %v1204 = vld [vmem:[%s1189 + $0x38] sm:$0xf]
        %v1205 = vld [vmem:[%s1189 + $0x3c] sm:$0xf]
        %v1206 = vld [vmem:[%s164 + $0x4] sm:$0x1]
        %v1207 = vld [vmem:[%s164 + $0xc] sm:$0x1]
        %v1208 = vld [vmem:[%s164 + $0x14] sm:$0x1]
        %v1209 = vld [vmem:[%s164 + $0x1c] sm:$0x1]
        %v1210 = vld [vmem:[%s164 + $0x24] sm:$0x1]
        %v1211 = vld [vmem:[%s164 + $0x2c] sm:$0x1]
        %v1212 = vld [vmem:[%s164 + $0x34] sm:$0x1]
        %v1213 = vld [vmem:[%s164 + $0x3c] sm:$0x1]
        %v1215 = vshrl.u32 %v1181, 16
        %v1217 = vrot.slane %v1215, 4
        %v1218 = vshll.u32 %v1181, 16
        %v1220 = vrot.slane %v1218, 5
        %v1221 = vor.u32 %v1217, %v1220
        %v1222 = vrot.slane %v1221, 4
        %v1224 = vshll.u32 %v1206, 16
        %v1226 = vrot.slane %v1224, 5
        %v1227 = vsel %vm394, %v1222, %v1226
        %v1229 = vshrl.u32 %v1182, 16
        %v1231 = vrot.slane %v1229, 4
        %v1232 = vshll.u32 %v1182, 16
        %v1234 = vrot.slane %v1232, 5
        %v1235 = vor.u32 %v1231, %v1234
        %v1236 = vrot.slane %v1235, 4
        %v1238 = vshll.u32 %v1207, 16
        %v1240 = vrot.slane %v1238, 5
        %v1241 = vsel %vm394, %v1236, %v1240
        %v1243 = vshrl.u32 %v1183, 16
        %v1245 = vrot.slane %v1243, 4
        %v1246 = vshll.u32 %v1183, 16
        %v1248 = vrot.slane %v1246, 5
        %v1249 = vor.u32 %v1245, %v1248
        %v1250 = vrot.slane %v1249, 4
        %v1252 = vshll.u32 %v1208, 16
        %v1254 = vrot.slane %v1252, 5
        %v1255 = vsel %vm394, %v1250, %v1254
        %v1257 = vshrl.u32 %v1184, 16
        %v1259 = vrot.slane %v1257, 4
        %v1260 = vshll.u32 %v1184, 16
        %v1262 = vrot.slane %v1260, 5
        %v1263 = vor.u32 %v1259, %v1262
        %v1264 = vrot.slane %v1263, 4
        %v1266 = vshll.u32 %v1209, 16
        %v1268 = vrot.slane %v1266, 5
        %v1269 = vsel %vm394, %v1264, %v1268
        %v1271 = vshrl.u32 %v1185, 16
        %v1273 = vrot.slane %v1271, 4
        %v1274 = vshll.u32 %v1185, 16
        %v1276 = vrot.slane %v1274, 5
        %v1277 = vor.u32 %v1273, %v1276
        %v1278 = vrot.slane %v1277, 4
        %v1280 = vshll.u32 %v1210, 16
        %v1282 = vrot.slane %v1280, 5
        %v1283 = vsel %vm394, %v1278, %v1282
        %v1285 = vshrl.u32 %v1186, 16
        %v1287 = vrot.slane %v1285, 4
        %v1288 = vshll.u32 %v1186, 16
        %v1290 = vrot.slane %v1288, 5
        %v1291 = vor.u32 %v1287, %v1290
        %v1292 = vrot.slane %v1291, 4
        %v1294 = vshll.u32 %v1211, 16
        %v1296 = vrot.slane %v1294, 5
        %v1297 = vsel %vm394, %v1292, %v1296
        %v1299 = vshrl.u32 %v1187, 16
        %v1301 = vrot.slane %v1299, 4
        %v1302 = vshll.u32 %v1187, 16
        %v1304 = vrot.slane %v1302, 5
        %v1305 = vor.u32 %v1301, %v1304
        %v1306 = vrot.slane %v1305, 4
        %v1308 = vshll.u32 %v1212, 16
        %v1310 = vrot.slane %v1308, 5
        %v1311 = vsel %vm394, %v1306, %v1310
        %v1313 = vshrl.u32 %v1188, 16
        %v1315 = vrot.slane %v1313, 4
        %v1316 = vshll.u32 %v1188, 16
        %v1318 = vrot.slane %v1316, 5
        %v1319 = vor.u32 %v1315, %v1318
        %v1320 = vrot.slane %v1319, 4
        %v1322 = vshll.u32 %v1213, 16
        %v1324 = vrot.slane %v1322, 5
        %v1325 = vsel %vm394, %v1320, %v1324
        %s1326 = scalar_lea.vmem %s1, 384
        %v1327 = vld [vmem:[%s1326] sm:$0xf]
        %v1328 = vld [vmem:[%s1326 + $0x4] sm:$0xf]
        %v1329 = vld [vmem:[%s1326 + $0x8] sm:$0xf]
        %v1330 = vld [vmem:[%s1326 + $0xc] sm:$0xf]
        %v1331 = vld [vmem:[%s1326 + $0x10] sm:$0xf]
        %v1332 = vld [vmem:[%s1326 + $0x14] sm:$0xf]
        %v1333 = vld [vmem:[%s1326 + $0x18] sm:$0xf]
        %v1334 = vld [vmem:[%s1326 + $0x1c] sm:$0xf]
        %v1335 = vld [vmem:[%s1326 + $0x20] sm:$0xf]
        %v1336 = vld [vmem:[%s1326 + $0x24] sm:$0xf]
        %v1337 = vld [vmem:[%s1326 + $0x28] sm:$0xf]
        %v1338 = vld [vmem:[%s1326 + $0x2c] sm:$0xf]
        %v1339 = vld [vmem:[%s1326 + $0x30] sm:$0xf]
        %v1340 = vld [vmem:[%s1326 + $0x34] sm:$0xf]
        %v1341 = vld [vmem:[%s1326 + $0x38] sm:$0xf]
        %v1342 = vld [vmem:[%s1326 + $0x3c] sm:$0xf]
        %v1343 = vunpack.c.l.b16 %v1227
        %v1344 = vunpack.c.l.b16 %v1241
        %v1345 = vunpack.c.l.b16 %v1255
        %v1346 = vunpack.c.l.b16 %v1269
        %v1347 = vunpack.c.l.b16 %v1283
        %v1348 = vunpack.c.l.b16 %v1297
        %v1349 = vunpack.c.l.b16 %v1311
        %v1350 = vunpack.c.l.b16 %v1325
        %v1351 = vpack.c.b16 %v1344, %v1343
        %v1352 = vpack.c.b16 %v1346, %v1345
        %v1353 = vpack.c.b16 %v1348, %v1347
        %v1354 = vpack.c.b16 %v1350, %v1349
        %v1375 = vunpack.c.l.b16 %v1327
        %v1376 = vunpack.c.l.b16 %v1328
        %v1377 = vunpack.c.l.b16 %v1329
        %v1378 = vunpack.c.l.b16 %v1330
        %v1379 = vunpack.c.l.b16 %v1331
        %v1380 = vunpack.c.l.b16 %v1332
        %v1381 = vunpack.c.l.b16 %v1333
        %v1382 = vunpack.c.l.b16 %v1334
        %v1383 = vunpack.c.l.b16 %v1335
        %v1384 = vunpack.c.l.b16 %v1336
        %v1385 = vunpack.c.l.b16 %v1337
        %v1386 = vunpack.c.l.b16 %v1338
        %v1387 = vunpack.c.l.b16 %v1339
        %v1388 = vunpack.c.l.b16 %v1340
        %v1389 = vunpack.c.l.b16 %v1341
        %v1390 = vunpack.c.l.b16 %v1342
        %v1391 = vpack.c.b16 %v1376, %v1375
        %v1392 = vpack.c.b16 %v1378, %v1377
        %v1393 = vpack.c.b16 %v1380, %v1379
        %v1394 = vpack.c.b16 %v1382, %v1381
        %v1395 = vpack.c.b16 %v1384, %v1383
        %v1396 = vpack.c.b16 %v1386, %v1385
        %v1397 = vpack.c.b16 %v1388, %v1387
        %v1398 = vpack.c.b16 %v1390, %v1389
        %1407 = vmatprep.subr.bf16.mxu0 0
        %1408 = vmatpush1.bf16.msra.mxu0 %v1398
        %1409 = vmatprep.subr.bf16.mxu0 0
        %1410 = vmatpush1.bf16.msra.mxu0 %v1397
        %1411 = vmatprep.subr.bf16.mxu0 0
        %1412 = vmatpush1.bf16.msra.mxu0 %v1396
        %1413 = vmatprep.subr.bf16.mxu0 0
        %1414 = vmatpush1.bf16.msra.mxu0 %v1395
        %1415 = vmatprep.subr.bf16.mxu0 0
        %1416 = vmatpush1.bf16.msra.mxu0 %v1394
        %1417 = vmatprep.subr.bf16.mxu0 0
        %1418 = vmatpush1.bf16.msra.mxu0 %v1393
        %1419 = vmatprep.subr.bf16.mxu0 0
        %1420 = vmatpush1.bf16.msra.mxu0 %v1392
        %1421 = vmatprep.subr.bf16.mxu0 0
        %1422 = vmatpush1.bf16.msra.mxu0 %v1391
        %1423 = vmatprep.subr.bf16.mxu0 0
        %1424 = vmatpush2.bf16.msra.mxu0 0
        %1425 = vmatprep.subr.bf16.mxu0 0
        %1426 = vmatpush2.bf16.msra.mxu0 0
        %1427 = vmatprep.subr.bf16.mxu0 0
        %1428 = vmatpush2.bf16.msra.mxu0 0
        %1429 = vmatprep.subr.bf16.mxu0 0
        %1430 = vmatpush2.bf16.msra.mxu0 0
        %1431 = vmatprep.subr.bf16.mxu0 0
        %1432 = vmatpush2.bf16.msra.mxu0 0
        %1433 = vmatprep.subr.bf16.mxu0 0
        %1434 = vmatpush2.bf16.msra.mxu0 0
        %1435 = vmatprep.subr.bf16.mxu0 0
        %1436 = vmatpush2.bf16.msra.mxu0 0
        %1437 = vmatprep.subr.bf16.mxu0 0
        %1438 = vmatpush2.bf16.msra.mxu0 0
        %1439 = vmatprep.mubr.bf16.mxu0 0
        %1440 = vmatmul.mubr.bf16.gmra.mxu0 %v1351
        %v1441 = vpop.f32.mrf.mxu0
        %v1442 = vadd.f32 0.0, %v1441
        %v1443 = vpop.f32.mrf.mxu0
        %v1444 = vpop.f32.mrf.mxu0
        %v1445 = vadd.f32 0.0, %v1444
        %v1446 = vpop.f32.mrf.mxu0
        %1447 = vmatprep.mubr.bf16.mxu0 0
        %1448 = vmatmul.mubr.bf16.gmra.mxu0 %v1352
        %v1449 = vpop.f32.mrf.mxu0
        %v1450 = vadd.f32 0.0, %v1449
        %v1451 = vpop.f32.mrf.mxu0
        %v1452 = vpop.f32.mrf.mxu0
        %v1453 = vadd.f32 0.0, %v1452
        %v1454 = vpop.f32.mrf.mxu0
        %1455 = vmatprep.mubr.bf16.mxu0 0
        %1456 = vmatmul.mubr.bf16.gmra.mxu0 %v1353
        %v1457 = vpop.f32.mrf.mxu0
        %v1458 = vadd.f32 0.0, %v1457
        %v1459 = vpop.f32.mrf.mxu0
        %v1460 = vpop.f32.mrf.mxu0
        %v1461 = vadd.f32 0.0, %v1460
        %v1462 = vpop.f32.mrf.mxu0
        %1463 = vmatprep.mubr.bf16.mxu0 0
        %1464 = vmatmul.mubr.bf16.gmra.mxu0 %v1354
        %v1465 = vpop.f32.mrf.mxu0
        %v1466 = vadd.f32 0.0, %v1465
        %v1467 = vpop.f32.mrf.mxu0
        %v1468 = vpop.f32.mrf.mxu0
        %v1469 = vadd.f32 0.0, %v1468
        %v1470 = vpop.f32.mrf.mxu0
        %1471 = vdwg.mxu0
        %v1480 = vunpack.c.l.b16 %v1181
        %v1481 = vunpack.c.l.b16 %v1182
        %v1482 = vunpack.c.l.b16 %v1183
        %v1483 = vunpack.c.l.b16 %v1184
        %v1484 = vunpack.c.l.b16 %v1185
        %v1485 = vunpack.c.l.b16 %v1186
        %v1486 = vunpack.c.l.b16 %v1187
        %v1487 = vunpack.c.l.b16 %v1188
        %v1488 = vpack.c.b16 %v1481, %v1480
        %v1489 = vpack.c.b16 %v1483, %v1482
        %v1490 = vpack.c.b16 %v1485, %v1484
        %v1491 = vpack.c.b16 %v1487, %v1486
        %v1512 = vunpack.c.l.b16 %v1190
        %v1513 = vunpack.c.l.b16 %v1191
        %v1514 = vunpack.c.l.b16 %v1192
        %v1515 = vunpack.c.l.b16 %v1193
        %v1516 = vunpack.c.l.b16 %v1194
        %v1517 = vunpack.c.l.b16 %v1195
        %v1518 = vunpack.c.l.b16 %v1196
        %v1519 = vunpack.c.l.b16 %v1197
        %v1520 = vunpack.c.l.b16 %v1198
        %v1521 = vunpack.c.l.b16 %v1199
        %v1522 = vunpack.c.l.b16 %v1200
        %v1523 = vunpack.c.l.b16 %v1201
        %v1524 = vunpack.c.l.b16 %v1202
        %v1525 = vunpack.c.l.b16 %v1203
        %v1526 = vunpack.c.l.b16 %v1204
        %v1527 = vunpack.c.l.b16 %v1205
        %v1528 = vpack.c.b16 %v1513, %v1512
        %v1529 = vpack.c.b16 %v1515, %v1514
        %v1530 = vpack.c.b16 %v1517, %v1516
        %v1531 = vpack.c.b16 %v1519, %v1518
        %v1532 = vpack.c.b16 %v1521, %v1520
        %v1533 = vpack.c.b16 %v1523, %v1522
        %v1534 = vpack.c.b16 %v1525, %v1524
        %v1535 = vpack.c.b16 %v1527, %v1526
        %1544 = vmatprep.subr.bf16.mxu0 0
        %1545 = vmatpush1.bf16.msra.mxu0 %v1535
        %1546 = vmatprep.subr.bf16.mxu0 0
        %1547 = vmatpush1.bf16.msra.mxu0 %v1534
        %1548 = vmatprep.subr.bf16.mxu0 0
        %1549 = vmatpush1.bf16.msra.mxu0 %v1533
        %1550 = vmatprep.subr.bf16.mxu0 0
        %1551 = vmatpush1.bf16.msra.mxu0 %v1532
        %1552 = vmatprep.subr.bf16.mxu0 0
        %1553 = vmatpush1.bf16.msra.mxu0 %v1531
        %1554 = vmatprep.subr.bf16.mxu0 0
        %1555 = vmatpush1.bf16.msra.mxu0 %v1530
        %1556 = vmatprep.subr.bf16.mxu0 0
        %1557 = vmatpush1.bf16.msra.mxu0 %v1529
        %1558 = vmatprep.subr.bf16.mxu0 0
        %1559 = vmatpush1.bf16.msra.mxu0 %v1528
        %1560 = vmatprep.subr.bf16.mxu0 0
        %1561 = vmatpush2.bf16.msra.mxu0 0
        %1562 = vmatprep.subr.bf16.mxu0 0
        %1563 = vmatpush2.bf16.msra.mxu0 0
        %1564 = vmatprep.subr.bf16.mxu0 0
        %1565 = vmatpush2.bf16.msra.mxu0 0
        %1566 = vmatprep.subr.bf16.mxu0 0
        %1567 = vmatpush2.bf16.msra.mxu0 0
        %1568 = vmatprep.subr.bf16.mxu0 0
        %1569 = vmatpush2.bf16.msra.mxu0 0
        %1570 = vmatprep.subr.bf16.mxu0 0
        %1571 = vmatpush2.bf16.msra.mxu0 0
        %1572 = vmatprep.subr.bf16.mxu0 0
        %1573 = vmatpush2.bf16.msra.mxu0 0
        %1574 = vmatprep.subr.bf16.mxu0 0
        %1575 = vmatpush2.bf16.msra.mxu0 0
        %1576 = vmatprep.mubr.bf16.mxu0 0
        %1577 = vmatmul.mubr.bf16.gmra.mxu0 %v1488
        %v1578 = vpop.f32.mrf.mxu0
        %v1579 = vadd.f32 %v1442, %v1578
        %v1580 = vpop.f32.mrf.mxu0
        %v1581 = vpop.f32.mrf.mxu0
        %v1582 = vadd.f32 %v1445, %v1581
        %v1583 = vpop.f32.mrf.mxu0
        %1584 = vmatprep.mubr.bf16.mxu0 0
        %1585 = vmatmul.mubr.bf16.gmra.mxu0 %v1489
        %v1586 = vpop.f32.mrf.mxu0
        %v1587 = vadd.f32 %v1450, %v1586
        %v1588 = vpop.f32.mrf.mxu0
        %v1589 = vpop.f32.mrf.mxu0
        %v1590 = vadd.f32 %v1453, %v1589
        %v1591 = vpop.f32.mrf.mxu0
        %1592 = vmatprep.mubr.bf16.mxu0 0
        %1593 = vmatmul.mubr.bf16.gmra.mxu0 %v1490
        %v1594 = vpop.f32.mrf.mxu0
        %v1595 = vadd.f32 %v1458, %v1594
        %v1596 = vpop.f32.mrf.mxu0
        %v1597 = vpop.f32.mrf.mxu0
        %v1598 = vadd.f32 %v1461, %v1597
        %v1599 = vpop.f32.mrf.mxu0
        %1600 = vmatprep.mubr.bf16.mxu0 0
        %1601 = vmatmul.mubr.bf16.gmra.mxu0 %v1491
        %v1602 = vpop.f32.mrf.mxu0
        %v1603 = vadd.f32 %v1466, %v1602
        %v1604 = vpop.f32.mrf.mxu0
        %v1605 = vpop.f32.mrf.mxu0
        %v1606 = vadd.f32 %v1469, %v1605
        %v1607 = vpop.f32.mrf.mxu0
        %1608 = vdwg.mxu0
        %v1609 = vld [vmem:[%s848] sm:$0xf]
        %v1610 = vld [vmem:[%s848 + $0x8] sm:$0xf]
        %v1611 = vld [vmem:[%s848 + $0x10] sm:$0xf]
        %v1612 = vld [vmem:[%s848 + $0x18] sm:$0xf]
        %v1613 = vld [vmem:[%s848 + $0x20] sm:$0xf]
        %v1614 = vld [vmem:[%s848 + $0x28] sm:$0xf]
        %v1615 = vld [vmem:[%s848 + $0x30] sm:$0xf]
        %v1616 = vld [vmem:[%s848 + $0x38] sm:$0xf]
        %s1617 = scalar_lea.vmem %s1, 448
        %v1618 = vld [vmem:[%s1617] sm:$0xf]
        %v1619 = vld [vmem:[%s1617 + $0x4] sm:$0xf]
        %v1620 = vld [vmem:[%s1617 + $0x8] sm:$0xf]
        %v1621 = vld [vmem:[%s1617 + $0xc] sm:$0xf]
        %v1622 = vld [vmem:[%s1617 + $0x10] sm:$0xf]
        %v1623 = vld [vmem:[%s1617 + $0x14] sm:$0xf]
        %v1624 = vld [vmem:[%s1617 + $0x18] sm:$0xf]
        %v1625 = vld [vmem:[%s1617 + $0x1c] sm:$0xf]
        %v1626 = vld [vmem:[%s1617 + $0x20] sm:$0xf]
        %v1627 = vld [vmem:[%s1617 + $0x24] sm:$0xf]
        %v1628 = vld [vmem:[%s1617 + $0x28] sm:$0xf]
        %v1629 = vld [vmem:[%s1617 + $0x2c] sm:$0xf]
        %v1630 = vld [vmem:[%s1617 + $0x30] sm:$0xf]
        %v1631 = vld [vmem:[%s1617 + $0x34] sm:$0xf]
        %v1632 = vld [vmem:[%s1617 + $0x38] sm:$0xf]
        %v1633 = vld [vmem:[%s1617 + $0x3c] sm:$0xf]
        %v1642 = vunpack.c.l.b16 %v1609
        %v1643 = vunpack.c.l.b16 %v1610
        %v1644 = vunpack.c.l.b16 %v1611
        %v1645 = vunpack.c.l.b16 %v1612
        %v1646 = vunpack.c.l.b16 %v1613
        %v1647 = vunpack.c.l.b16 %v1614
        %v1648 = vunpack.c.l.b16 %v1615
        %v1649 = vunpack.c.l.b16 %v1616
        %v1650 = vpack.c.b16 %v1643, %v1642
        %v1651 = vpack.c.b16 %v1645, %v1644
        %v1652 = vpack.c.b16 %v1647, %v1646
        %v1653 = vpack.c.b16 %v1649, %v1648
        %v1674 = vunpack.c.l.b16 %v1618
        %v1675 = vunpack.c.l.b16 %v1619
        %v1676 = vunpack.c.l.b16 %v1620
        %v1677 = vunpack.c.l.b16 %v1621
        %v1678 = vunpack.c.l.b16 %v1622
        %v1679 = vunpack.c.l.b16 %v1623
        %v1680 = vunpack.c.l.b16 %v1624
        %v1681 = vunpack.c.l.b16 %v1625
        %v1682 = vunpack.c.l.b16 %v1626
        %v1683 = vunpack.c.l.b16 %v1627
        %v1684 = vunpack.c.l.b16 %v1628
        %v1685 = vunpack.c.l.b16 %v1629
        %v1686 = vunpack.c.l.b16 %v1630
        %v1687 = vunpack.c.l.b16 %v1631
        %v1688 = vunpack.c.l.b16 %v1632
        %v1689 = vunpack.c.l.b16 %v1633
        %v1690 = vpack.c.b16 %v1675, %v1674
        %v1691 = vpack.c.b16 %v1677, %v1676
        %v1692 = vpack.c.b16 %v1679, %v1678
        %v1693 = vpack.c.b16 %v1681, %v1680
        %v1694 = vpack.c.b16 %v1683, %v1682
        %v1695 = vpack.c.b16 %v1685, %v1684
        %v1696 = vpack.c.b16 %v1687, %v1686
        %v1697 = vpack.c.b16 %v1689, %v1688
        %1706 = vmatprep.subr.bf16.mxu0 0
        %1707 = vmatpush1.bf16.msra.mxu0 %v1697
        %1708 = vmatprep.subr.bf16.mxu0 0
        %1709 = vmatpush1.bf16.msra.mxu0 %v1696
        %1710 = vmatprep.subr.bf16.mxu0 0
        %1711 = vmatpush1.bf16.msra.mxu0 %v1695
        %1712 = vmatprep.subr.bf16.mxu0 0
        %1713 = vmatpush1.bf16.msra.mxu0 %v1694
        %1714 = vmatprep.subr.bf16.mxu0 0
        %1715 = vmatpush1.bf16.msra.mxu0 %v1693
        %1716 = vmatprep.subr.bf16.mxu0 0
        %1717 = vmatpush1.bf16.msra.mxu0 %v1692
        %1718 = vmatprep.subr.bf16.mxu0 0
        %1719 = vmatpush1.bf16.msra.mxu0 %v1691
        %1720 = vmatprep.subr.bf16.mxu0 0
        %1721 = vmatpush1.bf16.msra.mxu0 %v1690
        %1722 = vmatprep.subr.bf16.mxu0 0
        %1723 = vmatpush2.bf16.msra.mxu0 0
        %1724 = vmatprep.subr.bf16.mxu0 0
        %1725 = vmatpush2.bf16.msra.mxu0 0
        %1726 = vmatprep.subr.bf16.mxu0 0
        %1727 = vmatpush2.bf16.msra.mxu0 0
        %1728 = vmatprep.subr.bf16.mxu0 0
        %1729 = vmatpush2.bf16.msra.mxu0 0
        %1730 = vmatprep.subr.bf16.mxu0 0
        %1731 = vmatpush2.bf16.msra.mxu0 0
        %1732 = vmatprep.subr.bf16.mxu0 0
        %1733 = vmatpush2.bf16.msra.mxu0 0
        %1734 = vmatprep.subr.bf16.mxu0 0
        %1735 = vmatpush2.bf16.msra.mxu0 0
        %1736 = vmatprep.subr.bf16.mxu0 0
        %1737 = vmatpush2.bf16.msra.mxu0 0
        %1738 = vmatprep.mubr.bf16.mxu0 0
        %1739 = vmatmul.mubr.bf16.gmra.mxu0 %v1650
        %v1740 = vpop.f32.mrf.mxu0
        %v1741 = vadd.f32 0.0, %v1740
        %v1742 = vpop.f32.mrf.mxu0
        %v1743 = vpop.f32.mrf.mxu0
        %v1744 = vadd.f32 0.0, %v1743
        %v1745 = vpop.f32.mrf.mxu0
        %1746 = vmatprep.mubr.bf16.mxu0 0
        %1747 = vmatmul.mubr.bf16.gmra.mxu0 %v1651
        %v1748 = vpop.f32.mrf.mxu0
        %v1749 = vadd.f32 0.0, %v1748
        %v1750 = vpop.f32.mrf.mxu0
        %v1751 = vpop.f32.mrf.mxu0
        %v1752 = vadd.f32 0.0, %v1751
        %v1753 = vpop.f32.mrf.mxu0
        %1754 = vmatprep.mubr.bf16.mxu0 0
        %1755 = vmatmul.mubr.bf16.gmra.mxu0 %v1652
        %v1756 = vpop.f32.mrf.mxu0
        %v1757 = vadd.f32 0.0, %v1756
        %v1758 = vpop.f32.mrf.mxu0
        %v1759 = vpop.f32.mrf.mxu0
        %v1760 = vadd.f32 0.0, %v1759
        %v1761 = vpop.f32.mrf.mxu0
        %1762 = vmatprep.mubr.bf16.mxu0 0
        %1763 = vmatmul.mubr.bf16.gmra.mxu0 %v1653
        %v1764 = vpop.f32.mrf.mxu0
        %v1765 = vadd.f32 0.0, %v1764
        %v1766 = vpop.f32.mrf.mxu0
        %v1767 = vpop.f32.mrf.mxu0
        %v1768 = vadd.f32 0.0, %v1767
        %v1769 = vpop.f32.mrf.mxu0
        %1770 = vdwg.mxu0
        %v1771 = vadd.f32 %v1579, %v1741
        %v1772 = vadd.f32 %v1582, %v1744
        %v1773 = vadd.f32 %v1587, %v1749
        %v1774 = vadd.f32 %v1590, %v1752
        %v1775 = vadd.f32 %v1595, %v1757
        %v1776 = vadd.f32 %v1598, %v1760
        %v1777 = vadd.f32 %v1603, %v1765
        %v1778 = vadd.f32 %v1606, %v1768
        %v1779 = vld [vmem:[%s848] sm:$0xf]
        %v1780 = vld [vmem:[%s848 + $0x4] sm:$0x1]
        %v1781 = vld [vmem:[%s848 + $0x8] sm:$0xf]
        %v1782 = vld [vmem:[%s848 + $0xc] sm:$0x1]
        %v1783 = vld [vmem:[%s848 + $0x10] sm:$0xf]
        %v1784 = vld [vmem:[%s848 + $0x14] sm:$0x1]
        %v1785 = vld [vmem:[%s848 + $0x18] sm:$0xf]
        %v1786 = vld [vmem:[%s848 + $0x1c] sm:$0x1]
        %v1787 = vld [vmem:[%s848 + $0x20] sm:$0xf]
        %v1788 = vld [vmem:[%s848 + $0x24] sm:$0x1]
        %v1789 = vld [vmem:[%s848 + $0x28] sm:$0xf]
        %v1790 = vld [vmem:[%s848 + $0x2c] sm:$0x1]
        %v1791 = vld [vmem:[%s848 + $0x30] sm:$0xf]
        %v1792 = vld [vmem:[%s848 + $0x34] sm:$0x1]
        %v1793 = vld [vmem:[%s848 + $0x38] sm:$0xf]
        %v1794 = vld [vmem:[%s848 + $0x3c] sm:$0x1]
        %v1796 = vshrl.u32 %v1779, 16
        %v1798 = vrot.slane %v1796, 4
        %v1799 = vshll.u32 %v1779, 16
        %v1801 = vrot.slane %v1799, 5
        %v1802 = vor.u32 %v1798, %v1801
        %v1803 = vrot.slane %v1802, 4
        %v1805 = vshll.u32 %v1780, 16
        %v1807 = vrot.slane %v1805, 5
        %v1808 = vsel %vm394, %v1803, %v1807
        %v1810 = vshrl.u32 %v1781, 16
        %v1812 = vrot.slane %v1810, 4
        %v1813 = vshll.u32 %v1781, 16
        %v1815 = vrot.slane %v1813, 5
        %v1816 = vor.u32 %v1812, %v1815
        %v1817 = vrot.slane %v1816, 4
        %v1819 = vshll.u32 %v1782, 16
        %v1821 = vrot.slane %v1819, 5
        %v1822 = vsel %vm394, %v1817, %v1821
        %v1824 = vshrl.u32 %v1783, 16
        %v1826 = vrot.slane %v1824, 4
        %v1827 = vshll.u32 %v1783, 16
        %v1829 = vrot.slane %v1827, 5
        %v1830 = vor.u32 %v1826, %v1829
        %v1831 = vrot.slane %v1830, 4
        %v1833 = vshll.u32 %v1784, 16
        %v1835 = vrot.slane %v1833, 5
        %v1836 = vsel %vm394, %v1831, %v1835
        %v1838 = vshrl.u32 %v1785, 16
        %v1840 = vrot.slane %v1838, 4
        %v1841 = vshll.u32 %v1785, 16
        %v1843 = vrot.slane %v1841, 5
        %v1844 = vor.u32 %v1840, %v1843
        %v1845 = vrot.slane %v1844, 4
        %v1847 = vshll.u32 %v1786, 16
        %v1849 = vrot.slane %v1847, 5
        %v1850 = vsel %vm394, %v1845, %v1849
        %v1852 = vshrl.u32 %v1787, 16
        %v1854 = vrot.slane %v1852, 4
        %v1855 = vshll.u32 %v1787, 16
        %v1857 = vrot.slane %v1855, 5
        %v1858 = vor.u32 %v1854, %v1857
        %v1859 = vrot.slane %v1858, 4
        %v1861 = vshll.u32 %v1788, 16
        %v1863 = vrot.slane %v1861, 5
        %v1864 = vsel %vm394, %v1859, %v1863
        %v1866 = vshrl.u32 %v1789, 16
        %v1868 = vrot.slane %v1866, 4
        %v1869 = vshll.u32 %v1789, 16
        %v1871 = vrot.slane %v1869, 5
        %v1872 = vor.u32 %v1868, %v1871
        %v1873 = vrot.slane %v1872, 4
        %v1875 = vshll.u32 %v1790, 16
        %v1877 = vrot.slane %v1875, 5
        %v1878 = vsel %vm394, %v1873, %v1877
        %v1880 = vshrl.u32 %v1791, 16
        %v1882 = vrot.slane %v1880, 4
        %v1883 = vshll.u32 %v1791, 16
        %v1885 = vrot.slane %v1883, 5
        %v1886 = vor.u32 %v1882, %v1885
        %v1887 = vrot.slane %v1886, 4
        %v1889 = vshll.u32 %v1792, 16
        %v1891 = vrot.slane %v1889, 5
        %v1892 = vsel %vm394, %v1887, %v1891
        %v1894 = vshrl.u32 %v1793, 16
        %v1896 = vrot.slane %v1894, 4
        %v1897 = vshll.u32 %v1793, 16
        %v1899 = vrot.slane %v1897, 5
        %v1900 = vor.u32 %v1896, %v1899
        %v1901 = vrot.slane %v1900, 4
        %v1903 = vshll.u32 %v1794, 16
        %v1905 = vrot.slane %v1903, 5
        %v1906 = vsel %vm394, %v1901, %v1905
        %s1907 = scalar_lea.vmem %s1, 512
        %v1908 = vld [vmem:[%s1907] sm:$0xf]
        %v1909 = vld [vmem:[%s1907 + $0x4] sm:$0xf]
        %v1910 = vld [vmem:[%s1907 + $0x8] sm:$0xf]
        %v1911 = vld [vmem:[%s1907 + $0xc] sm:$0xf]
        %v1912 = vld [vmem:[%s1907 + $0x10] sm:$0xf]
        %v1913 = vld [vmem:[%s1907 + $0x14] sm:$0xf]
        %v1914 = vld [vmem:[%s1907 + $0x18] sm:$0xf]
        %v1915 = vld [vmem:[%s1907 + $0x1c] sm:$0xf]
        %v1916 = vld [vmem:[%s1907 + $0x20] sm:$0xf]
        %v1917 = vld [vmem:[%s1907 + $0x24] sm:$0xf]
        %v1918 = vld [vmem:[%s1907 + $0x28] sm:$0xf]
        %v1919 = vld [vmem:[%s1907 + $0x2c] sm:$0xf]
        %v1920 = vld [vmem:[%s1907 + $0x30] sm:$0xf]
        %v1921 = vld [vmem:[%s1907 + $0x34] sm:$0xf]
        %v1922 = vld [vmem:[%s1907 + $0x38] sm:$0xf]
        %v1923 = vld [vmem:[%s1907 + $0x3c] sm:$0xf]
        %v1924 = vunpack.c.l.b16 %v1808
        %v1925 = vunpack.c.l.b16 %v1822
        %v1926 = vunpack.c.l.b16 %v1836
        %v1927 = vunpack.c.l.b16 %v1850
        %v1928 = vunpack.c.l.b16 %v1864
        %v1929 = vunpack.c.l.b16 %v1878
        %v1930 = vunpack.c.l.b16 %v1892
        %v1931 = vunpack.c.l.b16 %v1906
        %v1932 = vpack.c.b16 %v1925, %v1924
        %v1933 = vpack.c.b16 %v1927, %v1926
        %v1934 = vpack.c.b16 %v1929, %v1928
        %v1935 = vpack.c.b16 %v1931, %v1930
        %v1956 = vunpack.c.l.b16 %v1908
        %v1957 = vunpack.c.l.b16 %v1909
        %v1958 = vunpack.c.l.b16 %v1910
        %v1959 = vunpack.c.l.b16 %v1911
        %v1960 = vunpack.c.l.b16 %v1912
        %v1961 = vunpack.c.l.b16 %v1913
        %v1962 = vunpack.c.l.b16 %v1914
        %v1963 = vunpack.c.l.b16 %v1915
        %v1964 = vunpack.c.l.b16 %v1916
        %v1965 = vunpack.c.l.b16 %v1917
        %v1966 = vunpack.c.l.b16 %v1918
        %v1967 = vunpack.c.l.b16 %v1919
        %v1968 = vunpack.c.l.b16 %v1920
        %v1969 = vunpack.c.l.b16 %v1921
        %v1970 = vunpack.c.l.b16 %v1922
        %v1971 = vunpack.c.l.b16 %v1923
        %v1972 = vpack.c.b16 %v1957, %v1956
        %v1973 = vpack.c.b16 %v1959, %v1958
        %v1974 = vpack.c.b16 %v1961, %v1960
        %v1975 = vpack.c.b16 %v1963, %v1962
        %v1976 = vpack.c.b16 %v1965, %v1964
        %v1977 = vpack.c.b16 %v1967, %v1966
        %v1978 = vpack.c.b16 %v1969, %v1968
        %v1979 = vpack.c.b16 %v1971, %v1970
        %1988 = vmatprep.subr.bf16.mxu0 0
        %1989 = vmatpush1.bf16.msra.mxu0 %v1979
        %1990 = vmatprep.subr.bf16.mxu0 0
        %1991 = vmatpush1.bf16.msra.mxu0 %v1978
        %1992 = vmatprep.subr.bf16.mxu0 0
        %1993 = vmatpush1.bf16.msra.mxu0 %v1977
        %1994 = vmatprep.subr.bf16.mxu0 0
        %1995 = vmatpush1.bf16.msra.mxu0 %v1976
        %1996 = vmatprep.subr.bf16.mxu0 0
        %1997 = vmatpush1.bf16.msra.mxu0 %v1975
        %1998 = vmatprep.subr.bf16.mxu0 0
        %1999 = vmatpush1.bf16.msra.mxu0 %v1974
        %2000 = vmatprep.subr.bf16.mxu0 0
        %2001 = vmatpush1.bf16.msra.mxu0 %v1973
        %2002 = vmatprep.subr.bf16.mxu0 0
        %2003 = vmatpush1.bf16.msra.mxu0 %v1972
        %2004 = vmatprep.subr.bf16.mxu0 0
        %2005 = vmatpush2.bf16.msra.mxu0 0
        %2006 = vmatprep.subr.bf16.mxu0 0
        %2007 = vmatpush2.bf16.msra.mxu0 0
        %2008 = vmatprep.subr.bf16.mxu0 0
        %2009 = vmatpush2.bf16.msra.mxu0 0
        %2010 = vmatprep.subr.bf16.mxu0 0
        %2011 = vmatpush2.bf16.msra.mxu0 0
        %2012 = vmatprep.subr.bf16.mxu0 0
        %2013 = vmatpush2.bf16.msra.mxu0 0
        %2014 = vmatprep.subr.bf16.mxu0 0
        %2015 = vmatpush2.bf16.msra.mxu0 0
        %2016 = vmatprep.subr.bf16.mxu0 0
        %2017 = vmatpush2.bf16.msra.mxu0 0
        %2018 = vmatprep.subr.bf16.mxu0 0
        %2019 = vmatpush2.bf16.msra.mxu0 0
        %2020 = vmatprep.mubr.bf16.mxu0 0
        %2021 = vmatmul.mubr.bf16.gmra.mxu0 %v1932
        %v2022 = vpop.f32.mrf.mxu0
        %v2023 = vadd.f32 0.0, %v2022
        %v2024 = vpop.f32.mrf.mxu0
        %v2025 = vpop.f32.mrf.mxu0
        %v2026 = vadd.f32 0.0, %v2025
        %v2027 = vpop.f32.mrf.mxu0
        %2028 = vmatprep.mubr.bf16.mxu0 0
        %2029 = vmatmul.mubr.bf16.gmra.mxu0 %v1933
        %v2030 = vpop.f32.mrf.mxu0
        %v2031 = vadd.f32 0.0, %v2030
        %v2032 = vpop.f32.mrf.mxu0
        %v2033 = vpop.f32.mrf.mxu0
        %v2034 = vadd.f32 0.0, %v2033
        %v2035 = vpop.f32.mrf.mxu0
        %2036 = vmatprep.mubr.bf16.mxu0 0
        %2037 = vmatmul.mubr.bf16.gmra.mxu0 %v1934
        %v2038 = vpop.f32.mrf.mxu0
        %v2039 = vadd.f32 0.0, %v2038
        %v2040 = vpop.f32.mrf.mxu0
        %v2041 = vpop.f32.mrf.mxu0
        %v2042 = vadd.f32 0.0, %v2041
        %v2043 = vpop.f32.mrf.mxu0
        %2044 = vmatprep.mubr.bf16.mxu0 0
        %2045 = vmatmul.mubr.bf16.gmra.mxu0 %v1935
        %v2046 = vpop.f32.mrf.mxu0
        %v2047 = vadd.f32 0.0, %v2046
        %v2048 = vpop.f32.mrf.mxu0
        %v2049 = vpop.f32.mrf.mxu0
        %v2050 = vadd.f32 0.0, %v2049
        %v2051 = vpop.f32.mrf.mxu0
        %2052 = vdwg.mxu0
        %v2053 = vadd.f32 %v1771, %v2023
        %v2054 = vadd.f32 %v1772, %v2026
        %v2055 = vadd.f32 %v1773, %v2031
        %v2056 = vadd.f32 %v1774, %v2034
        %v2057 = vadd.f32 %v1775, %v2039
        %v2058 = vadd.f32 %v1776, %v2042
        %v2059 = vadd.f32 %v1777, %v2047
        %v2060 = vadd.f32 %v1778, %v2050
        %v2061 = vadd.f32 %v2053, %v195
        %v2062 = vadd.f32 %v2054, %v195
        %v2063 = vadd.f32 %v2055, %v195
        %v2064 = vadd.f32 %v2056, %v195
        %v2065 = vadd.f32 %v2057, %v195
        %v2066 = vadd.f32 %v2058, %v195
        %v2067 = vadd.f32 %v2059, %v195
        %v2068 = vadd.f32 %v2060, %v195
        %v2069 = vmax.f32 %v2061, 0.0
        %v2070 = vmax.f32 %v2062, 0.0
        %v2071 = vmax.f32 %v2063, 0.0
        %v2072 = vmax.f32 %v2064, 0.0
        %v2073 = vmax.f32 %v2065, 0.0
        %v2074 = vmax.f32 %v2066, 0.0
        %v2075 = vmax.f32 %v2067, 0.0
        %v2076 = vmax.f32 %v2068, 0.0
        %v2077 = vpack.c.bf16 %v2069, %v2069
        %v2078 = vpack.c.bf16 %v2070, %v2070
        %v2079 = vpack.c.bf16 %v2071, %v2071
        %v2080 = vpack.c.bf16 %v2072, %v2072
        %v2081 = vpack.c.bf16 %v2073, %v2073
        %v2082 = vpack.c.bf16 %v2074, %v2074
        %v2083 = vpack.c.bf16 %v2075, %v2075
        %v2084 = vpack.c.bf16 %v2076, %v2076
        %s2085 = scalar_lea.vmem %s159, 96 [#allocation2]
        %2086 = vst.msk [vmem:[%s2085] sm:$0xf] %vm350, %v2077
        %2087 = vst.msk [vmem:[%s2085 + $0x4] sm:$0xf] %vm350, %v2078
        %2088 = vst.msk [vmem:[%s2085 + $0x8] sm:$0xf] %vm350, %v2079
        %2089 = vst.msk [vmem:[%s2085 + $0xc] sm:$0xf] %vm350, %v2080
        %2090 = vst.msk [vmem:[%s2085 + $0x10] sm:$0xf] %vm350, %v2081
        %2091 = vst.msk [vmem:[%s2085 + $0x14] sm:$0xf] %vm350, %v2082
        %2092 = vst.msk [vmem:[%s2085 + $0x18] sm:$0xf] %vm350, %v2083
        %2093 = vst.msk [vmem:[%s2085 + $0x1c] sm:$0xf] %vm350, %v2084
        %s2094 = sand.u32 %s90, 1
        %s2095 = sand.u32 %s90, 1
        %s2096 = smul.addr %s2095, 128
        %s2097 = scalar_lea.vmem [#allocation2], %s2096
        // Predicated region
        $region33: #{autoencoder_forward.15} parent=31 // pred_check
          %p2098 = pneg %p100
        $region34: #{autoencoder_forward.15} parent=31 // pred_check_branch
          %2100 = sbr.rel (%p2098) target = $region36
        $region35: #{autoencoder_forward.15} parent=31 // pred_region
          %s2101 = smul.addr %s14, 8
          %s2102 = smul.addr %s2101, 4
          %s2103 = scalar_lea.vmem %s3, %s2102
          // Predicated region
          $region37: #{autoencoder_forward.15} parent=35 // pred_check
            _
          $region38: #{autoencoder_forward.15} parent=35 // pred_check_branch
            %2105 = sbr.rel (0) target = $region40
          $region39: #{autoencoder_forward.15} parent=35 // pred_region
            // Predicated region
            $region41: #{autoencoder_forward.15} parent=39 // pred_check
              _
            $region42: #{autoencoder_forward.15} parent=39 // pred_check_branch
              %2107 = sbr.rel target = $region44
            $region43: #{autoencoder_forward.15} parent=39 // pred_region
              // Predicated region
              $region56: #{autoencoder_forward.15} parent=43 // pred_check
                _
              $region57: #{autoencoder_forward.15} parent=43 // pred_check_branch
                %2185 = sbr.rel (0) target = $region59
              $region58: #{autoencoder_forward.15} parent=43 // pred_region
                loop: start=0, step=1, limit=1
                $region60: #{autoencoder_forward.15} parent=58 // loop_pre_header
                  _
                $region61: #{autoencoder_forward.15} parent=58 // loop_header
                  %s2187 = sphi 0, %s2191
                  %p2188 = scmp.ge.s32.totalorder %s2187, 1
                  %s2192 = sphi %s2097, %s2097
                  %s2193 = sphi %s2103, %s2103
                $region62: #{autoencoder_forward.15} parent=58 // loop_header_branch
                  %2190 = sbr.rel (%p2188) target = $region66
                $region63: #{autoencoder_forward.15} parent=58 // loop_body
                  _
                $region64: #{autoencoder_forward.15} parent=58 // loop_footer
                  %s2191 = sadd.s32 1, %s2187
                $region65: #{autoencoder_forward.15} parent=58 // loop_footer_branch
                  %2186 = sbr.rel target = $region61
                $region66: #{autoencoder_forward.15} parent=58 // loop_exit
                  _
                %s2195 = ssub.s32 16, 1
                loop: start=0, step=1, limit=1
                $region67: #{autoencoder_forward.15} parent=58 // loop_pre_header
                  _
                $region68: #{autoencoder_forward.15} parent=58 // loop_header
                  %s2197 = sphi 0, %s2201
                  %p2198 = scmp.ge.s32.totalorder %s2197, 1
                  %s2202 = sphi %s2097, %s2097
                  %s2203 = sphi %s2103, %s2103
                $region69: #{autoencoder_forward.15} parent=58 // loop_header_branch
                  %2200 = sbr.rel (%p2198) target = $region73
                $region70: #{autoencoder_forward.15} parent=58 // loop_body
                  %v2204 = vld [vmem:[%s2202] sm:%s2195]
                  %2205 = vst [vmem:[%s2203] sm:%s2195] %v2204
                  %v2206 = vld [vmem:[%s2202 + $0x4] sm:%s2195]
                  %2207 = vst [vmem:[%s2203 + $0x4] sm:%s2195] %v2206
                  %v2208 = vld [vmem:[%s2202 + $0x8] sm:%s2195]
                  %2209 = vst [vmem:[%s2203 + $0x8] sm:%s2195] %v2208
                  %v2210 = vld [vmem:[%s2202 + $0xc] sm:%s2195]
                  %2211 = vst [vmem:[%s2203 + $0xc] sm:%s2195] %v2210
                  %v2212 = vld [vmem:[%s2202 + $0x10] sm:%s2195]
                  %2213 = vst [vmem:[%s2203 + $0x10] sm:%s2195] %v2212
                  %v2214 = vld [vmem:[%s2202 + $0x14] sm:%s2195]
                  %2215 = vst [vmem:[%s2203 + $0x14] sm:%s2195] %v2214
                  %v2216 = vld [vmem:[%s2202 + $0x18] sm:%s2195]
                  %2217 = vst [vmem:[%s2203 + $0x18] sm:%s2195] %v2216
                  %v2218 = vld [vmem:[%s2202 + $0x1c] sm:%s2195]
                  %2219 = vst [vmem:[%s2203 + $0x1c] sm:%s2195] %v2218
                  %v2220 = vld [vmem:[%s2202 + $0x20] sm:%s2195]
                  %2221 = vst [vmem:[%s2203 + $0x40] sm:%s2195] %v2220
                  %v2222 = vld [vmem:[%s2202 + $0x24] sm:%s2195]
                  %2223 = vst [vmem:[%s2203 + $0x44] sm:%s2195] %v2222
                  %v2224 = vld [vmem:[%s2202 + $0x28] sm:%s2195]
                  %2225 = vst [vmem:[%s2203 + $0x48] sm:%s2195] %v2224
                  %v2226 = vld [vmem:[%s2202 + $0x2c] sm:%s2195]
                  %2227 = vst [vmem:[%s2203 + $0x4c] sm:%s2195] %v2226
                  %v2228 = vld [vmem:[%s2202 + $0x30] sm:%s2195]
                  %2229 = vst [vmem:[%s2203 + $0x50] sm:%s2195] %v2228
                  %v2230 = vld [vmem:[%s2202 + $0x34] sm:%s2195]
                  %2231 = vst [vmem:[%s2203 + $0x54] sm:%s2195] %v2230
                  %v2232 = vld [vmem:[%s2202 + $0x38] sm:%s2195]
                  %2233 = vst [vmem:[%s2203 + $0x58] sm:%s2195] %v2232
                  %v2234 = vld [vmem:[%s2202 + $0x3c] sm:%s2195]
                  %2235 = vst [vmem:[%s2203 + $0x5c] sm:%s2195] %v2234
                  %v2236 = vld [vmem:[%s2202 + $0x40] sm:%s2195]
                  %2237 = vst [vmem:[%s2203 + $0x80] sm:%s2195] %v2236
                  %v2238 = vld [vmem:[%s2202 + $0x44] sm:%s2195]
                  %2239 = vst [vmem:[%s2203 + $0x84] sm:%s2195] %v2238
                  %v2240 = vld [vmem:[%s2202 + $0x48] sm:%s2195]
                  %2241 = vst [vmem:[%s2203 + $0x88] sm:%s2195] %v2240
                  %v2242 = vld [vmem:[%s2202 + $0x4c] sm:%s2195]
                  %2243 = vst [vmem:[%s2203 + $0x8c] sm:%s2195] %v2242
                  %v2244 = vld [vmem:[%s2202 + $0x50] sm:%s2195]
                  %2245 = vst [vmem:[%s2203 + $0x90] sm:%s2195] %v2244
                  %v2246 = vld [vmem:[%s2202 + $0x54] sm:%s2195]
                  %2247 = vst [vmem:[%s2203 + $0x94] sm:%s2195] %v2246
                  %v2248 = vld [vmem:[%s2202 + $0x58] sm:%s2195]
                  %2249 = vst [vmem:[%s2203 + $0x98] sm:%s2195] %v2248
                  %v2250 = vld [vmem:[%s2202 + $0x5c] sm:%s2195]
                  %2251 = vst [vmem:[%s2203 + $0x9c] sm:%s2195] %v2250
                  %v2252 = vld [vmem:[%s2202 + $0x60] sm:%s2195]
                  %2253 = vst [vmem:[%s2203 + $0xc0] sm:%s2195] %v2252
                  %v2254 = vld [vmem:[%s2202 + $0x64] sm:%s2195]
                  %2255 = vst [vmem:[%s2203 + $0xc4] sm:%s2195] %v2254
                  %v2256 = vld [vmem:[%s2202 + $0x68] sm:%s2195]
                  %2257 = vst [vmem:[%s2203 + $0xc8] sm:%s2195] %v2256
                  %v2258 = vld [vmem:[%s2202 + $0x6c] sm:%s2195]
                  %2259 = vst [vmem:[%s2203 + $0xcc] sm:%s2195] %v2258
                  %v2260 = vld [vmem:[%s2202 + $0x70] sm:%s2195]
                  %2261 = vst [vmem:[%s2203 + $0xd0] sm:%s2195] %v2260
                  %v2262 = vld [vmem:[%s2202 + $0x74] sm:%s2195]
                  %2263 = vst [vmem:[%s2203 + $0xd4] sm:%s2195] %v2262
                  %v2264 = vld [vmem:[%s2202 + $0x78] sm:%s2195]
                  %2265 = vst [vmem:[%s2203 + $0xd8] sm:%s2195] %v2264
                  %v2266 = vld [vmem:[%s2202 + $0x7c] sm:%s2195]
                  %2267 = vst [vmem:[%s2203 + $0xdc] sm:%s2195] %v2266
                $region71: #{autoencoder_forward.15} parent=58 // loop_footer
                  %s2201 = sadd.s32 1, %s2197
                $region72: #{autoencoder_forward.15} parent=58 // loop_footer_branch
                  %2196 = sbr.rel target = $region68
                $region73: #{autoencoder_forward.15} parent=58 // loop_exit
                  _
              $region59: #{autoencoder_forward.15} parent=43 // pred_fallthru
                _
            $region44: #{autoencoder_forward.15} parent=39 // pred_fallthru
              _
            // Predicated region
            $region45: #{autoencoder_forward.15} parent=39 // pred_check
              _
            $region46: #{autoencoder_forward.15} parent=39 // pred_check_branch
              %2109 = sbr.rel (0) target = $region48
            $region47: #{autoencoder_forward.15} parent=39 // pred_region
              %s2111 = ssub.s32 16, 1
              loop: start=0, step=1, limit=1
              $region49: #{autoencoder_forward.15} parent=47 // loop_pre_header
                _
              $region50: #{autoencoder_forward.15} parent=47 // loop_header
                %s2113 = sphi 0, %s2117
                %p2114 = scmp.ge.s32.totalorder %s2113, 1
                %s2118 = sphi %s2097, %s2097
                %s2119 = sphi %s2103, %s2103
              $region51: #{autoencoder_forward.15} parent=47 // loop_header_branch
                %2116 = sbr.rel (%p2114) target = $region55
              $region52: #{autoencoder_forward.15} parent=47 // loop_body
                %v2120 = vld [vmem:[%s2118] sm:%s2111]
                %2121 = vst [vmem:[%s2119] sm:%s2111] %v2120
                %v2122 = vld [vmem:[%s2118 + $0x4] sm:%s2111]
                %2123 = vst [vmem:[%s2119 + $0x4] sm:%s2111] %v2122
                %v2124 = vld [vmem:[%s2118 + $0x8] sm:%s2111]
                %2125 = vst [vmem:[%s2119 + $0x8] sm:%s2111] %v2124
                %v2126 = vld [vmem:[%s2118 + $0xc] sm:%s2111]
                %2127 = vst [vmem:[%s2119 + $0xc] sm:%s2111] %v2126
                %v2128 = vld [vmem:[%s2118 + $0x10] sm:%s2111]
                %2129 = vst [vmem:[%s2119 + $0x10] sm:%s2111] %v2128
                %v2130 = vld [vmem:[%s2118 + $0x14] sm:%s2111]
                %2131 = vst [vmem:[%s2119 + $0x14] sm:%s2111] %v2130
                %v2132 = vld [vmem:[%s2118 + $0x18] sm:%s2111]
                %2133 = vst [vmem:[%s2119 + $0x18] sm:%s2111] %v2132
                %v2134 = vld [vmem:[%s2118 + $0x1c] sm:%s2111]
                %2135 = vst [vmem:[%s2119 + $0x1c] sm:%s2111] %v2134
                %v2136 = vld [vmem:[%s2118 + $0x20] sm:%s2111]
                %2137 = vst [vmem:[%s2119 + $0x40] sm:%s2111] %v2136
                %v2138 = vld [vmem:[%s2118 + $0x24] sm:%s2111]
                %2139 = vst [vmem:[%s2119 + $0x44] sm:%s2111] %v2138
                %v2140 = vld [vmem:[%s2118 + $0x28] sm:%s2111]
                %2141 = vst [vmem:[%s2119 + $0x48] sm:%s2111] %v2140
                %v2142 = vld [vmem:[%s2118 + $0x2c] sm:%s2111]
                %2143 = vst [vmem:[%s2119 + $0x4c] sm:%s2111] %v2142
                %v2144 = vld [vmem:[%s2118 + $0x30] sm:%s2111]
                %2145 = vst [vmem:[%s2119 + $0x50] sm:%s2111] %v2144
                %v2146 = vld [vmem:[%s2118 + $0x34] sm:%s2111]
                %2147 = vst [vmem:[%s2119 + $0x54] sm:%s2111] %v2146
                %v2148 = vld [vmem:[%s2118 + $0x38] sm:%s2111]
                %2149 = vst [vmem:[%s2119 + $0x58] sm:%s2111] %v2148
                %v2150 = vld [vmem:[%s2118 + $0x3c] sm:%s2111]
                %2151 = vst [vmem:[%s2119 + $0x5c] sm:%s2111] %v2150
                %v2152 = vld [vmem:[%s2118 + $0x40] sm:%s2111]
                %2153 = vst [vmem:[%s2119 + $0x80] sm:%s2111] %v2152
                %v2154 = vld [vmem:[%s2118 + $0x44] sm:%s2111]
                %2155 = vst [vmem:[%s2119 + $0x84] sm:%s2111] %v2154
                %v2156 = vld [vmem:[%s2118 + $0x48] sm:%s2111]
                %2157 = vst [vmem:[%s2119 + $0x88] sm:%s2111] %v2156
                %v2158 = vld [vmem:[%s2118 + $0x4c] sm:%s2111]
                %2159 = vst [vmem:[%s2119 + $0x8c] sm:%s2111] %v2158
                %v2160 = vld [vmem:[%s2118 + $0x50] sm:%s2111]
                %2161 = vst [vmem:[%s2119 + $0x90] sm:%s2111] %v2160
                %v2162 = vld [vmem:[%s2118 + $0x54] sm:%s2111]
                %2163 = vst [vmem:[%s2119 + $0x94] sm:%s2111] %v2162
                %v2164 = vld [vmem:[%s2118 + $0x58] sm:%s2111]
                %2165 = vst [vmem:[%s2119 + $0x98] sm:%s2111] %v2164
                %v2166 = vld [vmem:[%s2118 + $0x5c] sm:%s2111]
                %2167 = vst [vmem:[%s2119 + $0x9c] sm:%s2111] %v2166
                %v2168 = vld [vmem:[%s2118 + $0x60] sm:%s2111]
                %2169 = vst [vmem:[%s2119 + $0xc0] sm:%s2111] %v2168
                %v2170 = vld [vmem:[%s2118 + $0x64] sm:%s2111]
                %2171 = vst [vmem:[%s2119 + $0xc4] sm:%s2111] %v2170
                %v2172 = vld [vmem:[%s2118 + $0x68] sm:%s2111]
                %2173 = vst [vmem:[%s2119 + $0xc8] sm:%s2111] %v2172
                %v2174 = vld [vmem:[%s2118 + $0x6c] sm:%s2111]
                %2175 = vst [vmem:[%s2119 + $0xcc] sm:%s2111] %v2174
                %v2176 = vld [vmem:[%s2118 + $0x70] sm:%s2111]
                %2177 = vst [vmem:[%s2119 + $0xd0] sm:%s2111] %v2176
                %v2178 = vld [vmem:[%s2118 + $0x74] sm:%s2111]
                %2179 = vst [vmem:[%s2119 + $0xd4] sm:%s2111] %v2178
                %v2180 = vld [vmem:[%s2118 + $0x78] sm:%s2111]
                %2181 = vst [vmem:[%s2119 + $0xd8] sm:%s2111] %v2180
                %v2182 = vld [vmem:[%s2118 + $0x7c] sm:%s2111]
                %2183 = vst [vmem:[%s2119 + $0xdc] sm:%s2111] %v2182
              $region53: #{autoencoder_forward.15} parent=47 // loop_footer
                %s2117 = sadd.s32 1, %s2113
              $region54: #{autoencoder_forward.15} parent=47 // loop_footer_branch
                %2112 = sbr.rel target = $region50
              $region55: #{autoencoder_forward.15} parent=47 // loop_exit
                _
            $region48: #{autoencoder_forward.15} parent=39 // pred_fallthru
              _
          $region40: #{autoencoder_forward.15} parent=35 // pred_fallthru
            _
          %2268 = vnop
        $region36: #{autoencoder_forward.15} parent=31 // pred_fallthru
          _
      $region32: #{autoencoder_forward.15} parent=5 // pred_fallthru
        _
      %p2269 = scmp.le.s32.totalorder 2, %s9
      // Predicated region
      $region74: #{autoencoder_forward.15} parent=5 // pred_check
        %p2270 = pneg %p2269
      $region75: #{autoencoder_forward.15} parent=5 // pred_check_branch
        %2272 = sbr.rel (%p2270) target = $region77
      $region76: #{autoencoder_forward.15} parent=5 // pred_region
        %s2273 = ssub.s32 %s9, 2
        // Predicated region
        $region78: #{autoencoder_forward.15} parent=76 // pred_check
          %p2274 = pneg %p106
        $region79: #{autoencoder_forward.15} parent=76 // pred_check_branch
          %2276 = sbr.rel (%p2274) target = $region81
        $region80: #{autoencoder_forward.15} parent=76 // pred_region
          %s2277 = sand.u32 %s91, 1
          %s2278 = sand.u32 %s91, 1
          %s2279 = smul.addr %s2278, 128
          %s2280 = scalar_lea.vmem [#allocation2], %s2279
        $region81: #{autoencoder_forward.15} parent=76 // pred_fallthru
          _
      $region77: #{autoencoder_forward.15} parent=5 // pred_fallthru
        _
    $region6: #{autoencoder_forward.15} parent=1 // loop_footer
      %s13 = sadd.s32 1, %s9
    $region7: #{autoencoder_forward.15} parent=1 // loop_footer_branch
      %8 = sbr.rel target = $region3
    $region8: #{autoencoder_forward.15} parent=1 // loop_exit
      _

</llo_original>
